<compile_context>
chip_gen: v7x
topology: tpu7x:2x2x1
jax: 0.10.0
libtpu: 0.0.40
codegen_flags: <defaults>
</compile_context>

<pallas_src>
import functools
import math

import jax
import jax.numpy as jnp
from jax.experimental import pallas as pl
from jax.experimental.pallas import tpu as pltpu


def _round_up(x, m):
    return ((x + m - 1) // m) * m


def _pick_block(n, max_b=8):
    """Largest divisor of n that is <= max_b, preferring a grid of >= 2 steps (v7x 2 TCs)."""
    divs = [d for d in range(1, min(n, max_b) + 1) if n % d == 0]
    pref = [d for d in divs if n // d >= 2]
    return max(pref) if pref else max(divs)


# ------------------------------ fused whole-network kernel ------------------------------

def _vgg_fused_kernel(p1_ref, w1_ref, b1_ref,
                      w2_ref, b2_ref, w3_ref, b3_ref, w4_ref, b4_ref,
                      wh1_ref, bh1_ref, wh2_ref, bh2_ref, wh3_ref, bh3_ref,
                      o_ref, *, B, H0):
    f32 = jnp.float32
    bf16 = jnp.bfloat16

    def pool2x2(z, Bq, H, W, C):
        # z: (Bq*H*W, C) f32, rows ordered (b, h, w). 2x2 max pool, stride 2, on values.
        Ho, Wo = H // 2, W // 2
        zt = z.reshape(Bq, H, Wo, 2, C)
        z = jnp.maximum(zt[:, :, :, 0, :], zt[:, :, :, 1, :])        # pool along W
        zt = z.reshape(Bq, Ho, 2, Wo, C)
        z = jnp.maximum(zt[:, :, 0, :, :], zt[:, :, 1, :, :])        # pool along H
        return z                                                     # (Bq, Ho, Wo, C)

    def conv_relu_pool(a, w_ref, b_ref):
        # a: (Bq, H, W, Cin) f32 value. conv3x3 pad=1 as 9 shifted-slice matmuls
        # (in-VMEM im2col), + bias + ReLU + 2x2 maxpool. No HBM round trip.
        Bq, H, W, Cin = a.shape
        Cout = w_ref.shape[-1]
        zc = jnp.zeros((Bq, H, 1, Cin), f32)
        ap = jnp.concatenate([zc, a, zc], axis=2)                    # (Bq, H, W+2, Cin)
        zr = jnp.zeros((Bq, 1, W + 2, Cin), f32)
        ap = jnp.concatenate([zr, ap, zr], axis=1)                   # (Bq, H+2, W+2, Cin)
        acc = None
        for t in range(9):                                           # static unroll
            kh, kw = divmod(t, 3)
            lhs = ap[:, kh:kh + H, kw:kw + W, :].reshape(Bq * H * W, Cin).astype(bf16)
            d = jnp.dot(lhs, w_ref[t], preferred_element_type=f32)   # MXU, M = Bq*H*W
            acc = d if acc is None else acc + d
        z = jnp.maximum(acc + b_ref[...], 0.0)                       # (Bq*H*W, Cout) f32
        return pool2x2(z, Bq, H, W, Cout)

    # ---- stage 1: pre-packed im2col patches, one big matmul (M = B*H0*W0) ----
    HW, K1 = p1_ref.shape[1], p1_ref.shape[2]
    C1 = w1_ref.shape[1]
    p = p1_ref[...].reshape(B * HW, K1)                              # bf16, leading-dim merge
    z = jnp.dot(p, w1_ref[...], preferred_element_type=f32)
    z = jnp.maximum(z + b1_ref[...], 0.0)                            # (B*HW, C1) f32
    a = pool2x2(z, B, H0, H0, C1)                                    # (B, 8, 8, 64)

    # ---- stages 2-4: fully in-kernel conv + bias + ReLU + pool ----
    a = conv_relu_pool(a, w2_ref, b2_ref)                            # (B, 4, 4, 128)
    a = conv_relu_pool(a, w3_ref, b3_ref)                            # (B, 2, 2, 256)
    a = conv_relu_pool(a, w4_ref, b4_ref)                            # (B, 1, 1, 512)

    # ---- F.avg_pool2d(x, x.shape[3]): features are 1x1 spatial here -> identity ----
    Cf = a.shape[-1]
    feat = a.reshape(B, Cf)                                          # (B, 512) f32

    # ---- classifier: Linear -> ReLU -> Dropout -> Linear -> ReLU -> Dropout -> Linear ----
    # TODO(synk): nn.Dropout treated as identity (inference semantics).
    h = jnp.dot(feat.astype(bf16), wh1_ref[...], preferred_element_type=f32) + bh1_ref[...]
    h = jnp.maximum(h, 0.0)
    h = jnp.dot(h.astype(bf16), wh2_ref[...], preferred_element_type=f32) + bh2_ref[...]
    h = jnp.maximum(h, 0.0)
    logits = jnp.dot(h.astype(bf16), wh3_ref[...], preferred_element_type=f32) + bh3_ref[...]
    o_ref[0] = logits                                                # (B, 128) f32, lane-dense


def _vgg_fused_call(patches, packed, *, B, H0):
    (w1, b1, w2, b2, w3, b3, w4, b4, wh1, bh1, wh2, bh2, wh3, bh3) = packed
    N, HW, K1 = patches.shape
    assert N % B == 0
    G = N // B
    ncp = wh3.shape[1]                                               # lane-padded classes (128)

    def const_spec(arr):
        nd = arr.ndim
        # grid-invariant weights/biases: resident in VMEM, single-buffered.
        return pl.BlockSpec(arr.shape, lambda g, _nd=nd: (0,) * _nd,
                            pipeline_mode=pl.Buffered(1))

    consts = (w1, b1, w2, b2, w3, b3, w4, b4, wh1, bh1, wh2, bh2, wh3, bh3)
    kern = functools.partial(_vgg_fused_kernel, B=B, H0=H0)
    out = pl.pallas_call(
        kern,
        out_shape=jax.ShapeDtypeStruct((G, B, ncp), jnp.float32),
        grid=(G,),
        in_specs=[pl.BlockSpec((B, HW, K1), lambda g: (g, 0, 0))]
                + [const_spec(a) for a in consts],
        out_specs=pl.BlockSpec((1, B, ncp), lambda g: (g, 0, 0)),
        compiler_params=pltpu.CompilerParams(
            dimension_semantics=("parallel",),
            vmem_limit_bytes=32 * 1024 * 1024),                      # safe on v7x's 64 MiB
    )(patches, *consts)
    return out.reshape(N, ncp)


# ----------------------- XLA glue: im2col for the FIRST 3x3 conv only -----------------------

def _im2col_3x3(x_nhwc, k_pad):
    # x_nhwc: (N, H, W, C) bf16 -> (N, H*W, k_pad) bf16 patches (tiny: C=3 input only).
    N, H, W, C = x_nhwc.shape
    xp = jnp.pad(x_nhwc, ((0, 0), (1, 1), (1, 1), (0, 0)))
    cols = [xp[:, kh:kh + H, kw:kw + W, :] for kh in range(3) for kw in range(3)]
    p = jnp.concatenate(cols, axis=-1).reshape(N, H * W, 9 * C)
    if k_pad > 9 * C:
        p = jnp.pad(p, ((0, 0), (0, 0), (0, k_pad - 9 * C)))
    return p


# --------------------- parameter init (matches VGG._initialize_weights) ---------------------

def init_vgg_params(key, cfg, in_channels=3, num_classes=10):
    # Conv2d: N(0, sqrt(2/(k*k*out_channels))), bias 0.  Linear: N(0, 0.1), bias 0.
    feature_ops = []
    c = in_channels
    for v in cfg:
        if v == "M":
            feature_ops.append(("pool",))
        else:
            key, wk = jax.random.split(key)
            std = math.sqrt(2.0 / (3 * 3 * v))
            w = std * jax.random.normal(wk, (3, 3, c, v), jnp.float32)     # HWIO
            b = jnp.zeros((v,), jnp.float32)
            feature_ops.append(("conv", w, b))
            c = v
    dims = [c, 512, 512, num_classes]
    head_params = []
    for din, dout in zip(dims[:-1], dims[1:]):
        key, wk = jax.random.split(key)
        w = 0.1 * jax.random.normal(wk, (din, dout), jnp.float32)
        b = jnp.zeros((dout,), jnp.float32)
        head_params.append((w, b))
    return feature_ops, head_params


def pack_params(feature_ops, head_params, num_classes=10, out_pad=128):
    """Pack weights for the fused kernel (bf16 matmul operands, f32 biases)."""
    kinds = [op[0] for op in feature_ops]
    assert kinds == ["conv", "pool"] * 4, \
        "fused kernel expects cfg [64,'M',128,'M',256,'M',512,'M'] (conv always followed by 'M')"
    convs = [op for op in feature_ops if op[0] == "conv"]
    assert convs[-1][1].shape[3] == head_params[0][0].shape[0], "head expects 512 features"

    # Stage 1: im2col weight, contraction 9*Cin zero-padded to a multiple of 32.
    w0, bias0 = convs[0][1], convs[0][2]
    cin0, cout0 = w0.shape[2], w0.shape[3]
    k0 = 9 * cin0
    k0p = _round_up(k0, 32)
    w1 = jnp.pad(w0.reshape(k0, cout0), ((0, k0p - k0), (0, 0))).astype(jnp.bfloat16)
    b1 = bias0.reshape(1, cout0).astype(jnp.float32)

    def tapw(w):                                   # (3,3,Cin,Cout) -> (9,Cin,Cout) bf16
        return w.reshape(9, w.shape[2], w.shape[3]).astype(jnp.bfloat16)

    w2, b2 = tapw(convs[1][1]), convs[1][2].reshape(1, -1).astype(jnp.float32)
    w3, b3 = tapw(convs[2][1]), convs[2][2].reshape(1, -1).astype(jnp.float32)
    w4, b4 = tapw(convs[3][1]), convs[3][2].reshape(1, -1).astype(jnp.float32)

    (hw1, hb1), (hw2, hb2), (hw3, hb3) = head_params
    wh1 = hw1.astype(jnp.bfloat16); bh1 = hb1.reshape(1, -1).astype(jnp.float32)
    wh2 = hw2.astype(jnp.bfloat16); bh2 = hb2.reshape(1, -1).astype(jnp.float32)
    # Lane-pad the last Linear (num_classes -> 128) so the kernel's output store is lane-dense.
    wh3 = jnp.pad(hw3, ((0, 0), (0, out_pad - num_classes))).astype(jnp.bfloat16)
    bh3 = jnp.pad(hb3, (0, out_pad - num_classes)).reshape(1, out_pad).astype(jnp.float32)
    return (w1, b1, w2, b2, w3, b3, w4, b4, wh1, bh1, wh2, bh2, wh3, bh3)


# -------------------------------------- full forward --------------------------------------

def vgg_forward(x_nchw, packed, num_classes=10):
    N, C, H, W = x_nchw.shape
    assert H == 16 and W == 16, "this fused VGG kernel expects 16x16 inputs (4 pools -> 1x1)"
    B = _pick_block(N)                                               # batch block per grid step
    k1 = packed[0].shape[0]                                          # padded stage-1 contraction
    x = jnp.transpose(x_nchw, (0, 2, 3, 1)).astype(jnp.bfloat16)     # NCHW -> NHWC
    patches = _im2col_3x3(x, k1)                                     # (N, 256, k1) bf16
    logits_pad = _vgg_fused_call(patches, packed, B=B, H0=H)         # (N, 128) f32
    return logits_pad[:, :num_classes]


if __name__ == "__main__":
    key = jax.random.PRNGKey(0)
    k_params, k_x = jax.random.split(key)
    cfg = [64, "M", 128, "M", 256, "M", 512, "M"]                    # 16x16 -> 1x1x512 features
    feature_ops, head_params = init_vgg_params(k_params, cfg, in_channels=3, num_classes=10)
    packed = pack_params(feature_ops, head_params, num_classes=10)

    x = jax.random.normal(k_x, (2, 3, 16, 16), jnp.float32)          # NCHW like PyTorch

    fwd = jax.jit(lambda a: vgg_forward(a, packed, num_classes=10))
    out = jax.block_until_ready(fwd(x))

    assert out.shape == (2, 10), out.shape
    assert bool(jnp.all(jnp.isfinite(out)))
    print("KERNEL_OK")
</pallas_src>

<mosaic_0001>
module attributes {stable_mosaic.version = 11 : i64} {
  func.func @_vgg_fused_kernel(%arg0: i32, %arg1: memref<1x256x32xbf16, #tpu.memory_space<vmem>>, %arg2: memref<32x64xbf16, #tpu.memory_space<vmem>>, %arg3: memref<1x64xf32, #tpu.memory_space<vmem>>, %arg4: memref<9x64x128xbf16, #tpu.memory_space<vmem>>, %arg5: memref<1x128xf32, #tpu.memory_space<vmem>>, %arg6: memref<9x128x256xbf16, #tpu.memory_space<vmem>>, %arg7: memref<1x256xf32, #tpu.memory_space<vmem>>, %arg8: memref<9x256x512xbf16, #tpu.memory_space<vmem>>, %arg9: memref<1x512xf32, #tpu.memory_space<vmem>>, %arg10: memref<512x512xbf16, #tpu.memory_space<vmem>>, %arg11: memref<1x512xf32, #tpu.memory_space<vmem>>, %arg12: memref<512x512xbf16, #tpu.memory_space<vmem>>, %arg13: memref<1x512xf32, #tpu.memory_space<vmem>>, %arg14: memref<512x128xbf16, #tpu.memory_space<vmem>>, %arg15: memref<1x128xf32, #tpu.memory_space<vmem>>, %arg16: memref<1x1x128xf32, #tpu.memory_space<vmem>>) attributes {dimension_semantics = [#tpu.dimension_semantics<parallel>], iteration_bounds = array<i64: 2>, scalar_prefetch = 0 : i64, scratch_operands = 0 : i64, tpu.core_type = #tpu.core_type<tc>, window_params = [{transform_indices = @transform_0, window_bounds = array<i64: 1, 256, 32>}, {pipeline_mode = #tpu.pipeline_mode<synchronous>, transform_indices = @transform_1, window_bounds = array<i64: 32, 64>}, {pipeline_mode = #tpu.pipeline_mode<synchronous>, transform_indices = @transform_2, window_bounds = array<i64: 1, 64>}, {pipeline_mode = #tpu.pipeline_mode<synchronous>, transform_indices = @transform_3, window_bounds = array<i64: 9, 64, 128>}, {pipeline_mode = #tpu.pipeline_mode<synchronous>, transform_indices = @transform_4, window_bounds = array<i64: 1, 128>}, {pipeline_mode = #tpu.pipeline_mode<synchronous>, transform_indices = @transform_5, window_bounds = array<i64: 9, 128, 256>}, {pipeline_mode = #tpu.pipeline_mode<synchronous>, transform_indices = @transform_6, window_bounds = array<i64: 1, 256>}, {pipeline_mode = #tpu.pipeline_mode<synchronous>, transform_indices = @transform_7, window_bounds = array<i64: 9, 256, 512>}, {pipeline_mode = #tpu.pipeline_mode<synchronous>, transform_indices = @transform_8, window_bounds = array<i64: 1, 512>}, {pipeline_mode = #tpu.pipeline_mode<synchronous>, transform_indices = @transform_9, window_bounds = array<i64: 512, 512>}, {pipeline_mode = #tpu.pipeline_mode<synchronous>, transform_indices = @transform_10, window_bounds = array<i64: 1, 512>}, {pipeline_mode = #tpu.pipeline_mode<synchronous>, transform_indices = @transform_11, window_bounds = array<i64: 512, 512>}, {pipeline_mode = #tpu.pipeline_mode<synchronous>, transform_indices = @transform_12, window_bounds = array<i64: 1, 512>}, {pipeline_mode = #tpu.pipeline_mode<synchronous>, transform_indices = @transform_13, window_bounds = array<i64: 512, 128>}, {pipeline_mode = #tpu.pipeline_mode<synchronous>, transform_indices = @transform_14, window_bounds = array<i64: 1, 128>}, {transform_indices = @transform_15, window_bounds = array<i64: 1, 1, 128>}]} {
    %c0 = arith.constant 0 : index
    %c0_0 = arith.constant 0 : index
    %c0_1 = arith.constant 0 : index
    %0 = vector.load %arg1[%c0, %c0_0, %c0_1] : memref<1x256x32xbf16, #tpu.memory_space<vmem>>, vector<1x256x32xbf16>
    %1 = vector.shape_cast %0 : vector<1x256x32xbf16> to vector<256x32xbf16>
    %c0_2 = arith.constant 0 : index
    %c0_3 = arith.constant 0 : index
    %2 = vector.load %arg2[%c0_2, %c0_3] : memref<32x64xbf16, #tpu.memory_space<vmem>>, vector<32x64xbf16>
    %cst = arith.constant dense<0.000000e+00> : vector<256x64xf32>
    %3 = tpu.matmul %1, %2, %cst {dimension_numbers = #tpu.dot_dimension_numbers<[1], [0], [0], [1], [0, 0, 1, 1], [], []>} : vector<256x32xbf16>, vector<32x64xbf16>, vector<256x64xf32> -> vector<256x64xf32>
    %c0_4 = arith.constant 0 : index
    %c0_5 = arith.constant 0 : index
    %4 = vector.load %arg3[%c0_4, %c0_5] : memref<1x64xf32, #tpu.memory_space<vmem>>, vector<1x64xf32>
    %5 = vector.broadcast %4 : vector<1x64xf32> to vector<256x64xf32>
    %6 = arith.addf %3, %5 : vector<256x64xf32>
    %cst_6 = arith.constant 0.000000e+00 : f32
    %7 = vector.broadcast %cst_6 : f32 to vector<256x64xf32>
    %8 = arith.maximumf %6, %7 : vector<256x64xf32>
    %9 = vector.shape_cast %8 : vector<256x64xf32> to vector<1x16x8x2x64xf32>
    %10 = vector.extract_strided_slice %9 {offsets = [0, 0, 0, 0, 0], sizes = [1, 16, 8, 1, 64], strides = [1, 1, 1, 1, 1]} : vector<1x16x8x2x64xf32> to vector<1x16x8x1x64xf32>
    %11 = vector.shape_cast %10 : vector<1x16x8x1x64xf32> to vector<1x16x8x64xf32>
    %12 = vector.extract_strided_slice %9 {offsets = [0, 0, 0, 1, 0], sizes = [1, 16, 8, 1, 64], strides = [1, 1, 1, 1, 1]} : vector<1x16x8x2x64xf32> to vector<1x16x8x1x64xf32>
    %13 = vector.shape_cast %12 : vector<1x16x8x1x64xf32> to vector<1x16x8x64xf32>
    %14 = arith.maximumf %11, %13 : vector<1x16x8x64xf32>
    %15 = vector.shape_cast %14 : vector<1x16x8x64xf32> to vector<1x8x2x8x64xf32>
    %16 = vector.extract_strided_slice %15 {offsets = [0, 0, 0, 0, 0], sizes = [1, 8, 1, 8, 64], strides = [1, 1, 1, 1, 1]} : vector<1x8x2x8x64xf32> to vector<1x8x1x8x64xf32>
    %17 = vector.shape_cast %16 : vector<1x8x1x8x64xf32> to vector<1x8x8x64xf32>
    %18 = vector.extract_strided_slice %15 {offsets = [0, 0, 1, 0, 0], sizes = [1, 8, 1, 8, 64], strides = [1, 1, 1, 1, 1]} : vector<1x8x2x8x64xf32> to vector<1x8x1x8x64xf32>
    %19 = vector.shape_cast %18 : vector<1x8x1x8x64xf32> to vector<1x8x8x64xf32>
    %20 = arith.maximumf %17, %19 : vector<1x8x8x64xf32>
    %cst_7 = arith.constant 0.000000e+00 : f32
    %21 = vector.broadcast %cst_7 : f32 to vector<1x8x1x64xf32>
    %22 = tpu.concatenate %21, %20, %21 in 2 : vector<1x8x1x64xf32>, vector<1x8x8x64xf32>, vector<1x8x1x64xf32> -> vector<1x8x10x64xf32>
    %cst_8 = arith.constant 0.000000e+00 : f32
    %23 = vector.broadcast %cst_8 : f32 to vector<1x1x10x64xf32>
    %24 = tpu.concatenate %23, %22, %23 in 1 : vector<1x1x10x64xf32>, vector<1x8x10x64xf32>, vector<1x1x10x64xf32> -> vector<1x10x10x64xf32>
    %25 = vector.extract_strided_slice %24 {offsets = [0, 0, 0, 0], sizes = [1, 8, 8, 64], strides = [1, 1, 1, 1]} : vector<1x10x10x64xf32> to vector<1x8x8x64xf32>
    %26 = vector.shape_cast %25 : vector<1x8x8x64xf32> to vector<64x64xf32>
    %27 = arith.truncf %26 : vector<64x64xf32> to vector<64x64xbf16>
    %c0_9 = arith.constant 0 : index
    %c0_10 = arith.constant 0 : index
    %c0_11 = arith.constant 0 : index
    %28 = vector.load %arg4[%c0_9, %c0_10, %c0_11] : memref<9x64x128xbf16, #tpu.memory_space<vmem>>, vector<1x64x128xbf16>
    %29 = vector.shape_cast %28 : vector<1x64x128xbf16> to vector<64x128xbf16>
    %cst_12 = arith.constant dense<0.000000e+00> : vector<64x128xf32>
    %30 = tpu.matmul %27, %29, %cst_12 {dimension_numbers = #tpu.dot_dimension_numbers<[1], [0], [0], [1], [0, 0, 1, 1], [], []>} : vector<64x64xbf16>, vector<64x128xbf16>, vector<64x128xf32> -> vector<64x128xf32>
    %31 = vector.extract_strided_slice %24 {offsets = [0, 0, 1, 0], sizes = [1, 8, 8, 64], strides = [1, 1, 1, 1]} : vector<1x10x10x64xf32> to vector<1x8x8x64xf32>
    %32 = vector.shape_cast %31 : vector<1x8x8x64xf32> to vector<64x64xf32>
    %33 = arith.truncf %32 : vector<64x64xf32> to vector<64x64xbf16>
    %c1 = arith.constant 1 : index
    %c0_13 = arith.constant 0 : index
    %c0_14 = arith.constant 0 : index
    %34 = vector.load %arg4[%c1, %c0_13, %c0_14] : memref<9x64x128xbf16, #tpu.memory_space<vmem>>, vector<1x64x128xbf16>
    %35 = vector.shape_cast %34 : vector<1x64x128xbf16> to vector<64x128xbf16>
    %cst_15 = arith.constant dense<0.000000e+00> : vector<64x128xf32>
    %36 = tpu.matmul %33, %35, %cst_15 {dimension_numbers = #tpu.dot_dimension_numbers<[1], [0], [0], [1], [0, 0, 1, 1], [], []>} : vector<64x64xbf16>, vector<64x128xbf16>, vector<64x128xf32> -> vector<64x128xf32>
    %37 = arith.addf %30, %36 : vector<64x128xf32>
    %38 = vector.extract_strided_slice %24 {offsets = [0, 0, 2, 0], sizes = [1, 8, 8, 64], strides = [1, 1, 1, 1]} : vector<1x10x10x64xf32> to vector<1x8x8x64xf32>
    %39 = vector.shape_cast %38 : vector<1x8x8x64xf32> to vector<64x64xf32>
    %40 = arith.truncf %39 : vector<64x64xf32> to vector<64x64xbf16>
    %c2 = arith.constant 2 : index
    %c0_16 = arith.constant 0 : index
    %c0_17 = arith.constant 0 : index
    %41 = vector.load %arg4[%c2, %c0_16, %c0_17] : memref<9x64x128xbf16, #tpu.memory_space<vmem>>, vector<1x64x128xbf16>
    %42 = vector.shape_cast %41 : vector<1x64x128xbf16> to vector<64x128xbf16>
    %cst_18 = arith.constant dense<0.000000e+00> : vector<64x128xf32>
    %43 = tpu.matmul %40, %42, %cst_18 {dimension_numbers = #tpu.dot_dimension_numbers<[1], [0], [0], [1], [0, 0, 1, 1], [], []>} : vector<64x64xbf16>, vector<64x128xbf16>, vector<64x128xf32> -> vector<64x128xf32>
    %44 = arith.addf %37, %43 : vector<64x128xf32>
    %45 = vector.extract_strided_slice %24 {offsets = [0, 1, 0, 0], sizes = [1, 8, 8, 64], strides = [1, 1, 1, 1]} : vector<1x10x10x64xf32> to vector<1x8x8x64xf32>
    %46 = vector.shape_cast %45 : vector<1x8x8x64xf32> to vector<64x64xf32>
    %47 = arith.truncf %46 : vector<64x64xf32> to vector<64x64xbf16>
    %c3 = arith.constant 3 : index
    %c0_19 = arith.constant 0 : index
    %c0_20 = arith.constant 0 : index
    %48 = vector.load %arg4[%c3, %c0_19, %c0_20] : memref<9x64x128xbf16, #tpu.memory_space<vmem>>, vector<1x64x128xbf16>
    %49 = vector.shape_cast %48 : vector<1x64x128xbf16> to vector<64x128xbf16>
    %cst_21 = arith.constant dense<0.000000e+00> : vector<64x128xf32>
    %50 = tpu.matmul %47, %49, %cst_21 {dimension_numbers = #tpu.dot_dimension_numbers<[1], [0], [0], [1], [0, 0, 1, 1], [], []>} : vector<64x64xbf16>, vector<64x128xbf16>, vector<64x128xf32> -> vector<64x128xf32>
    %51 = arith.addf %44, %50 : vector<64x128xf32>
    %52 = vector.extract_strided_slice %24 {offsets = [0, 1, 1, 0], sizes = [1, 8, 8, 64], strides = [1, 1, 1, 1]} : vector<1x10x10x64xf32> to vector<1x8x8x64xf32>
    %53 = vector.shape_cast %52 : vector<1x8x8x64xf32> to vector<64x64xf32>
    %54 = arith.truncf %53 : vector<64x64xf32> to vector<64x64xbf16>
    %c4 = arith.constant 4 : index
    %c0_22 = arith.constant 0 : index
    %c0_23 = arith.constant 0 : index
    %55 = vector.load %arg4[%c4, %c0_22, %c0_23] : memref<9x64x128xbf16, #tpu.memory_space<vmem>>, vector<1x64x128xbf16>
    %56 = vector.shape_cast %55 : vector<1x64x128xbf16> to vector<64x128xbf16>
    %cst_24 = arith.constant dense<0.000000e+00> : vector<64x128xf32>
    %57 = tpu.matmul %54, %56, %cst_24 {dimension_numbers = #tpu.dot_dimension_numbers<[1], [0], [0], [1], [0, 0, 1, 1], [], []>} : vector<64x64xbf16>, vector<64x128xbf16>, vector<64x128xf32> -> vector<64x128xf32>
    %58 = arith.addf %51, %57 : vector<64x128xf32>
    %59 = vector.extract_strided_slice %24 {offsets = [0, 1, 2, 0], sizes = [1, 8, 8, 64], strides = [1, 1, 1, 1]} : vector<1x10x10x64xf32> to vector<1x8x8x64xf32>
    %60 = vector.shape_cast %59 : vector<1x8x8x64xf32> to vector<64x64xf32>
    %61 = arith.truncf %60 : vector<64x64xf32> to vector<64x64xbf16>
    %c5 = arith.constant 5 : index
    %c0_25 = arith.constant 0 : index
    %c0_26 = arith.constant 0 : index
    %62 = vector.load %arg4[%c5, %c0_25, %c0_26] : memref<9x64x128xbf16, #tpu.memory_space<vmem>>, vector<1x64x128xbf16>
    %63 = vector.shape_cast %62 : vector<1x64x128xbf16> to vector<64x128xbf16>
    %cst_27 = arith.constant dense<0.000000e+00> : vector<64x128xf32>
    %64 = tpu.matmul %61, %63, %cst_27 {dimension_numbers = #tpu.dot_dimension_numbers<[1], [0], [0], [1], [0, 0, 1, 1], [], []>} : vector<64x64xbf16>, vector<64x128xbf16>, vector<64x128xf32> -> vector<64x128xf32>
    %65 = arith.addf %58, %64 : vector<64x128xf32>
    %66 = vector.extract_strided_slice %24 {offsets = [0, 2, 0, 0], sizes = [1, 8, 8, 64], strides = [1, 1, 1, 1]} : vector<1x10x10x64xf32> to vector<1x8x8x64xf32>
    %67 = vector.shape_cast %66 : vector<1x8x8x64xf32> to vector<64x64xf32>
    %68 = arith.truncf %67 : vector<64x64xf32> to vector<64x64xbf16>
    %c6 = arith.constant 6 : index
    %c0_28 = arith.constant 0 : index
    %c0_29 = arith.constant 0 : index
    %69 = vector.load %arg4[%c6, %c0_28, %c0_29] : memref<9x64x128xbf16, #tpu.memory_space<vmem>>, vector<1x64x128xbf16>
    %70 = vector.shape_cast %69 : vector<1x64x128xbf16> to vector<64x128xbf16>
    %cst_30 = arith.constant dense<0.000000e+00> : vector<64x128xf32>
    %71 = tpu.matmul %68, %70, %cst_30 {dimension_numbers = #tpu.dot_dimension_numbers<[1], [0], [0], [1], [0, 0, 1, 1], [], []>} : vector<64x64xbf16>, vector<64x128xbf16>, vector<64x128xf32> -> vector<64x128xf32>
    %72 = arith.addf %65, %71 : vector<64x128xf32>
    %73 = vector.extract_strided_slice %24 {offsets = [0, 2, 1, 0], sizes = [1, 8, 8, 64], strides = [1, 1, 1, 1]} : vector<1x10x10x64xf32> to vector<1x8x8x64xf32>
    %74 = vector.shape_cast %73 : vector<1x8x8x64xf32> to vector<64x64xf32>
    %75 = arith.truncf %74 : vector<64x64xf32> to vector<64x64xbf16>
    %c7 = arith.constant 7 : index
    %c0_31 = arith.constant 0 : index
    %c0_32 = arith.constant 0 : index
    %76 = vector.load %arg4[%c7, %c0_31, %c0_32] : memref<9x64x128xbf16, #tpu.memory_space<vmem>>, vector<1x64x128xbf16>
    %77 = vector.shape_cast %76 : vector<1x64x128xbf16> to vector<64x128xbf16>
    %cst_33 = arith.constant dense<0.000000e+00> : vector<64x128xf32>
    %78 = tpu.matmul %75, %77, %cst_33 {dimension_numbers = #tpu.dot_dimension_numbers<[1], [0], [0], [1], [0, 0, 1, 1], [], []>} : vector<64x64xbf16>, vector<64x128xbf16>, vector<64x128xf32> -> vector<64x128xf32>
    %79 = arith.addf %72, %78 : vector<64x128xf32>
    %80 = vector.extract_strided_slice %24 {offsets = [0, 2, 2, 0], sizes = [1, 8, 8, 64], strides = [1, 1, 1, 1]} : vector<1x10x10x64xf32> to vector<1x8x8x64xf32>
    %81 = vector.shape_cast %80 : vector<1x8x8x64xf32> to vector<64x64xf32>
    %82 = arith.truncf %81 : vector<64x64xf32> to vector<64x64xbf16>
    %c8 = arith.constant 8 : index
    %c0_34 = arith.constant 0 : index
    %c0_35 = arith.constant 0 : index
    %83 = vector.load %arg4[%c8, %c0_34, %c0_35] : memref<9x64x128xbf16, #tpu.memory_space<vmem>>, vector<1x64x128xbf16>
    %84 = vector.shape_cast %83 : vector<1x64x128xbf16> to vector<64x128xbf16>
    %cst_36 = arith.constant dense<0.000000e+00> : vector<64x128xf32>
    %85 = tpu.matmul %82, %84, %cst_36 {dimension_numbers = #tpu.dot_dimension_numbers<[1], [0], [0], [1], [0, 0, 1, 1], [], []>} : vector<64x64xbf16>, vector<64x128xbf16>, vector<64x128xf32> -> vector<64x128xf32>
    %86 = arith.addf %79, %85 : vector<64x128xf32>
    %c0_37 = arith.constant 0 : index
    %c0_38 = arith.constant 0 : index
    %87 = vector.load %arg5[%c0_37, %c0_38] : memref<1x128xf32, #tpu.memory_space<vmem>>, vector<1x128xf32>
    %88 = vector.broadcast %87 : vector<1x128xf32> to vector<64x128xf32>
    %89 = arith.addf %86, %88 : vector<64x128xf32>
    %cst_39 = arith.constant 0.000000e+00 : f32
    %90 = vector.broadcast %cst_39 : f32 to vector<64x128xf32>
    %91 = arith.maximumf %89, %90 : vector<64x128xf32>
    %92 = vector.shape_cast %91 : vector<64x128xf32> to vector<1x8x4x2x128xf32>
    %93 = vector.extract_strided_slice %92 {offsets = [0, 0, 0, 0, 0], sizes = [1, 8, 4, 1, 128], strides = [1, 1, 1, 1, 1]} : vector<1x8x4x2x128xf32> to vector<1x8x4x1x128xf32>
    %94 = vector.shape_cast %93 : vector<1x8x4x1x128xf32> to vector<1x8x4x128xf32>
    %95 = vector.extract_strided_slice %92 {offsets = [0, 0, 0, 1, 0], sizes = [1, 8, 4, 1, 128], strides = [1, 1, 1, 1, 1]} : vector<1x8x4x2x128xf32> to vector<1x8x4x1x128xf32>
    %96 = vector.shape_cast %95 : vector<1x8x4x1x128xf32> to vector<1x8x4x128xf32>
    %97 = arith.maximumf %94, %96 : vector<1x8x4x128xf32>
    %98 = vector.shape_cast %97 : vector<1x8x4x128xf32> to vector<1x4x2x4x128xf32>
    %99 = vector.extract_strided_slice %98 {offsets = [0, 0, 0, 0, 0], sizes = [1, 4, 1, 4, 128], strides = [1, 1, 1, 1, 1]} : vector<1x4x2x4x128xf32> to vector<1x4x1x4x128xf32>
    %100 = vector.shape_cast %99 : vector<1x4x1x4x128xf32> to vector<1x4x4x128xf32>
    %101 = vector.extract_strided_slice %98 {offsets = [0, 0, 1, 0, 0], sizes = [1, 4, 1, 4, 128], strides = [1, 1, 1, 1, 1]} : vector<1x4x2x4x128xf32> to vector<1x4x1x4x128xf32>
    %102 = vector.shape_cast %101 : vector<1x4x1x4x128xf32> to vector<1x4x4x128xf32>
    %103 = arith.maximumf %100, %102 : vector<1x4x4x128xf32>
    %cst_40 = arith.constant 0.000000e+00 : f32
    %104 = vector.broadcast %cst_40 : f32 to vector<1x4x1x128xf32>
    %105 = tpu.concatenate %104, %103, %104 in 2 : vector<1x4x1x128xf32>, vector<1x4x4x128xf32>, vector<1x4x1x128xf32> -> vector<1x4x6x128xf32>
    %cst_41 = arith.constant 0.000000e+00 : f32
    %106 = vector.broadcast %cst_41 : f32 to vector<1x1x6x128xf32>
    %107 = tpu.concatenate %106, %105, %106 in 1 : vector<1x1x6x128xf32>, vector<1x4x6x128xf32>, vector<1x1x6x128xf32> -> vector<1x6x6x128xf32>
    %108 = vector.extract_strided_slice %107 {offsets = [0, 0, 0, 0], sizes = [1, 4, 4, 128], strides = [1, 1, 1, 1]} : vector<1x6x6x128xf32> to vector<1x4x4x128xf32>
    %109 = vector.shape_cast %108 : vector<1x4x4x128xf32> to vector<16x128xf32>
    %110 = arith.truncf %109 : vector<16x128xf32> to vector<16x128xbf16>
    %c0_42 = arith.constant 0 : index
    %c0_43 = arith.constant 0 : index
    %c0_44 = arith.constant 0 : index
    %111 = vector.load %arg6[%c0_42, %c0_43, %c0_44] : memref<9x128x256xbf16, #tpu.memory_space<vmem>>, vector<1x128x256xbf16>
    %112 = vector.shape_cast %111 : vector<1x128x256xbf16> to vector<128x256xbf16>
    %cst_45 = arith.constant dense<0.000000e+00> : vector<16x256xf32>
    %113 = tpu.matmul %110, %112, %cst_45 {dimension_numbers = #tpu.dot_dimension_numbers<[1], [0], [0], [1], [0, 0, 1, 1], [], []>} : vector<16x128xbf16>, vector<128x256xbf16>, vector<16x256xf32> -> vector<16x256xf32>
    %114 = vector.extract_strided_slice %107 {offsets = [0, 0, 1, 0], sizes = [1, 4, 4, 128], strides = [1, 1, 1, 1]} : vector<1x6x6x128xf32> to vector<1x4x4x128xf32>
    %115 = vector.shape_cast %114 : vector<1x4x4x128xf32> to vector<16x128xf32>
    %116 = arith.truncf %115 : vector<16x128xf32> to vector<16x128xbf16>
    %c1_46 = arith.constant 1 : index
    %c0_47 = arith.constant 0 : index
    %c0_48 = arith.constant 0 : index
    %117 = vector.load %arg6[%c1_46, %c0_47, %c0_48] : memref<9x128x256xbf16, #tpu.memory_space<vmem>>, vector<1x128x256xbf16>
    %118 = vector.shape_cast %117 : vector<1x128x256xbf16> to vector<128x256xbf16>
    %cst_49 = arith.constant dense<0.000000e+00> : vector<16x256xf32>
    %119 = tpu.matmul %116, %118, %cst_49 {dimension_numbers = #tpu.dot_dimension_numbers<[1], [0], [0], [1], [0, 0, 1, 1], [], []>} : vector<16x128xbf16>, vector<128x256xbf16>, vector<16x256xf32> -> vector<16x256xf32>
    %120 = arith.addf %113, %119 : vector<16x256xf32>
    %121 = vector.extract_strided_slice %107 {offsets = [0, 0, 2, 0], sizes = [1, 4, 4, 128], strides = [1, 1, 1, 1]} : vector<1x6x6x128xf32> to vector<1x4x4x128xf32>
    %122 = vector.shape_cast %121 : vector<1x4x4x128xf32> to vector<16x128xf32>
    %123 = arith.truncf %122 : vector<16x128xf32> to vector<16x128xbf16>
    %c2_50 = arith.constant 2 : index
    %c0_51 = arith.constant 0 : index
    %c0_52 = arith.constant 0 : index
    %124 = vector.load %arg6[%c2_50, %c0_51, %c0_52] : memref<9x128x256xbf16, #tpu.memory_space<vmem>>, vector<1x128x256xbf16>
    %125 = vector.shape_cast %124 : vector<1x128x256xbf16> to vector<128x256xbf16>
    %cst_53 = arith.constant dense<0.000000e+00> : vector<16x256xf32>
    %126 = tpu.matmul %123, %125, %cst_53 {dimension_numbers = #tpu.dot_dimension_numbers<[1], [0], [0], [1], [0, 0, 1, 1], [], []>} : vector<16x128xbf16>, vector<128x256xbf16>, vector<16x256xf32> -> vector<16x256xf32>
    %127 = arith.addf %120, %126 : vector<16x256xf32>
    %128 = vector.extract_strided_slice %107 {offsets = [0, 1, 0, 0], sizes = [1, 4, 4, 128], strides = [1, 1, 1, 1]} : vector<1x6x6x128xf32> to vector<1x4x4x128xf32>
    %129 = vector.shape_cast %128 : vector<1x4x4x128xf32> to vector<16x128xf32>
    %130 = arith.truncf %129 : vector<16x128xf32> to vector<16x128xbf16>
    %c3_54 = arith.constant 3 : index
    %c0_55 = arith.constant 0 : index
    %c0_56 = arith.constant 0 : index
    %131 = vector.load %arg6[%c3_54, %c0_55, %c0_56] : memref<9x128x256xbf16, #tpu.memory_space<vmem>>, vector<1x128x256xbf16>
    %132 = vector.shape_cast %131 : vector<1x128x256xbf16> to vector<128x256xbf16>
    %cst_57 = arith.constant dense<0.000000e+00> : vector<16x256xf32>
    %133 = tpu.matmul %130, %132, %cst_57 {dimension_numbers = #tpu.dot_dimension_numbers<[1], [0], [0], [1], [0, 0, 1, 1], [], []>} : vector<16x128xbf16>, vector<128x256xbf16>, vector<16x256xf32> -> vector<16x256xf32>
    %134 = arith.addf %127, %133 : vector<16x256xf32>
    %135 = vector.extract_strided_slice %107 {offsets = [0, 1, 1, 0], sizes = [1, 4, 4, 128], strides = [1, 1, 1, 1]} : vector<1x6x6x128xf32> to vector<1x4x4x128xf32>
    %136 = vector.shape_cast %135 : vector<1x4x4x128xf32> to vector<16x128xf32>
    %137 = arith.truncf %136 : vector<16x128xf32> to vector<16x128xbf16>
    %c4_58 = arith.constant 4 : index
    %c0_59 = arith.constant 0 : index
    %c0_60 = arith.constant 0 : index
    %138 = vector.load %arg6[%c4_58, %c0_59, %c0_60] : memref<9x128x256xbf16, #tpu.memory_space<vmem>>, vector<1x128x256xbf16>
    %139 = vector.shape_cast %138 : vector<1x128x256xbf16> to vector<128x256xbf16>
    %cst_61 = arith.constant dense<0.000000e+00> : vector<16x256xf32>
    %140 = tpu.matmul %137, %139, %cst_61 {dimension_numbers = #tpu.dot_dimension_numbers<[1], [0], [0], [1], [0, 0, 1, 1], [], []>} : vector<16x128xbf16>, vector<128x256xbf16>, vector<16x256xf32> -> vector<16x256xf32>
    %141 = arith.addf %134, %140 : vector<16x256xf32>
    %142 = vector.extract_strided_slice %107 {offsets = [0, 1, 2, 0], sizes = [1, 4, 4, 128], strides = [1, 1, 1, 1]} : vector<1x6x6x128xf32> to vector<1x4x4x128xf32>
    %143 = vector.shape_cast %142 : vector<1x4x4x128xf32> to vector<16x128xf32>
    %144 = arith.truncf %143 : vector<16x128xf32> to vector<16x128xbf16>
    %c5_62 = arith.constant 5 : index
    %c0_63 = arith.constant 0 : index
    %c0_64 = arith.constant 0 : index
    %145 = vector.load %arg6[%c5_62, %c0_63, %c0_64] : memref<9x128x256xbf16, #tpu.memory_space<vmem>>, vector<1x128x256xbf16>
    %146 = vector.shape_cast %145 : vector<1x128x256xbf16> to vector<128x256xbf16>
    %cst_65 = arith.constant dense<0.000000e+00> : vector<16x256xf32>
    %147 = tpu.matmul %144, %146, %cst_65 {dimension_numbers = #tpu.dot_dimension_numbers<[1], [0], [0], [1], [0, 0, 1, 1], [], []>} : vector<16x128xbf16>, vector<128x256xbf16>, vector<16x256xf32> -> vector<16x256xf32>
    %148 = arith.addf %141, %147 : vector<16x256xf32>
    %149 = vector.extract_strided_slice %107 {offsets = [0, 2, 0, 0], sizes = [1, 4, 4, 128], strides = [1, 1, 1, 1]} : vector<1x6x6x128xf32> to vector<1x4x4x128xf32>
    %150 = vector.shape_cast %149 : vector<1x4x4x128xf32> to vector<16x128xf32>
    %151 = arith.truncf %150 : vector<16x128xf32> to vector<16x128xbf16>
    %c6_66 = arith.constant 6 : index
    %c0_67 = arith.constant 0 : index
    %c0_68 = arith.constant 0 : index
    %152 = vector.load %arg6[%c6_66, %c0_67, %c0_68] : memref<9x128x256xbf16, #tpu.memory_space<vmem>>, vector<1x128x256xbf16>
    %153 = vector.shape_cast %152 : vector<1x128x256xbf16> to vector<128x256xbf16>
    %cst_69 = arith.constant dense<0.000000e+00> : vector<16x256xf32>
    %154 = tpu.matmul %151, %153, %cst_69 {dimension_numbers = #tpu.dot_dimension_numbers<[1], [0], [0], [1], [0, 0, 1, 1], [], []>} : vector<16x128xbf16>, vector<128x256xbf16>, vector<16x256xf32> -> vector<16x256xf32>
    %155 = arith.addf %148, %154 : vector<16x256xf32>
    %156 = vector.extract_strided_slice %107 {offsets = [0, 2, 1, 0], sizes = [1, 4, 4, 128], strides = [1, 1, 1, 1]} : vector<1x6x6x128xf32> to vector<1x4x4x128xf32>
    %157 = vector.shape_cast %156 : vector<1x4x4x128xf32> to vector<16x128xf32>
    %158 = arith.truncf %157 : vector<16x128xf32> to vector<16x128xbf16>
    %c7_70 = arith.constant 7 : index
    %c0_71 = arith.constant 0 : index
    %c0_72 = arith.constant 0 : index
    %159 = vector.load %arg6[%c7_70, %c0_71, %c0_72] : memref<9x128x256xbf16, #tpu.memory_space<vmem>>, vector<1x128x256xbf16>
    %160 = vector.shape_cast %159 : vector<1x128x256xbf16> to vector<128x256xbf16>
    %cst_73 = arith.constant dense<0.000000e+00> : vector<16x256xf32>
    %161 = tpu.matmul %158, %160, %cst_73 {dimension_numbers = #tpu.dot_dimension_numbers<[1], [0], [0], [1], [0, 0, 1, 1], [], []>} : vector<16x128xbf16>, vector<128x256xbf16>, vector<16x256xf32> -> vector<16x256xf32>
    %162 = arith.addf %155, %161 : vector<16x256xf32>
    %163 = vector.extract_strided_slice %107 {offsets = [0, 2, 2, 0], sizes = [1, 4, 4, 128], strides = [1, 1, 1, 1]} : vector<1x6x6x128xf32> to vector<1x4x4x128xf32>
    %164 = vector.shape_cast %163 : vector<1x4x4x128xf32> to vector<16x128xf32>
    %165 = arith.truncf %164 : vector<16x128xf32> to vector<16x128xbf16>
    %c8_74 = arith.constant 8 : index
    %c0_75 = arith.constant 0 : index
    %c0_76 = arith.constant 0 : index
    %166 = vector.load %arg6[%c8_74, %c0_75, %c0_76] : memref<9x128x256xbf16, #tpu.memory_space<vmem>>, vector<1x128x256xbf16>
    %167 = vector.shape_cast %166 : vector<1x128x256xbf16> to vector<128x256xbf16>
    %cst_77 = arith.constant dense<0.000000e+00> : vector<16x256xf32>
    %168 = tpu.matmul %165, %167, %cst_77 {dimension_numbers = #tpu.dot_dimension_numbers<[1], [0], [0], [1], [0, 0, 1, 1], [], []>} : vector<16x128xbf16>, vector<128x256xbf16>, vector<16x256xf32> -> vector<16x256xf32>
    %169 = arith.addf %162, %168 : vector<16x256xf32>
    %c0_78 = arith.constant 0 : index
    %c0_79 = arith.constant 0 : index
    %170 = vector.load %arg7[%c0_78, %c0_79] : memref<1x256xf32, #tpu.memory_space<vmem>>, vector<1x256xf32>
    %171 = vector.broadcast %170 : vector<1x256xf32> to vector<16x256xf32>
    %172 = arith.addf %169, %171 : vector<16x256xf32>
    %cst_80 = arith.constant 0.000000e+00 : f32
    %173 = vector.broadcast %cst_80 : f32 to vector<16x256xf32>
    %174 = arith.maximumf %172, %173 : vector<16x256xf32>
    %175 = vector.shape_cast %174 : vector<16x256xf32> to vector<1x4x2x2x256xf32>
    %176 = vector.extract_strided_slice %175 {offsets = [0, 0, 0, 0, 0], sizes = [1, 4, 2, 1, 256], strides = [1, 1, 1, 1, 1]} : vector<1x4x2x2x256xf32> to vector<1x4x2x1x256xf32>
    %177 = vector.shape_cast %176 : vector<1x4x2x1x256xf32> to vector<1x4x2x256xf32>
    %178 = vector.extract_strided_slice %175 {offsets = [0, 0, 0, 1, 0], sizes = [1, 4, 2, 1, 256], strides = [1, 1, 1, 1, 1]} : vector<1x4x2x2x256xf32> to vector<1x4x2x1x256xf32>
    %179 = vector.shape_cast %178 : vector<1x4x2x1x256xf32> to vector<1x4x2x256xf32>
    %180 = arith.maximumf %177, %179 : vector<1x4x2x256xf32>
    %181 = vector.shape_cast %180 : vector<1x4x2x256xf32> to vector<1x2x2x2x256xf32>
    %182 = vector.extract_strided_slice %181 {offsets = [0, 0, 0, 0, 0], sizes = [1, 2, 1, 2, 256], strides = [1, 1, 1, 1, 1]} : vector<1x2x2x2x256xf32> to vector<1x2x1x2x256xf32>
    %183 = vector.shape_cast %182 : vector<1x2x1x2x256xf32> to vector<1x2x2x256xf32>
    %184 = vector.extract_strided_slice %181 {offsets = [0, 0, 1, 0, 0], sizes = [1, 2, 1, 2, 256], strides = [1, 1, 1, 1, 1]} : vector<1x2x2x2x256xf32> to vector<1x2x1x2x256xf32>
    %185 = vector.shape_cast %184 : vector<1x2x1x2x256xf32> to vector<1x2x2x256xf32>
    %186 = arith.maximumf %183, %185 : vector<1x2x2x256xf32>
    %cst_81 = arith.constant 0.000000e+00 : f32
    %187 = vector.broadcast %cst_81 : f32 to vector<1x2x1x256xf32>
    %188 = tpu.concatenate %187, %186, %187 in 2 : vector<1x2x1x256xf32>, vector<1x2x2x256xf32>, vector<1x2x1x256xf32> -> vector<1x2x4x256xf32>
    %cst_82 = arith.constant 0.000000e+00 : f32
    %189 = vector.broadcast %cst_82 : f32 to vector<1x1x4x256xf32>
    %190 = tpu.concatenate %189, %188, %189 in 1 : vector<1x1x4x256xf32>, vector<1x2x4x256xf32>, vector<1x1x4x256xf32> -> vector<1x4x4x256xf32>
    %191 = vector.extract_strided_slice %190 {offsets = [0, 0, 0, 0], sizes = [1, 2, 2, 256], strides = [1, 1, 1, 1]} : vector<1x4x4x256xf32> to vector<1x2x2x256xf32>
    %192 = vector.shape_cast %191 : vector<1x2x2x256xf32> to vector<4x256xf32>
    %193 = arith.truncf %192 : vector<4x256xf32> to vector<4x256xbf16>
    %c0_83 = arith.constant 0 : index
    %c0_84 = arith.constant 0 : index
    %c0_85 = arith.constant 0 : index
    %194 = vector.load %arg8[%c0_83, %c0_84, %c0_85] : memref<9x256x512xbf16, #tpu.memory_space<vmem>>, vector<1x256x512xbf16>
    %195 = vector.shape_cast %194 : vector<1x256x512xbf16> to vector<256x512xbf16>
    %cst_86 = arith.constant dense<0.000000e+00> : vector<4x512xf32>
    %196 = tpu.matmul %193, %195, %cst_86 {dimension_numbers = #tpu.dot_dimension_numbers<[1], [0], [0], [1], [0, 0, 1, 1], [], []>} : vector<4x256xbf16>, vector<256x512xbf16>, vector<4x512xf32> -> vector<4x512xf32>
    %197 = vector.extract_strided_slice %190 {offsets = [0, 0, 1, 0], sizes = [1, 2, 2, 256], strides = [1, 1, 1, 1]} : vector<1x4x4x256xf32> to vector<1x2x2x256xf32>
    %198 = vector.shape_cast %197 : vector<1x2x2x256xf32> to vector<4x256xf32>
    %199 = arith.truncf %198 : vector<4x256xf32> to vector<4x256xbf16>
    %c1_87 = arith.constant 1 : index
    %c0_88 = arith.constant 0 : index
    %c0_89 = arith.constant 0 : index
    %200 = vector.load %arg8[%c1_87, %c0_88, %c0_89] : memref<9x256x512xbf16, #tpu.memory_space<vmem>>, vector<1x256x512xbf16>
    %201 = vector.shape_cast %200 : vector<1x256x512xbf16> to vector<256x512xbf16>
    %cst_90 = arith.constant dense<0.000000e+00> : vector<4x512xf32>
    %202 = tpu.matmul %199, %201, %cst_90 {dimension_numbers = #tpu.dot_dimension_numbers<[1], [0], [0], [1], [0, 0, 1, 1], [], []>} : vector<4x256xbf16>, vector<256x512xbf16>, vector<4x512xf32> -> vector<4x512xf32>
    %203 = arith.addf %196, %202 : vector<4x512xf32>
    %204 = vector.extract_strided_slice %190 {offsets = [0, 0, 2, 0], sizes = [1, 2, 2, 256], strides = [1, 1, 1, 1]} : vector<1x4x4x256xf32> to vector<1x2x2x256xf32>
    %205 = vector.shape_cast %204 : vector<1x2x2x256xf32> to vector<4x256xf32>
    %206 = arith.truncf %205 : vector<4x256xf32> to vector<4x256xbf16>
    %c2_91 = arith.constant 2 : index
    %c0_92 = arith.constant 0 : index
    %c0_93 = arith.constant 0 : index
    %207 = vector.load %arg8[%c2_91, %c0_92, %c0_93] : memref<9x256x512xbf16, #tpu.memory_space<vmem>>, vector<1x256x512xbf16>
    %208 = vector.shape_cast %207 : vector<1x256x512xbf16> to vector<256x512xbf16>
    %cst_94 = arith.constant dense<0.000000e+00> : vector<4x512xf32>
    %209 = tpu.matmul %206, %208, %cst_94 {dimension_numbers = #tpu.dot_dimension_numbers<[1], [0], [0], [1], [0, 0, 1, 1], [], []>} : vector<4x256xbf16>, vector<256x512xbf16>, vector<4x512xf32> -> vector<4x512xf32>
    %210 = arith.addf %203, %209 : vector<4x512xf32>
    %211 = vector.extract_strided_slice %190 {offsets = [0, 1, 0, 0], sizes = [1, 2, 2, 256], strides = [1, 1, 1, 1]} : vector<1x4x4x256xf32> to vector<1x2x2x256xf32>
    %212 = vector.shape_cast %211 : vector<1x2x2x256xf32> to vector<4x256xf32>
    %213 = arith.truncf %212 : vector<4x256xf32> to vector<4x256xbf16>
    %c3_95 = arith.constant 3 : index
    %c0_96 = arith.constant 0 : index
    %c0_97 = arith.constant 0 : index
    %214 = vector.load %arg8[%c3_95, %c0_96, %c0_97] : memref<9x256x512xbf16, #tpu.memory_space<vmem>>, vector<1x256x512xbf16>
    %215 = vector.shape_cast %214 : vector<1x256x512xbf16> to vector<256x512xbf16>
    %cst_98 = arith.constant dense<0.000000e+00> : vector<4x512xf32>
    %216 = tpu.matmul %213, %215, %cst_98 {dimension_numbers = #tpu.dot_dimension_numbers<[1], [0], [0], [1], [0, 0, 1, 1], [], []>} : vector<4x256xbf16>, vector<256x512xbf16>, vector<4x512xf32> -> vector<4x512xf32>
    %217 = arith.addf %210, %216 : vector<4x512xf32>
    %218 = vector.extract_strided_slice %190 {offsets = [0, 1, 1, 0], sizes = [1, 2, 2, 256], strides = [1, 1, 1, 1]} : vector<1x4x4x256xf32> to vector<1x2x2x256xf32>
    %219 = vector.shape_cast %218 : vector<1x2x2x256xf32> to vector<4x256xf32>
    %220 = arith.truncf %219 : vector<4x256xf32> to vector<4x256xbf16>
    %c4_99 = arith.constant 4 : index
    %c0_100 = arith.constant 0 : index
    %c0_101 = arith.constant 0 : index
    %221 = vector.load %arg8[%c4_99, %c0_100, %c0_101] : memref<9x256x512xbf16, #tpu.memory_space<vmem>>, vector<1x256x512xbf16>
    %222 = vector.shape_cast %221 : vector<1x256x512xbf16> to vector<256x512xbf16>
    %cst_102 = arith.constant dense<0.000000e+00> : vector<4x512xf32>
    %223 = tpu.matmul %220, %222, %cst_102 {dimension_numbers = #tpu.dot_dimension_numbers<[1], [0], [0], [1], [0, 0, 1, 1], [], []>} : vector<4x256xbf16>, vector<256x512xbf16>, vector<4x512xf32> -> vector<4x512xf32>
    %224 = arith.addf %217, %223 : vector<4x512xf32>
    %225 = vector.extract_strided_slice %190 {offsets = [0, 1, 2, 0], sizes = [1, 2, 2, 256], strides = [1, 1, 1, 1]} : vector<1x4x4x256xf32> to vector<1x2x2x256xf32>
    %226 = vector.shape_cast %225 : vector<1x2x2x256xf32> to vector<4x256xf32>
    %227 = arith.truncf %226 : vector<4x256xf32> to vector<4x256xbf16>
    %c5_103 = arith.constant 5 : index
    %c0_104 = arith.constant 0 : index
    %c0_105 = arith.constant 0 : index
    %228 = vector.load %arg8[%c5_103, %c0_104, %c0_105] : memref<9x256x512xbf16, #tpu.memory_space<vmem>>, vector<1x256x512xbf16>
    %229 = vector.shape_cast %228 : vector<1x256x512xbf16> to vector<256x512xbf16>
    %cst_106 = arith.constant dense<0.000000e+00> : vector<4x512xf32>
    %230 = tpu.matmul %227, %229, %cst_106 {dimension_numbers = #tpu.dot_dimension_numbers<[1], [0], [0], [1], [0, 0, 1, 1], [], []>} : vector<4x256xbf16>, vector<256x512xbf16>, vector<4x512xf32> -> vector<4x512xf32>
    %231 = arith.addf %224, %230 : vector<4x512xf32>
    %232 = vector.extract_strided_slice %190 {offsets = [0, 2, 0, 0], sizes = [1, 2, 2, 256], strides = [1, 1, 1, 1]} : vector<1x4x4x256xf32> to vector<1x2x2x256xf32>
    %233 = vector.shape_cast %232 : vector<1x2x2x256xf32> to vector<4x256xf32>
    %234 = arith.truncf %233 : vector<4x256xf32> to vector<4x256xbf16>
    %c6_107 = arith.constant 6 : index
    %c0_108 = arith.constant 0 : index
    %c0_109 = arith.constant 0 : index
    %235 = vector.load %arg8[%c6_107, %c0_108, %c0_109] : memref<9x256x512xbf16, #tpu.memory_space<vmem>>, vector<1x256x512xbf16>
    %236 = vector.shape_cast %235 : vector<1x256x512xbf16> to vector<256x512xbf16>
    %cst_110 = arith.constant dense<0.000000e+00> : vector<4x512xf32>
    %237 = tpu.matmul %234, %236, %cst_110 {dimension_numbers = #tpu.dot_dimension_numbers<[1], [0], [0], [1], [0, 0, 1, 1], [], []>} : vector<4x256xbf16>, vector<256x512xbf16>, vector<4x512xf32> -> vector<4x512xf32>
    %238 = arith.addf %231, %237 : vector<4x512xf32>
    %239 = vector.extract_strided_slice %190 {offsets = [0, 2, 1, 0], sizes = [1, 2, 2, 256], strides = [1, 1, 1, 1]} : vector<1x4x4x256xf32> to vector<1x2x2x256xf32>
    %240 = vector.shape_cast %239 : vector<1x2x2x256xf32> to vector<4x256xf32>
    %241 = arith.truncf %240 : vector<4x256xf32> to vector<4x256xbf16>
    %c7_111 = arith.constant 7 : index
    %c0_112 = arith.constant 0 : index
    %c0_113 = arith.constant 0 : index
    %242 = vector.load %arg8[%c7_111, %c0_112, %c0_113] : memref<9x256x512xbf16, #tpu.memory_space<vmem>>, vector<1x256x512xbf16>
    %243 = vector.shape_cast %242 : vector<1x256x512xbf16> to vector<256x512xbf16>
    %cst_114 = arith.constant dense<0.000000e+00> : vector<4x512xf32>
    %244 = tpu.matmul %241, %243, %cst_114 {dimension_numbers = #tpu.dot_dimension_numbers<[1], [0], [0], [1], [0, 0, 1, 1], [], []>} : vector<4x256xbf16>, vector<256x512xbf16>, vector<4x512xf32> -> vector<4x512xf32>
    %245 = arith.addf %238, %244 : vector<4x512xf32>
    %246 = vector.extract_strided_slice %190 {offsets = [0, 2, 2, 0], sizes = [1, 2, 2, 256], strides = [1, 1, 1, 1]} : vector<1x4x4x256xf32> to vector<1x2x2x256xf32>
    %247 = vector.shape_cast %246 : vector<1x2x2x256xf32> to vector<4x256xf32>
    %248 = arith.truncf %247 : vector<4x256xf32> to vector<4x256xbf16>
    %c8_115 = arith.constant 8 : index
    %c0_116 = arith.constant 0 : index
    %c0_117 = arith.constant 0 : index
    %249 = vector.load %arg8[%c8_115, %c0_116, %c0_117] : memref<9x256x512xbf16, #tpu.memory_space<vmem>>, vector<1x256x512xbf16>
    %250 = vector.shape_cast %249 : vector<1x256x512xbf16> to vector<256x512xbf16>
    %cst_118 = arith.constant dense<0.000000e+00> : vector<4x512xf32>
    %251 = tpu.matmul %248, %250, %cst_118 {dimension_numbers = #tpu.dot_dimension_numbers<[1], [0], [0], [1], [0, 0, 1, 1], [], []>} : vector<4x256xbf16>, vector<256x512xbf16>, vector<4x512xf32> -> vector<4x512xf32>
    %252 = arith.addf %245, %251 : vector<4x512xf32>
    %c0_119 = arith.constant 0 : index
    %c0_120 = arith.constant 0 : index
    %253 = vector.load %arg9[%c0_119, %c0_120] : memref<1x512xf32, #tpu.memory_space<vmem>>, vector<1x512xf32>
    %254 = vector.broadcast %253 : vector<1x512xf32> to vector<4x512xf32>
    %255 = arith.addf %252, %254 : vector<4x512xf32>
    %cst_121 = arith.constant 0.000000e+00 : f32
    %256 = vector.broadcast %cst_121 : f32 to vector<4x512xf32>
    %257 = arith.maximumf %255, %256 : vector<4x512xf32>
    %258 = vector.shape_cast %257 : vector<4x512xf32> to vector<1x2x1x2x512xf32>
    %259 = vector.extract_strided_slice %258 {offsets = [0, 0, 0, 0, 0], sizes = [1, 2, 1, 1, 512], strides = [1, 1, 1, 1, 1]} : vector<1x2x1x2x512xf32> to vector<1x2x1x1x512xf32>
    %260 = vector.shape_cast %259 : vector<1x2x1x1x512xf32> to vector<1x2x1x512xf32>
    %261 = vector.extract_strided_slice %258 {offsets = [0, 0, 0, 1, 0], sizes = [1, 2, 1, 1, 512], strides = [1, 1, 1, 1, 1]} : vector<1x2x1x2x512xf32> to vector<1x2x1x1x512xf32>
    %262 = vector.shape_cast %261 : vector<1x2x1x1x512xf32> to vector<1x2x1x512xf32>
    %263 = arith.maximumf %260, %262 : vector<1x2x1x512xf32>
    %264 = vector.shape_cast %263 : vector<1x2x1x512xf32> to vector<1x1x2x1x512xf32>
    %265 = vector.extract_strided_slice %264 {offsets = [0, 0, 0, 0, 0], sizes = [1, 1, 1, 1, 512], strides = [1, 1, 1, 1, 1]} : vector<1x1x2x1x512xf32> to vector<1x1x1x1x512xf32>
    %266 = vector.shape_cast %265 : vector<1x1x1x1x512xf32> to vector<1x1x1x512xf32>
    %267 = vector.extract_strided_slice %264 {offsets = [0, 0, 1, 0, 0], sizes = [1, 1, 1, 1, 512], strides = [1, 1, 1, 1, 1]} : vector<1x1x2x1x512xf32> to vector<1x1x1x1x512xf32>
    %268 = vector.shape_cast %267 : vector<1x1x1x1x512xf32> to vector<1x1x1x512xf32>
    %269 = arith.maximumf %266, %268 : vector<1x1x1x512xf32>
    %270 = vector.shape_cast %269 : vector<1x1x1x512xf32> to vector<1x512xf32>
    %271 = arith.truncf %270 : vector<1x512xf32> to vector<1x512xbf16>
    %c0_122 = arith.constant 0 : index
    %c0_123 = arith.constant 0 : index
    %272 = vector.load %arg10[%c0_122, %c0_123] : memref<512x512xbf16, #tpu.memory_space<vmem>>, vector<512x512xbf16>
    %cst_124 = arith.constant dense<0.000000e+00> : vector<1x512xf32>
    %273 = tpu.matmul %271, %272, %cst_124 {dimension_numbers = #tpu.dot_dimension_numbers<[1], [0], [0], [1], [0, 0, 1, 1], [], []>} : vector<1x512xbf16>, vector<512x512xbf16>, vector<1x512xf32> -> vector<1x512xf32>
    %c0_125 = arith.constant 0 : index
    %c0_126 = arith.constant 0 : index
    %274 = vector.load %arg11[%c0_125, %c0_126] : memref<1x512xf32, #tpu.memory_space<vmem>>, vector<1x512xf32>
    %275 = arith.addf %273, %274 : vector<1x512xf32>
    %cst_127 = arith.constant 0.000000e+00 : f32
    %276 = vector.broadcast %cst_127 : f32 to vector<1x512xf32>
    %277 = arith.maximumf %275, %276 : vector<1x512xf32>
    %278 = arith.truncf %277 : vector<1x512xf32> to vector<1x512xbf16>
    %c0_128 = arith.constant 0 : index
    %c0_129 = arith.constant 0 : index
    %279 = vector.load %arg12[%c0_128, %c0_129] : memref<512x512xbf16, #tpu.memory_space<vmem>>, vector<512x512xbf16>
    %cst_130 = arith.constant dense<0.000000e+00> : vector<1x512xf32>
    %280 = tpu.matmul %278, %279, %cst_130 {dimension_numbers = #tpu.dot_dimension_numbers<[1], [0], [0], [1], [0, 0, 1, 1], [], []>} : vector<1x512xbf16>, vector<512x512xbf16>, vector<1x512xf32> -> vector<1x512xf32>
    %c0_131 = arith.constant 0 : index
    %c0_132 = arith.constant 0 : index
    %281 = vector.load %arg13[%c0_131, %c0_132] : memref<1x512xf32, #tpu.memory_space<vmem>>, vector<1x512xf32>
    %282 = arith.addf %280, %281 : vector<1x512xf32>
    %cst_133 = arith.constant 0.000000e+00 : f32
    %283 = vector.broadcast %cst_133 : f32 to vector<1x512xf32>
    %284 = arith.maximumf %282, %283 : vector<1x512xf32>
    %285 = arith.truncf %284 : vector<1x512xf32> to vector<1x512xbf16>
    %c0_134 = arith.constant 0 : index
    %c0_135 = arith.constant 0 : index
    %286 = vector.load %arg14[%c0_134, %c0_135] : memref<512x128xbf16, #tpu.memory_space<vmem>>, vector<512x128xbf16>
    %cst_136 = arith.constant dense<0.000000e+00> : vector<1x128xf32>
    %287 = tpu.matmul %285, %286, %cst_136 {dimension_numbers = #tpu.dot_dimension_numbers<[1], [0], [0], [1], [0, 0, 1, 1], [], []>} : vector<1x512xbf16>, vector<512x128xbf16>, vector<1x128xf32> -> vector<1x128xf32>
    %c0_137 = arith.constant 0 : index
    %c0_138 = arith.constant 0 : index
    %288 = vector.load %arg15[%c0_137, %c0_138] : memref<1x128xf32, #tpu.memory_space<vmem>>, vector<1x128xf32>
    %289 = arith.addf %287, %288 : vector<1x128xf32>
    %c0_139 = arith.constant 0 : index
    %c0_140 = arith.constant 0 : index
    %c0_141 = arith.constant 0 : index
    %290 = vector.load %arg16[%c0_139, %c0_140, %c0_141] : memref<1x1x128xf32, #tpu.memory_space<vmem>>, vector<1x1x128xf32>
    %291 = vector.shape_cast %290 : vector<1x1x128xf32> to vector<1x128xf32>
    %292 = vector.shape_cast %289 : vector<1x128xf32> to vector<1x1x128xf32>
    tpu.vector_store %arg16[%c0_139, %c0_140, %c0_141], %292 {strides = array<i32>} : memref<1x1x128xf32, #tpu.memory_space<vmem>>, vector<1x1x128xf32>,
    return
  }
  func.func @transform_0(%arg0: i32) -> (i32, i32, i32) {
    %c0_i32 = arith.constant 0 : i32
    %c0_i32_0 = arith.constant 0 : i32
    %c0_i32_1 = arith.constant 0 : i32
    return %arg0, %c0_i32, %c0_i32_0 : i32, i32, i32
  }
  func.func @transform_1(%arg0: i32) -> (i32, i32) {
    %c0_i32 = arith.constant 0 : i32
    %c0_i32_0 = arith.constant 0 : i32
    %c0_i32_1 = arith.constant 0 : i32
    return %c0_i32, %c0_i32_0 : i32, i32
  }
  func.func @transform_2(%arg0: i32) -> (i32, i32) {
    %c0_i32 = arith.constant 0 : i32
    %c0_i32_0 = arith.constant 0 : i32
    %c0_i32_1 = arith.constant 0 : i32
    return %c0_i32, %c0_i32_0 : i32, i32
  }
  func.func @transform_3(%arg0: i32) -> (i32, i32, i32) {
    %c0_i32 = arith.constant 0 : i32
    %c0_i32_0 = arith.constant 0 : i32
    %c0_i32_1 = arith.constant 0 : i32
    %c0_i32_2 = arith.constant 0 : i32
    return %c0_i32, %c0_i32_0, %c0_i32_1 : i32, i32, i32
  }
  func.func @transform_4(%arg0: i32) -> (i32, i32) {
    %c0_i32 = arith.constant 0 : i32
    %c0_i32_0 = arith.constant 0 : i32
    %c0_i32_1 = arith.constant 0 : i32
    return %c0_i32, %c0_i32_0 : i32, i32
  }
  func.func @transform_5(%arg0: i32) -> (i32, i32, i32) {
    %c0_i32 = arith.constant 0 : i32
    %c0_i32_0 = arith.constant 0 : i32
    %c0_i32_1 = arith.constant 0 : i32
    %c0_i32_2 = arith.constant 0 : i32
    return %c0_i32, %c0_i32_0, %c0_i32_1 : i32, i32, i32
  }
  func.func @transform_6(%arg0: i32) -> (i32, i32) {
    %c0_i32 = arith.constant 0 : i32
    %c0_i32_0 = arith.constant 0 : i32
    %c0_i32_1 = arith.constant 0 : i32
    return %c0_i32, %c0_i32_0 : i32, i32
  }
  func.func @transform_7(%arg0: i32) -> (i32, i32, i32) {
    %c0_i32 = arith.constant 0 : i32
    %c0_i32_0 = arith.constant 0 : i32
    %c0_i32_1 = arith.constant 0 : i32
    %c0_i32_2 = arith.constant 0 : i32
    return %c0_i32, %c0_i32_0, %c0_i32_1 : i32, i32, i32
  }
  func.func @transform_8(%arg0: i32) -> (i32, i32) {
    %c0_i32 = arith.constant 0 : i32
    %c0_i32_0 = arith.constant 0 : i32
    %c0_i32_1 = arith.constant 0 : i32
    return %c0_i32, %c0_i32_0 : i32, i32
  }
  func.func @transform_9(%arg0: i32) -> (i32, i32) {
    %c0_i32 = arith.constant 0 : i32
    %c0_i32_0 = arith.constant 0 : i32
    %c0_i32_1 = arith.constant 0 : i32
    return %c0_i32, %c0_i32_0 : i32, i32
  }
  func.func @transform_10(%arg0: i32) -> (i32, i32) {
    %c0_i32 = arith.constant 0 : i32
    %c0_i32_0 = arith.constant 0 : i32
    %c0_i32_1 = arith.constant 0 : i32
    return %c0_i32, %c0_i32_0 : i32, i32
  }
  func.func @transform_11(%arg0: i32) -> (i32, i32) {
    %c0_i32 = arith.constant 0 : i32
    %c0_i32_0 = arith.constant 0 : i32
    %c0_i32_1 = arith.constant 0 : i32
    return %c0_i32, %c0_i32_0 : i32, i32
  }
  func.func @transform_12(%arg0: i32) -> (i32, i32) {
    %c0_i32 = arith.constant 0 : i32
    %c0_i32_0 = arith.constant 0 : i32
    %c0_i32_1 = arith.constant 0 : i32
    return %c0_i32, %c0_i32_0 : i32, i32
  }
  func.func @transform_13(%arg0: i32) -> (i32, i32) {
    %c0_i32 = arith.constant 0 : i32
    %c0_i32_0 = arith.constant 0 : i32
    %c0_i32_1 = arith.constant 0 : i32
    return %c0_i32, %c0_i32_0 : i32, i32
  }
  func.func @transform_14(%arg0: i32) -> (i32, i32) {
    %c0_i32 = arith.constant 0 : i32
    %c0_i32_0 = arith.constant 0 : i32
    %c0_i32_1 = arith.constant 0 : i32
    return %c0_i32, %c0_i32_0 : i32, i32
  }
  func.func @transform_15(%arg0: i32) -> (i32, i32, i32) {
    %c0_i32 = arith.constant 0 : i32
    %c0_i32_0 = arith.constant 0 : i32
    %c0_i32_1 = arith.constant 0 : i32
    return %arg0, %c0_i32, %c0_i32_0 : i32, i32, i32
  }
}

</mosaic_0001>

<llo_original>
// kernel: _lambda_.1
$region0: #{_lambda_.1}
  #allocation0 [shape = 'u32[]', space=smem, size = 0x4, offset = 0x4, fixed_abs, tag = 'smem constant byte address 0x4 - core index']
  #allocation1 [shape = 'u32[144,128]{1,0:T(1,128)}', space=vmem, size = 0x12000, scoped, tag = 'internal scratch']
  %s0 = inlined_call_operand.vmem [shape: bf16[2,256,32], index: 0, kind: input, shape index: {}]
  %s1 = inlined_call_operand.vmem [shape: bf16[32,64], index: 1, kind: input, shape index: {}]
  %s2 = inlined_call_operand.vmem [shape: f32[1,64], index: 2, kind: input, shape index: {}]
  %s3 = inlined_call_operand.vmem [shape: bf16[9,64,128], index: 3, kind: input, shape index: {}]
  %s4 = inlined_call_operand.vmem [shape: f32[1,128], index: 4, kind: input, shape index: {}, may-alias: {4,14}]
  %s5 = inlined_call_operand.vmem [shape: bf16[9,128,256], index: 5, kind: input, shape index: {}]
  %s6 = inlined_call_operand.vmem [shape: f32[1,256], index: 6, kind: input, shape index: {}]
  %s7 = inlined_call_operand.vmem [shape: bf16[9,256,512], index: 7, kind: input, shape index: {}]
  %s8 = inlined_call_operand.vmem [shape: f32[1,512], index: 8, kind: input, shape index: {}, may-alias: {8,10,12}]
  %s9 = inlined_call_operand.vmem [shape: bf16[512,512], index: 9, kind: input, shape index: {}]
  %s10 = inlined_call_operand.vmem [shape: f32[1,512], index: 10, kind: input, shape index: {}, may-alias: {8,10,12}]
  %s11 = inlined_call_operand.vmem [shape: bf16[512,512], index: 11, kind: input, shape index: {}]
  %s12 = inlined_call_operand.vmem [shape: f32[1,512], index: 12, kind: input, shape index: {}, may-alias: {8,10,12}]
  %s13 = inlined_call_operand.vmem [shape: bf16[512,128], index: 13, kind: input, shape index: {}]
  %s14 = inlined_call_operand.vmem [shape: f32[1,128], index: 14, kind: input, shape index: {}, may-alias: {4,14}]
  %s15 = inlined_call_operand.hbm [shape: f32[2,1,128], index: 15, kind: output, shape index: {}]
  %s16 = sld [smem:[#allocation0]]
  $region93: #{_lambda_.1} parent=0
    _
  %s18 = ssub.s32 1, %s16
  %s19 = scalar_select 0, %s18, %s16
  $region1: #{_lambda_.1} parent=0
    #allocation2 [shape = 'u8[1024]{0}', space=vmem, size = 0x400, scoped, tag = 'output window, operand 0']
    #allocation3 [shape = 's32[2]{0}', space=sflag, size = 0x8, scoped, tag = 'scoped memory for _lambda_.1']
    %20 = vsyncpa [#allocation3], 0
    %s21 = scalar_lea.sflag [#allocation3], 1
    %22 = vsyncpa %s21, 0
    loop: start=0, step=1, limit=4
    $region2: #{_lambda_.1} parent=1 // loop_pre_header
      _
    $region3: #{_lambda_.1} parent=1 // loop_header
      %s24 = sphi 0, %s28
      %p25 = scmp.ge.s32.totalorder %s24, 4
      %s34 = sphi 0, %s36
      %s37 = sphi 0, %s34
      %s38 = sphi 0, %s37
      %s54 = sphi 0, %s38
      %s58 = sphi 0, %s58
      %s60 = sphi 0, %s58
      %s61 = sphi 0, %s60
      %s75 = sphi 0, %s61
      %s79 = sphi 0, %s79
      %s81 = sphi 0, %s79
      %s82 = sphi 0, %s81
      %s96 = sphi 0, %s82
      %s100 = sphi 0, %s100
      %s102 = sphi 0, %s100
      %s103 = sphi 0, %s102
      %s117 = sphi 0, %s103
      %s121 = sphi 0, %s121
      %s123 = sphi 0, %s121
      %s124 = sphi 0, %s123
      %s138 = sphi 0, %s124
      %s142 = sphi 0, %s142
      %s144 = sphi 0, %s142
      %s145 = sphi 0, %s144
      %s159 = sphi 0, %s145
      %s163 = sphi 0, %s163
      %s165 = sphi 0, %s163
      %s166 = sphi 0, %s165
      %s180 = sphi 0, %s166
      %s184 = sphi 0, %s184
      %s186 = sphi 0, %s184
      %s187 = sphi 0, %s186
      %s201 = sphi 0, %s187
      %s205 = sphi 0, %s205
      %s207 = sphi 0, %s205
      %s208 = sphi 0, %s207
      %s222 = sphi 0, %s208
      %s226 = sphi 0, %s226
      %s228 = sphi 0, %s226
      %s229 = sphi 0, %s228
      %s243 = sphi 0, %s229
      %s247 = sphi 0, %s247
      %s249 = sphi 0, %s247
      %s250 = sphi 0, %s249
      %s264 = sphi 0, %s250
      %s268 = sphi 0, %s268
      %s270 = sphi 0, %s268
      %s271 = sphi 0, %s270
      %s285 = sphi 0, %s271
      %s289 = sphi 0, %s289
      %s291 = sphi 0, %s289
      %s292 = sphi 0, %s291
      %s306 = sphi 0, %s292
      %s310 = sphi 0, %s310
      %s312 = sphi 0, %s310
      %s313 = sphi 0, %s312
      %s327 = sphi 0, %s313
      %s331 = sphi 0, %s331
      %s333 = sphi 0, %s331
      %s334 = sphi 0, %s333
      %s348 = sphi 0, %s334
      %s354 = sphi 0, %s356
      %s357 = sphi 0, %s354
      %s358 = sphi 0, %s357
      %s374 = sphi 0, %s358
    $region4: #{_lambda_.1} parent=1 // loop_header_branch
      %27 = sbr.rel (%p25) target = $region8
    $region5: #{_lambda_.1} parent=1 // loop_body
      %s29 = ssub.s32 %s24, 1
      %s30 = ssub.s32 %s24, 2
      %s31 = sadd.s32 %s24, 1
      %s32 = ssub.s32 %s24, %s31
      %p33 = scmp.eq.s32.totalorder %s32, 0
      %s35 = sadd.s32 %s34, 1
      %s36 = scalar_select %p33, %s34, %s35
      %p39 = pneg %p33
      %p40 = scmp.eq.s32.totalorder %s24, 1
      %p41 = por %p39, %p40
      %p42 = scmp.ne.s32.totalorder %s34, %s37
      %p43 = scmp.eq.s32.totalorder %s24, 0
      %p44 = por %p42, %p43
      %p45 = scmp.ne.s32.totalorder %s34, %s37
      %p46 = scmp.eq.s32.totalorder %s29, 1
      %p47 = por %p45, %p46
      %p48 = scmp.ne.s32.totalorder %s37, %s38
      %p49 = scmp.eq.s32.totalorder %s29, 0
      %p50 = por %p48, %p49
      %p51 = scmp.ne.s32.totalorder %s37, %s38
      %p52 = scmp.eq.s32.totalorder %s30, 1
      %p53 = por %p51, %p52
      %p55 = scmp.ne.s32.totalorder %s38, %s54
      %p56 = scmp.eq.s32.totalorder %s30, 0
      %p57 = por %p55, %p56
      %s59 = sadd.s32 %s58, 1
      %p62 = scmp.eq.s32.totalorder %s24, 1
      %p63 = scmp.ne.s32.totalorder %s58, %s60
      %p64 = scmp.eq.s32.totalorder %s24, 0
      %p65 = por %p63, %p64
      %p66 = scmp.ne.s32.totalorder %s58, %s60
      %p67 = scmp.eq.s32.totalorder %s29, 1
      %p68 = por %p66, %p67
      %p69 = scmp.ne.s32.totalorder %s60, %s61
      %p70 = scmp.eq.s32.totalorder %s29, 0
      %p71 = por %p69, %p70
      %p72 = scmp.ne.s32.totalorder %s60, %s61
      %p73 = scmp.eq.s32.totalorder %s30, 1
      %p74 = por %p72, %p73
      %p76 = scmp.ne.s32.totalorder %s61, %s75
      %p77 = scmp.eq.s32.totalorder %s30, 0
      %p78 = por %p76, %p77
      %s80 = sadd.s32 %s79, 1
      %p83 = scmp.eq.s32.totalorder %s24, 1
      %p84 = scmp.ne.s32.totalorder %s79, %s81
      %p85 = scmp.eq.s32.totalorder %s24, 0
      %p86 = por %p84, %p85
      %p87 = scmp.ne.s32.totalorder %s79, %s81
      %p88 = scmp.eq.s32.totalorder %s29, 1
      %p89 = por %p87, %p88
      %p90 = scmp.ne.s32.totalorder %s81, %s82
      %p91 = scmp.eq.s32.totalorder %s29, 0
      %p92 = por %p90, %p91
      %p93 = scmp.ne.s32.totalorder %s81, %s82
      %p94 = scmp.eq.s32.totalorder %s30, 1
      %p95 = por %p93, %p94
      %p97 = scmp.ne.s32.totalorder %s82, %s96
      %p98 = scmp.eq.s32.totalorder %s30, 0
      %p99 = por %p97, %p98
      %s101 = sadd.s32 %s100, 1
      %p104 = scmp.eq.s32.totalorder %s24, 1
      %p105 = scmp.ne.s32.totalorder %s100, %s102
      %p106 = scmp.eq.s32.totalorder %s24, 0
      %p107 = por %p105, %p106
      %p108 = scmp.ne.s32.totalorder %s100, %s102
      %p109 = scmp.eq.s32.totalorder %s29, 1
      %p110 = por %p108, %p109
      %p111 = scmp.ne.s32.totalorder %s102, %s103
      %p112 = scmp.eq.s32.totalorder %s29, 0
      %p113 = por %p111, %p112
      %p114 = scmp.ne.s32.totalorder %s102, %s103
      %p115 = scmp.eq.s32.totalorder %s30, 1
      %p116 = por %p114, %p115
      %p118 = scmp.ne.s32.totalorder %s103, %s117
      %p119 = scmp.eq.s32.totalorder %s30, 0
      %p120 = por %p118, %p119
      %s122 = sadd.s32 %s121, 1
      %p125 = scmp.eq.s32.totalorder %s24, 1
      %p126 = scmp.ne.s32.totalorder %s121, %s123
      %p127 = scmp.eq.s32.totalorder %s24, 0
      %p128 = por %p126, %p127
      %p129 = scmp.ne.s32.totalorder %s121, %s123
      %p130 = scmp.eq.s32.totalorder %s29, 1
      %p131 = por %p129, %p130
      %p132 = scmp.ne.s32.totalorder %s123, %s124
      %p133 = scmp.eq.s32.totalorder %s29, 0
      %p134 = por %p132, %p133
      %p135 = scmp.ne.s32.totalorder %s123, %s124
      %p136 = scmp.eq.s32.totalorder %s30, 1
      %p137 = por %p135, %p136
      %p139 = scmp.ne.s32.totalorder %s124, %s138
      %p140 = scmp.eq.s32.totalorder %s30, 0
      %p141 = por %p139, %p140
      %s143 = sadd.s32 %s142, 1
      %p146 = scmp.eq.s32.totalorder %s24, 1
      %p147 = scmp.ne.s32.totalorder %s142, %s144
      %p148 = scmp.eq.s32.totalorder %s24, 0
      %p149 = por %p147, %p148
      %p150 = scmp.ne.s32.totalorder %s142, %s144
      %p151 = scmp.eq.s32.totalorder %s29, 1
      %p152 = por %p150, %p151
      %p153 = scmp.ne.s32.totalorder %s144, %s145
      %p154 = scmp.eq.s32.totalorder %s29, 0
      %p155 = por %p153, %p154
      %p156 = scmp.ne.s32.totalorder %s144, %s145
      %p157 = scmp.eq.s32.totalorder %s30, 1
      %p158 = por %p156, %p157
      %p160 = scmp.ne.s32.totalorder %s145, %s159
      %p161 = scmp.eq.s32.totalorder %s30, 0
      %p162 = por %p160, %p161
      %s164 = sadd.s32 %s163, 1
      %p167 = scmp.eq.s32.totalorder %s24, 1
      %p168 = scmp.ne.s32.totalorder %s163, %s165
      %p169 = scmp.eq.s32.totalorder %s24, 0
      %p170 = por %p168, %p169
      %p171 = scmp.ne.s32.totalorder %s163, %s165
      %p172 = scmp.eq.s32.totalorder %s29, 1
      %p173 = por %p171, %p172
      %p174 = scmp.ne.s32.totalorder %s165, %s166
      %p175 = scmp.eq.s32.totalorder %s29, 0
      %p176 = por %p174, %p175
      %p177 = scmp.ne.s32.totalorder %s165, %s166
      %p178 = scmp.eq.s32.totalorder %s30, 1
      %p179 = por %p177, %p178
      %p181 = scmp.ne.s32.totalorder %s166, %s180
      %p182 = scmp.eq.s32.totalorder %s30, 0
      %p183 = por %p181, %p182
      %s185 = sadd.s32 %s184, 1
      %p188 = scmp.eq.s32.totalorder %s24, 1
      %p189 = scmp.ne.s32.totalorder %s184, %s186
      %p190 = scmp.eq.s32.totalorder %s24, 0
      %p191 = por %p189, %p190
      %p192 = scmp.ne.s32.totalorder %s184, %s186
      %p193 = scmp.eq.s32.totalorder %s29, 1
      %p194 = por %p192, %p193
      %p195 = scmp.ne.s32.totalorder %s186, %s187
      %p196 = scmp.eq.s32.totalorder %s29, 0
      %p197 = por %p195, %p196
      %p198 = scmp.ne.s32.totalorder %s186, %s187
      %p199 = scmp.eq.s32.totalorder %s30, 1
      %p200 = por %p198, %p199
      %p202 = scmp.ne.s32.totalorder %s187, %s201
      %p203 = scmp.eq.s32.totalorder %s30, 0
      %p204 = por %p202, %p203
      %s206 = sadd.s32 %s205, 1
      %p209 = scmp.eq.s32.totalorder %s24, 1
      %p210 = scmp.ne.s32.totalorder %s205, %s207
      %p211 = scmp.eq.s32.totalorder %s24, 0
      %p212 = por %p210, %p211
      %p213 = scmp.ne.s32.totalorder %s205, %s207
      %p214 = scmp.eq.s32.totalorder %s29, 1
      %p215 = por %p213, %p214
      %p216 = scmp.ne.s32.totalorder %s207, %s208
      %p217 = scmp.eq.s32.totalorder %s29, 0
      %p218 = por %p216, %p217
      %p219 = scmp.ne.s32.totalorder %s207, %s208
      %p220 = scmp.eq.s32.totalorder %s30, 1
      %p221 = por %p219, %p220
      %p223 = scmp.ne.s32.totalorder %s208, %s222
      %p224 = scmp.eq.s32.totalorder %s30, 0
      %p225 = por %p223, %p224
      %s227 = sadd.s32 %s226, 1
      %p230 = scmp.eq.s32.totalorder %s24, 1
      %p231 = scmp.ne.s32.totalorder %s226, %s228
      %p232 = scmp.eq.s32.totalorder %s24, 0
      %p233 = por %p231, %p232
      %p234 = scmp.ne.s32.totalorder %s226, %s228
      %p235 = scmp.eq.s32.totalorder %s29, 1
      %p236 = por %p234, %p235
      %p237 = scmp.ne.s32.totalorder %s228, %s229
      %p238 = scmp.eq.s32.totalorder %s29, 0
      %p239 = por %p237, %p238
      %p240 = scmp.ne.s32.totalorder %s228, %s229
      %p241 = scmp.eq.s32.totalorder %s30, 1
      %p242 = por %p240, %p241
      %p244 = scmp.ne.s32.totalorder %s229, %s243
      %p245 = scmp.eq.s32.totalorder %s30, 0
      %p246 = por %p244, %p245
      %s248 = sadd.s32 %s247, 1
      %p251 = scmp.eq.s32.totalorder %s24, 1
      %p252 = scmp.ne.s32.totalorder %s247, %s249
      %p253 = scmp.eq.s32.totalorder %s24, 0
      %p254 = por %p252, %p253
      %p255 = scmp.ne.s32.totalorder %s247, %s249
      %p256 = scmp.eq.s32.totalorder %s29, 1
      %p257 = por %p255, %p256
      %p258 = scmp.ne.s32.totalorder %s249, %s250
      %p259 = scmp.eq.s32.totalorder %s29, 0
      %p260 = por %p258, %p259
      %p261 = scmp.ne.s32.totalorder %s249, %s250
      %p262 = scmp.eq.s32.totalorder %s30, 1
      %p263 = por %p261, %p262
      %p265 = scmp.ne.s32.totalorder %s250, %s264
      %p266 = scmp.eq.s32.totalorder %s30, 0
      %p267 = por %p265, %p266
      %s269 = sadd.s32 %s268, 1
      %p272 = scmp.eq.s32.totalorder %s24, 1
      %p273 = scmp.ne.s32.totalorder %s268, %s270
      %p274 = scmp.eq.s32.totalorder %s24, 0
      %p275 = por %p273, %p274
      %p276 = scmp.ne.s32.totalorder %s268, %s270
      %p277 = scmp.eq.s32.totalorder %s29, 1
      %p278 = por %p276, %p277
      %p279 = scmp.ne.s32.totalorder %s270, %s271
      %p280 = scmp.eq.s32.totalorder %s29, 0
      %p281 = por %p279, %p280
      %p282 = scmp.ne.s32.totalorder %s270, %s271
      %p283 = scmp.eq.s32.totalorder %s30, 1
      %p284 = por %p282, %p283
      %p286 = scmp.ne.s32.totalorder %s271, %s285
      %p287 = scmp.eq.s32.totalorder %s30, 0
      %p288 = por %p286, %p287
      %s290 = sadd.s32 %s289, 1
      %p293 = scmp.eq.s32.totalorder %s24, 1
      %p294 = scmp.ne.s32.totalorder %s289, %s291
      %p295 = scmp.eq.s32.totalorder %s24, 0
      %p296 = por %p294, %p295
      %p297 = scmp.ne.s32.totalorder %s289, %s291
      %p298 = scmp.eq.s32.totalorder %s29, 1
      %p299 = por %p297, %p298
      %p300 = scmp.ne.s32.totalorder %s291, %s292
      %p301 = scmp.eq.s32.totalorder %s29, 0
      %p302 = por %p300, %p301
      %p303 = scmp.ne.s32.totalorder %s291, %s292
      %p304 = scmp.eq.s32.totalorder %s30, 1
      %p305 = por %p303, %p304
      %p307 = scmp.ne.s32.totalorder %s292, %s306
      %p308 = scmp.eq.s32.totalorder %s30, 0
      %p309 = por %p307, %p308
      %s311 = sadd.s32 %s310, 1
      %p314 = scmp.eq.s32.totalorder %s24, 1
      %p315 = scmp.ne.s32.totalorder %s310, %s312
      %p316 = scmp.eq.s32.totalorder %s24, 0
      %p317 = por %p315, %p316
      %p318 = scmp.ne.s32.totalorder %s310, %s312
      %p319 = scmp.eq.s32.totalorder %s29, 1
      %p320 = por %p318, %p319
      %p321 = scmp.ne.s32.totalorder %s312, %s313
      %p322 = scmp.eq.s32.totalorder %s29, 0
      %p323 = por %p321, %p322
      %p324 = scmp.ne.s32.totalorder %s312, %s313
      %p325 = scmp.eq.s32.totalorder %s30, 1
      %p326 = por %p324, %p325
      %p328 = scmp.ne.s32.totalorder %s313, %s327
      %p329 = scmp.eq.s32.totalorder %s30, 0
      %p330 = por %p328, %p329
      %s332 = sadd.s32 %s331, 1
      %p335 = scmp.eq.s32.totalorder %s24, 1
      %p336 = scmp.ne.s32.totalorder %s331, %s333
      %p337 = scmp.eq.s32.totalorder %s24, 0
      %p338 = por %p336, %p337
      %p339 = scmp.ne.s32.totalorder %s331, %s333
      %p340 = scmp.eq.s32.totalorder %s29, 1
      %p341 = por %p339, %p340
      %p342 = scmp.ne.s32.totalorder %s333, %s334
      %p343 = scmp.eq.s32.totalorder %s29, 0
      %p344 = por %p342, %p343
      %p345 = scmp.ne.s32.totalorder %s333, %s334
      %p346 = scmp.eq.s32.totalorder %s30, 1
      %p347 = por %p345, %p346
      %p349 = scmp.ne.s32.totalorder %s334, %s348
      %p350 = scmp.eq.s32.totalorder %s30, 0
      %p351 = por %p349, %p350
      %s352 = ssub.s32 %s24, %s31
      %p353 = scmp.eq.s32.totalorder %s352, 0
      %s355 = sadd.s32 %s354, 1
      %s356 = scalar_select %p353, %s354, %s355
      %p359 = pneg %p353
      %p360 = scmp.eq.s32.totalorder %s24, 1
      %p361 = por %p359, %p360
      %p362 = scmp.ne.s32.totalorder %s354, %s357
      %p363 = scmp.eq.s32.totalorder %s24, 0
      %p364 = por %p362, %p363
      %p365 = scmp.ne.s32.totalorder %s354, %s357
      %p366 = scmp.eq.s32.totalorder %s29, 1
      %p367 = por %p365, %p366
      %p368 = scmp.ne.s32.totalorder %s357, %s358
      %p369 = scmp.eq.s32.totalorder %s29, 0
      %p370 = por %p368, %p369
      %p371 = scmp.ne.s32.totalorder %s357, %s358
      %p372 = scmp.eq.s32.totalorder %s30, 1
      %p373 = por %p371, %p372
      %p375 = scmp.ne.s32.totalorder %s358, %s374
      %p376 = scmp.eq.s32.totalorder %s30, 0
      %p377 = por %p375, %p376
      %p378 = scmp.le.s32.totalorder 1, %s24
      %p379 = scmp.lt.s32.totalorder %s24, 3
      %p380 = pnand %p378, %p379
      %p381 = pneg %p380
      // Predicated region
      $region9: #{_lambda_.1} parent=5 // pred_check
        _
      $region10: #{_lambda_.1} parent=5 // pred_check_branch
        %383 = sbr.rel (%p380) target = $region12
      $region11: #{_lambda_.1} parent=5 // pred_region
        %s384 = ssub.s32 %s24, 1
        // Predicated region
        $region13: #{_lambda_.1} parent=11 // pred_check
          %p385 = pneg %p71
        $region14: #{_lambda_.1} parent=11 // pred_check_branch
          %387 = sbr.rel (%p385) target = $region16
        $region15: #{_lambda_.1} parent=11 // pred_region
          _
        $region16: #{_lambda_.1} parent=11 // pred_fallthru
          _
        // Predicated region
        $region17: #{_lambda_.1} parent=11 // pred_check
          %p388 = pneg %p92
        $region18: #{_lambda_.1} parent=11 // pred_check_branch
          %390 = sbr.rel (%p388) target = $region20
        $region19: #{_lambda_.1} parent=11 // pred_region
          _
        $region20: #{_lambda_.1} parent=11 // pred_fallthru
          _
        // Predicated region
        $region21: #{_lambda_.1} parent=11 // pred_check
          %p391 = pneg %p113
        $region22: #{_lambda_.1} parent=11 // pred_check_branch
          %393 = sbr.rel (%p391) target = $region24
        $region23: #{_lambda_.1} parent=11 // pred_region
          _
        $region24: #{_lambda_.1} parent=11 // pred_fallthru
          _
        // Predicated region
        $region25: #{_lambda_.1} parent=11 // pred_check
          %p394 = pneg %p134
        $region26: #{_lambda_.1} parent=11 // pred_check_branch
          %396 = sbr.rel (%p394) target = $region28
        $region27: #{_lambda_.1} parent=11 // pred_region
          _
        $region28: #{_lambda_.1} parent=11 // pred_fallthru
          _
        // Predicated region
        $region29: #{_lambda_.1} parent=11 // pred_check
          %p397 = pneg %p155
        $region30: #{_lambda_.1} parent=11 // pred_check_branch
          %399 = sbr.rel (%p397) target = $region32
        $region31: #{_lambda_.1} parent=11 // pred_region
          _
        $region32: #{_lambda_.1} parent=11 // pred_fallthru
          _
        // Predicated region
        $region33: #{_lambda_.1} parent=11 // pred_check
          %p400 = pneg %p176
        $region34: #{_lambda_.1} parent=11 // pred_check_branch
          %402 = sbr.rel (%p400) target = $region36
        $region35: #{_lambda_.1} parent=11 // pred_region
          _
        $region36: #{_lambda_.1} parent=11 // pred_fallthru
          _
        // Predicated region
        $region37: #{_lambda_.1} parent=11 // pred_check
          %p403 = pneg %p197
        $region38: #{_lambda_.1} parent=11 // pred_check_branch
          %405 = sbr.rel (%p403) target = $region40
        $region39: #{_lambda_.1} parent=11 // pred_region
          _
        $region40: #{_lambda_.1} parent=11 // pred_fallthru
          _
        // Predicated region
        $region41: #{_lambda_.1} parent=11 // pred_check
          %p406 = pneg %p218
        $region42: #{_lambda_.1} parent=11 // pred_check_branch
          %408 = sbr.rel (%p406) target = $region44
        $region43: #{_lambda_.1} parent=11 // pred_region
          _
        $region44: #{_lambda_.1} parent=11 // pred_fallthru
          _
        // Predicated region
        $region45: #{_lambda_.1} parent=11 // pred_check
          %p409 = pneg %p239
        $region46: #{_lambda_.1} parent=11 // pred_check_branch
          %411 = sbr.rel (%p409) target = $region48
        $region47: #{_lambda_.1} parent=11 // pred_region
          _
        $region48: #{_lambda_.1} parent=11 // pred_fallthru
          _
        // Predicated region
        $region49: #{_lambda_.1} parent=11 // pred_check
          %p412 = pneg %p260
        $region50: #{_lambda_.1} parent=11 // pred_check_branch
          %414 = sbr.rel (%p412) target = $region52
        $region51: #{_lambda_.1} parent=11 // pred_region
          _
        $region52: #{_lambda_.1} parent=11 // pred_fallthru
          _
        // Predicated region
        $region53: #{_lambda_.1} parent=11 // pred_check
          %p415 = pneg %p281
        $region54: #{_lambda_.1} parent=11 // pred_check_branch
          %417 = sbr.rel (%p415) target = $region56
        $region55: #{_lambda_.1} parent=11 // pred_region
          _
        $region56: #{_lambda_.1} parent=11 // pred_fallthru
          _
        // Predicated region
        $region57: #{_lambda_.1} parent=11 // pred_check
          %p418 = pneg %p302
        $region58: #{_lambda_.1} parent=11 // pred_check_branch
          %420 = sbr.rel (%p418) target = $region60
        $region59: #{_lambda_.1} parent=11 // pred_region
          _
        $region60: #{_lambda_.1} parent=11 // pred_fallthru
          _
        // Predicated region
        $region61: #{_lambda_.1} parent=11 // pred_check
          %p421 = pneg %p323
        $region62: #{_lambda_.1} parent=11 // pred_check_branch
          %423 = sbr.rel (%p421) target = $region64
        $region63: #{_lambda_.1} parent=11 // pred_region
          _
        $region64: #{_lambda_.1} parent=11 // pred_fallthru
          _
        // Predicated region
        $region65: #{_lambda_.1} parent=11 // pred_check
          %p424 = pneg %p344
        $region66: #{_lambda_.1} parent=11 // pred_check_branch
          %426 = sbr.rel (%p424) target = $region68
        $region67: #{_lambda_.1} parent=11 // pred_region
          _
        $region68: #{_lambda_.1} parent=11 // pred_fallthru
          _
      $region12: #{_lambda_.1} parent=5 // pred_fallthru
        _
      %p427 = scmp.lt.s32.totalorder %s24, 2
      // Predicated region
      $region69: #{_lambda_.1} parent=5 // pred_check
        %p428 = pneg %p427
      $region70: #{_lambda_.1} parent=5 // pred_check_branch
        %430 = sbr.rel (%p428) target = $region72
      $region71: #{_lambda_.1} parent=5 // pred_region
        // Predicated region
        $region73: #{_lambda_.1} parent=71 // pred_check
          %p431 = pneg %p44
        $region74: #{_lambda_.1} parent=71 // pred_check_branch
          %433 = sbr.rel (%p431) target = $region76
        $region75: #{_lambda_.1} parent=71 // pred_region
          %p434 = scmp.lt.s32.totalorder %s24, 1
          %s435 = scalar_select %p434, %s24, 1
          %s436 = smul.addr %s435, 32
          %s437 = smul.addr %s436, 4
          %s438 = scalar_lea.vmem %s0, %s437
        $region76: #{_lambda_.1} parent=71 // pred_fallthru
          _
      $region72: #{_lambda_.1} parent=5 // pred_fallthru
        _
      %p439 = scmp.le.s32.totalorder 1, %s24
      %p440 = scmp.lt.s32.totalorder %s24, 3
      %p441 = pnand %p439, %p440
      %p442 = pneg %p441
      // Predicated region
      $region77: #{_lambda_.1} parent=5 // pred_check
        _
      $region78: #{_lambda_.1} parent=5 // pred_check_branch
        %444 = sbr.rel (%p441) target = $region80
      $region79: #{_lambda_.1} parent=5 // pred_region
        %s445 = ssub.s32 %s24, 1
        %p446 = scmp.lt.s32.totalorder %s29, 1
        %s447 = scalar_select %p446, %s29, 1
        %s448 = smul.addr %s447, 32
        %s449 = smul.addr %s448, 4
        %s450 = scalar_lea.vmem %s0, %s449
        %p451 = pneg %p50
        %p452 = pneg %p47
        %p453 = pneg %p71
        %p454 = pneg %p68
        %p455 = pneg %p92
        %p456 = pneg %p89
        %p457 = pneg %p113
        %p458 = pneg %p110
        %p459 = pneg %p134
        %p460 = pneg %p131
        %p461 = pneg %p155
        %p462 = pneg %p152
        %p463 = pneg %p176
        %p464 = pneg %p173
        %p465 = pneg %p197
        %p466 = pneg %p194
        %p467 = pneg %p218
        %p468 = pneg %p215
        %p469 = pneg %p239
        %p470 = pneg %p236
        %p471 = pneg %p260
        %p472 = pneg %p257
        %p473 = pneg %p281
        %p474 = pneg %p278
        %p475 = pneg %p302
        %p476 = pneg %p299
        %p477 = pneg %p323
        %p478 = pneg %p320
        %p479 = pneg %p344
        %p480 = pneg %p341
        %p481 = pneg %p370
        %p482 = pneg %p367
        %s483 = sand.u32 %s357, 1
        %s484 = scalar_lea.sflag [#allocation3], %s483
        %s485 = sand.u32 %s357, 1
        %s486 = scalar_lea.vmem [#allocation2], %s485
        %p487 = scmp.lt.s32.totalorder %s29, 1
        %s488 = scalar_select %p487, %s29, 1
        %s489 = smul.addr %s488, 32
        %s490 = smul.addr %s489, 4
        %s491 = scalar_lea.vmem %s0, %s490
        %v493 = vld [vmem:[%s491] sm:$0xf]
        %v494 = vld [vmem:[%s491 + $0x4] sm:$0xf]
        %v495 = vld [vmem:[%s491 + $0x8] sm:$0xf]
        %v496 = vld [vmem:[%s491 + $0xc] sm:$0xf]
        %v497 = vld [vmem:[%s491 + $0x10] sm:$0xf]
        %v498 = vld [vmem:[%s491 + $0x14] sm:$0xf]
        %v499 = vld [vmem:[%s491 + $0x18] sm:$0xf]
        %v500 = vld [vmem:[%s491 + $0x1c] sm:$0xf]
        %v501 = vld [vmem:[%s491 + $0x20] sm:$0xf]
        %v502 = vld [vmem:[%s491 + $0x24] sm:$0xf]
        %v503 = vld [vmem:[%s491 + $0x28] sm:$0xf]
        %v504 = vld [vmem:[%s491 + $0x2c] sm:$0xf]
        %v505 = vld [vmem:[%s491 + $0x30] sm:$0xf]
        %v506 = vld [vmem:[%s491 + $0x34] sm:$0xf]
        %v507 = vld [vmem:[%s491 + $0x38] sm:$0xf]
        %v508 = vld [vmem:[%s491 + $0x3c] sm:$0xf]
        %v509 = vld [vmem:[%s491 + $0x40] sm:$0xf]
        %v510 = vld [vmem:[%s491 + $0x44] sm:$0xf]
        %v511 = vld [vmem:[%s491 + $0x48] sm:$0xf]
        %v512 = vld [vmem:[%s491 + $0x4c] sm:$0xf]
        %v513 = vld [vmem:[%s491 + $0x50] sm:$0xf]
        %v514 = vld [vmem:[%s491 + $0x54] sm:$0xf]
        %v515 = vld [vmem:[%s491 + $0x58] sm:$0xf]
        %v516 = vld [vmem:[%s491 + $0x5c] sm:$0xf]
        %v517 = vld [vmem:[%s491 + $0x60] sm:$0xf]
        %v518 = vld [vmem:[%s491 + $0x64] sm:$0xf]
        %v519 = vld [vmem:[%s491 + $0x68] sm:$0xf]
        %v520 = vld [vmem:[%s491 + $0x6c] sm:$0xf]
        %v521 = vld [vmem:[%s491 + $0x70] sm:$0xf]
        %v522 = vld [vmem:[%s491 + $0x74] sm:$0xf]
        %v523 = vld [vmem:[%s491 + $0x78] sm:$0xf]
        %v524 = vld [vmem:[%s491 + $0x7c] sm:$0xf]
        %v525 = vld [vmem:[%s1] sm:$0xf]
        %v526 = vld [vmem:[%s1 + $0x4] sm:$0xf]
        %v527 = vld [vmem:[%s1 + $0x8] sm:$0xf]
        %v528 = vld [vmem:[%s1 + $0xc] sm:$0xf]
        %v529 = vld [vmem:[%s2] sm:$0x1]
        %v531 = vlaneseq
        %v532 = vshrl.u32 %v531, 7
        %v533 = vsub.s32 0, %v532
        %v534 = vrot.slane %v529, %v533
        %v568 = vunpack.c.l.b16 %v493
        %v569 = vunpack.c.l.b16 %v494
        %v570 = vunpack.c.l.b16 %v495
        %v571 = vunpack.c.l.b16 %v496
        %v572 = vunpack.c.l.b16 %v497
        %v573 = vunpack.c.l.b16 %v498
        %v574 = vunpack.c.l.b16 %v499
        %v575 = vunpack.c.l.b16 %v500
        %v576 = vunpack.c.l.b16 %v501
        %v577 = vunpack.c.l.b16 %v502
        %v578 = vunpack.c.l.b16 %v503
        %v579 = vunpack.c.l.b16 %v504
        %v580 = vunpack.c.l.b16 %v505
        %v581 = vunpack.c.l.b16 %v506
        %v582 = vunpack.c.l.b16 %v507
        %v583 = vunpack.c.l.b16 %v508
        %v584 = vunpack.c.l.b16 %v509
        %v585 = vunpack.c.l.b16 %v510
        %v586 = vunpack.c.l.b16 %v511
        %v587 = vunpack.c.l.b16 %v512
        %v588 = vunpack.c.l.b16 %v513
        %v589 = vunpack.c.l.b16 %v514
        %v590 = vunpack.c.l.b16 %v515
        %v591 = vunpack.c.l.b16 %v516
        %v592 = vunpack.c.l.b16 %v517
        %v593 = vunpack.c.l.b16 %v518
        %v594 = vunpack.c.l.b16 %v519
        %v595 = vunpack.c.l.b16 %v520
        %v596 = vunpack.c.l.b16 %v521
        %v597 = vunpack.c.l.b16 %v522
        %v598 = vunpack.c.l.b16 %v523
        %v599 = vunpack.c.l.b16 %v524
        %v600 = vpack.c.b16 %v569, %v568
        %v601 = vpack.c.b16 %v571, %v570
        %v602 = vpack.c.b16 %v573, %v572
        %v603 = vpack.c.b16 %v575, %v574
        %v604 = vpack.c.b16 %v577, %v576
        %v605 = vpack.c.b16 %v579, %v578
        %v606 = vpack.c.b16 %v581, %v580
        %v607 = vpack.c.b16 %v583, %v582
        %v608 = vpack.c.b16 %v585, %v584
        %v609 = vpack.c.b16 %v587, %v586
        %v610 = vpack.c.b16 %v589, %v588
        %v611 = vpack.c.b16 %v591, %v590
        %v612 = vpack.c.b16 %v593, %v592
        %v613 = vpack.c.b16 %v595, %v594
        %v614 = vpack.c.b16 %v597, %v596
        %v615 = vpack.c.b16 %v599, %v598
        %v620 = vunpack.c.l.b16 %v525
        %v621 = vunpack.c.l.b16 %v526
        %v622 = vunpack.c.l.b16 %v527
        %v623 = vunpack.c.l.b16 %v528
        %v624 = vpack.c.b16 %v621, %v620
        %v625 = vpack.c.b16 %v623, %v622
        %vm628 = vcmask 261120
        %v630 = vsel %vm628, %v600, 0
        %v633 = vsel %vm628, %v601, 0
        %v636 = vsel %vm628, %v602, 0
        %v639 = vsel %vm628, %v603, 0
        %v642 = vsel %vm628, %v604, 0
        %v645 = vsel %vm628, %v605, 0
        %v648 = vsel %vm628, %v606, 0
        %v651 = vsel %vm628, %v607, 0
        %v654 = vsel %vm628, %v608, 0
        %v657 = vsel %vm628, %v609, 0
        %v660 = vsel %vm628, %v610, 0
        %v663 = vsel %vm628, %v611, 0
        %v666 = vsel %vm628, %v612, 0
        %v669 = vsel %vm628, %v613, 0
        %v672 = vsel %vm628, %v614, 0
        %v675 = vsel %vm628, %v615, 0
        %677 = vmatprep.subr.bf16.mxu0 0
        %678 = vmatpush1.bf16.msra.mxu0 %v624
        %679 = vmatprep.subr.bf16.mxu0 0
        %680 = vmatpush1.bf16.msra.mxu0 %v625
        %681 = vmatprep.subr.bf16.mxu0 0
        %682 = vmatpush1.bf16.msra.mxu0 0
        %683 = vmatprep.subr.bf16.mxu0 0
        %684 = vmatpush1.bf16.msra.mxu0 0
        %685 = vmatprep.subr.bf16.mxu0 0
        %686 = vmatpush1.bf16.msra.mxu0 0
        %687 = vmatprep.subr.bf16.mxu0 0
        %688 = vmatpush1.bf16.msra.mxu0 0
        %689 = vmatprep.subr.bf16.mxu0 0
        %690 = vmatpush1.bf16.msra.mxu0 0
        %691 = vmatprep.subr.bf16.mxu0 0
        %692 = vmatpush1.bf16.msra.mxu0 0
        %693 = vmatprep.subr.bf16.mxu0 0
        %694 = vmatpush1.bf16.msra.mxu0 0
        %695 = vmatprep.subr.bf16.mxu0 0
        %696 = vmatpush1.bf16.msra.mxu0 0
        %697 = vmatprep.subr.bf16.mxu0 0
        %698 = vmatpush1.bf16.msra.mxu0 0
        %699 = vmatprep.subr.bf16.mxu0 0
        %700 = vmatpush1.bf16.msra.mxu0 0
        %701 = vmatprep.subr.bf16.mxu0 0
        %702 = vmatpush1.bf16.msra.mxu0 0
        %703 = vmatprep.subr.bf16.mxu0 0
        %704 = vmatpush1.bf16.msra.mxu0 0
        %705 = vmatprep.subr.bf16.mxu0 0
        %706 = vmatpush1.bf16.msra.mxu0 0
        %707 = vmatprep.subr.bf16.mxu0 0
        %708 = vmatpush1.bf16.msra.mxu0 0
        %709 = vmatprep.mubr.bf16.mxu0 0
        %710 = vmatmul.mubr.bf16.gmra.mrb[0].mxu0 %v630
        %v711 = vpop.f32.mrb[0].mxu0
        %v712 = vadd.f32 %v534, %v711
        %v713 = vpop.f32.mrb[0].mxu0
        %v714 = vpop.f32.mrb[0].mxu0
        %v715 = vadd.f32 %v534, %v714
        %v716 = vpop.f32.mrb[0].mxu0
        %717 = vmatprep.mubr.bf16.mxu0 0
        %718 = vmatmul.mubr.bf16.gmra.mrb[0].mxu0 %v633
        %v719 = vpop.f32.mrb[0].mxu0
        %v720 = vadd.f32 %v534, %v719
        %v721 = vpop.f32.mrb[0].mxu0
        %v722 = vpop.f32.mrb[0].mxu0
        %v723 = vadd.f32 %v534, %v722
        %v724 = vpop.f32.mrb[0].mxu0
        %725 = vmatprep.mubr.bf16.mxu0 0
        %726 = vmatmul.mubr.bf16.gmra.mrb[0].mxu0 %v636
        %v727 = vpop.f32.mrb[0].mxu0
        %v728 = vadd.f32 %v534, %v727
        %v729 = vpop.f32.mrb[0].mxu0
        %v730 = vpop.f32.mrb[0].mxu0
        %v731 = vadd.f32 %v534, %v730
        %v732 = vpop.f32.mrb[0].mxu0
        %733 = vmatprep.mubr.bf16.mxu0 0
        %734 = vmatmul.mubr.bf16.gmra.mrb[0].mxu0 %v639
        %v735 = vpop.f32.mrb[0].mxu0
        %v736 = vadd.f32 %v534, %v735
        %v737 = vpop.f32.mrb[0].mxu0
        %v738 = vpop.f32.mrb[0].mxu0
        %v739 = vadd.f32 %v534, %v738
        %v740 = vpop.f32.mrb[0].mxu0
        %741 = vmatprep.mubr.bf16.mxu0 0
        %742 = vmatmul.mubr.bf16.gmra.mrb[0].mxu0 %v642
        %v743 = vpop.f32.mrb[0].mxu0
        %v744 = vadd.f32 %v534, %v743
        %v745 = vpop.f32.mrb[0].mxu0
        %v746 = vpop.f32.mrb[0].mxu0
        %v747 = vadd.f32 %v534, %v746
        %v748 = vpop.f32.mrb[0].mxu0
        %749 = vmatprep.mubr.bf16.mxu0 0
        %750 = vmatmul.mubr.bf16.gmra.mrb[0].mxu0 %v645
        %v751 = vpop.f32.mrb[0].mxu0
        %v752 = vadd.f32 %v534, %v751
        %v753 = vpop.f32.mrb[0].mxu0
        %v754 = vpop.f32.mrb[0].mxu0
        %v755 = vadd.f32 %v534, %v754
        %v756 = vpop.f32.mrb[0].mxu0
        %757 = vmatprep.mubr.bf16.mxu0 0
        %758 = vmatmul.mubr.bf16.gmra.mrb[0].mxu0 %v648
        %v759 = vpop.f32.mrb[0].mxu0
        %v760 = vadd.f32 %v534, %v759
        %v761 = vpop.f32.mrb[0].mxu0
        %v762 = vpop.f32.mrb[0].mxu0
        %v763 = vadd.f32 %v534, %v762
        %v764 = vpop.f32.mrb[0].mxu0
        %765 = vmatprep.mubr.bf16.mxu0 0
        %766 = vmatmul.mubr.bf16.gmra.mrb[0].mxu0 %v651
        %v767 = vpop.f32.mrb[0].mxu0
        %v768 = vadd.f32 %v534, %v767
        %v769 = vpop.f32.mrb[0].mxu0
        %v770 = vpop.f32.mrb[0].mxu0
        %v771 = vadd.f32 %v534, %v770
        %v772 = vpop.f32.mrb[0].mxu0
        %773 = vmatprep.mubr.bf16.mxu0 0
        %774 = vmatmul.mubr.bf16.gmra.mrb[0].mxu0 %v654
        %v775 = vpop.f32.mrb[0].mxu0
        %v776 = vadd.f32 %v534, %v775
        %v777 = vpop.f32.mrb[0].mxu0
        %v778 = vpop.f32.mrb[0].mxu0
        %v779 = vadd.f32 %v534, %v778
        %v780 = vpop.f32.mrb[0].mxu0
        %781 = vmatprep.mubr.bf16.mxu0 0
        %782 = vmatmul.mubr.bf16.gmra.mrb[0].mxu0 %v657
        %v783 = vpop.f32.mrb[0].mxu0
        %v784 = vadd.f32 %v534, %v783
        %v785 = vpop.f32.mrb[0].mxu0
        %v786 = vpop.f32.mrb[0].mxu0
        %v787 = vadd.f32 %v534, %v786
        %v788 = vpop.f32.mrb[0].mxu0
        %789 = vmatprep.mubr.bf16.mxu0 0
        %790 = vmatmul.mubr.bf16.gmra.mrb[0].mxu0 %v660
        %v791 = vpop.f32.mrb[0].mxu0
        %v792 = vadd.f32 %v534, %v791
        %v793 = vpop.f32.mrb[0].mxu0
        %v794 = vpop.f32.mrb[0].mxu0
        %v795 = vadd.f32 %v534, %v794
        %v796 = vpop.f32.mrb[0].mxu0
        %797 = vmatprep.mubr.bf16.mxu0 0
        %798 = vmatmul.mubr.bf16.gmra.mrb[0].mxu0 %v663
        %v799 = vpop.f32.mrb[0].mxu0
        %v800 = vadd.f32 %v534, %v799
        %v801 = vpop.f32.mrb[0].mxu0
        %v802 = vpop.f32.mrb[0].mxu0
        %v803 = vadd.f32 %v534, %v802
        %v804 = vpop.f32.mrb[0].mxu0
        %805 = vmatprep.mubr.bf16.mxu0 0
        %806 = vmatmul.mubr.bf16.gmra.mrb[0].mxu0 %v666
        %v807 = vpop.f32.mrb[0].mxu0
        %v808 = vadd.f32 %v534, %v807
        %v809 = vpop.f32.mrb[0].mxu0
        %v810 = vpop.f32.mrb[0].mxu0
        %v811 = vadd.f32 %v534, %v810
        %v812 = vpop.f32.mrb[0].mxu0
        %813 = vmatprep.mubr.bf16.mxu0 0
        %814 = vmatmul.mubr.bf16.gmra.mrb[0].mxu0 %v669
        %v815 = vpop.f32.mrb[0].mxu0
        %v816 = vadd.f32 %v534, %v815
        %v817 = vpop.f32.mrb[0].mxu0
        %v818 = vpop.f32.mrb[0].mxu0
        %v819 = vadd.f32 %v534, %v818
        %v820 = vpop.f32.mrb[0].mxu0
        %821 = vmatprep.mubr.bf16.mxu0 0
        %822 = vmatmul.mubr.bf16.gmra.mrb[0].mxu0 %v672
        %v823 = vpop.f32.mrb[0].mxu0
        %v824 = vadd.f32 %v534, %v823
        %v825 = vpop.f32.mrb[0].mxu0
        %v826 = vpop.f32.mrb[0].mxu0
        %v827 = vadd.f32 %v534, %v826
        %v828 = vpop.f32.mrb[0].mxu0
        %829 = vmatprep.mubr.bf16.mxu0 0
        %830 = vmatmul.mubr.bf16.gmra.mrb[0].mxu0 %v675
        %v831 = vpop.f32.mrb[0].mxu0
        %v832 = vadd.f32 %v534, %v831
        %v833 = vpop.f32.mrb[0].mxu0
        %v834 = vpop.f32.mrb[0].mxu0
        %v835 = vadd.f32 %v534, %v834
        %v836 = vpop.f32.mrb[0].mxu0
        %837 = vdwg.mxu0
        %v838 = vmax.f32 %v712, 0.0
        %v839 = vmax.f32 %v715, 0.0
        %v840 = vmax.f32 %v720, 0.0
        %v841 = vmax.f32 %v723, 0.0
        %v842 = vmax.f32 %v728, 0.0
        %v843 = vmax.f32 %v731, 0.0
        %v844 = vmax.f32 %v736, 0.0
        %v845 = vmax.f32 %v739, 0.0
        %v846 = vmax.f32 %v744, 0.0
        %v847 = vmax.f32 %v747, 0.0
        %v848 = vmax.f32 %v752, 0.0
        %v849 = vmax.f32 %v755, 0.0
        %v850 = vmax.f32 %v760, 0.0
        %v851 = vmax.f32 %v763, 0.0
        %v852 = vmax.f32 %v768, 0.0
        %v853 = vmax.f32 %v771, 0.0
        %v854 = vmax.f32 %v776, 0.0
        %v855 = vmax.f32 %v779, 0.0
        %v856 = vmax.f32 %v784, 0.0
        %v857 = vmax.f32 %v787, 0.0
        %v858 = vmax.f32 %v792, 0.0
        %v859 = vmax.f32 %v795, 0.0
        %v860 = vmax.f32 %v800, 0.0
        %v861 = vmax.f32 %v803, 0.0
        %v862 = vmax.f32 %v808, 0.0
        %v863 = vmax.f32 %v811, 0.0
        %v864 = vmax.f32 %v816, 0.0
        %v865 = vmax.f32 %v819, 0.0
        %v866 = vmax.f32 %v824, 0.0
        %v867 = vmax.f32 %v827, 0.0
        %v868 = vmax.f32 %v832, 0.0
        %v869 = vmax.f32 %v835, 0.0
        %v902 = vcombine.high %v838, %v838
        %v904 = vunpack.c.l.s4 1983009808
        %v905 = vunpack.c.0.s8 %v904
        %v906 = vlaneseq
        %v907 = vshrl.u32 %v906, 7
        %v908 = vsub.s32 %v905, %v907
        %v909 = vrot.slane %v838, %v908
        %v911 = vunpack.c.l.s4 1983009808
        %v912 = vunpack.c.0.s8 %v911
        %v913 = vlaneseq
        %v914 = vshrl.u32 %v913, 7
        %v915 = vsub.s32 %v912, %v914
        %v916 = vrot.slane %v902, %v915
        %v917 = vcombine.high %v909, %v909
        %v918 = vcombine.high %v916, %v916
        %v919 = vcombine.high %v839, %v839
        %v921 = vunpack.c.l.s4 1983009808
        %v922 = vunpack.c.0.s8 %v921
        %v923 = vlaneseq
        %v924 = vshrl.u32 %v923, 7
        %v925 = vsub.s32 %v922, %v924
        %v926 = vrot.slane %v839, %v925
        %v928 = vunpack.c.l.s4 1983009808
        %v929 = vunpack.c.0.s8 %v928
        %v930 = vlaneseq
        %v931 = vshrl.u32 %v930, 7
        %v932 = vsub.s32 %v929, %v931
        %v933 = vrot.slane %v919, %v932
        %v934 = vcombine.high %v926, %v926
        %v935 = vcombine.high %v933, %v933
        %v936 = vcombine.high %v840, %v840
        %v938 = vunpack.c.l.s4 1983009808
        %v939 = vunpack.c.0.s8 %v938
        %v940 = vlaneseq
        %v941 = vshrl.u32 %v940, 7
        %v942 = vsub.s32 %v939, %v941
        %v943 = vrot.slane %v840, %v942
        %v945 = vunpack.c.l.s4 1983009808
        %v946 = vunpack.c.0.s8 %v945
        %v947 = vlaneseq
        %v948 = vshrl.u32 %v947, 7
        %v949 = vsub.s32 %v946, %v948
        %v950 = vrot.slane %v936, %v949
        %v951 = vcombine.high %v943, %v943
        %v952 = vcombine.high %v950, %v950
        %v953 = vcombine.high %v841, %v841
        %v955 = vunpack.c.l.s4 1983009808
        %v956 = vunpack.c.0.s8 %v955
        %v957 = vlaneseq
        %v958 = vshrl.u32 %v957, 7
        %v959 = vsub.s32 %v956, %v958
        %v960 = vrot.slane %v841, %v959
        %v962 = vunpack.c.l.s4 1983009808
        %v963 = vunpack.c.0.s8 %v962
        %v964 = vlaneseq
        %v965 = vshrl.u32 %v964, 7
        %v966 = vsub.s32 %v963, %v965
        %v967 = vrot.slane %v953, %v966
        %v968 = vcombine.high %v960, %v960
        %v969 = vcombine.high %v967, %v967
        %v970 = vcombine.high %v842, %v842
        %v972 = vunpack.c.l.s4 1983009808
        %v973 = vunpack.c.0.s8 %v972
        %v974 = vlaneseq
        %v975 = vshrl.u32 %v974, 7
        %v976 = vsub.s32 %v973, %v975
        %v977 = vrot.slane %v842, %v976
        %v979 = vunpack.c.l.s4 1983009808
        %v980 = vunpack.c.0.s8 %v979
        %v981 = vlaneseq
        %v982 = vshrl.u32 %v981, 7
        %v983 = vsub.s32 %v980, %v982
        %v984 = vrot.slane %v970, %v983
        %v985 = vcombine.high %v977, %v977
        %v986 = vcombine.high %v984, %v984
        %v987 = vcombine.high %v843, %v843
        %v989 = vunpack.c.l.s4 1983009808
        %v990 = vunpack.c.0.s8 %v989
        %v991 = vlaneseq
        %v992 = vshrl.u32 %v991, 7
        %v993 = vsub.s32 %v990, %v992
        %v994 = vrot.slane %v843, %v993
        %v996 = vunpack.c.l.s4 1983009808
        %v997 = vunpack.c.0.s8 %v996
        %v998 = vlaneseq
        %v999 = vshrl.u32 %v998, 7
        %v1000 = vsub.s32 %v997, %v999
        %v1001 = vrot.slane %v987, %v1000
        %v1002 = vcombine.high %v994, %v994
        %v1003 = vcombine.high %v1001, %v1001
        %v1004 = vcombine.high %v844, %v844
        %v1006 = vunpack.c.l.s4 1983009808
        %v1007 = vunpack.c.0.s8 %v1006
        %v1008 = vlaneseq
        %v1009 = vshrl.u32 %v1008, 7
        %v1010 = vsub.s32 %v1007, %v1009
        %v1011 = vrot.slane %v844, %v1010
        %v1013 = vunpack.c.l.s4 1983009808
        %v1014 = vunpack.c.0.s8 %v1013
        %v1015 = vlaneseq
        %v1016 = vshrl.u32 %v1015, 7
        %v1017 = vsub.s32 %v1014, %v1016
        %v1018 = vrot.slane %v1004, %v1017
        %v1019 = vcombine.high %v1011, %v1011
        %v1020 = vcombine.high %v1018, %v1018
        %v1021 = vcombine.high %v845, %v845
        %v1023 = vunpack.c.l.s4 1983009808
        %v1024 = vunpack.c.0.s8 %v1023
        %v1025 = vlaneseq
        %v1026 = vshrl.u32 %v1025, 7
        %v1027 = vsub.s32 %v1024, %v1026
        %v1028 = vrot.slane %v845, %v1027
        %v1030 = vunpack.c.l.s4 1983009808
        %v1031 = vunpack.c.0.s8 %v1030
        %v1032 = vlaneseq
        %v1033 = vshrl.u32 %v1032, 7
        %v1034 = vsub.s32 %v1031, %v1033
        %v1035 = vrot.slane %v1021, %v1034
        %v1036 = vcombine.high %v1028, %v1028
        %v1037 = vcombine.high %v1035, %v1035
        %v1038 = vcombine.high %v846, %v846
        %v1040 = vunpack.c.l.s4 1983009808
        %v1041 = vunpack.c.0.s8 %v1040
        %v1042 = vlaneseq
        %v1043 = vshrl.u32 %v1042, 7
        %v1044 = vsub.s32 %v1041, %v1043
        %v1045 = vrot.slane %v846, %v1044
        %v1047 = vunpack.c.l.s4 1983009808
        %v1048 = vunpack.c.0.s8 %v1047
        %v1049 = vlaneseq
        %v1050 = vshrl.u32 %v1049, 7
        %v1051 = vsub.s32 %v1048, %v1050
        %v1052 = vrot.slane %v1038, %v1051
        %v1053 = vcombine.high %v1045, %v1045
        %v1054 = vcombine.high %v1052, %v1052
        %v1055 = vcombine.high %v847, %v847
        %v1057 = vunpack.c.l.s4 1983009808
        %v1058 = vunpack.c.0.s8 %v1057
        %v1059 = vlaneseq
        %v1060 = vshrl.u32 %v1059, 7
        %v1061 = vsub.s32 %v1058, %v1060
        %v1062 = vrot.slane %v847, %v1061
        %v1064 = vunpack.c.l.s4 1983009808
        %v1065 = vunpack.c.0.s8 %v1064
        %v1066 = vlaneseq
        %v1067 = vshrl.u32 %v1066, 7
        %v1068 = vsub.s32 %v1065, %v1067
        %v1069 = vrot.slane %v1055, %v1068
        %v1070 = vcombine.high %v1062, %v1062
        %v1071 = vcombine.high %v1069, %v1069
        %v1072 = vcombine.high %v848, %v848
        %v1074 = vunpack.c.l.s4 1983009808
        %v1075 = vunpack.c.0.s8 %v1074
        %v1076 = vlaneseq
        %v1077 = vshrl.u32 %v1076, 7
        %v1078 = vsub.s32 %v1075, %v1077
        %v1079 = vrot.slane %v848, %v1078
        %v1081 = vunpack.c.l.s4 1983009808
        %v1082 = vunpack.c.0.s8 %v1081
        %v1083 = vlaneseq
        %v1084 = vshrl.u32 %v1083, 7
        %v1085 = vsub.s32 %v1082, %v1084
        %v1086 = vrot.slane %v1072, %v1085
        %v1087 = vcombine.high %v1079, %v1079
        %v1088 = vcombine.high %v1086, %v1086
        %v1089 = vcombine.high %v849, %v849
        %v1091 = vunpack.c.l.s4 1983009808
        %v1092 = vunpack.c.0.s8 %v1091
        %v1093 = vlaneseq
        %v1094 = vshrl.u32 %v1093, 7
        %v1095 = vsub.s32 %v1092, %v1094
        %v1096 = vrot.slane %v849, %v1095
        %v1098 = vunpack.c.l.s4 1983009808
        %v1099 = vunpack.c.0.s8 %v1098
        %v1100 = vlaneseq
        %v1101 = vshrl.u32 %v1100, 7
        %v1102 = vsub.s32 %v1099, %v1101
        %v1103 = vrot.slane %v1089, %v1102
        %v1104 = vcombine.high %v1096, %v1096
        %v1105 = vcombine.high %v1103, %v1103
        %v1106 = vcombine.high %v850, %v850
        %v1108 = vunpack.c.l.s4 1983009808
        %v1109 = vunpack.c.0.s8 %v1108
        %v1110 = vlaneseq
        %v1111 = vshrl.u32 %v1110, 7
        %v1112 = vsub.s32 %v1109, %v1111
        %v1113 = vrot.slane %v850, %v1112
        %v1115 = vunpack.c.l.s4 1983009808
        %v1116 = vunpack.c.0.s8 %v1115
        %v1117 = vlaneseq
        %v1118 = vshrl.u32 %v1117, 7
        %v1119 = vsub.s32 %v1116, %v1118
        %v1120 = vrot.slane %v1106, %v1119
        %v1121 = vcombine.high %v1113, %v1113
        %v1122 = vcombine.high %v1120, %v1120
        %v1123 = vcombine.high %v851, %v851
        %v1125 = vunpack.c.l.s4 1983009808
        %v1126 = vunpack.c.0.s8 %v1125
        %v1127 = vlaneseq
        %v1128 = vshrl.u32 %v1127, 7
        %v1129 = vsub.s32 %v1126, %v1128
        %v1130 = vrot.slane %v851, %v1129
        %v1132 = vunpack.c.l.s4 1983009808
        %v1133 = vunpack.c.0.s8 %v1132
        %v1134 = vlaneseq
        %v1135 = vshrl.u32 %v1134, 7
        %v1136 = vsub.s32 %v1133, %v1135
        %v1137 = vrot.slane %v1123, %v1136
        %v1138 = vcombine.high %v1130, %v1130
        %v1139 = vcombine.high %v1137, %v1137
        %v1140 = vcombine.high %v852, %v852
        %v1142 = vunpack.c.l.s4 1983009808
        %v1143 = vunpack.c.0.s8 %v1142
        %v1144 = vlaneseq
        %v1145 = vshrl.u32 %v1144, 7
        %v1146 = vsub.s32 %v1143, %v1145
        %v1147 = vrot.slane %v852, %v1146
        %v1149 = vunpack.c.l.s4 1983009808
        %v1150 = vunpack.c.0.s8 %v1149
        %v1151 = vlaneseq
        %v1152 = vshrl.u32 %v1151, 7
        %v1153 = vsub.s32 %v1150, %v1152
        %v1154 = vrot.slane %v1140, %v1153
        %v1155 = vcombine.high %v1147, %v1147
        %v1156 = vcombine.high %v1154, %v1154
        %v1157 = vcombine.high %v853, %v853
        %v1159 = vunpack.c.l.s4 1983009808
        %v1160 = vunpack.c.0.s8 %v1159
        %v1161 = vlaneseq
        %v1162 = vshrl.u32 %v1161, 7
        %v1163 = vsub.s32 %v1160, %v1162
        %v1164 = vrot.slane %v853, %v1163
        %v1166 = vunpack.c.l.s4 1983009808
        %v1167 = vunpack.c.0.s8 %v1166
        %v1168 = vlaneseq
        %v1169 = vshrl.u32 %v1168, 7
        %v1170 = vsub.s32 %v1167, %v1169
        %v1171 = vrot.slane %v1157, %v1170
        %v1172 = vcombine.high %v1164, %v1164
        %v1173 = vcombine.high %v1171, %v1171
        %v1174 = vcombine.high %v854, %v854
        %v1176 = vunpack.c.l.s4 1983009808
        %v1177 = vunpack.c.0.s8 %v1176
        %v1178 = vlaneseq
        %v1179 = vshrl.u32 %v1178, 7
        %v1180 = vsub.s32 %v1177, %v1179
        %v1181 = vrot.slane %v854, %v1180
        %v1183 = vunpack.c.l.s4 1983009808
        %v1184 = vunpack.c.0.s8 %v1183
        %v1185 = vlaneseq
        %v1186 = vshrl.u32 %v1185, 7
        %v1187 = vsub.s32 %v1184, %v1186
        %v1188 = vrot.slane %v1174, %v1187
        %v1189 = vcombine.high %v1181, %v1181
        %v1190 = vcombine.high %v1188, %v1188
        %v1191 = vcombine.high %v855, %v855
        %v1193 = vunpack.c.l.s4 1983009808
        %v1194 = vunpack.c.0.s8 %v1193
        %v1195 = vlaneseq
        %v1196 = vshrl.u32 %v1195, 7
        %v1197 = vsub.s32 %v1194, %v1196
        %v1198 = vrot.slane %v855, %v1197
        %v1200 = vunpack.c.l.s4 1983009808
        %v1201 = vunpack.c.0.s8 %v1200
        %v1202 = vlaneseq
        %v1203 = vshrl.u32 %v1202, 7
        %v1204 = vsub.s32 %v1201, %v1203
        %v1205 = vrot.slane %v1191, %v1204
        %v1206 = vcombine.high %v1198, %v1198
        %v1207 = vcombine.high %v1205, %v1205
        %v1208 = vcombine.high %v856, %v856
        %v1210 = vunpack.c.l.s4 1983009808
        %v1211 = vunpack.c.0.s8 %v1210
        %v1212 = vlaneseq
        %v1213 = vshrl.u32 %v1212, 7
        %v1214 = vsub.s32 %v1211, %v1213
        %v1215 = vrot.slane %v856, %v1214
        %v1217 = vunpack.c.l.s4 1983009808
        %v1218 = vunpack.c.0.s8 %v1217
        %v1219 = vlaneseq
        %v1220 = vshrl.u32 %v1219, 7
        %v1221 = vsub.s32 %v1218, %v1220
        %v1222 = vrot.slane %v1208, %v1221
        %v1223 = vcombine.high %v1215, %v1215
        %v1224 = vcombine.high %v1222, %v1222
        %v1225 = vcombine.high %v857, %v857
        %v1227 = vunpack.c.l.s4 1983009808
        %v1228 = vunpack.c.0.s8 %v1227
        %v1229 = vlaneseq
        %v1230 = vshrl.u32 %v1229, 7
        %v1231 = vsub.s32 %v1228, %v1230
        %v1232 = vrot.slane %v857, %v1231
        %v1234 = vunpack.c.l.s4 1983009808
        %v1235 = vunpack.c.0.s8 %v1234
        %v1236 = vlaneseq
        %v1237 = vshrl.u32 %v1236, 7
        %v1238 = vsub.s32 %v1235, %v1237
        %v1239 = vrot.slane %v1225, %v1238
        %v1240 = vcombine.high %v1232, %v1232
        %v1241 = vcombine.high %v1239, %v1239
        %v1242 = vcombine.high %v858, %v858
        %v1244 = vunpack.c.l.s4 1983009808
        %v1245 = vunpack.c.0.s8 %v1244
        %v1246 = vlaneseq
        %v1247 = vshrl.u32 %v1246, 7
        %v1248 = vsub.s32 %v1245, %v1247
        %v1249 = vrot.slane %v858, %v1248
        %v1251 = vunpack.c.l.s4 1983009808
        %v1252 = vunpack.c.0.s8 %v1251
        %v1253 = vlaneseq
        %v1254 = vshrl.u32 %v1253, 7
        %v1255 = vsub.s32 %v1252, %v1254
        %v1256 = vrot.slane %v1242, %v1255
        %v1257 = vcombine.high %v1249, %v1249
        %v1258 = vcombine.high %v1256, %v1256
        %v1259 = vcombine.high %v859, %v859
        %v1261 = vunpack.c.l.s4 1983009808
        %v1262 = vunpack.c.0.s8 %v1261
        %v1263 = vlaneseq
        %v1264 = vshrl.u32 %v1263, 7
        %v1265 = vsub.s32 %v1262, %v1264
        %v1266 = vrot.slane %v859, %v1265
        %v1268 = vunpack.c.l.s4 1983009808
        %v1269 = vunpack.c.0.s8 %v1268
        %v1270 = vlaneseq
        %v1271 = vshrl.u32 %v1270, 7
        %v1272 = vsub.s32 %v1269, %v1271
        %v1273 = vrot.slane %v1259, %v1272
        %v1274 = vcombine.high %v1266, %v1266
        %v1275 = vcombine.high %v1273, %v1273
        %v1276 = vcombine.high %v860, %v860
        %v1278 = vunpack.c.l.s4 1983009808
        %v1279 = vunpack.c.0.s8 %v1278
        %v1280 = vlaneseq
        %v1281 = vshrl.u32 %v1280, 7
        %v1282 = vsub.s32 %v1279, %v1281
        %v1283 = vrot.slane %v860, %v1282
        %v1285 = vunpack.c.l.s4 1983009808
        %v1286 = vunpack.c.0.s8 %v1285
        %v1287 = vlaneseq
        %v1288 = vshrl.u32 %v1287, 7
        %v1289 = vsub.s32 %v1286, %v1288
        %v1290 = vrot.slane %v1276, %v1289
        %v1291 = vcombine.high %v1283, %v1283
        %v1292 = vcombine.high %v1290, %v1290
        %v1293 = vcombine.high %v861, %v861
        %v1295 = vunpack.c.l.s4 1983009808
        %v1296 = vunpack.c.0.s8 %v1295
        %v1297 = vlaneseq
        %v1298 = vshrl.u32 %v1297, 7
        %v1299 = vsub.s32 %v1296, %v1298
        %v1300 = vrot.slane %v861, %v1299
        %v1302 = vunpack.c.l.s4 1983009808
        %v1303 = vunpack.c.0.s8 %v1302
        %v1304 = vlaneseq
        %v1305 = vshrl.u32 %v1304, 7
        %v1306 = vsub.s32 %v1303, %v1305
        %v1307 = vrot.slane %v1293, %v1306
        %v1308 = vcombine.high %v1300, %v1300
        %v1309 = vcombine.high %v1307, %v1307
        %v1310 = vcombine.high %v862, %v862
        %v1312 = vunpack.c.l.s4 1983009808
        %v1313 = vunpack.c.0.s8 %v1312
        %v1314 = vlaneseq
        %v1315 = vshrl.u32 %v1314, 7
        %v1316 = vsub.s32 %v1313, %v1315
        %v1317 = vrot.slane %v862, %v1316
        %v1319 = vunpack.c.l.s4 1983009808
        %v1320 = vunpack.c.0.s8 %v1319
        %v1321 = vlaneseq
        %v1322 = vshrl.u32 %v1321, 7
        %v1323 = vsub.s32 %v1320, %v1322
        %v1324 = vrot.slane %v1310, %v1323
        %v1325 = vcombine.high %v1317, %v1317
        %v1326 = vcombine.high %v1324, %v1324
        %v1327 = vcombine.high %v863, %v863
        %v1329 = vunpack.c.l.s4 1983009808
        %v1330 = vunpack.c.0.s8 %v1329
        %v1331 = vlaneseq
        %v1332 = vshrl.u32 %v1331, 7
        %v1333 = vsub.s32 %v1330, %v1332
        %v1334 = vrot.slane %v863, %v1333
        %v1336 = vunpack.c.l.s4 1983009808
        %v1337 = vunpack.c.0.s8 %v1336
        %v1338 = vlaneseq
        %v1339 = vshrl.u32 %v1338, 7
        %v1340 = vsub.s32 %v1337, %v1339
        %v1341 = vrot.slane %v1327, %v1340
        %v1342 = vcombine.high %v1334, %v1334
        %v1343 = vcombine.high %v1341, %v1341
        %v1344 = vcombine.high %v864, %v864
        %v1346 = vunpack.c.l.s4 1983009808
        %v1347 = vunpack.c.0.s8 %v1346
        %v1348 = vlaneseq
        %v1349 = vshrl.u32 %v1348, 7
        %v1350 = vsub.s32 %v1347, %v1349
        %v1351 = vrot.slane %v864, %v1350
        %v1353 = vunpack.c.l.s4 1983009808
        %v1354 = vunpack.c.0.s8 %v1353
        %v1355 = vlaneseq
        %v1356 = vshrl.u32 %v1355, 7
        %v1357 = vsub.s32 %v1354, %v1356
        %v1358 = vrot.slane %v1344, %v1357
        %v1359 = vcombine.high %v1351, %v1351
        %v1360 = vcombine.high %v1358, %v1358
        %v1361 = vcombine.high %v865, %v865
        %v1363 = vunpack.c.l.s4 1983009808
        %v1364 = vunpack.c.0.s8 %v1363
        %v1365 = vlaneseq
        %v1366 = vshrl.u32 %v1365, 7
        %v1367 = vsub.s32 %v1364, %v1366
        %v1368 = vrot.slane %v865, %v1367
        %v1370 = vunpack.c.l.s4 1983009808
        %v1371 = vunpack.c.0.s8 %v1370
        %v1372 = vlaneseq
        %v1373 = vshrl.u32 %v1372, 7
        %v1374 = vsub.s32 %v1371, %v1373
        %v1375 = vrot.slane %v1361, %v1374
        %v1376 = vcombine.high %v1368, %v1368
        %v1377 = vcombine.high %v1375, %v1375
        %v1378 = vcombine.high %v866, %v866
        %v1380 = vunpack.c.l.s4 1983009808
        %v1381 = vunpack.c.0.s8 %v1380
        %v1382 = vlaneseq
        %v1383 = vshrl.u32 %v1382, 7
        %v1384 = vsub.s32 %v1381, %v1383
        %v1385 = vrot.slane %v866, %v1384
        %v1387 = vunpack.c.l.s4 1983009808
        %v1388 = vunpack.c.0.s8 %v1387
        %v1389 = vlaneseq
        %v1390 = vshrl.u32 %v1389, 7
        %v1391 = vsub.s32 %v1388, %v1390
        %v1392 = vrot.slane %v1378, %v1391
        %v1393 = vcombine.high %v1385, %v1385
        %v1394 = vcombine.high %v1392, %v1392
        %v1395 = vcombine.high %v867, %v867
        %v1397 = vunpack.c.l.s4 1983009808
        %v1398 = vunpack.c.0.s8 %v1397
        %v1399 = vlaneseq
        %v1400 = vshrl.u32 %v1399, 7
        %v1401 = vsub.s32 %v1398, %v1400
        %v1402 = vrot.slane %v867, %v1401
        %v1404 = vunpack.c.l.s4 1983009808
        %v1405 = vunpack.c.0.s8 %v1404
        %v1406 = vlaneseq
        %v1407 = vshrl.u32 %v1406, 7
        %v1408 = vsub.s32 %v1405, %v1407
        %v1409 = vrot.slane %v1395, %v1408
        %v1410 = vcombine.high %v1402, %v1402
        %v1411 = vcombine.high %v1409, %v1409
        %v1412 = vcombine.high %v868, %v868
        %v1414 = vunpack.c.l.s4 1983009808
        %v1415 = vunpack.c.0.s8 %v1414
        %v1416 = vlaneseq
        %v1417 = vshrl.u32 %v1416, 7
        %v1418 = vsub.s32 %v1415, %v1417
        %v1419 = vrot.slane %v868, %v1418
        %v1421 = vunpack.c.l.s4 1983009808
        %v1422 = vunpack.c.0.s8 %v1421
        %v1423 = vlaneseq
        %v1424 = vshrl.u32 %v1423, 7
        %v1425 = vsub.s32 %v1422, %v1424
        %v1426 = vrot.slane %v1412, %v1425
        %v1427 = vcombine.high %v1419, %v1419
        %v1428 = vcombine.high %v1426, %v1426
        %v1429 = vcombine.high %v869, %v869
        %v1431 = vunpack.c.l.s4 1983009808
        %v1432 = vunpack.c.0.s8 %v1431
        %v1433 = vlaneseq
        %v1434 = vshrl.u32 %v1433, 7
        %v1435 = vsub.s32 %v1432, %v1434
        %v1436 = vrot.slane %v869, %v1435
        %v1438 = vunpack.c.l.s4 1983009808
        %v1439 = vunpack.c.0.s8 %v1438
        %v1440 = vlaneseq
        %v1441 = vshrl.u32 %v1440, 7
        %v1442 = vsub.s32 %v1439, %v1441
        %v1443 = vrot.slane %v1429, %v1442
        %v1444 = vcombine.high %v1436, %v1436
        %v1445 = vcombine.high %v1443, %v1443
        %v1574 = vrot.slane %v909, 7
        %v1575 = vrot.slane %v1574, 2
        %v1576 = vrot.slane %v917, 7
        %v1577 = vrot.slane %v1576, 2
        %v1578 = vrot.slane %v916, 7
        %v1579 = vrot.slane %v1578, 2
        %v1580 = vrot.slane %v918, 7
        %v1581 = vrot.slane %v1580, 2
        %v1582 = vrot.slane %v926, 7
        %v1583 = vrot.slane %v1582, 2
        %v1584 = vrot.slane %v934, 7
        %v1585 = vrot.slane %v1584, 2
        %v1586 = vrot.slane %v933, 7
        %v1587 = vrot.slane %v1586, 2
        %v1588 = vrot.slane %v935, 7
        %v1589 = vrot.slane %v1588, 2
        %v1590 = vrot.slane %v943, 7
        %v1591 = vrot.slane %v1590, 2
        %v1592 = vrot.slane %v951, 7
        %v1593 = vrot.slane %v1592, 2
        %v1594 = vrot.slane %v950, 7
        %v1595 = vrot.slane %v1594, 2
        %v1596 = vrot.slane %v952, 7
        %v1597 = vrot.slane %v1596, 2
        %v1598 = vrot.slane %v960, 7
        %v1599 = vrot.slane %v1598, 2
        %v1600 = vrot.slane %v968, 7
        %v1601 = vrot.slane %v1600, 2
        %v1602 = vrot.slane %v967, 7
        %v1603 = vrot.slane %v1602, 2
        %v1604 = vrot.slane %v969, 7
        %v1605 = vrot.slane %v1604, 2
        %v1606 = vrot.slane %v977, 7
        %v1607 = vrot.slane %v1606, 2
        %v1608 = vrot.slane %v985, 7
        %v1609 = vrot.slane %v1608, 2
        %v1610 = vrot.slane %v984, 7
        %v1611 = vrot.slane %v1610, 2
        %v1612 = vrot.slane %v986, 7
        %v1613 = vrot.slane %v1612, 2
        %v1614 = vrot.slane %v994, 7
        %v1615 = vrot.slane %v1614, 2
        %v1616 = vrot.slane %v1002, 7
        %v1617 = vrot.slane %v1616, 2
        %v1618 = vrot.slane %v1001, 7
        %v1619 = vrot.slane %v1618, 2
        %v1620 = vrot.slane %v1003, 7
        %v1621 = vrot.slane %v1620, 2
        %v1622 = vrot.slane %v1011, 7
        %v1623 = vrot.slane %v1622, 2
        %v1624 = vrot.slane %v1019, 7
        %v1625 = vrot.slane %v1624, 2
        %v1626 = vrot.slane %v1018, 7
        %v1627 = vrot.slane %v1626, 2
        %v1628 = vrot.slane %v1020, 7
        %v1629 = vrot.slane %v1628, 2
        %v1630 = vrot.slane %v1028, 7
        %v1631 = vrot.slane %v1630, 2
        %v1632 = vrot.slane %v1036, 7
        %v1633 = vrot.slane %v1632, 2
        %v1634 = vrot.slane %v1035, 7
        %v1635 = vrot.slane %v1634, 2
        %v1636 = vrot.slane %v1037, 7
        %v1637 = vrot.slane %v1636, 2
        %v1638 = vrot.slane %v1045, 7
        %v1639 = vrot.slane %v1638, 2
        %v1640 = vrot.slane %v1053, 7
        %v1641 = vrot.slane %v1640, 2
        %v1642 = vrot.slane %v1052, 7
        %v1643 = vrot.slane %v1642, 2
        %v1644 = vrot.slane %v1054, 7
        %v1645 = vrot.slane %v1644, 2
        %v1646 = vrot.slane %v1062, 7
        %v1647 = vrot.slane %v1646, 2
        %v1648 = vrot.slane %v1070, 7
        %v1649 = vrot.slane %v1648, 2
        %v1650 = vrot.slane %v1069, 7
        %v1651 = vrot.slane %v1650, 2
        %v1652 = vrot.slane %v1071, 7
        %v1653 = vrot.slane %v1652, 2
        %v1654 = vrot.slane %v1079, 7
        %v1655 = vrot.slane %v1654, 2
        %v1656 = vrot.slane %v1087, 7
        %v1657 = vrot.slane %v1656, 2
        %v1658 = vrot.slane %v1086, 7
        %v1659 = vrot.slane %v1658, 2
        %v1660 = vrot.slane %v1088, 7
        %v1661 = vrot.slane %v1660, 2
        %v1662 = vrot.slane %v1096, 7
        %v1663 = vrot.slane %v1662, 2
        %v1664 = vrot.slane %v1104, 7
        %v1665 = vrot.slane %v1664, 2
        %v1666 = vrot.slane %v1103, 7
        %v1667 = vrot.slane %v1666, 2
        %v1668 = vrot.slane %v1105, 7
        %v1669 = vrot.slane %v1668, 2
        %v1670 = vrot.slane %v1113, 7
        %v1671 = vrot.slane %v1670, 2
        %v1672 = vrot.slane %v1121, 7
        %v1673 = vrot.slane %v1672, 2
        %v1674 = vrot.slane %v1120, 7
        %v1675 = vrot.slane %v1674, 2
        %v1676 = vrot.slane %v1122, 7
        %v1677 = vrot.slane %v1676, 2
        %v1678 = vrot.slane %v1130, 7
        %v1679 = vrot.slane %v1678, 2
        %v1680 = vrot.slane %v1138, 7
        %v1681 = vrot.slane %v1680, 2
        %v1682 = vrot.slane %v1137, 7
        %v1683 = vrot.slane %v1682, 2
        %v1684 = vrot.slane %v1139, 7
        %v1685 = vrot.slane %v1684, 2
        %v1686 = vrot.slane %v1147, 7
        %v1687 = vrot.slane %v1686, 2
        %v1688 = vrot.slane %v1155, 7
        %v1689 = vrot.slane %v1688, 2
        %v1690 = vrot.slane %v1154, 7
        %v1691 = vrot.slane %v1690, 2
        %v1692 = vrot.slane %v1156, 7
        %v1693 = vrot.slane %v1692, 2
        %v1694 = vrot.slane %v1164, 7
        %v1695 = vrot.slane %v1694, 2
        %v1696 = vrot.slane %v1172, 7
        %v1697 = vrot.slane %v1696, 2
        %v1698 = vrot.slane %v1171, 7
        %v1699 = vrot.slane %v1698, 2
        %v1700 = vrot.slane %v1173, 7
        %v1701 = vrot.slane %v1700, 2
        %v1702 = vrot.slane %v1181, 7
        %v1703 = vrot.slane %v1702, 2
        %v1704 = vrot.slane %v1189, 7
        %v1705 = vrot.slane %v1704, 2
        %v1706 = vrot.slane %v1188, 7
        %v1707 = vrot.slane %v1706, 2
        %v1708 = vrot.slane %v1190, 7
        %v1709 = vrot.slane %v1708, 2
        %v1710 = vrot.slane %v1198, 7
        %v1711 = vrot.slane %v1710, 2
        %v1712 = vrot.slane %v1206, 7
        %v1713 = vrot.slane %v1712, 2
        %v1714 = vrot.slane %v1205, 7
        %v1715 = vrot.slane %v1714, 2
        %v1716 = vrot.slane %v1207, 7
        %v1717 = vrot.slane %v1716, 2
        %v1718 = vrot.slane %v1215, 7
        %v1719 = vrot.slane %v1718, 2
        %v1720 = vrot.slane %v1223, 7
        %v1721 = vrot.slane %v1720, 2
        %v1722 = vrot.slane %v1222, 7
        %v1723 = vrot.slane %v1722, 2
        %v1724 = vrot.slane %v1224, 7
        %v1725 = vrot.slane %v1724, 2
        %v1726 = vrot.slane %v1232, 7
        %v1727 = vrot.slane %v1726, 2
        %v1728 = vrot.slane %v1240, 7
        %v1729 = vrot.slane %v1728, 2
        %v1730 = vrot.slane %v1239, 7
        %v1731 = vrot.slane %v1730, 2
        %v1732 = vrot.slane %v1241, 7
        %v1733 = vrot.slane %v1732, 2
        %v1734 = vrot.slane %v1249, 7
        %v1735 = vrot.slane %v1734, 2
        %v1736 = vrot.slane %v1257, 7
        %v1737 = vrot.slane %v1736, 2
        %v1738 = vrot.slane %v1256, 7
        %v1739 = vrot.slane %v1738, 2
        %v1740 = vrot.slane %v1258, 7
        %v1741 = vrot.slane %v1740, 2
        %v1742 = vrot.slane %v1266, 7
        %v1743 = vrot.slane %v1742, 2
        %v1744 = vrot.slane %v1274, 7
        %v1745 = vrot.slane %v1744, 2
        %v1746 = vrot.slane %v1273, 7
        %v1747 = vrot.slane %v1746, 2
        %v1748 = vrot.slane %v1275, 7
        %v1749 = vrot.slane %v1748, 2
        %v1750 = vrot.slane %v1283, 7
        %v1751 = vrot.slane %v1750, 2
        %v1752 = vrot.slane %v1291, 7
        %v1753 = vrot.slane %v1752, 2
        %v1754 = vrot.slane %v1290, 7
        %v1755 = vrot.slane %v1754, 2
        %v1756 = vrot.slane %v1292, 7
        %v1757 = vrot.slane %v1756, 2
        %v1758 = vrot.slane %v1300, 7
        %v1759 = vrot.slane %v1758, 2
        %v1760 = vrot.slane %v1308, 7
        %v1761 = vrot.slane %v1760, 2
        %v1762 = vrot.slane %v1307, 7
        %v1763 = vrot.slane %v1762, 2
        %v1764 = vrot.slane %v1309, 7
        %v1765 = vrot.slane %v1764, 2
        %v1766 = vrot.slane %v1317, 7
        %v1767 = vrot.slane %v1766, 2
        %v1768 = vrot.slane %v1325, 7
        %v1769 = vrot.slane %v1768, 2
        %v1770 = vrot.slane %v1324, 7
        %v1771 = vrot.slane %v1770, 2
        %v1772 = vrot.slane %v1326, 7
        %v1773 = vrot.slane %v1772, 2
        %v1774 = vrot.slane %v1334, 7
        %v1775 = vrot.slane %v1774, 2
        %v1776 = vrot.slane %v1342, 7
        %v1777 = vrot.slane %v1776, 2
        %v1778 = vrot.slane %v1341, 7
        %v1779 = vrot.slane %v1778, 2
        %v1780 = vrot.slane %v1343, 7
        %v1781 = vrot.slane %v1780, 2
        %v1782 = vrot.slane %v1351, 7
        %v1783 = vrot.slane %v1782, 2
        %v1784 = vrot.slane %v1359, 7
        %v1785 = vrot.slane %v1784, 2
        %v1786 = vrot.slane %v1358, 7
        %v1787 = vrot.slane %v1786, 2
        %v1788 = vrot.slane %v1360, 7
        %v1789 = vrot.slane %v1788, 2
        %v1790 = vrot.slane %v1368, 7
        %v1791 = vrot.slane %v1790, 2
        %v1792 = vrot.slane %v1376, 7
        %v1793 = vrot.slane %v1792, 2
        %v1794 = vrot.slane %v1375, 7
        %v1795 = vrot.slane %v1794, 2
        %v1796 = vrot.slane %v1377, 7
        %v1797 = vrot.slane %v1796, 2
        %v1798 = vrot.slane %v1385, 7
        %v1799 = vrot.slane %v1798, 2
        %v1800 = vrot.slane %v1393, 7
        %v1801 = vrot.slane %v1800, 2
        %v1802 = vrot.slane %v1392, 7
        %v1803 = vrot.slane %v1802, 2
        %v1804 = vrot.slane %v1394, 7
        %v1805 = vrot.slane %v1804, 2
        %v1806 = vrot.slane %v1402, 7
        %v1807 = vrot.slane %v1806, 2
        %v1808 = vrot.slane %v1410, 7
        %v1809 = vrot.slane %v1808, 2
        %v1810 = vrot.slane %v1409, 7
        %v1811 = vrot.slane %v1810, 2
        %v1812 = vrot.slane %v1411, 7
        %v1813 = vrot.slane %v1812, 2
        %v1814 = vrot.slane %v1419, 7
        %v1815 = vrot.slane %v1814, 2
        %v1816 = vrot.slane %v1427, 7
        %v1817 = vrot.slane %v1816, 2
        %v1818 = vrot.slane %v1426, 7
        %v1819 = vrot.slane %v1818, 2
        %v1820 = vrot.slane %v1428, 7
        %v1821 = vrot.slane %v1820, 2
        %v1822 = vrot.slane %v1436, 7
        %v1823 = vrot.slane %v1822, 2
        %v1824 = vrot.slane %v1444, 7
        %v1825 = vrot.slane %v1824, 2
        %v1826 = vrot.slane %v1443, 7
        %v1827 = vrot.slane %v1826, 2
        %v1828 = vrot.slane %v1445, 7
        %v1829 = vrot.slane %v1828, 2
        %v1958 = vmax.f32 %v909, %v1575
        %v1959 = vmax.f32 %v917, %v1577
        %v1960 = vmax.f32 %v916, %v1579
        %v1961 = vmax.f32 %v918, %v1581
        %v1962 = vmax.f32 %v926, %v1583
        %v1963 = vmax.f32 %v934, %v1585
        %v1964 = vmax.f32 %v933, %v1587
        %v1965 = vmax.f32 %v935, %v1589
        %v1966 = vmax.f32 %v943, %v1591
        %v1967 = vmax.f32 %v951, %v1593
        %v1968 = vmax.f32 %v950, %v1595
        %v1969 = vmax.f32 %v952, %v1597
        %v1970 = vmax.f32 %v960, %v1599
        %v1971 = vmax.f32 %v968, %v1601
        %v1972 = vmax.f32 %v967, %v1603
        %v1973 = vmax.f32 %v969, %v1605
        %v1974 = vmax.f32 %v977, %v1607
        %v1975 = vmax.f32 %v985, %v1609
        %v1976 = vmax.f32 %v984, %v1611
        %v1977 = vmax.f32 %v986, %v1613
        %v1978 = vmax.f32 %v994, %v1615
        %v1979 = vmax.f32 %v1002, %v1617
        %v1980 = vmax.f32 %v1001, %v1619
        %v1981 = vmax.f32 %v1003, %v1621
        %v1982 = vmax.f32 %v1011, %v1623
        %v1983 = vmax.f32 %v1019, %v1625
        %v1984 = vmax.f32 %v1018, %v1627
        %v1985 = vmax.f32 %v1020, %v1629
        %v1986 = vmax.f32 %v1028, %v1631
        %v1987 = vmax.f32 %v1036, %v1633
        %v1988 = vmax.f32 %v1035, %v1635
        %v1989 = vmax.f32 %v1037, %v1637
        %v1990 = vmax.f32 %v1045, %v1639
        %v1991 = vmax.f32 %v1053, %v1641
        %v1992 = vmax.f32 %v1052, %v1643
        %v1993 = vmax.f32 %v1054, %v1645
        %v1994 = vmax.f32 %v1062, %v1647
        %v1995 = vmax.f32 %v1070, %v1649
        %v1996 = vmax.f32 %v1069, %v1651
        %v1997 = vmax.f32 %v1071, %v1653
        %v1998 = vmax.f32 %v1079, %v1655
        %v1999 = vmax.f32 %v1087, %v1657
        %v2000 = vmax.f32 %v1086, %v1659
        %v2001 = vmax.f32 %v1088, %v1661
        %v2002 = vmax.f32 %v1096, %v1663
        %v2003 = vmax.f32 %v1104, %v1665
        %v2004 = vmax.f32 %v1103, %v1667
        %v2005 = vmax.f32 %v1105, %v1669
        %v2006 = vmax.f32 %v1113, %v1671
        %v2007 = vmax.f32 %v1121, %v1673
        %v2008 = vmax.f32 %v1120, %v1675
        %v2009 = vmax.f32 %v1122, %v1677
        %v2010 = vmax.f32 %v1130, %v1679
        %v2011 = vmax.f32 %v1138, %v1681
        %v2012 = vmax.f32 %v1137, %v1683
        %v2013 = vmax.f32 %v1139, %v1685
        %v2014 = vmax.f32 %v1147, %v1687
        %v2015 = vmax.f32 %v1155, %v1689
        %v2016 = vmax.f32 %v1154, %v1691
        %v2017 = vmax.f32 %v1156, %v1693
        %v2018 = vmax.f32 %v1164, %v1695
        %v2019 = vmax.f32 %v1172, %v1697
        %v2020 = vmax.f32 %v1171, %v1699
        %v2021 = vmax.f32 %v1173, %v1701
        %v2022 = vmax.f32 %v1181, %v1703
        %v2023 = vmax.f32 %v1189, %v1705
        %v2024 = vmax.f32 %v1188, %v1707
        %v2025 = vmax.f32 %v1190, %v1709
        %v2026 = vmax.f32 %v1198, %v1711
        %v2027 = vmax.f32 %v1206, %v1713
        %v2028 = vmax.f32 %v1205, %v1715
        %v2029 = vmax.f32 %v1207, %v1717
        %v2030 = vmax.f32 %v1215, %v1719
        %v2031 = vmax.f32 %v1223, %v1721
        %v2032 = vmax.f32 %v1222, %v1723
        %v2033 = vmax.f32 %v1224, %v1725
        %v2034 = vmax.f32 %v1232, %v1727
        %v2035 = vmax.f32 %v1240, %v1729
        %v2036 = vmax.f32 %v1239, %v1731
        %v2037 = vmax.f32 %v1241, %v1733
        %v2038 = vmax.f32 %v1249, %v1735
        %v2039 = vmax.f32 %v1257, %v1737
        %v2040 = vmax.f32 %v1256, %v1739
        %v2041 = vmax.f32 %v1258, %v1741
        %v2042 = vmax.f32 %v1266, %v1743
        %v2043 = vmax.f32 %v1274, %v1745
        %v2044 = vmax.f32 %v1273, %v1747
        %v2045 = vmax.f32 %v1275, %v1749
        %v2046 = vmax.f32 %v1283, %v1751
        %v2047 = vmax.f32 %v1291, %v1753
        %v2048 = vmax.f32 %v1290, %v1755
        %v2049 = vmax.f32 %v1292, %v1757
        %v2050 = vmax.f32 %v1300, %v1759
        %v2051 = vmax.f32 %v1308, %v1761
        %v2052 = vmax.f32 %v1307, %v1763
        %v2053 = vmax.f32 %v1309, %v1765
        %v2054 = vmax.f32 %v1317, %v1767
        %v2055 = vmax.f32 %v1325, %v1769
        %v2056 = vmax.f32 %v1324, %v1771
        %v2057 = vmax.f32 %v1326, %v1773
        %v2058 = vmax.f32 %v1334, %v1775
        %v2059 = vmax.f32 %v1342, %v1777
        %v2060 = vmax.f32 %v1341, %v1779
        %v2061 = vmax.f32 %v1343, %v1781
        %v2062 = vmax.f32 %v1351, %v1783
        %v2063 = vmax.f32 %v1359, %v1785
        %v2064 = vmax.f32 %v1358, %v1787
        %v2065 = vmax.f32 %v1360, %v1789
        %v2066 = vmax.f32 %v1368, %v1791
        %v2067 = vmax.f32 %v1376, %v1793
        %v2068 = vmax.f32 %v1375, %v1795
        %v2069 = vmax.f32 %v1377, %v1797
        %v2070 = vmax.f32 %v1385, %v1799
        %v2071 = vmax.f32 %v1393, %v1801
        %v2072 = vmax.f32 %v1392, %v1803
        %v2073 = vmax.f32 %v1394, %v1805
        %v2074 = vmax.f32 %v1402, %v1807
        %v2075 = vmax.f32 %v1410, %v1809
        %v2076 = vmax.f32 %v1409, %v1811
        %v2077 = vmax.f32 %v1411, %v1813
        %v2078 = vmax.f32 %v1419, %v1815
        %v2079 = vmax.f32 %v1427, %v1817
        %v2080 = vmax.f32 %v1426, %v1819
        %v2081 = vmax.f32 %v1428, %v1821
        %v2082 = vmax.f32 %v1436, %v1823
        %v2083 = vmax.f32 %v1444, %v1825
        %v2084 = vmax.f32 %v1443, %v1827
        %v2085 = vmax.f32 %v1445, %v1829
        %v2086 = vmax.f32 %v1958, %v1966
        %v2087 = vmax.f32 %v1959, %v1967
        %v2088 = vmax.f32 %v1960, %v1968
        %v2089 = vmax.f32 %v1961, %v1969
        %v2090 = vmax.f32 %v1962, %v1970
        %v2091 = vmax.f32 %v1963, %v1971
        %v2092 = vmax.f32 %v1964, %v1972
        %v2093 = vmax.f32 %v1965, %v1973
        %v2094 = vmax.f32 %v1974, %v1982
        %v2095 = vmax.f32 %v1975, %v1983
        %v2096 = vmax.f32 %v1976, %v1984
        %v2097 = vmax.f32 %v1977, %v1985
        %v2098 = vmax.f32 %v1978, %v1986
        %v2099 = vmax.f32 %v1979, %v1987
        %v2100 = vmax.f32 %v1980, %v1988
        %v2101 = vmax.f32 %v1981, %v1989
        %v2102 = vmax.f32 %v1990, %v1998
        %v2103 = vmax.f32 %v1991, %v1999
        %v2104 = vmax.f32 %v1992, %v2000
        %v2105 = vmax.f32 %v1993, %v2001
        %v2106 = vmax.f32 %v1994, %v2002
        %v2107 = vmax.f32 %v1995, %v2003
        %v2108 = vmax.f32 %v1996, %v2004
        %v2109 = vmax.f32 %v1997, %v2005
        %v2110 = vmax.f32 %v2006, %v2014
        %v2111 = vmax.f32 %v2007, %v2015
        %v2112 = vmax.f32 %v2008, %v2016
        %v2113 = vmax.f32 %v2009, %v2017
        %v2114 = vmax.f32 %v2010, %v2018
        %v2115 = vmax.f32 %v2011, %v2019
        %v2116 = vmax.f32 %v2012, %v2020
        %v2117 = vmax.f32 %v2013, %v2021
        %v2118 = vmax.f32 %v2022, %v2030
        %v2119 = vmax.f32 %v2023, %v2031
        %v2120 = vmax.f32 %v2024, %v2032
        %v2121 = vmax.f32 %v2025, %v2033
        %v2122 = vmax.f32 %v2026, %v2034
        %v2123 = vmax.f32 %v2027, %v2035
        %v2124 = vmax.f32 %v2028, %v2036
        %v2125 = vmax.f32 %v2029, %v2037
        %v2126 = vmax.f32 %v2038, %v2046
        %v2127 = vmax.f32 %v2039, %v2047
        %v2128 = vmax.f32 %v2040, %v2048
        %v2129 = vmax.f32 %v2041, %v2049
        %v2130 = vmax.f32 %v2042, %v2050
        %v2131 = vmax.f32 %v2043, %v2051
        %v2132 = vmax.f32 %v2044, %v2052
        %v2133 = vmax.f32 %v2045, %v2053
        %v2134 = vmax.f32 %v2054, %v2062
        %v2135 = vmax.f32 %v2055, %v2063
        %v2136 = vmax.f32 %v2056, %v2064
        %v2137 = vmax.f32 %v2057, %v2065
        %v2138 = vmax.f32 %v2058, %v2066
        %v2139 = vmax.f32 %v2059, %v2067
        %v2140 = vmax.f32 %v2060, %v2068
        %v2141 = vmax.f32 %v2061, %v2069
        %v2142 = vmax.f32 %v2070, %v2078
        %v2143 = vmax.f32 %v2071, %v2079
        %v2144 = vmax.f32 %v2072, %v2080
        %v2145 = vmax.f32 %v2073, %v2081
        %v2146 = vmax.f32 %v2074, %v2082
        %v2147 = vmax.f32 %v2075, %v2083
        %v2148 = vmax.f32 %v2076, %v2084
        %v2149 = vmax.f32 %v2077, %v2085
        %v2214 = vlaneseq
        %v2215 = vshrl.u32 %v2214, 7
        %v2216 = vsub.s32 0, %v2215
        %v2217 = vrot.slane %v2086, %v2216
        %v2218 = vlaneseq
        %v2219 = vshrl.u32 %v2218, 7
        %v2220 = vsub.s32 0, %v2219
        %v2221 = vrot.slane %v2087, %v2220
        %v2222 = vlaneseq
        %v2223 = vshrl.u32 %v2222, 7
        %v2224 = vsub.s32 0, %v2223
        %v2225 = vrot.slane %v2088, %v2224
        %v2226 = vlaneseq
        %v2227 = vshrl.u32 %v2226, 7
        %v2228 = vsub.s32 0, %v2227
        %v2229 = vrot.slane %v2089, %v2228
        %v2230 = vlaneseq
        %v2231 = vshrl.u32 %v2230, 7
        %v2232 = vsub.s32 0, %v2231
        %v2233 = vrot.slane %v2090, %v2232
        %v2234 = vlaneseq
        %v2235 = vshrl.u32 %v2234, 7
        %v2236 = vsub.s32 0, %v2235
        %v2237 = vrot.slane %v2091, %v2236
        %v2238 = vlaneseq
        %v2239 = vshrl.u32 %v2238, 7
        %v2240 = vsub.s32 0, %v2239
        %v2241 = vrot.slane %v2092, %v2240
        %v2242 = vlaneseq
        %v2243 = vshrl.u32 %v2242, 7
        %v2244 = vsub.s32 0, %v2243
        %v2245 = vrot.slane %v2093, %v2244
        %v2246 = vlaneseq
        %v2247 = vshrl.u32 %v2246, 7
        %v2248 = vsub.s32 0, %v2247
        %v2249 = vrot.slane %v2094, %v2248
        %v2250 = vlaneseq
        %v2251 = vshrl.u32 %v2250, 7
        %v2252 = vsub.s32 0, %v2251
        %v2253 = vrot.slane %v2095, %v2252
        %v2254 = vlaneseq
        %v2255 = vshrl.u32 %v2254, 7
        %v2256 = vsub.s32 0, %v2255
        %v2257 = vrot.slane %v2096, %v2256
        %v2258 = vlaneseq
        %v2259 = vshrl.u32 %v2258, 7
        %v2260 = vsub.s32 0, %v2259
        %v2261 = vrot.slane %v2097, %v2260
        %v2262 = vlaneseq
        %v2263 = vshrl.u32 %v2262, 7
        %v2264 = vsub.s32 0, %v2263
        %v2265 = vrot.slane %v2098, %v2264
        %v2266 = vlaneseq
        %v2267 = vshrl.u32 %v2266, 7
        %v2268 = vsub.s32 0, %v2267
        %v2269 = vrot.slane %v2099, %v2268
        %v2270 = vlaneseq
        %v2271 = vshrl.u32 %v2270, 7
        %v2272 = vsub.s32 0, %v2271
        %v2273 = vrot.slane %v2100, %v2272
        %v2274 = vlaneseq
        %v2275 = vshrl.u32 %v2274, 7
        %v2276 = vsub.s32 0, %v2275
        %v2277 = vrot.slane %v2101, %v2276
        %v2278 = vlaneseq
        %v2279 = vshrl.u32 %v2278, 7
        %v2280 = vsub.s32 0, %v2279
        %v2281 = vrot.slane %v2102, %v2280
        %v2282 = vlaneseq
        %v2283 = vshrl.u32 %v2282, 7
        %v2284 = vsub.s32 0, %v2283
        %v2285 = vrot.slane %v2103, %v2284
        %v2286 = vlaneseq
        %v2287 = vshrl.u32 %v2286, 7
        %v2288 = vsub.s32 0, %v2287
        %v2289 = vrot.slane %v2104, %v2288
        %v2290 = vlaneseq
        %v2291 = vshrl.u32 %v2290, 7
        %v2292 = vsub.s32 0, %v2291
        %v2293 = vrot.slane %v2105, %v2292
        %v2294 = vlaneseq
        %v2295 = vshrl.u32 %v2294, 7
        %v2296 = vsub.s32 0, %v2295
        %v2297 = vrot.slane %v2106, %v2296
        %v2298 = vlaneseq
        %v2299 = vshrl.u32 %v2298, 7
        %v2300 = vsub.s32 0, %v2299
        %v2301 = vrot.slane %v2107, %v2300
        %v2302 = vlaneseq
        %v2303 = vshrl.u32 %v2302, 7
        %v2304 = vsub.s32 0, %v2303
        %v2305 = vrot.slane %v2108, %v2304
        %v2306 = vlaneseq
        %v2307 = vshrl.u32 %v2306, 7
        %v2308 = vsub.s32 0, %v2307
        %v2309 = vrot.slane %v2109, %v2308
        %v2310 = vlaneseq
        %v2311 = vshrl.u32 %v2310, 7
        %v2312 = vsub.s32 0, %v2311
        %v2313 = vrot.slane %v2110, %v2312
        %v2314 = vlaneseq
        %v2315 = vshrl.u32 %v2314, 7
        %v2316 = vsub.s32 0, %v2315
        %v2317 = vrot.slane %v2111, %v2316
        %v2318 = vlaneseq
        %v2319 = vshrl.u32 %v2318, 7
        %v2320 = vsub.s32 0, %v2319
        %v2321 = vrot.slane %v2112, %v2320
        %v2322 = vlaneseq
        %v2323 = vshrl.u32 %v2322, 7
        %v2324 = vsub.s32 0, %v2323
        %v2325 = vrot.slane %v2113, %v2324
        %v2326 = vlaneseq
        %v2327 = vshrl.u32 %v2326, 7
        %v2328 = vsub.s32 0, %v2327
        %v2329 = vrot.slane %v2114, %v2328
        %v2330 = vlaneseq
        %v2331 = vshrl.u32 %v2330, 7
        %v2332 = vsub.s32 0, %v2331
        %v2333 = vrot.slane %v2115, %v2332
        %v2334 = vlaneseq
        %v2335 = vshrl.u32 %v2334, 7
        %v2336 = vsub.s32 0, %v2335
        %v2337 = vrot.slane %v2116, %v2336
        %v2338 = vlaneseq
        %v2339 = vshrl.u32 %v2338, 7
        %v2340 = vsub.s32 0, %v2339
        %v2341 = vrot.slane %v2117, %v2340
        %v2342 = vlaneseq
        %v2343 = vshrl.u32 %v2342, 7
        %v2344 = vsub.s32 0, %v2343
        %v2345 = vrot.slane %v2118, %v2344
        %v2346 = vlaneseq
        %v2347 = vshrl.u32 %v2346, 7
        %v2348 = vsub.s32 0, %v2347
        %v2349 = vrot.slane %v2119, %v2348
        %v2350 = vlaneseq
        %v2351 = vshrl.u32 %v2350, 7
        %v2352 = vsub.s32 0, %v2351
        %v2353 = vrot.slane %v2120, %v2352
        %v2354 = vlaneseq
        %v2355 = vshrl.u32 %v2354, 7
        %v2356 = vsub.s32 0, %v2355
        %v2357 = vrot.slane %v2121, %v2356
        %v2358 = vlaneseq
        %v2359 = vshrl.u32 %v2358, 7
        %v2360 = vsub.s32 0, %v2359
        %v2361 = vrot.slane %v2122, %v2360
        %v2362 = vlaneseq
        %v2363 = vshrl.u32 %v2362, 7
        %v2364 = vsub.s32 0, %v2363
        %v2365 = vrot.slane %v2123, %v2364
        %v2366 = vlaneseq
        %v2367 = vshrl.u32 %v2366, 7
        %v2368 = vsub.s32 0, %v2367
        %v2369 = vrot.slane %v2124, %v2368
        %v2370 = vlaneseq
        %v2371 = vshrl.u32 %v2370, 7
        %v2372 = vsub.s32 0, %v2371
        %v2373 = vrot.slane %v2125, %v2372
        %v2374 = vlaneseq
        %v2375 = vshrl.u32 %v2374, 7
        %v2376 = vsub.s32 0, %v2375
        %v2377 = vrot.slane %v2126, %v2376
        %v2378 = vlaneseq
        %v2379 = vshrl.u32 %v2378, 7
        %v2380 = vsub.s32 0, %v2379
        %v2381 = vrot.slane %v2127, %v2380
        %v2382 = vlaneseq
        %v2383 = vshrl.u32 %v2382, 7
        %v2384 = vsub.s32 0, %v2383
        %v2385 = vrot.slane %v2128, %v2384
        %v2386 = vlaneseq
        %v2387 = vshrl.u32 %v2386, 7
        %v2388 = vsub.s32 0, %v2387
        %v2389 = vrot.slane %v2129, %v2388
        %v2390 = vlaneseq
        %v2391 = vshrl.u32 %v2390, 7
        %v2392 = vsub.s32 0, %v2391
        %v2393 = vrot.slane %v2130, %v2392
        %v2394 = vlaneseq
        %v2395 = vshrl.u32 %v2394, 7
        %v2396 = vsub.s32 0, %v2395
        %v2397 = vrot.slane %v2131, %v2396
        %v2398 = vlaneseq
        %v2399 = vshrl.u32 %v2398, 7
        %v2400 = vsub.s32 0, %v2399
        %v2401 = vrot.slane %v2132, %v2400
        %v2402 = vlaneseq
        %v2403 = vshrl.u32 %v2402, 7
        %v2404 = vsub.s32 0, %v2403
        %v2405 = vrot.slane %v2133, %v2404
        %v2406 = vlaneseq
        %v2407 = vshrl.u32 %v2406, 7
        %v2408 = vsub.s32 0, %v2407
        %v2409 = vrot.slane %v2134, %v2408
        %v2410 = vlaneseq
        %v2411 = vshrl.u32 %v2410, 7
        %v2412 = vsub.s32 0, %v2411
        %v2413 = vrot.slane %v2135, %v2412
        %v2414 = vlaneseq
        %v2415 = vshrl.u32 %v2414, 7
        %v2416 = vsub.s32 0, %v2415
        %v2417 = vrot.slane %v2136, %v2416
        %v2418 = vlaneseq
        %v2419 = vshrl.u32 %v2418, 7
        %v2420 = vsub.s32 0, %v2419
        %v2421 = vrot.slane %v2137, %v2420
        %v2422 = vlaneseq
        %v2423 = vshrl.u32 %v2422, 7
        %v2424 = vsub.s32 0, %v2423
        %v2425 = vrot.slane %v2138, %v2424
        %v2426 = vlaneseq
        %v2427 = vshrl.u32 %v2426, 7
        %v2428 = vsub.s32 0, %v2427
        %v2429 = vrot.slane %v2139, %v2428
        %v2430 = vlaneseq
        %v2431 = vshrl.u32 %v2430, 7
        %v2432 = vsub.s32 0, %v2431
        %v2433 = vrot.slane %v2140, %v2432
        %v2434 = vlaneseq
        %v2435 = vshrl.u32 %v2434, 7
        %v2436 = vsub.s32 0, %v2435
        %v2437 = vrot.slane %v2141, %v2436
        %v2438 = vlaneseq
        %v2439 = vshrl.u32 %v2438, 7
        %v2440 = vsub.s32 0, %v2439
        %v2441 = vrot.slane %v2142, %v2440
        %v2442 = vlaneseq
        %v2443 = vshrl.u32 %v2442, 7
        %v2444 = vsub.s32 0, %v2443
        %v2445 = vrot.slane %v2143, %v2444
        %v2446 = vlaneseq
        %v2447 = vshrl.u32 %v2446, 7
        %v2448 = vsub.s32 0, %v2447
        %v2449 = vrot.slane %v2144, %v2448
        %v2450 = vlaneseq
        %v2451 = vshrl.u32 %v2450, 7
        %v2452 = vsub.s32 0, %v2451
        %v2453 = vrot.slane %v2145, %v2452
        %v2454 = vlaneseq
        %v2455 = vshrl.u32 %v2454, 7
        %v2456 = vsub.s32 0, %v2455
        %v2457 = vrot.slane %v2146, %v2456
        %v2458 = vlaneseq
        %v2459 = vshrl.u32 %v2458, 7
        %v2460 = vsub.s32 0, %v2459
        %v2461 = vrot.slane %v2147, %v2460
        %v2462 = vlaneseq
        %v2463 = vshrl.u32 %v2462, 7
        %v2464 = vsub.s32 0, %v2463
        %v2465 = vrot.slane %v2148, %v2464
        %v2466 = vlaneseq
        %v2467 = vshrl.u32 %v2466, 7
        %v2468 = vsub.s32 0, %v2467
        %v2469 = vrot.slane %v2149, %v2468
        %vm2470 = vcmask 1042434
        %v2471 = vsel %vm2470, %v2221, %v2217
        %vm2472 = vcmask 1043459
        %v2473 = vsel %vm2472, %v2225, %v2471
        %vm2474 = vcmask 1044484
        %v2475 = vsel %vm2474, %v2229, %v2473
        %vm2476 = vcmask 1045509
        %v2477 = vsel %vm2476, %v2233, %v2475
        %vm2478 = vcmask 1046534
        %v2479 = vsel %vm2478, %v2237, %v2477
        %vm2480 = vcmask 1047559
        %v2481 = vsel %vm2480, %v2241, %v2479
        %v2482 = vsel %vm2470, %v2253, %v2249
        %v2483 = vsel %vm2472, %v2257, %v2482
        %v2484 = vsel %vm2474, %v2261, %v2483
        %v2485 = vsel %vm2476, %v2265, %v2484
        %v2486 = vsel %vm2478, %v2269, %v2485
        %v2487 = vsel %vm2480, %v2273, %v2486
        %v2488 = vsel %vm2470, %v2285, %v2281
        %v2489 = vsel %vm2472, %v2289, %v2488
        %v2490 = vsel %vm2474, %v2293, %v2489
        %v2491 = vsel %vm2476, %v2297, %v2490
        %v2492 = vsel %vm2478, %v2301, %v2491
        %v2493 = vsel %vm2480, %v2305, %v2492
        %v2494 = vsel %vm2470, %v2317, %v2313
        %v2495 = vsel %vm2472, %v2321, %v2494
        %v2496 = vsel %vm2474, %v2325, %v2495
        %v2497 = vsel %vm2476, %v2329, %v2496
        %v2498 = vsel %vm2478, %v2333, %v2497
        %v2499 = vsel %vm2480, %v2337, %v2498
        %v2500 = vsel %vm2470, %v2349, %v2345
        %v2501 = vsel %vm2472, %v2353, %v2500
        %v2502 = vsel %vm2474, %v2357, %v2501
        %v2503 = vsel %vm2476, %v2361, %v2502
        %v2504 = vsel %vm2478, %v2365, %v2503
        %v2505 = vsel %vm2480, %v2369, %v2504
        %v2506 = vsel %vm2470, %v2381, %v2377
        %v2507 = vsel %vm2472, %v2385, %v2506
        %v2508 = vsel %vm2474, %v2389, %v2507
        %v2509 = vsel %vm2476, %v2393, %v2508
        %v2510 = vsel %vm2478, %v2397, %v2509
        %v2511 = vsel %vm2480, %v2401, %v2510
        %v2512 = vsel %vm2470, %v2413, %v2409
        %v2513 = vsel %vm2472, %v2417, %v2512
        %v2514 = vsel %vm2474, %v2421, %v2513
        %v2515 = vsel %vm2476, %v2425, %v2514
        %v2516 = vsel %vm2478, %v2429, %v2515
        %v2517 = vsel %vm2480, %v2433, %v2516
        %v2518 = vsel %vm2470, %v2445, %v2441
        %v2519 = vsel %vm2472, %v2449, %v2518
        %v2520 = vsel %vm2474, %v2453, %v2519
        %v2521 = vsel %vm2476, %v2457, %v2520
        %v2522 = vsel %vm2478, %v2461, %v2521
        %v2523 = vsel %vm2480, %v2465, %v2522
        %vm2540 = vcmask 1040384
        %v2541 = vsel %vm2540, 0.0, %v2481
        %v2542 = vsel %vm2540, 0.0, %v2487
        %v2543 = vsel %vm2540, 0.0, %v2493
        %v2544 = vsel %vm2540, 0.0, %v2499
        %v2545 = vsel %vm2540, 0.0, %v2505
        %v2546 = vsel %vm2540, 0.0, %v2511
        %v2547 = vsel %vm2540, 0.0, %v2517
        %v2548 = vsel %vm2540, 0.0, %v2523
        %v2549 = vsel %vm2540, %v2245, 0.0
        %v2550 = vsel %vm2540, %v2277, 0.0
        %v2551 = vsel %vm2540, %v2309, 0.0
        %v2552 = vsel %vm2540, %v2341, 0.0
        %v2553 = vsel %vm2540, %v2373, 0.0
        %v2554 = vsel %vm2540, %v2405, 0.0
        %v2555 = vsel %vm2540, %v2437, 0.0
        %v2556 = vsel %vm2540, %v2469, 0.0
        %v2557 = vpack.c.bf16 %v2541, 0.0
        %v2558 = vpack.c.bf16 %v2543, %v2542
        %v2559 = vpack.c.bf16 %v2545, %v2544
        %v2560 = vpack.c.bf16 %v2547, %v2546
        %v2561 = vld [vmem:[%s3] sm:$0xf]
        %v2562 = vld [vmem:[%s3 + $0x4] sm:$0xf]
        %v2563 = vld [vmem:[%s3 + $0x8] sm:$0xf]
        %v2564 = vld [vmem:[%s3 + $0xc] sm:$0xf]
        %v2565 = vld [vmem:[%s3 + $0x10] sm:$0xf]
        %v2566 = vld [vmem:[%s3 + $0x14] sm:$0xf]
        %v2567 = vld [vmem:[%s3 + $0x18] sm:$0xf]
        %v2568 = vld [vmem:[%s3 + $0x1c] sm:$0xf]
        %vm2584 = vcmask 1046528
        %v2585 = vrot.slane 0.0, 1
        %v2586 = vsel %vm2584, %v2585, %v2585
        %v2587 = vrot.slane %v2541, 1
        %v2588 = vrot.slane %v2549, 1
        %v2589 = vsel %vm2584, %v2587, %v2588
        %v2590 = vrot.slane %v2542, 1
        %v2591 = vrot.slane %v2550, 1
        %v2592 = vsel %vm2584, %v2590, %v2591
        %v2593 = vrot.slane %v2543, 1
        %v2594 = vrot.slane %v2551, 1
        %v2595 = vsel %vm2584, %v2593, %v2594
        %v2596 = vrot.slane %v2544, 1
        %v2597 = vrot.slane %v2552, 1
        %v2598 = vsel %vm2584, %v2596, %v2597
        %v2599 = vrot.slane %v2545, 1
        %v2600 = vrot.slane %v2553, 1
        %v2601 = vsel %vm2584, %v2599, %v2600
        %v2602 = vrot.slane %v2546, 1
        %v2603 = vrot.slane %v2554, 1
        %v2604 = vsel %vm2584, %v2602, %v2603
        %v2605 = vrot.slane %v2547, 1
        %v2606 = vrot.slane %v2555, 1
        %v2607 = vsel %vm2584, %v2605, %v2606
        %v2616 = vpack.c.bf16 %v2589, %v2586
        %v2617 = vpack.c.bf16 %v2595, %v2592
        %v2618 = vpack.c.bf16 %v2601, %v2598
        %v2619 = vpack.c.bf16 %v2607, %v2604
        %s2620 = scalar_lea.vmem %s3, 32
        %v2621 = vld [vmem:[%s2620] sm:$0xf]
        %v2622 = vld [vmem:[%s2620 + $0x4] sm:$0xf]
        %v2623 = vld [vmem:[%s2620 + $0x8] sm:$0xf]
        %v2624 = vld [vmem:[%s2620 + $0xc] sm:$0xf]
        %v2625 = vld [vmem:[%s2620 + $0x10] sm:$0xf]
        %v2626 = vld [vmem:[%s2620 + $0x14] sm:$0xf]
        %v2627 = vld [vmem:[%s2620 + $0x18] sm:$0xf]
        %v2628 = vld [vmem:[%s2620 + $0x1c] sm:$0xf]
        %v2637 = vunpack.c.l.b16 %v2621
        %v2638 = vunpack.c.l.b16 %v2622
        %v2639 = vunpack.c.l.b16 %v2623
        %v2640 = vunpack.c.l.b16 %v2624
        %v2641 = vunpack.c.l.b16 %v2625
        %v2642 = vunpack.c.l.b16 %v2626
        %v2643 = vunpack.c.l.b16 %v2627
        %v2644 = vunpack.c.l.b16 %v2628
        %v2645 = vpack.c.b16 %v2638, %v2637
        %v2646 = vpack.c.b16 %v2640, %v2639
        %v2647 = vpack.c.b16 %v2642, %v2641
        %v2648 = vpack.c.b16 %v2644, %v2643
        %vm2653 = vcmask 523264
        %v2655 = vsel %vm2653, %v2616, 0
        %v2658 = vsel %vm2653, %v2617, 0
        %v2661 = vsel %vm2653, %v2618, 0
        %v2664 = vsel %vm2653, %v2619, 0
        %2666 = vmatprep.subr.bf16.mxu0 0
        %2667 = vmatpush1.bf16.msra.mxu0 %v2645
        %2668 = vmatprep.subr.bf16.mxu0 0
        %2669 = vmatpush1.bf16.msra.mxu0 %v2646
        %2670 = vmatprep.subr.bf16.mxu0 0
        %2671 = vmatpush1.bf16.msra.mxu0 %v2647
        %2672 = vmatprep.subr.bf16.mxu0 0
        %2673 = vmatpush1.bf16.msra.mxu0 %v2648
        %2674 = vmatprep.subr.bf16.mxu0 0
        %2675 = vmatpush1.bf16.msra.mxu0 0
        %2676 = vmatprep.subr.bf16.mxu0 0
        %2677 = vmatpush1.bf16.msra.mxu0 0
        %2678 = vmatprep.subr.bf16.mxu0 0
        %2679 = vmatpush1.bf16.msra.mxu0 0
        %2680 = vmatprep.subr.bf16.mxu0 0
        %2681 = vmatpush1.bf16.msra.mxu0 0
        %2682 = vmatprep.subr.bf16.mxu0 0
        %2683 = vmatpush1.bf16.msra.mxu0 0
        %2684 = vmatprep.subr.bf16.mxu0 0
        %2685 = vmatpush1.bf16.msra.mxu0 0
        %2686 = vmatprep.subr.bf16.mxu0 0
        %2687 = vmatpush1.bf16.msra.mxu0 0
        %2688 = vmatprep.subr.bf16.mxu0 0
        %2689 = vmatpush1.bf16.msra.mxu0 0
        %2690 = vmatprep.subr.bf16.mxu0 0
        %2691 = vmatpush1.bf16.msra.mxu0 0
        %2692 = vmatprep.subr.bf16.mxu0 0
        %2693 = vmatpush1.bf16.msra.mxu0 0
        %2694 = vmatprep.subr.bf16.mxu0 0
        %2695 = vmatpush1.bf16.msra.mxu0 0
        %2696 = vmatprep.subr.bf16.mxu0 0
        %2697 = vmatpush1.bf16.msra.mxu0 0
        %2698 = vmatprep.mubr.bf16.mxu0 0
        %2699 = vmatmul.mubr.bf16.gmra.mrb[0].mxu0 %v2655
        %v2700 = vpop.f32.mrb[0].mxu0
        %v2701 = vadd.f32 0.0, %v2700
        %v2702 = vpop.f32.mrb[0].mxu0
        %v2703 = vpop.f32.mrb[0].mxu0
        %v2704 = vadd.f32 0.0, %v2703
        %v2705 = vpop.f32.mrb[0].mxu0
        %2706 = vmatprep.mubr.bf16.mxu0 0
        %2707 = vmatmul.mubr.bf16.gmra.mrb[0].mxu0 %v2658
        %v2708 = vpop.f32.mrb[0].mxu0
        %v2709 = vadd.f32 0.0, %v2708
        %v2710 = vpop.f32.mrb[0].mxu0
        %v2711 = vpop.f32.mrb[0].mxu0
        %v2712 = vadd.f32 0.0, %v2711
        %v2713 = vpop.f32.mrb[0].mxu0
        %2714 = vmatprep.mubr.bf16.mxu0 0
        %2715 = vmatmul.mubr.bf16.gmra.mrb[0].mxu0 %v2661
        %v2716 = vpop.f32.mrb[0].mxu0
        %v2717 = vadd.f32 0.0, %v2716
        %v2718 = vpop.f32.mrb[0].mxu0
        %v2719 = vpop.f32.mrb[0].mxu0
        %v2720 = vadd.f32 0.0, %v2719
        %v2721 = vpop.f32.mrb[0].mxu0
        %2722 = vmatprep.mubr.bf16.mxu0 0
        %2723 = vmatmul.mubr.bf16.gmra.mrb[0].mxu0 %v2664
        %v2724 = vpop.f32.mrb[0].mxu0
        %v2725 = vadd.f32 0.0, %v2724
        %v2726 = vpop.f32.mrb[0].mxu0
        %v2727 = vpop.f32.mrb[0].mxu0
        %v2728 = vadd.f32 0.0, %v2727
        %v2729 = vpop.f32.mrb[0].mxu0
        %2730 = vdwg.mxu0
        %v2739 = vunpack.c.l.b16 %v2561
        %v2740 = vunpack.c.l.b16 %v2562
        %v2741 = vunpack.c.l.b16 %v2563
        %v2742 = vunpack.c.l.b16 %v2564
        %v2743 = vunpack.c.l.b16 %v2565
        %v2744 = vunpack.c.l.b16 %v2566
        %v2745 = vunpack.c.l.b16 %v2567
        %v2746 = vunpack.c.l.b16 %v2568
        %v2747 = vpack.c.b16 %v2740, %v2739
        %v2748 = vpack.c.b16 %v2742, %v2741
        %v2749 = vpack.c.b16 %v2744, %v2743
        %v2750 = vpack.c.b16 %v2746, %v2745
        %v2756 = vsel %vm2653, %v2557, 0
        %v2759 = vsel %vm2653, %v2558, 0
        %v2762 = vsel %vm2653, %v2559, 0
        %v2765 = vsel %vm2653, %v2560, 0
        %2767 = vmatprep.subr.bf16.mxu0 0
        %2768 = vmatpush1.bf16.msra.mxu0 %v2747
        %2769 = vmatprep.subr.bf16.mxu0 0
        %2770 = vmatpush1.bf16.msra.mxu0 %v2748
        %2771 = vmatprep.subr.bf16.mxu0 0
        %2772 = vmatpush1.bf16.msra.mxu0 %v2749
        %2773 = vmatprep.subr.bf16.mxu0 0
        %2774 = vmatpush1.bf16.msra.mxu0 %v2750
        %2775 = vmatprep.subr.bf16.mxu0 0
        %2776 = vmatpush1.bf16.msra.mxu0 0
        %2777 = vmatprep.subr.bf16.mxu0 0
        %2778 = vmatpush1.bf16.msra.mxu0 0
        %2779 = vmatprep.subr.bf16.mxu0 0
        %2780 = vmatpush1.bf16.msra.mxu0 0
        %2781 = vmatprep.subr.bf16.mxu0 0
        %2782 = vmatpush1.bf16.msra.mxu0 0
        %2783 = vmatprep.subr.bf16.mxu0 0
        %2784 = vmatpush1.bf16.msra.mxu0 0
        %2785 = vmatprep.subr.bf16.mxu0 0
        %2786 = vmatpush1.bf16.msra.mxu0 0
        %2787 = vmatprep.subr.bf16.mxu0 0
        %2788 = vmatpush1.bf16.msra.mxu0 0
        %2789 = vmatprep.subr.bf16.mxu0 0
        %2790 = vmatpush1.bf16.msra.mxu0 0
        %2791 = vmatprep.subr.bf16.mxu0 0
        %2792 = vmatpush1.bf16.msra.mxu0 0
        %2793 = vmatprep.subr.bf16.mxu0 0
        %2794 = vmatpush1.bf16.msra.mxu0 0
        %2795 = vmatprep.subr.bf16.mxu0 0
        %2796 = vmatpush1.bf16.msra.mxu0 0
        %2797 = vmatprep.subr.bf16.mxu0 0
        %2798 = vmatpush1.bf16.msra.mxu0 0
        %2799 = vmatprep.mubr.bf16.mxu0 0
        %2800 = vmatmul.mubr.bf16.gmra.mrb[0].mxu0 %v2756
        %v2801 = vpop.f32.mrb[0].mxu0
        %v2802 = vadd.f32 %v2701, %v2801
        %v2803 = vpop.f32.mrb[0].mxu0
        %v2804 = vpop.f32.mrb[0].mxu0
        %v2805 = vadd.f32 %v2704, %v2804
        %v2806 = vpop.f32.mrb[0].mxu0
        %2807 = vmatprep.mubr.bf16.mxu0 0
        %2808 = vmatmul.mubr.bf16.gmra.mrb[0].mxu0 %v2759
        %v2809 = vpop.f32.mrb[0].mxu0
        %v2810 = vadd.f32 %v2709, %v2809
        %v2811 = vpop.f32.mrb[0].mxu0
        %v2812 = vpop.f32.mrb[0].mxu0
        %v2813 = vadd.f32 %v2712, %v2812
        %v2814 = vpop.f32.mrb[0].mxu0
        %2815 = vmatprep.mubr.bf16.mxu0 0
        %2816 = vmatmul.mubr.bf16.gmra.mrb[0].mxu0 %v2762
        %v2817 = vpop.f32.mrb[0].mxu0
        %v2818 = vadd.f32 %v2717, %v2817
        %v2819 = vpop.f32.mrb[0].mxu0
        %v2820 = vpop.f32.mrb[0].mxu0
        %v2821 = vadd.f32 %v2720, %v2820
        %v2822 = vpop.f32.mrb[0].mxu0
        %2823 = vmatprep.mubr.bf16.mxu0 0
        %2824 = vmatmul.mubr.bf16.gmra.mrb[0].mxu0 %v2765
        %v2825 = vpop.f32.mrb[0].mxu0
        %v2826 = vadd.f32 %v2725, %v2825
        %v2827 = vpop.f32.mrb[0].mxu0
        %v2828 = vpop.f32.mrb[0].mxu0
        %v2829 = vadd.f32 %v2728, %v2828
        %v2830 = vpop.f32.mrb[0].mxu0
        %2831 = vdwg.mxu0
        %vm2832 = vcmask 1045504
        %v2833 = vrot.slane 0.0, 2
        %v2834 = vsel %vm2832, %v2833, %v2833
        %v2835 = vrot.slane %v2541, 2
        %v2836 = vrot.slane %v2549, 2
        %v2837 = vsel %vm2832, %v2835, %v2836
        %v2838 = vrot.slane %v2542, 2
        %v2839 = vrot.slane %v2550, 2
        %v2840 = vsel %vm2832, %v2838, %v2839
        %v2841 = vrot.slane %v2543, 2
        %v2842 = vrot.slane %v2551, 2
        %v2843 = vsel %vm2832, %v2841, %v2842
        %v2844 = vrot.slane %v2544, 2
        %v2845 = vrot.slane %v2552, 2
        %v2846 = vsel %vm2832, %v2844, %v2845
        %v2847 = vrot.slane %v2545, 2
        %v2848 = vrot.slane %v2553, 2
        %v2849 = vsel %vm2832, %v2847, %v2848
        %v2850 = vrot.slane %v2546, 2
        %v2851 = vrot.slane %v2554, 2
        %v2852 = vsel %vm2832, %v2850, %v2851
        %v2853 = vrot.slane %v2547, 2
        %v2854 = vrot.slane %v2555, 2
        %v2855 = vsel %vm2832, %v2853, %v2854
        %v2864 = vpack.c.bf16 %v2837, %v2834
        %v2865 = vpack.c.bf16 %v2843, %v2840
        %v2866 = vpack.c.bf16 %v2849, %v2846
        %v2867 = vpack.c.bf16 %v2855, %v2852
        %s2868 = scalar_lea.vmem %s3, 64
        %v2869 = vld [vmem:[%s2868] sm:$0xf]
        %v2870 = vld [vmem:[%s2868 + $0x4] sm:$0xf]
        %v2871 = vld [vmem:[%s2868 + $0x8] sm:$0xf]
        %v2872 = vld [vmem:[%s2868 + $0xc] sm:$0xf]
        %v2873 = vld [vmem:[%s2868 + $0x10] sm:$0xf]
        %v2874 = vld [vmem:[%s2868 + $0x14] sm:$0xf]
        %v2875 = vld [vmem:[%s2868 + $0x18] sm:$0xf]
        %v2876 = vld [vmem:[%s2868 + $0x1c] sm:$0xf]
        %v2885 = vunpack.c.l.b16 %v2869
        %v2886 = vunpack.c.l.b16 %v2870
        %v2887 = vunpack.c.l.b16 %v2871
        %v2888 = vunpack.c.l.b16 %v2872
        %v2889 = vunpack.c.l.b16 %v2873
        %v2890 = vunpack.c.l.b16 %v2874
        %v2891 = vunpack.c.l.b16 %v2875
        %v2892 = vunpack.c.l.b16 %v2876
        %v2893 = vpack.c.b16 %v2886, %v2885
        %v2894 = vpack.c.b16 %v2888, %v2887
        %v2895 = vpack.c.b16 %v2890, %v2889
        %v2896 = vpack.c.b16 %v2892, %v2891
        %v2902 = vsel %vm2653, %v2864, 0
        %v2905 = vsel %vm2653, %v2865, 0
        %v2908 = vsel %vm2653, %v2866, 0
        %v2911 = vsel %vm2653, %v2867, 0
        %2913 = vmatprep.subr.bf16.mxu0 0
        %2914 = vmatpush1.bf16.msra.mxu0 %v2893
        %2915 = vmatprep.subr.bf16.mxu0 0
        %2916 = vmatpush1.bf16.msra.mxu0 %v2894
        %2917 = vmatprep.subr.bf16.mxu0 0
        %2918 = vmatpush1.bf16.msra.mxu0 %v2895
        %2919 = vmatprep.subr.bf16.mxu0 0
        %2920 = vmatpush1.bf16.msra.mxu0 %v2896
        %2921 = vmatprep.subr.bf16.mxu0 0
        %2922 = vmatpush1.bf16.msra.mxu0 0
        %2923 = vmatprep.subr.bf16.mxu0 0
        %2924 = vmatpush1.bf16.msra.mxu0 0
        %2925 = vmatprep.subr.bf16.mxu0 0
        %2926 = vmatpush1.bf16.msra.mxu0 0
        %2927 = vmatprep.subr.bf16.mxu0 0
        %2928 = vmatpush1.bf16.msra.mxu0 0
        %2929 = vmatprep.subr.bf16.mxu0 0
        %2930 = vmatpush1.bf16.msra.mxu0 0
        %2931 = vmatprep.subr.bf16.mxu0 0
        %2932 = vmatpush1.bf16.msra.mxu0 0
        %2933 = vmatprep.subr.bf16.mxu0 0
        %2934 = vmatpush1.bf16.msra.mxu0 0
        %2935 = vmatprep.subr.bf16.mxu0 0
        %2936 = vmatpush1.bf16.msra.mxu0 0
        %2937 = vmatprep.subr.bf16.mxu0 0
        %2938 = vmatpush1.bf16.msra.mxu0 0
        %2939 = vmatprep.subr.bf16.mxu0 0
        %2940 = vmatpush1.bf16.msra.mxu0 0
        %2941 = vmatprep.subr.bf16.mxu0 0
        %2942 = vmatpush1.bf16.msra.mxu0 0
        %2943 = vmatprep.subr.bf16.mxu0 0
        %2944 = vmatpush1.bf16.msra.mxu0 0
        %2945 = vmatprep.mubr.bf16.mxu0 0
        %2946 = vmatmul.mubr.bf16.gmra.mrb[0].mxu0 %v2902
        %v2947 = vpop.f32.mrb[0].mxu0
        %v2948 = vadd.f32 0.0, %v2947
        %v2949 = vpop.f32.mrb[0].mxu0
        %v2950 = vpop.f32.mrb[0].mxu0
        %v2951 = vadd.f32 0.0, %v2950
        %v2952 = vpop.f32.mrb[0].mxu0
        %2953 = vmatprep.mubr.bf16.mxu0 0
        %2954 = vmatmul.mubr.bf16.gmra.mrb[0].mxu0 %v2905
        %v2955 = vpop.f32.mrb[0].mxu0
        %v2956 = vadd.f32 0.0, %v2955
        %v2957 = vpop.f32.mrb[0].mxu0
        %v2958 = vpop.f32.mrb[0].mxu0
        %v2959 = vadd.f32 0.0, %v2958
        %v2960 = vpop.f32.mrb[0].mxu0
        %2961 = vmatprep.mubr.bf16.mxu0 0
        %2962 = vmatmul.mubr.bf16.gmra.mrb[0].mxu0 %v2908
        %v2963 = vpop.f32.mrb[0].mxu0
        %v2964 = vadd.f32 0.0, %v2963
        %v2965 = vpop.f32.mrb[0].mxu0
        %v2966 = vpop.f32.mrb[0].mxu0
        %v2967 = vadd.f32 0.0, %v2966
        %v2968 = vpop.f32.mrb[0].mxu0
        %2969 = vmatprep.mubr.bf16.mxu0 0
        %2970 = vmatmul.mubr.bf16.gmra.mrb[0].mxu0 %v2911
        %v2971 = vpop.f32.mrb[0].mxu0
        %v2972 = vadd.f32 0.0, %v2971
        %v2973 = vpop.f32.mrb[0].mxu0
        %v2974 = vpop.f32.mrb[0].mxu0
        %v2975 = vadd.f32 0.0, %v2974
        %v2976 = vpop.f32.mrb[0].mxu0
        %2977 = vdwg.mxu0
        %v2978 = vadd.f32 %v2802, %v2948
        %v2979 = vadd.f32 %v2805, %v2951
        %v2980 = vadd.f32 %v2810, %v2956
        %v2981 = vadd.f32 %v2813, %v2959
        %v2982 = vadd.f32 %v2818, %v2964
        %v2983 = vadd.f32 %v2821, %v2967
        %v2984 = vadd.f32 %v2826, %v2972
        %v2985 = vadd.f32 %v2829, %v2975
        %v2986 = vpack.c.bf16 %v2542, %v2541
        %v2987 = vpack.c.bf16 %v2544, %v2543
        %v2988 = vpack.c.bf16 %v2546, %v2545
        %v2989 = vpack.c.bf16 %v2548, %v2547
        %s2990 = scalar_lea.vmem %s3, 96
        %v2991 = vld [vmem:[%s2990] sm:$0xf]
        %v2992 = vld [vmem:[%s2990 + $0x4] sm:$0xf]
        %v2993 = vld [vmem:[%s2990 + $0x8] sm:$0xf]
        %v2994 = vld [vmem:[%s2990 + $0xc] sm:$0xf]
        %v2995 = vld [vmem:[%s2990 + $0x10] sm:$0xf]
        %v2996 = vld [vmem:[%s2990 + $0x14] sm:$0xf]
        %v2997 = vld [vmem:[%s2990 + $0x18] sm:$0xf]
        %v2998 = vld [vmem:[%s2990 + $0x1c] sm:$0xf]
        %v3007 = vunpack.c.l.b16 %v2991
        %v3008 = vunpack.c.l.b16 %v2992
        %v3009 = vunpack.c.l.b16 %v2993
        %v3010 = vunpack.c.l.b16 %v2994
        %v3011 = vunpack.c.l.b16 %v2995
        %v3012 = vunpack.c.l.b16 %v2996
        %v3013 = vunpack.c.l.b16 %v2997
        %v3014 = vunpack.c.l.b16 %v2998
        %v3015 = vpack.c.b16 %v3008, %v3007
        %v3016 = vpack.c.b16 %v3010, %v3009
        %v3017 = vpack.c.b16 %v3012, %v3011
        %v3018 = vpack.c.b16 %v3014, %v3013
        %v3024 = vsel %vm2653, %v2986, 0
        %v3027 = vsel %vm2653, %v2987, 0
        %v3030 = vsel %vm2653, %v2988, 0
        %v3033 = vsel %vm2653, %v2989, 0
        %3035 = vmatprep.subr.bf16.mxu0 0
        %3036 = vmatpush1.bf16.msra.mxu0 %v3015
        %3037 = vmatprep.subr.bf16.mxu0 0
        %3038 = vmatpush1.bf16.msra.mxu0 %v3016
        %3039 = vmatprep.subr.bf16.mxu0 0
        %3040 = vmatpush1.bf16.msra.mxu0 %v3017
        %3041 = vmatprep.subr.bf16.mxu0 0
        %3042 = vmatpush1.bf16.msra.mxu0 %v3018
        %3043 = vmatprep.subr.bf16.mxu0 0
        %3044 = vmatpush1.bf16.msra.mxu0 0
        %3045 = vmatprep.subr.bf16.mxu0 0
        %3046 = vmatpush1.bf16.msra.mxu0 0
        %3047 = vmatprep.subr.bf16.mxu0 0
        %3048 = vmatpush1.bf16.msra.mxu0 0
        %3049 = vmatprep.subr.bf16.mxu0 0
        %3050 = vmatpush1.bf16.msra.mxu0 0
        %3051 = vmatprep.subr.bf16.mxu0 0
        %3052 = vmatpush1.bf16.msra.mxu0 0
        %3053 = vmatprep.subr.bf16.mxu0 0
        %3054 = vmatpush1.bf16.msra.mxu0 0
        %3055 = vmatprep.subr.bf16.mxu0 0
        %3056 = vmatpush1.bf16.msra.mxu0 0
        %3057 = vmatprep.subr.bf16.mxu0 0
        %3058 = vmatpush1.bf16.msra.mxu0 0
        %3059 = vmatprep.subr.bf16.mxu0 0
        %3060 = vmatpush1.bf16.msra.mxu0 0
        %3061 = vmatprep.subr.bf16.mxu0 0
        %3062 = vmatpush1.bf16.msra.mxu0 0
        %3063 = vmatprep.subr.bf16.mxu0 0
        %3064 = vmatpush1.bf16.msra.mxu0 0
        %3065 = vmatprep.subr.bf16.mxu0 0
        %3066 = vmatpush1.bf16.msra.mxu0 0
        %3067 = vmatprep.mubr.bf16.mxu0 0
        %3068 = vmatmul.mubr.bf16.gmra.mrb[0].mxu0 %v3024
        %v3069 = vpop.f32.mrb[0].mxu0
        %v3070 = vadd.f32 0.0, %v3069
        %v3071 = vpop.f32.mrb[0].mxu0
        %v3072 = vpop.f32.mrb[0].mxu0
        %v3073 = vadd.f32 0.0, %v3072
        %v3074 = vpop.f32.mrb[0].mxu0
        %3075 = vmatprep.mubr.bf16.mxu0 0
        %3076 = vmatmul.mubr.bf16.gmra.mrb[0].mxu0 %v3027
        %v3077 = vpop.f32.mrb[0].mxu0
        %v3078 = vadd.f32 0.0, %v3077
        %v3079 = vpop.f32.mrb[0].mxu0
        %v3080 = vpop.f32.mrb[0].mxu0
        %v3081 = vadd.f32 0.0, %v3080
        %v3082 = vpop.f32.mrb[0].mxu0
        %3083 = vmatprep.mubr.bf16.mxu0 0
        %3084 = vmatmul.mubr.bf16.gmra.mrb[0].mxu0 %v3030
        %v3085 = vpop.f32.mrb[0].mxu0
        %v3086 = vadd.f32 0.0, %v3085
        %v3087 = vpop.f32.mrb[0].mxu0
        %v3088 = vpop.f32.mrb[0].mxu0
        %v3089 = vadd.f32 0.0, %v3088
        %v3090 = vpop.f32.mrb[0].mxu0
        %3091 = vmatprep.mubr.bf16.mxu0 0
        %3092 = vmatmul.mubr.bf16.gmra.mrb[0].mxu0 %v3033
        %v3093 = vpop.f32.mrb[0].mxu0
        %v3094 = vadd.f32 0.0, %v3093
        %v3095 = vpop.f32.mrb[0].mxu0
        %v3096 = vpop.f32.mrb[0].mxu0
        %v3097 = vadd.f32 0.0, %v3096
        %v3098 = vpop.f32.mrb[0].mxu0
        %3099 = vdwg.mxu0
        %v3100 = vadd.f32 %v2978, %v3070
        %v3101 = vadd.f32 %v2979, %v3073
        %v3102 = vadd.f32 %v2980, %v3078
        %v3103 = vadd.f32 %v2981, %v3081
        %v3104 = vadd.f32 %v2982, %v3086
        %v3105 = vadd.f32 %v2983, %v3089
        %v3106 = vadd.f32 %v2984, %v3094
        %v3107 = vadd.f32 %v2985, %v3097
        %v3110 = vrot.slane %v2548, 1
        %v3111 = vrot.slane %v2556, 1
        %v3112 = vsel %vm2584, %v3110, %v3111
        %v3114 = vpack.c.bf16 %v2592, %v2589
        %v3115 = vpack.c.bf16 %v2598, %v2595
        %v3116 = vpack.c.bf16 %v2604, %v2601
        %v3117 = vpack.c.bf16 %v3112, %v2607
        %s3118 = scalar_lea.vmem %s3, 128
        %v3119 = vld [vmem:[%s3118] sm:$0xf]
        %v3120 = vld [vmem:[%s3118 + $0x4] sm:$0xf]
        %v3121 = vld [vmem:[%s3118 + $0x8] sm:$0xf]
        %v3122 = vld [vmem:[%s3118 + $0xc] sm:$0xf]
        %v3123 = vld [vmem:[%s3118 + $0x10] sm:$0xf]
        %v3124 = vld [vmem:[%s3118 + $0x14] sm:$0xf]
        %v3125 = vld [vmem:[%s3118 + $0x18] sm:$0xf]
        %v3126 = vld [vmem:[%s3118 + $0x1c] sm:$0xf]
        %v3135 = vunpack.c.l.b16 %v3119
        %v3136 = vunpack.c.l.b16 %v3120
        %v3137 = vunpack.c.l.b16 %v3121
        %v3138 = vunpack.c.l.b16 %v3122
        %v3139 = vunpack.c.l.b16 %v3123
        %v3140 = vunpack.c.l.b16 %v3124
        %v3141 = vunpack.c.l.b16 %v3125
        %v3142 = vunpack.c.l.b16 %v3126
        %v3143 = vpack.c.b16 %v3136, %v3135
        %v3144 = vpack.c.b16 %v3138, %v3137
        %v3145 = vpack.c.b16 %v3140, %v3139
        %v3146 = vpack.c.b16 %v3142, %v3141
        %v3152 = vsel %vm2653, %v3114, 0
        %v3155 = vsel %vm2653, %v3115, 0
        %v3158 = vsel %vm2653, %v3116, 0
        %v3161 = vsel %vm2653, %v3117, 0
        %3163 = vmatprep.subr.bf16.mxu0 0
        %3164 = vmatpush1.bf16.msra.mxu0 %v3143
        %3165 = vmatprep.subr.bf16.mxu0 0
        %3166 = vmatpush1.bf16.msra.mxu0 %v3144
        %3167 = vmatprep.subr.bf16.mxu0 0
        %3168 = vmatpush1.bf16.msra.mxu0 %v3145
        %3169 = vmatprep.subr.bf16.mxu0 0
        %3170 = vmatpush1.bf16.msra.mxu0 %v3146
        %3171 = vmatprep.subr.bf16.mxu0 0
        %3172 = vmatpush1.bf16.msra.mxu0 0
        %3173 = vmatprep.subr.bf16.mxu0 0
        %3174 = vmatpush1.bf16.msra.mxu0 0
        %3175 = vmatprep.subr.bf16.mxu0 0
        %3176 = vmatpush1.bf16.msra.mxu0 0
        %3177 = vmatprep.subr.bf16.mxu0 0
        %3178 = vmatpush1.bf16.msra.mxu0 0
        %3179 = vmatprep.subr.bf16.mxu0 0
        %3180 = vmatpush1.bf16.msra.mxu0 0
        %3181 = vmatprep.subr.bf16.mxu0 0
        %3182 = vmatpush1.bf16.msra.mxu0 0
        %3183 = vmatprep.subr.bf16.mxu0 0
        %3184 = vmatpush1.bf16.msra.mxu0 0
        %3185 = vmatprep.subr.bf16.mxu0 0
        %3186 = vmatpush1.bf16.msra.mxu0 0
        %3187 = vmatprep.subr.bf16.mxu0 0
        %3188 = vmatpush1.bf16.msra.mxu0 0
        %3189 = vmatprep.subr.bf16.mxu0 0
        %3190 = vmatpush1.bf16.msra.mxu0 0
        %3191 = vmatprep.subr.bf16.mxu0 0
        %3192 = vmatpush1.bf16.msra.mxu0 0
        %3193 = vmatprep.subr.bf16.mxu0 0
        %3194 = vmatpush1.bf16.msra.mxu0 0
        %3195 = vmatprep.mubr.bf16.mxu0 0
        %3196 = vmatmul.mubr.bf16.gmra.mrb[0].mxu0 %v3152
        %v3197 = vpop.f32.mrb[0].mxu0
        %v3198 = vadd.f32 0.0, %v3197
        %v3199 = vpop.f32.mrb[0].mxu0
        %v3200 = vpop.f32.mrb[0].mxu0
        %v3201 = vadd.f32 0.0, %v3200
        %v3202 = vpop.f32.mrb[0].mxu0
        %3203 = vmatprep.mubr.bf16.mxu0 0
        %3204 = vmatmul.mubr.bf16.gmra.mrb[0].mxu0 %v3155
        %v3205 = vpop.f32.mrb[0].mxu0
        %v3206 = vadd.f32 0.0, %v3205
        %v3207 = vpop.f32.mrb[0].mxu0
        %v3208 = vpop.f32.mrb[0].mxu0
        %v3209 = vadd.f32 0.0, %v3208
        %v3210 = vpop.f32.mrb[0].mxu0
        %3211 = vmatprep.mubr.bf16.mxu0 0
        %3212 = vmatmul.mubr.bf16.gmra.mrb[0].mxu0 %v3158
        %v3213 = vpop.f32.mrb[0].mxu0
        %v3214 = vadd.f32 0.0, %v3213
        %v3215 = vpop.f32.mrb[0].mxu0
        %v3216 = vpop.f32.mrb[0].mxu0
        %v3217 = vadd.f32 0.0, %v3216
        %v3218 = vpop.f32.mrb[0].mxu0
        %3219 = vmatprep.mubr.bf16.mxu0 0
        %3220 = vmatmul.mubr.bf16.gmra.mrb[0].mxu0 %v3161
        %v3221 = vpop.f32.mrb[0].mxu0
        %v3222 = vadd.f32 0.0, %v3221
        %v3223 = vpop.f32.mrb[0].mxu0
        %v3224 = vpop.f32.mrb[0].mxu0
        %v3225 = vadd.f32 0.0, %v3224
        %v3226 = vpop.f32.mrb[0].mxu0
        %3227 = vdwg.mxu0
        %v3228 = vadd.f32 %v3100, %v3198
        %v3229 = vadd.f32 %v3101, %v3201
        %v3230 = vadd.f32 %v3102, %v3206
        %v3231 = vadd.f32 %v3103, %v3209
        %v3232 = vadd.f32 %v3104, %v3214
        %v3233 = vadd.f32 %v3105, %v3217
        %v3234 = vadd.f32 %v3106, %v3222
        %v3235 = vadd.f32 %v3107, %v3225
        %v3236 = vrot.slane %v2548, 2
        %v3237 = vrot.slane %v2556, 2
        %v3238 = vsel %vm2832, %v3236, %v3237
        %v3240 = vpack.c.bf16 %v2840, %v2837
        %v3241 = vpack.c.bf16 %v2846, %v2843
        %v3242 = vpack.c.bf16 %v2852, %v2849
        %v3243 = vpack.c.bf16 %v3238, %v2855
        %s3244 = scalar_lea.vmem %s3, 160
        %v3245 = vld [vmem:[%s3244] sm:$0xf]
        %v3246 = vld [vmem:[%s3244 + $0x4] sm:$0xf]
        %v3247 = vld [vmem:[%s3244 + $0x8] sm:$0xf]
        %v3248 = vld [vmem:[%s3244 + $0xc] sm:$0xf]
        %v3249 = vld [vmem:[%s3244 + $0x10] sm:$0xf]
        %v3250 = vld [vmem:[%s3244 + $0x14] sm:$0xf]
        %v3251 = vld [vmem:[%s3244 + $0x18] sm:$0xf]
        %v3252 = vld [vmem:[%s3244 + $0x1c] sm:$0xf]
        %v3261 = vunpack.c.l.b16 %v3245
        %v3262 = vunpack.c.l.b16 %v3246
        %v3263 = vunpack.c.l.b16 %v3247
        %v3264 = vunpack.c.l.b16 %v3248
        %v3265 = vunpack.c.l.b16 %v3249
        %v3266 = vunpack.c.l.b16 %v3250
        %v3267 = vunpack.c.l.b16 %v3251
        %v3268 = vunpack.c.l.b16 %v3252
        %v3269 = vpack.c.b16 %v3262, %v3261
        %v3270 = vpack.c.b16 %v3264, %v3263
        %v3271 = vpack.c.b16 %v3266, %v3265
        %v3272 = vpack.c.b16 %v3268, %v3267
        %v3278 = vsel %vm2653, %v3240, 0
        %v3281 = vsel %vm2653, %v3241, 0
        %v3284 = vsel %vm2653, %v3242, 0
        %v3287 = vsel %vm2653, %v3243, 0
        %3289 = vmatprep.subr.bf16.mxu0 0
        %3290 = vmatpush1.bf16.msra.mxu0 %v3269
        %3291 = vmatprep.subr.bf16.mxu0 0
        %3292 = vmatpush1.bf16.msra.mxu0 %v3270
        %3293 = vmatprep.subr.bf16.mxu0 0
        %3294 = vmatpush1.bf16.msra.mxu0 %v3271
        %3295 = vmatprep.subr.bf16.mxu0 0
        %3296 = vmatpush1.bf16.msra.mxu0 %v3272
        %3297 = vmatprep.subr.bf16.mxu0 0
        %3298 = vmatpush1.bf16.msra.mxu0 0
        %3299 = vmatprep.subr.bf16.mxu0 0
        %3300 = vmatpush1.bf16.msra.mxu0 0
        %3301 = vmatprep.subr.bf16.mxu0 0
        %3302 = vmatpush1.bf16.msra.mxu0 0
        %3303 = vmatprep.subr.bf16.mxu0 0
        %3304 = vmatpush1.bf16.msra.mxu0 0
        %3305 = vmatprep.subr.bf16.mxu0 0
        %3306 = vmatpush1.bf16.msra.mxu0 0
        %3307 = vmatprep.subr.bf16.mxu0 0
        %3308 = vmatpush1.bf16.msra.mxu0 0
        %3309 = vmatprep.subr.bf16.mxu0 0
        %3310 = vmatpush1.bf16.msra.mxu0 0
        %3311 = vmatprep.subr.bf16.mxu0 0
        %3312 = vmatpush1.bf16.msra.mxu0 0
        %3313 = vmatprep.subr.bf16.mxu0 0
        %3314 = vmatpush1.bf16.msra.mxu0 0
        %3315 = vmatprep.subr.bf16.mxu0 0
        %3316 = vmatpush1.bf16.msra.mxu0 0
        %3317 = vmatprep.subr.bf16.mxu0 0
        %3318 = vmatpush1.bf16.msra.mxu0 0
        %3319 = vmatprep.subr.bf16.mxu0 0
        %3320 = vmatpush1.bf16.msra.mxu0 0
        %3321 = vmatprep.mubr.bf16.mxu0 0
        %3322 = vmatmul.mubr.bf16.gmra.mrb[0].mxu0 %v3278
        %v3323 = vpop.f32.mrb[0].mxu0
        %v3324 = vadd.f32 0.0, %v3323
        %v3325 = vpop.f32.mrb[0].mxu0
        %v3326 = vpop.f32.mrb[0].mxu0
        %v3327 = vadd.f32 0.0, %v3326
        %v3328 = vpop.f32.mrb[0].mxu0
        %3329 = vmatprep.mubr.bf16.mxu0 0
        %3330 = vmatmul.mubr.bf16.gmra.mrb[0].mxu0 %v3281
        %v3331 = vpop.f32.mrb[0].mxu0
        %v3332 = vadd.f32 0.0, %v3331
        %v3333 = vpop.f32.mrb[0].mxu0
        %v3334 = vpop.f32.mrb[0].mxu0
        %v3335 = vadd.f32 0.0, %v3334
        %v3336 = vpop.f32.mrb[0].mxu0
        %3337 = vmatprep.mubr.bf16.mxu0 0
        %3338 = vmatmul.mubr.bf16.gmra.mrb[0].mxu0 %v3284
        %v3339 = vpop.f32.mrb[0].mxu0
        %v3340 = vadd.f32 0.0, %v3339
        %v3341 = vpop.f32.mrb[0].mxu0
        %v3342 = vpop.f32.mrb[0].mxu0
        %v3343 = vadd.f32 0.0, %v3342
        %v3344 = vpop.f32.mrb[0].mxu0
        %3345 = vmatprep.mubr.bf16.mxu0 0
        %3346 = vmatmul.mubr.bf16.gmra.mrb[0].mxu0 %v3287
        %v3347 = vpop.f32.mrb[0].mxu0
        %v3348 = vadd.f32 0.0, %v3347
        %v3349 = vpop.f32.mrb[0].mxu0
        %v3350 = vpop.f32.mrb[0].mxu0
        %v3351 = vadd.f32 0.0, %v3350
        %v3352 = vpop.f32.mrb[0].mxu0
        %3353 = vdwg.mxu0
        %v3354 = vadd.f32 %v3228, %v3324
        %v3355 = vadd.f32 %v3229, %v3327
        %v3356 = vadd.f32 %v3230, %v3332
        %v3357 = vadd.f32 %v3231, %v3335
        %v3358 = vadd.f32 %v3232, %v3340
        %v3359 = vadd.f32 %v3233, %v3343
        %v3360 = vadd.f32 %v3234, %v3348
        %v3361 = vadd.f32 %v3235, %v3351
        %v3362 = vpack.c.bf16 0.0, %v2548
        %s3363 = scalar_lea.vmem %s3, 192
        %v3364 = vld [vmem:[%s3363] sm:$0xf]
        %v3365 = vld [vmem:[%s3363 + $0x4] sm:$0xf]
        %v3366 = vld [vmem:[%s3363 + $0x8] sm:$0xf]
        %v3367 = vld [vmem:[%s3363 + $0xc] sm:$0xf]
        %v3368 = vld [vmem:[%s3363 + $0x10] sm:$0xf]
        %v3369 = vld [vmem:[%s3363 + $0x14] sm:$0xf]
        %v3370 = vld [vmem:[%s3363 + $0x18] sm:$0xf]
        %v3371 = vld [vmem:[%s3363 + $0x1c] sm:$0xf]
        %v3380 = vunpack.c.l.b16 %v3364
        %v3381 = vunpack.c.l.b16 %v3365
        %v3382 = vunpack.c.l.b16 %v3366
        %v3383 = vunpack.c.l.b16 %v3367
        %v3384 = vunpack.c.l.b16 %v3368
        %v3385 = vunpack.c.l.b16 %v3369
        %v3386 = vunpack.c.l.b16 %v3370
        %v3387 = vunpack.c.l.b16 %v3371
        %v3388 = vpack.c.b16 %v3381, %v3380
        %v3389 = vpack.c.b16 %v3383, %v3382
        %v3390 = vpack.c.b16 %v3385, %v3384
        %v3391 = vpack.c.b16 %v3387, %v3386
        %v3397 = vsel %vm2653, %v3362, 0
        %3399 = vmatprep.subr.bf16.mxu0 0
        %3400 = vmatpush1.bf16.msra.mxu0 %v3388
        %3401 = vmatprep.subr.bf16.mxu0 0
        %3402 = vmatpush1.bf16.msra.mxu0 %v3389
        %3403 = vmatprep.subr.bf16.mxu0 0
        %3404 = vmatpush1.bf16.msra.mxu0 %v3390
        %3405 = vmatprep.subr.bf16.mxu0 0
        %3406 = vmatpush1.bf16.msra.mxu0 %v3391
        %3407 = vmatprep.subr.bf16.mxu0 0
        %3408 = vmatpush1.bf16.msra.mxu0 0
        %3409 = vmatprep.subr.bf16.mxu0 0
        %3410 = vmatpush1.bf16.msra.mxu0 0
        %3411 = vmatprep.subr.bf16.mxu0 0
        %3412 = vmatpush1.bf16.msra.mxu0 0
        %3413 = vmatprep.subr.bf16.mxu0 0
        %3414 = vmatpush1.bf16.msra.mxu0 0
        %3415 = vmatprep.subr.bf16.mxu0 0
        %3416 = vmatpush1.bf16.msra.mxu0 0
        %3417 = vmatprep.subr.bf16.mxu0 0
        %3418 = vmatpush1.bf16.msra.mxu0 0
        %3419 = vmatprep.subr.bf16.mxu0 0
        %3420 = vmatpush1.bf16.msra.mxu0 0
        %3421 = vmatprep.subr.bf16.mxu0 0
        %3422 = vmatpush1.bf16.msra.mxu0 0
        %3423 = vmatprep.subr.bf16.mxu0 0
        %3424 = vmatpush1.bf16.msra.mxu0 0
        %3425 = vmatprep.subr.bf16.mxu0 0
        %3426 = vmatpush1.bf16.msra.mxu0 0
        %3427 = vmatprep.subr.bf16.mxu0 0
        %3428 = vmatpush1.bf16.msra.mxu0 0
        %3429 = vmatprep.subr.bf16.mxu0 0
        %3430 = vmatpush1.bf16.msra.mxu0 0
        %3431 = vmatprep.mubr.bf16.mxu0 0
        %3432 = vmatmul.mubr.bf16.gmra.mrb[0].mxu0 %v2759
        %v3433 = vpop.f32.mrb[0].mxu0
        %v3434 = vadd.f32 0.0, %v3433
        %v3435 = vpop.f32.mrb[0].mxu0
        %v3436 = vpop.f32.mrb[0].mxu0
        %v3437 = vadd.f32 0.0, %v3436
        %v3438 = vpop.f32.mrb[0].mxu0
        %3439 = vmatprep.mubr.bf16.mxu0 0
        %3440 = vmatmul.mubr.bf16.gmra.mrb[0].mxu0 %v2762
        %v3441 = vpop.f32.mrb[0].mxu0
        %v3442 = vadd.f32 0.0, %v3441
        %v3443 = vpop.f32.mrb[0].mxu0
        %v3444 = vpop.f32.mrb[0].mxu0
        %v3445 = vadd.f32 0.0, %v3444
        %v3446 = vpop.f32.mrb[0].mxu0
        %3447 = vmatprep.mubr.bf16.mxu0 0
        %3448 = vmatmul.mubr.bf16.gmra.mrb[0].mxu0 %v2765
        %v3449 = vpop.f32.mrb[0].mxu0
        %v3450 = vadd.f32 0.0, %v3449
        %v3451 = vpop.f32.mrb[0].mxu0
        %v3452 = vpop.f32.mrb[0].mxu0
        %v3453 = vadd.f32 0.0, %v3452
        %v3454 = vpop.f32.mrb[0].mxu0
        %3455 = vmatprep.mubr.bf16.mxu0 0
        %3456 = vmatmul.mubr.bf16.gmra.mrb[0].mxu0 %v3397
        %v3457 = vpop.f32.mrb[0].mxu0
        %v3458 = vadd.f32 0.0, %v3457
        %v3459 = vpop.f32.mrb[0].mxu0
        %v3460 = vpop.f32.mrb[0].mxu0
        %v3461 = vadd.f32 0.0, %v3460
        %v3462 = vpop.f32.mrb[0].mxu0
        %3463 = vdwg.mxu0
        %v3464 = vadd.f32 %v3354, %v3434
        %v3465 = vadd.f32 %v3355, %v3437
        %v3466 = vadd.f32 %v3356, %v3442
        %v3467 = vadd.f32 %v3357, %v3445
        %v3468 = vadd.f32 %v3358, %v3450
        %v3469 = vadd.f32 %v3359, %v3453
        %v3470 = vadd.f32 %v3360, %v3458
        %v3471 = vadd.f32 %v3361, %v3461
        %v3472 = vpack.c.bf16 %v2586, %v3112
        %s3473 = scalar_lea.vmem %s3, 224
        %v3474 = vld [vmem:[%s3473] sm:$0xf]
        %v3475 = vld [vmem:[%s3473 + $0x4] sm:$0xf]
        %v3476 = vld [vmem:[%s3473 + $0x8] sm:$0xf]
        %v3477 = vld [vmem:[%s3473 + $0xc] sm:$0xf]
        %v3478 = vld [vmem:[%s3473 + $0x10] sm:$0xf]
        %v3479 = vld [vmem:[%s3473 + $0x14] sm:$0xf]
        %v3480 = vld [vmem:[%s3473 + $0x18] sm:$0xf]
        %v3481 = vld [vmem:[%s3473 + $0x1c] sm:$0xf]
        %v3490 = vunpack.c.l.b16 %v3474
        %v3491 = vunpack.c.l.b16 %v3475
        %v3492 = vunpack.c.l.b16 %v3476
        %v3493 = vunpack.c.l.b16 %v3477
        %v3494 = vunpack.c.l.b16 %v3478
        %v3495 = vunpack.c.l.b16 %v3479
        %v3496 = vunpack.c.l.b16 %v3480
        %v3497 = vunpack.c.l.b16 %v3481
        %v3498 = vpack.c.b16 %v3491, %v3490
        %v3499 = vpack.c.b16 %v3493, %v3492
        %v3500 = vpack.c.b16 %v3495, %v3494
        %v3501 = vpack.c.b16 %v3497, %v3496
        %v3507 = vsel %vm2653, %v3472, 0
        %3509 = vmatprep.subr.bf16.mxu0 0
        %3510 = vmatpush1.bf16.msra.mxu0 %v3498
        %3511 = vmatprep.subr.bf16.mxu0 0
        %3512 = vmatpush1.bf16.msra.mxu0 %v3499
        %3513 = vmatprep.subr.bf16.mxu0 0
        %3514 = vmatpush1.bf16.msra.mxu0 %v3500
        %3515 = vmatprep.subr.bf16.mxu0 0
        %3516 = vmatpush1.bf16.msra.mxu0 %v3501
        %3517 = vmatprep.subr.bf16.mxu0 0
        %3518 = vmatpush1.bf16.msra.mxu0 0
        %3519 = vmatprep.subr.bf16.mxu0 0
        %3520 = vmatpush1.bf16.msra.mxu0 0
        %3521 = vmatprep.subr.bf16.mxu0 0
        %3522 = vmatpush1.bf16.msra.mxu0 0
        %3523 = vmatprep.subr.bf16.mxu0 0
        %3524 = vmatpush1.bf16.msra.mxu0 0
        %3525 = vmatprep.subr.bf16.mxu0 0
        %3526 = vmatpush1.bf16.msra.mxu0 0
        %3527 = vmatprep.subr.bf16.mxu0 0
        %3528 = vmatpush1.bf16.msra.mxu0 0
        %3529 = vmatprep.subr.bf16.mxu0 0
        %3530 = vmatpush1.bf16.msra.mxu0 0
        %3531 = vmatprep.subr.bf16.mxu0 0
        %3532 = vmatpush1.bf16.msra.mxu0 0
        %3533 = vmatprep.subr.bf16.mxu0 0
        %3534 = vmatpush1.bf16.msra.mxu0 0
        %3535 = vmatprep.subr.bf16.mxu0 0
        %3536 = vmatpush1.bf16.msra.mxu0 0
        %3537 = vmatprep.subr.bf16.mxu0 0
        %3538 = vmatpush1.bf16.msra.mxu0 0
        %3539 = vmatprep.subr.bf16.mxu0 0
        %3540 = vmatpush1.bf16.msra.mxu0 0
        %3541 = vmatprep.mubr.bf16.mxu0 0
        %3542 = vmatmul.mubr.bf16.gmra.mrb[0].mxu0 %v2658
        %v3543 = vpop.f32.mrb[0].mxu0
        %v3544 = vadd.f32 0.0, %v3543
        %v3545 = vpop.f32.mrb[0].mxu0
        %v3546 = vpop.f32.mrb[0].mxu0
        %v3547 = vadd.f32 0.0, %v3546
        %v3548 = vpop.f32.mrb[0].mxu0
        %3549 = vmatprep.mubr.bf16.mxu0 0
        %3550 = vmatmul.mubr.bf16.gmra.mrb[0].mxu0 %v2661
        %v3551 = vpop.f32.mrb[0].mxu0
        %v3552 = vadd.f32 0.0, %v3551
        %v3553 = vpop.f32.mrb[0].mxu0
        %v3554 = vpop.f32.mrb[0].mxu0
        %v3555 = vadd.f32 0.0, %v3554
        %v3556 = vpop.f32.mrb[0].mxu0
        %3557 = vmatprep.mubr.bf16.mxu0 0
        %3558 = vmatmul.mubr.bf16.gmra.mrb[0].mxu0 %v2664
        %v3559 = vpop.f32.mrb[0].mxu0
        %v3560 = vadd.f32 0.0, %v3559
        %v3561 = vpop.f32.mrb[0].mxu0
        %v3562 = vpop.f32.mrb[0].mxu0
        %v3563 = vadd.f32 0.0, %v3562
        %v3564 = vpop.f32.mrb[0].mxu0
        %3565 = vmatprep.mubr.bf16.mxu0 0
        %3566 = vmatmul.mubr.bf16.gmra.mrb[0].mxu0 %v3507
        %v3567 = vpop.f32.mrb[0].mxu0
        %v3568 = vadd.f32 0.0, %v3567
        %v3569 = vpop.f32.mrb[0].mxu0
        %v3570 = vpop.f32.mrb[0].mxu0
        %v3571 = vadd.f32 0.0, %v3570
        %v3572 = vpop.f32.mrb[0].mxu0
        %3573 = vdwg.mxu0
        %v3574 = vadd.f32 %v3464, %v3544
        %v3575 = vadd.f32 %v3465, %v3547
        %v3576 = vadd.f32 %v3466, %v3552
        %v3577 = vadd.f32 %v3467, %v3555
        %v3578 = vadd.f32 %v3468, %v3560
        %v3579 = vadd.f32 %v3469, %v3563
        %v3580 = vadd.f32 %v3470, %v3568
        %v3581 = vadd.f32 %v3471, %v3571
        %v3582 = vpack.c.bf16 %v2834, %v3238
        %s3583 = scalar_lea.vmem %s3, 256
        %v3584 = vld [vmem:[%s3583] sm:$0xf]
        %v3585 = vld [vmem:[%s3583 + $0x4] sm:$0xf]
        %v3586 = vld [vmem:[%s3583 + $0x8] sm:$0xf]
        %v3587 = vld [vmem:[%s3583 + $0xc] sm:$0xf]
        %v3588 = vld [vmem:[%s3583 + $0x10] sm:$0xf]
        %v3589 = vld [vmem:[%s3583 + $0x14] sm:$0xf]
        %v3590 = vld [vmem:[%s3583 + $0x18] sm:$0xf]
        %v3591 = vld [vmem:[%s3583 + $0x1c] sm:$0xf]
        %v3600 = vunpack.c.l.b16 %v3584
        %v3601 = vunpack.c.l.b16 %v3585
        %v3602 = vunpack.c.l.b16 %v3586
        %v3603 = vunpack.c.l.b16 %v3587
        %v3604 = vunpack.c.l.b16 %v3588
        %v3605 = vunpack.c.l.b16 %v3589
        %v3606 = vunpack.c.l.b16 %v3590
        %v3607 = vunpack.c.l.b16 %v3591
        %v3608 = vpack.c.b16 %v3601, %v3600
        %v3609 = vpack.c.b16 %v3603, %v3602
        %v3610 = vpack.c.b16 %v3605, %v3604
        %v3611 = vpack.c.b16 %v3607, %v3606
        %v3617 = vsel %vm2653, %v3582, 0
        %3619 = vmatprep.subr.bf16.mxu0 0
        %3620 = vmatpush1.bf16.msra.mxu0 %v3608
        %3621 = vmatprep.subr.bf16.mxu0 0
        %3622 = vmatpush1.bf16.msra.mxu0 %v3609
        %3623 = vmatprep.subr.bf16.mxu0 0
        %3624 = vmatpush1.bf16.msra.mxu0 %v3610
        %3625 = vmatprep.subr.bf16.mxu0 0
        %3626 = vmatpush1.bf16.msra.mxu0 %v3611
        %3627 = vmatprep.subr.bf16.mxu0 0
        %3628 = vmatpush1.bf16.msra.mxu0 0
        %3629 = vmatprep.subr.bf16.mxu0 0
        %3630 = vmatpush1.bf16.msra.mxu0 0
        %3631 = vmatprep.subr.bf16.mxu0 0
        %3632 = vmatpush1.bf16.msra.mxu0 0
        %3633 = vmatprep.subr.bf16.mxu0 0
        %3634 = vmatpush1.bf16.msra.mxu0 0
        %3635 = vmatprep.subr.bf16.mxu0 0
        %3636 = vmatpush1.bf16.msra.mxu0 0
        %3637 = vmatprep.subr.bf16.mxu0 0
        %3638 = vmatpush1.bf16.msra.mxu0 0
        %3639 = vmatprep.subr.bf16.mxu0 0
        %3640 = vmatpush1.bf16.msra.mxu0 0
        %3641 = vmatprep.subr.bf16.mxu0 0
        %3642 = vmatpush1.bf16.msra.mxu0 0
        %3643 = vmatprep.subr.bf16.mxu0 0
        %3644 = vmatpush1.bf16.msra.mxu0 0
        %3645 = vmatprep.subr.bf16.mxu0 0
        %3646 = vmatpush1.bf16.msra.mxu0 0
        %3647 = vmatprep.subr.bf16.mxu0 0
        %3648 = vmatpush1.bf16.msra.mxu0 0
        %3649 = vmatprep.subr.bf16.mxu0 0
        %3650 = vmatpush1.bf16.msra.mxu0 0
        %3651 = vmatprep.mubr.bf16.mxu0 0
        %3652 = vmatmul.mubr.bf16.gmra.mrb[0].mxu0 %v2905
        %v3653 = vpop.f32.mrb[0].mxu0
        %v3654 = vadd.f32 0.0, %v3653
        %v3655 = vpop.f32.mrb[0].mxu0
        %v3656 = vpop.f32.mrb[0].mxu0
        %v3657 = vadd.f32 0.0, %v3656
        %v3658 = vpop.f32.mrb[0].mxu0
        %3659 = vmatprep.mubr.bf16.mxu0 0
        %3660 = vmatmul.mubr.bf16.gmra.mrb[0].mxu0 %v2908
        %v3661 = vpop.f32.mrb[0].mxu0
        %v3662 = vadd.f32 0.0, %v3661
        %v3663 = vpop.f32.mrb[0].mxu0
        %v3664 = vpop.f32.mrb[0].mxu0
        %v3665 = vadd.f32 0.0, %v3664
        %v3666 = vpop.f32.mrb[0].mxu0
        %3667 = vmatprep.mubr.bf16.mxu0 0
        %3668 = vmatmul.mubr.bf16.gmra.mrb[0].mxu0 %v2911
        %v3669 = vpop.f32.mrb[0].mxu0
        %v3670 = vadd.f32 0.0, %v3669
        %v3671 = vpop.f32.mrb[0].mxu0
        %v3672 = vpop.f32.mrb[0].mxu0
        %v3673 = vadd.f32 0.0, %v3672
        %v3674 = vpop.f32.mrb[0].mxu0
        %3675 = vmatprep.mubr.bf16.mxu0 0
        %3676 = vmatmul.mubr.bf16.gmra.mrb[0].mxu0 %v3617
        %v3677 = vpop.f32.mrb[0].mxu0
        %v3678 = vadd.f32 0.0, %v3677
        %v3679 = vpop.f32.mrb[0].mxu0
        %v3680 = vpop.f32.mrb[0].mxu0
        %v3681 = vadd.f32 0.0, %v3680
        %v3682 = vpop.f32.mrb[0].mxu0
        %3683 = vdwg.mxu0
        %v3684 = vadd.f32 %v3574, %v3654
        %v3685 = vadd.f32 %v3575, %v3657
        %v3686 = vadd.f32 %v3576, %v3662
        %v3687 = vadd.f32 %v3577, %v3665
        %v3688 = vadd.f32 %v3578, %v3670
        %v3689 = vadd.f32 %v3579, %v3673
        %v3690 = vadd.f32 %v3580, %v3678
        %v3691 = vadd.f32 %v3581, %v3681
        %v3692 = vld [vmem:[%s4] sm:$0x1]
        %v3694 = vlaneseq
        %v3695 = vshrl.u32 %v3694, 7
        %v3696 = vsub.s32 0, %v3695
        %v3697 = vrot.slane %v3692, %v3696
        %v3699 = vadd.f32 %v3684, %v3697
        %v3700 = vadd.f32 %v3685, %v3697
        %v3701 = vadd.f32 %v3686, %v3697
        %v3702 = vadd.f32 %v3687, %v3697
        %v3703 = vadd.f32 %v3688, %v3697
        %v3704 = vadd.f32 %v3689, %v3697
        %v3705 = vadd.f32 %v3690, %v3697
        %v3706 = vadd.f32 %v3691, %v3697
        %v3707 = vmax.f32 %v3699, 0.0
        %v3708 = vmax.f32 %v3700, 0.0
        %v3709 = vmax.f32 %v3701, 0.0
        %v3710 = vmax.f32 %v3702, 0.0
        %v3711 = vmax.f32 %v3703, 0.0
        %v3712 = vmax.f32 %v3704, 0.0
        %v3713 = vmax.f32 %v3705, 0.0
        %v3714 = vmax.f32 %v3706, 0.0
        %v3723 = vcombine.high %v3707, %v3707
        %v3725 = vunpack.c.l.s4 1983009808
        %v3726 = vunpack.c.0.s8 %v3725
        %v3727 = vlaneseq
        %v3728 = vshrl.u32 %v3727, 7
        %v3729 = vsub.s32 %v3726, %v3728
        %v3730 = vrot.slane %v3707, %v3729
        %v3732 = vunpack.c.l.s4 1983009808
        %v3733 = vunpack.c.0.s8 %v3732
        %v3734 = vlaneseq
        %v3735 = vshrl.u32 %v3734, 7
        %v3736 = vsub.s32 %v3733, %v3735
        %v3737 = vrot.slane %v3723, %v3736
        %v3738 = vcombine.high %v3730, %v3730
        %v3739 = vcombine.high %v3737, %v3737
        %v3740 = vcombine.high %v3708, %v3708
        %v3742 = vunpack.c.l.s4 1983009808
        %v3743 = vunpack.c.0.s8 %v3742
        %v3744 = vlaneseq
        %v3745 = vshrl.u32 %v3744, 7
        %v3746 = vsub.s32 %v3743, %v3745
        %v3747 = vrot.slane %v3708, %v3746
        %v3749 = vunpack.c.l.s4 1983009808
        %v3750 = vunpack.c.0.s8 %v3749
        %v3751 = vlaneseq
        %v3752 = vshrl.u32 %v3751, 7
        %v3753 = vsub.s32 %v3750, %v3752
        %v3754 = vrot.slane %v3740, %v3753
        %v3755 = vcombine.high %v3747, %v3747
        %v3756 = vcombine.high %v3754, %v3754
        %v3757 = vcombine.high %v3709, %v3709
        %v3759 = vunpack.c.l.s4 1983009808
        %v3760 = vunpack.c.0.s8 %v3759
        %v3761 = vlaneseq
        %v3762 = vshrl.u32 %v3761, 7
        %v3763 = vsub.s32 %v3760, %v3762
        %v3764 = vrot.slane %v3709, %v3763
        %v3766 = vunpack.c.l.s4 1983009808
        %v3767 = vunpack.c.0.s8 %v3766
        %v3768 = vlaneseq
        %v3769 = vshrl.u32 %v3768, 7
        %v3770 = vsub.s32 %v3767, %v3769
        %v3771 = vrot.slane %v3757, %v3770
        %v3772 = vcombine.high %v3764, %v3764
        %v3773 = vcombine.high %v3771, %v3771
        %v3774 = vcombine.high %v3710, %v3710
        %v3776 = vunpack.c.l.s4 1983009808
        %v3777 = vunpack.c.0.s8 %v3776
        %v3778 = vlaneseq
        %v3779 = vshrl.u32 %v3778, 7
        %v3780 = vsub.s32 %v3777, %v3779
        %v3781 = vrot.slane %v3710, %v3780
        %v3783 = vunpack.c.l.s4 1983009808
        %v3784 = vunpack.c.0.s8 %v3783
        %v3785 = vlaneseq
        %v3786 = vshrl.u32 %v3785, 7
        %v3787 = vsub.s32 %v3784, %v3786
        %v3788 = vrot.slane %v3774, %v3787
        %v3789 = vcombine.high %v3781, %v3781
        %v3790 = vcombine.high %v3788, %v3788
        %v3791 = vcombine.high %v3711, %v3711
        %v3793 = vunpack.c.l.s4 1983009808
        %v3794 = vunpack.c.0.s8 %v3793
        %v3795 = vlaneseq
        %v3796 = vshrl.u32 %v3795, 7
        %v3797 = vsub.s32 %v3794, %v3796
        %v3798 = vrot.slane %v3711, %v3797
        %v3800 = vunpack.c.l.s4 1983009808
        %v3801 = vunpack.c.0.s8 %v3800
        %v3802 = vlaneseq
        %v3803 = vshrl.u32 %v3802, 7
        %v3804 = vsub.s32 %v3801, %v3803
        %v3805 = vrot.slane %v3791, %v3804
        %v3806 = vcombine.high %v3798, %v3798
        %v3807 = vcombine.high %v3805, %v3805
        %v3808 = vcombine.high %v3712, %v3712
        %v3810 = vunpack.c.l.s4 1983009808
        %v3811 = vunpack.c.0.s8 %v3810
        %v3812 = vlaneseq
        %v3813 = vshrl.u32 %v3812, 7
        %v3814 = vsub.s32 %v3811, %v3813
        %v3815 = vrot.slane %v3712, %v3814
        %v3817 = vunpack.c.l.s4 1983009808
        %v3818 = vunpack.c.0.s8 %v3817
        %v3819 = vlaneseq
        %v3820 = vshrl.u32 %v3819, 7
        %v3821 = vsub.s32 %v3818, %v3820
        %v3822 = vrot.slane %v3808, %v3821
        %v3823 = vcombine.high %v3815, %v3815
        %v3824 = vcombine.high %v3822, %v3822
        %v3825 = vcombine.high %v3713, %v3713
        %v3827 = vunpack.c.l.s4 1983009808
        %v3828 = vunpack.c.0.s8 %v3827
        %v3829 = vlaneseq
        %v3830 = vshrl.u32 %v3829, 7
        %v3831 = vsub.s32 %v3828, %v3830
        %v3832 = vrot.slane %v3713, %v3831
        %v3834 = vunpack.c.l.s4 1983009808
        %v3835 = vunpack.c.0.s8 %v3834
        %v3836 = vlaneseq
        %v3837 = vshrl.u32 %v3836, 7
        %v3838 = vsub.s32 %v3835, %v3837
        %v3839 = vrot.slane %v3825, %v3838
        %v3840 = vcombine.high %v3832, %v3832
        %v3841 = vcombine.high %v3839, %v3839
        %v3842 = vcombine.high %v3714, %v3714
        %v3844 = vunpack.c.l.s4 1983009808
        %v3845 = vunpack.c.0.s8 %v3844
        %v3846 = vlaneseq
        %v3847 = vshrl.u32 %v3846, 7
        %v3848 = vsub.s32 %v3845, %v3847
        %v3849 = vrot.slane %v3714, %v3848
        %v3851 = vunpack.c.l.s4 1983009808
        %v3852 = vunpack.c.0.s8 %v3851
        %v3853 = vlaneseq
        %v3854 = vshrl.u32 %v3853, 7
        %v3855 = vsub.s32 %v3852, %v3854
        %v3856 = vrot.slane %v3842, %v3855
        %v3857 = vcombine.high %v3849, %v3849
        %v3858 = vcombine.high %v3856, %v3856
        %v3891 = vrot.slane %v3730, 7
        %v3892 = vrot.slane %v3891, 2
        %v3893 = vrot.slane %v3738, 7
        %v3894 = vrot.slane %v3893, 2
        %v3895 = vrot.slane %v3737, 7
        %v3896 = vrot.slane %v3895, 2
        %v3897 = vrot.slane %v3739, 7
        %v3898 = vrot.slane %v3897, 2
        %v3899 = vrot.slane %v3747, 7
        %v3900 = vrot.slane %v3899, 2
        %v3901 = vrot.slane %v3755, 7
        %v3902 = vrot.slane %v3901, 2
        %v3903 = vrot.slane %v3754, 7
        %v3904 = vrot.slane %v3903, 2
        %v3905 = vrot.slane %v3756, 7
        %v3906 = vrot.slane %v3905, 2
        %v3907 = vrot.slane %v3764, 7
        %v3908 = vrot.slane %v3907, 2
        %v3909 = vrot.slane %v3772, 7
        %v3910 = vrot.slane %v3909, 2
        %v3911 = vrot.slane %v3771, 7
        %v3912 = vrot.slane %v3911, 2
        %v3913 = vrot.slane %v3773, 7
        %v3914 = vrot.slane %v3913, 2
        %v3915 = vrot.slane %v3781, 7
        %v3916 = vrot.slane %v3915, 2
        %v3917 = vrot.slane %v3789, 7
        %v3918 = vrot.slane %v3917, 2
        %v3919 = vrot.slane %v3788, 7
        %v3920 = vrot.slane %v3919, 2
        %v3921 = vrot.slane %v3790, 7
        %v3922 = vrot.slane %v3921, 2
        %v3923 = vrot.slane %v3798, 7
        %v3924 = vrot.slane %v3923, 2
        %v3925 = vrot.slane %v3806, 7
        %v3926 = vrot.slane %v3925, 2
        %v3927 = vrot.slane %v3805, 7
        %v3928 = vrot.slane %v3927, 2
        %v3929 = vrot.slane %v3807, 7
        %v3930 = vrot.slane %v3929, 2
        %v3931 = vrot.slane %v3815, 7
        %v3932 = vrot.slane %v3931, 2
        %v3933 = vrot.slane %v3823, 7
        %v3934 = vrot.slane %v3933, 2
        %v3935 = vrot.slane %v3822, 7
        %v3936 = vrot.slane %v3935, 2
        %v3937 = vrot.slane %v3824, 7
        %v3938 = vrot.slane %v3937, 2
        %v3939 = vrot.slane %v3832, 7
        %v3940 = vrot.slane %v3939, 2
        %v3941 = vrot.slane %v3840, 7
        %v3942 = vrot.slane %v3941, 2
        %v3943 = vrot.slane %v3839, 7
        %v3944 = vrot.slane %v3943, 2
        %v3945 = vrot.slane %v3841, 7
        %v3946 = vrot.slane %v3945, 2
        %v3947 = vrot.slane %v3849, 7
        %v3948 = vrot.slane %v3947, 2
        %v3949 = vrot.slane %v3857, 7
        %v3950 = vrot.slane %v3949, 2
        %v3951 = vrot.slane %v3856, 7
        %v3952 = vrot.slane %v3951, 2
        %v3953 = vrot.slane %v3858, 7
        %v3954 = vrot.slane %v3953, 2
        %v3987 = vmax.f32 %v3730, %v3892
        %v3988 = vmax.f32 %v3738, %v3894
        %v3989 = vmax.f32 %v3737, %v3896
        %v3990 = vmax.f32 %v3739, %v3898
        %v3991 = vmax.f32 %v3747, %v3900
        %v3992 = vmax.f32 %v3755, %v3902
        %v3993 = vmax.f32 %v3754, %v3904
        %v3994 = vmax.f32 %v3756, %v3906
        %v3995 = vmax.f32 %v3764, %v3908
        %v3996 = vmax.f32 %v3772, %v3910
        %v3997 = vmax.f32 %v3771, %v3912
        %v3998 = vmax.f32 %v3773, %v3914
        %v3999 = vmax.f32 %v3781, %v3916
        %v4000 = vmax.f32 %v3789, %v3918
        %v4001 = vmax.f32 %v3788, %v3920
        %v4002 = vmax.f32 %v3790, %v3922
        %v4003 = vmax.f32 %v3798, %v3924
        %v4004 = vmax.f32 %v3806, %v3926
        %v4005 = vmax.f32 %v3805, %v3928
        %v4006 = vmax.f32 %v3807, %v3930
        %v4007 = vmax.f32 %v3815, %v3932
        %v4008 = vmax.f32 %v3823, %v3934
        %v4009 = vmax.f32 %v3822, %v3936
        %v4010 = vmax.f32 %v3824, %v3938
        %v4011 = vmax.f32 %v3832, %v3940
        %v4012 = vmax.f32 %v3840, %v3942
        %v4013 = vmax.f32 %v3839, %v3944
        %v4014 = vmax.f32 %v3841, %v3946
        %v4015 = vmax.f32 %v3849, %v3948
        %v4016 = vmax.f32 %v3857, %v3950
        %v4017 = vmax.f32 %v3856, %v3952
        %v4018 = vmax.f32 %v3858, %v3954
        %v4019 = vmax.f32 %v3987, %v3991
        %v4020 = vmax.f32 %v3988, %v3992
        %v4021 = vmax.f32 %v3989, %v3993
        %v4022 = vmax.f32 %v3990, %v3994
        %v4023 = vmax.f32 %v3995, %v3999
        %v4024 = vmax.f32 %v3996, %v4000
        %v4025 = vmax.f32 %v3997, %v4001
        %v4026 = vmax.f32 %v3998, %v4002
        %v4027 = vmax.f32 %v4003, %v4007
        %v4028 = vmax.f32 %v4004, %v4008
        %v4029 = vmax.f32 %v4005, %v4009
        %v4030 = vmax.f32 %v4006, %v4010
        %v4031 = vmax.f32 %v4011, %v4015
        %v4032 = vmax.f32 %v4012, %v4016
        %v4033 = vmax.f32 %v4013, %v4017
        %v4034 = vmax.f32 %v4014, %v4018
        %v4051 = vlaneseq
        %v4052 = vshrl.u32 %v4051, 7
        %v4053 = vsub.s32 0, %v4052
        %v4054 = vrot.slane %v4019, %v4053
        %v4055 = vlaneseq
        %v4056 = vshrl.u32 %v4055, 7
        %v4057 = vsub.s32 0, %v4056
        %v4058 = vrot.slane %v4020, %v4057
        %v4059 = vlaneseq
        %v4060 = vshrl.u32 %v4059, 7
        %v4061 = vsub.s32 0, %v4060
        %v4062 = vrot.slane %v4021, %v4061
        %v4063 = vlaneseq
        %v4064 = vshrl.u32 %v4063, 7
        %v4065 = vsub.s32 0, %v4064
        %v4066 = vrot.slane %v4022, %v4065
        %v4067 = vlaneseq
        %v4068 = vshrl.u32 %v4067, 7
        %v4069 = vsub.s32 0, %v4068
        %v4070 = vrot.slane %v4023, %v4069
        %v4071 = vlaneseq
        %v4072 = vshrl.u32 %v4071, 7
        %v4073 = vsub.s32 0, %v4072
        %v4074 = vrot.slane %v4024, %v4073
        %v4075 = vlaneseq
        %v4076 = vshrl.u32 %v4075, 7
        %v4077 = vsub.s32 0, %v4076
        %v4078 = vrot.slane %v4025, %v4077
        %v4079 = vlaneseq
        %v4080 = vshrl.u32 %v4079, 7
        %v4081 = vsub.s32 0, %v4080
        %v4082 = vrot.slane %v4026, %v4081
        %v4083 = vlaneseq
        %v4084 = vshrl.u32 %v4083, 7
        %v4085 = vsub.s32 0, %v4084
        %v4086 = vrot.slane %v4027, %v4085
        %v4087 = vlaneseq
        %v4088 = vshrl.u32 %v4087, 7
        %v4089 = vsub.s32 0, %v4088
        %v4090 = vrot.slane %v4028, %v4089
        %v4091 = vlaneseq
        %v4092 = vshrl.u32 %v4091, 7
        %v4093 = vsub.s32 0, %v4092
        %v4094 = vrot.slane %v4029, %v4093
        %v4095 = vlaneseq
        %v4096 = vshrl.u32 %v4095, 7
        %v4097 = vsub.s32 0, %v4096
        %v4098 = vrot.slane %v4030, %v4097
        %v4099 = vlaneseq
        %v4100 = vshrl.u32 %v4099, 7
        %v4101 = vsub.s32 0, %v4100
        %v4102 = vrot.slane %v4031, %v4101
        %v4103 = vlaneseq
        %v4104 = vshrl.u32 %v4103, 7
        %v4105 = vsub.s32 0, %v4104
        %v4106 = vrot.slane %v4032, %v4105
        %v4107 = vlaneseq
        %v4108 = vshrl.u32 %v4107, 7
        %v4109 = vsub.s32 0, %v4108
        %v4110 = vrot.slane %v4033, %v4109
        %v4111 = vlaneseq
        %v4112 = vshrl.u32 %v4111, 7
        %v4113 = vsub.s32 0, %v4112
        %v4114 = vrot.slane %v4034, %v4113
        %v4115 = vsel %vm2470, %v4058, %v4054
        %v4116 = vsel %vm2472, %v4062, %v4115
        %v4117 = vsel %vm2474, %v4066, %v4116
        %v4118 = vsel %vm2470, %v4074, %v4070
        %v4119 = vsel %vm2472, %v4078, %v4118
        %v4120 = vsel %vm2474, %v4082, %v4119
        %v4121 = vsel %vm2470, %v4090, %v4086
        %v4122 = vsel %vm2472, %v4094, %v4121
        %v4123 = vsel %vm2474, %v4098, %v4122
        %v4124 = vsel %vm2470, %v4106, %v4102
        %v4125 = vsel %vm2472, %v4110, %v4124
        %v4126 = vsel %vm2474, %v4114, %v4125
        %v4131 = vsel %vm2540, 0.0, %v4117
        %v4132 = vsel %vm2540, 0.0, %v4120
        %v4133 = vsel %vm2540, 0.0, %v4123
        %v4134 = vsel %vm2540, 0.0, %v4126
        %vm4135 = vcmask 1044480
        %v4136 = vsel %vm4135, %v4131, 0.0
        %v4137 = vsel %vm4135, %v4132, 0.0
        %v4138 = vsel %vm4135, %v4133, 0.0
        %v4139 = vsel %vm4135, %v4134, 0.0
        %v4143 = vcombine.low 0.0, %v4136
        %v4144 = vcombine.low %v4137, %v4138
        %v4147 = vpack.c.bf16 %v4144, %v4143
        %v4148 = vld [vmem:[%s5] sm:$0xff]
        %v4149 = vld [vmem:[%s5 + $0x8] sm:$0xff]
        %v4150 = vld [vmem:[%s5 + $0x10] sm:$0xff]
        %v4151 = vld [vmem:[%s5 + $0x18] sm:$0xff]
        %v4152 = vld [vmem:[%s5 + $0x20] sm:$0xff]
        %v4153 = vld [vmem:[%s5 + $0x28] sm:$0xff]
        %v4154 = vld [vmem:[%s5 + $0x30] sm:$0xff]
        %v4155 = vld [vmem:[%s5 + $0x38] sm:$0xff]
        %v4156 = vld [vmem:[%s5 + $0x40] sm:$0xff]
        %v4157 = vld [vmem:[%s5 + $0x48] sm:$0xff]
        %v4158 = vld [vmem:[%s5 + $0x50] sm:$0xff]
        %v4159 = vld [vmem:[%s5 + $0x58] sm:$0xff]
        %v4160 = vld [vmem:[%s5 + $0x60] sm:$0xff]
        %v4161 = vld [vmem:[%s5 + $0x68] sm:$0xff]
        %v4162 = vld [vmem:[%s5 + $0x70] sm:$0xff]
        %v4163 = vld [vmem:[%s5 + $0x78] sm:$0xff]
        %v4164 = vcombine.high 0.0, 0.0
        %v4165 = vcombine.high %v4136, %v4136
        %v4166 = vcombine.high %v4137, %v4137
        %v4167 = vcombine.high %v4138, %v4138
        %vm4168 = vcmask 1042432
        %vm4169 = vcmask 1046532
        %vm4170 = vmor %vm4168, %vm4169
        %v4171 = vrot.slane 0.0, 5
        %v4172 = vrot.slane %v4171, 4
        %v4173 = vrot.slane %v4164, 5
        %v4174 = vsel %vm4170, %v4172, %v4173
        %v4175 = vrot.slane %v4136, 5
        %v4176 = vrot.slane %v4175, 4
        %v4177 = vrot.slane %v4165, 5
        %v4178 = vsel %vm4170, %v4176, %v4177
        %v4179 = vrot.slane %v4137, 5
        %v4180 = vrot.slane %v4179, 4
        %v4181 = vrot.slane %v4166, 5
        %v4182 = vsel %vm4170, %v4180, %v4181
        %v4183 = vrot.slane %v4138, 5
        %v4184 = vrot.slane %v4183, 4
        %v4185 = vrot.slane %v4167, 5
        %v4186 = vsel %vm4170, %v4184, %v4185
        %v4187 = vcombine.low %v4174, %v4178
        %v4188 = vcombine.low %v4182, %v4186
        %v4191 = vpack.c.bf16 %v4188, %v4187
        %s4192 = scalar_lea.vmem %s5, 128
        %v4193 = vld [vmem:[%s4192] sm:$0xff]
        %v4194 = vld [vmem:[%s4192 + $0x8] sm:$0xff]
        %v4195 = vld [vmem:[%s4192 + $0x10] sm:$0xff]
        %v4196 = vld [vmem:[%s4192 + $0x18] sm:$0xff]
        %v4197 = vld [vmem:[%s4192 + $0x20] sm:$0xff]
        %v4198 = vld [vmem:[%s4192 + $0x28] sm:$0xff]
        %v4199 = vld [vmem:[%s4192 + $0x30] sm:$0xff]
        %v4200 = vld [vmem:[%s4192 + $0x38] sm:$0xff]
        %v4201 = vld [vmem:[%s4192 + $0x40] sm:$0xff]
        %v4202 = vld [vmem:[%s4192 + $0x48] sm:$0xff]
        %v4203 = vld [vmem:[%s4192 + $0x50] sm:$0xff]
        %v4204 = vld [vmem:[%s4192 + $0x58] sm:$0xff]
        %v4205 = vld [vmem:[%s4192 + $0x60] sm:$0xff]
        %v4206 = vld [vmem:[%s4192 + $0x68] sm:$0xff]
        %v4207 = vld [vmem:[%s4192 + $0x70] sm:$0xff]
        %v4208 = vld [vmem:[%s4192 + $0x78] sm:$0xff]
        %v4225 = vunpack.c.l.b16 %v4193
        %v4226 = vunpack.c.h.b16 %v4193
        %v4227 = vunpack.c.l.b16 %v4194
        %v4228 = vunpack.c.h.b16 %v4194
        %v4229 = vunpack.c.l.b16 %v4195
        %v4230 = vunpack.c.h.b16 %v4195
        %v4231 = vunpack.c.l.b16 %v4196
        %v4232 = vunpack.c.h.b16 %v4196
        %v4233 = vunpack.c.l.b16 %v4197
        %v4234 = vunpack.c.h.b16 %v4197
        %v4235 = vunpack.c.l.b16 %v4198
        %v4236 = vunpack.c.h.b16 %v4198
        %v4237 = vunpack.c.l.b16 %v4199
        %v4238 = vunpack.c.h.b16 %v4199
        %v4239 = vunpack.c.l.b16 %v4200
        %v4240 = vunpack.c.h.b16 %v4200
        %v4241 = vunpack.c.l.b16 %v4201
        %v4242 = vunpack.c.h.b16 %v4201
        %v4243 = vunpack.c.l.b16 %v4202
        %v4244 = vunpack.c.h.b16 %v4202
        %v4245 = vunpack.c.l.b16 %v4203
        %v4246 = vunpack.c.h.b16 %v4203
        %v4247 = vunpack.c.l.b16 %v4204
        %v4248 = vunpack.c.h.b16 %v4204
        %v4249 = vunpack.c.l.b16 %v4205
        %v4250 = vunpack.c.h.b16 %v4205
        %v4251 = vunpack.c.l.b16 %v4206
        %v4252 = vunpack.c.h.b16 %v4206
        %v4253 = vunpack.c.l.b16 %v4207
        %v4254 = vunpack.c.h.b16 %v4207
        %v4255 = vunpack.c.l.b16 %v4208
        %v4256 = vunpack.c.h.b16 %v4208
        %v4257 = vpack.c.b16 %v4227, %v4225
        %v4258 = vpack.c.b16 %v4228, %v4226
        %v4259 = vpack.c.b16 %v4231, %v4229
        %v4260 = vpack.c.b16 %v4232, %v4230
        %v4261 = vpack.c.b16 %v4235, %v4233
        %v4262 = vpack.c.b16 %v4236, %v4234
        %v4263 = vpack.c.b16 %v4239, %v4237
        %v4264 = vpack.c.b16 %v4240, %v4238
        %v4265 = vpack.c.b16 %v4243, %v4241
        %v4266 = vpack.c.b16 %v4244, %v4242
        %v4267 = vpack.c.b16 %v4247, %v4245
        %v4268 = vpack.c.b16 %v4248, %v4246
        %v4269 = vpack.c.b16 %v4251, %v4249
        %v4270 = vpack.c.b16 %v4252, %v4250
        %v4271 = vpack.c.b16 %v4255, %v4253
        %v4272 = vpack.c.b16 %v4256, %v4254
        %4289 = vmatprep.subr.bf16.mxu0 %v4258
        %4290 = vmatpush1.bf16.msra.mxu0 %v4257
        %4291 = vmatprep.subr.bf16.mxu0 %v4260
        %4292 = vmatpush1.bf16.msra.mxu0 %v4259
        %4293 = vmatprep.subr.bf16.mxu0 %v4262
        %4294 = vmatpush1.bf16.msra.mxu0 %v4261
        %4295 = vmatprep.subr.bf16.mxu0 %v4264
        %4296 = vmatpush1.bf16.msra.mxu0 %v4263
        %4297 = vmatprep.subr.bf16.mxu0 %v4266
        %4298 = vmatpush1.bf16.msra.mxu0 %v4265
        %4299 = vmatprep.subr.bf16.mxu0 %v4268
        %4300 = vmatpush1.bf16.msra.mxu0 %v4267
        %4301 = vmatprep.subr.bf16.mxu0 %v4270
        %4302 = vmatpush1.bf16.msra.mxu0 %v4269
        %4303 = vmatprep.subr.bf16.mxu0 %v4272
        %4304 = vmatpush1.bf16.msra.mxu0 %v4271
        %4305 = vmatprep.subr.bf16.mxu0 0
        %4306 = vmatpush1.bf16.msra.mxu0 0
        %4307 = vmatprep.subr.bf16.mxu0 0
        %4308 = vmatpush1.bf16.msra.mxu0 0
        %4309 = vmatprep.subr.bf16.mxu0 0
        %4310 = vmatpush1.bf16.msra.mxu0 0
        %4311 = vmatprep.subr.bf16.mxu0 0
        %4312 = vmatpush1.bf16.msra.mxu0 0
        %4313 = vmatprep.subr.bf16.mxu0 0
        %4314 = vmatpush1.bf16.msra.mxu0 0
        %4315 = vmatprep.subr.bf16.mxu0 0
        %4316 = vmatpush1.bf16.msra.mxu0 0
        %4317 = vmatprep.subr.bf16.mxu0 0
        %4318 = vmatpush1.bf16.msra.mxu0 0
        %4319 = vmatprep.subr.bf16.mxu0 0
        %4320 = vmatpush1.bf16.msra.mxu0 0
        %4321 = vmatprep.mubr.bf16.mxu0 0
        %4322 = vmatmul.mubr.bf16.gmra.mrb[0].mxu0 %v4191
        %v4323 = vpop.f32.mrb[0].mxu0
        %v4324 = vadd.f32 0.0, %v4323
        %v4325 = vpop.f32.mrb[0].mxu0
        %v4326 = vadd.f32 0.0, %v4325
        %v4327 = vpop.f32.mrb[0].mxu0
        %v4328 = vadd.f32 0.0, %v4327
        %v4329 = vpop.f32.mrb[0].mxu0
        %v4330 = vadd.f32 0.0, %v4329
        %4331 = vdwg.mxu0
        %v4348 = vunpack.c.l.b16 %v4148
        %v4349 = vunpack.c.h.b16 %v4148
        %v4350 = vunpack.c.l.b16 %v4149
        %v4351 = vunpack.c.h.b16 %v4149
        %v4352 = vunpack.c.l.b16 %v4150
        %v4353 = vunpack.c.h.b16 %v4150
        %v4354 = vunpack.c.l.b16 %v4151
        %v4355 = vunpack.c.h.b16 %v4151
        %v4356 = vunpack.c.l.b16 %v4152
        %v4357 = vunpack.c.h.b16 %v4152
        %v4358 = vunpack.c.l.b16 %v4153
        %v4359 = vunpack.c.h.b16 %v4153
        %v4360 = vunpack.c.l.b16 %v4154
        %v4361 = vunpack.c.h.b16 %v4154
        %v4362 = vunpack.c.l.b16 %v4155
        %v4363 = vunpack.c.h.b16 %v4155
        %v4364 = vunpack.c.l.b16 %v4156
        %v4365 = vunpack.c.h.b16 %v4156
        %v4366 = vunpack.c.l.b16 %v4157
        %v4367 = vunpack.c.h.b16 %v4157
        %v4368 = vunpack.c.l.b16 %v4158
        %v4369 = vunpack.c.h.b16 %v4158
        %v4370 = vunpack.c.l.b16 %v4159
        %v4371 = vunpack.c.h.b16 %v4159
        %v4372 = vunpack.c.l.b16 %v4160
        %v4373 = vunpack.c.h.b16 %v4160
        %v4374 = vunpack.c.l.b16 %v4161
        %v4375 = vunpack.c.h.b16 %v4161
        %v4376 = vunpack.c.l.b16 %v4162
        %v4377 = vunpack.c.h.b16 %v4162
        %v4378 = vunpack.c.l.b16 %v4163
        %v4379 = vunpack.c.h.b16 %v4163
        %v4380 = vpack.c.b16 %v4350, %v4348
        %v4381 = vpack.c.b16 %v4351, %v4349
        %v4382 = vpack.c.b16 %v4354, %v4352
        %v4383 = vpack.c.b16 %v4355, %v4353
        %v4384 = vpack.c.b16 %v4358, %v4356
        %v4385 = vpack.c.b16 %v4359, %v4357
        %v4386 = vpack.c.b16 %v4362, %v4360
        %v4387 = vpack.c.b16 %v4363, %v4361
        %v4388 = vpack.c.b16 %v4366, %v4364
        %v4389 = vpack.c.b16 %v4367, %v4365
        %v4390 = vpack.c.b16 %v4370, %v4368
        %v4391 = vpack.c.b16 %v4371, %v4369
        %v4392 = vpack.c.b16 %v4374, %v4372
        %v4393 = vpack.c.b16 %v4375, %v4373
        %v4394 = vpack.c.b16 %v4378, %v4376
        %v4395 = vpack.c.b16 %v4379, %v4377
        %4412 = vmatprep.subr.bf16.mxu0 %v4381
        %4413 = vmatpush1.bf16.msra.mxu0 %v4380
        %4414 = vmatprep.subr.bf16.mxu0 %v4383
        %4415 = vmatpush1.bf16.msra.mxu0 %v4382
        %4416 = vmatprep.subr.bf16.mxu0 %v4385
        %4417 = vmatpush1.bf16.msra.mxu0 %v4384
        %4418 = vmatprep.subr.bf16.mxu0 %v4387
        %4419 = vmatpush1.bf16.msra.mxu0 %v4386
        %4420 = vmatprep.subr.bf16.mxu0 %v4389
        %4421 = vmatpush1.bf16.msra.mxu0 %v4388
        %4422 = vmatprep.subr.bf16.mxu0 %v4391
        %4423 = vmatpush1.bf16.msra.mxu0 %v4390
        %4424 = vmatprep.subr.bf16.mxu0 %v4393
        %4425 = vmatpush1.bf16.msra.mxu0 %v4392
        %4426 = vmatprep.subr.bf16.mxu0 %v4395
        %4427 = vmatpush1.bf16.msra.mxu0 %v4394
        %4428 = vmatprep.subr.bf16.mxu0 0
        %4429 = vmatpush1.bf16.msra.mxu0 0
        %4430 = vmatprep.subr.bf16.mxu0 0
        %4431 = vmatpush1.bf16.msra.mxu0 0
        %4432 = vmatprep.subr.bf16.mxu0 0
        %4433 = vmatpush1.bf16.msra.mxu0 0
        %4434 = vmatprep.subr.bf16.mxu0 0
        %4435 = vmatpush1.bf16.msra.mxu0 0
        %4436 = vmatprep.subr.bf16.mxu0 0
        %4437 = vmatpush1.bf16.msra.mxu0 0
        %4438 = vmatprep.subr.bf16.mxu0 0
        %4439 = vmatpush1.bf16.msra.mxu0 0
        %4440 = vmatprep.subr.bf16.mxu0 0
        %4441 = vmatpush1.bf16.msra.mxu0 0
        %4442 = vmatprep.subr.bf16.mxu0 0
        %4443 = vmatpush1.bf16.msra.mxu0 0
        %4444 = vmatprep.mubr.bf16.mxu0 0
        %4445 = vmatmul.mubr.bf16.gmra.mrb[0].mxu0 %v4147
        %v4446 = vpop.f32.mrb[0].mxu0
        %v4447 = vadd.f32 %v4324, %v4446
        %v4448 = vpop.f32.mrb[0].mxu0
        %v4449 = vadd.f32 %v4326, %v4448
        %v4450 = vpop.f32.mrb[0].mxu0
        %v4451 = vadd.f32 %v4328, %v4450
        %v4452 = vpop.f32.mrb[0].mxu0
        %v4453 = vadd.f32 %v4330, %v4452
        %4454 = vdwg.mxu0
        %vm4455 = vcmask 1041408
        %vm4456 = vcmask 1045508
        %vm4457 = vmor %vm4455, %vm4456
        %v4458 = vrot.slane 0.0, 6
        %v4459 = vrot.slane %v4458, 4
        %v4460 = vrot.slane %v4164, 6
        %v4461 = vsel %vm4457, %v4459, %v4460
        %v4462 = vrot.slane %v4136, 6
        %v4463 = vrot.slane %v4462, 4
        %v4464 = vrot.slane %v4165, 6
        %v4465 = vsel %vm4457, %v4463, %v4464
        %v4466 = vrot.slane %v4137, 6
        %v4467 = vrot.slane %v4466, 4
        %v4468 = vrot.slane %v4166, 6
        %v4469 = vsel %vm4457, %v4467, %v4468
        %v4470 = vrot.slane %v4138, 6
        %v4471 = vrot.slane %v4470, 4
        %v4472 = vrot.slane %v4167, 6
        %v4473 = vsel %vm4457, %v4471, %v4472
        %v4474 = vcombine.low %v4461, %v4465
        %v4475 = vcombine.low %v4469, %v4473
        %v4478 = vpack.c.bf16 %v4475, %v4474
        %s4479 = scalar_lea.vmem %s5, 256
        %v4480 = vld [vmem:[%s4479] sm:$0xff]
        %v4481 = vld [vmem:[%s4479 + $0x8] sm:$0xff]
        %v4482 = vld [vmem:[%s4479 + $0x10] sm:$0xff]
        %v4483 = vld [vmem:[%s4479 + $0x18] sm:$0xff]
        %v4484 = vld [vmem:[%s4479 + $0x20] sm:$0xff]
        %v4485 = vld [vmem:[%s4479 + $0x28] sm:$0xff]
        %v4486 = vld [vmem:[%s4479 + $0x30] sm:$0xff]
        %v4487 = vld [vmem:[%s4479 + $0x38] sm:$0xff]
        %v4488 = vld [vmem:[%s4479 + $0x40] sm:$0xff]
        %v4489 = vld [vmem:[%s4479 + $0x48] sm:$0xff]
        %v4490 = vld [vmem:[%s4479 + $0x50] sm:$0xff]
        %v4491 = vld [vmem:[%s4479 + $0x58] sm:$0xff]
        %v4492 = vld [vmem:[%s4479 + $0x60] sm:$0xff]
        %v4493 = vld [vmem:[%s4479 + $0x68] sm:$0xff]
        %v4494 = vld [vmem:[%s4479 + $0x70] sm:$0xff]
        %v4495 = vld [vmem:[%s4479 + $0x78] sm:$0xff]
        %v4512 = vunpack.c.l.b16 %v4480
        %v4513 = vunpack.c.h.b16 %v4480
        %v4514 = vunpack.c.l.b16 %v4481
        %v4515 = vunpack.c.h.b16 %v4481
        %v4516 = vunpack.c.l.b16 %v4482
        %v4517 = vunpack.c.h.b16 %v4482
        %v4518 = vunpack.c.l.b16 %v4483
        %v4519 = vunpack.c.h.b16 %v4483
        %v4520 = vunpack.c.l.b16 %v4484
        %v4521 = vunpack.c.h.b16 %v4484
        %v4522 = vunpack.c.l.b16 %v4485
        %v4523 = vunpack.c.h.b16 %v4485
        %v4524 = vunpack.c.l.b16 %v4486
        %v4525 = vunpack.c.h.b16 %v4486
        %v4526 = vunpack.c.l.b16 %v4487
        %v4527 = vunpack.c.h.b16 %v4487
        %v4528 = vunpack.c.l.b16 %v4488
        %v4529 = vunpack.c.h.b16 %v4488
        %v4530 = vunpack.c.l.b16 %v4489
        %v4531 = vunpack.c.h.b16 %v4489
        %v4532 = vunpack.c.l.b16 %v4490
        %v4533 = vunpack.c.h.b16 %v4490
        %v4534 = vunpack.c.l.b16 %v4491
        %v4535 = vunpack.c.h.b16 %v4491
        %v4536 = vunpack.c.l.b16 %v4492
        %v4537 = vunpack.c.h.b16 %v4492
        %v4538 = vunpack.c.l.b16 %v4493
        %v4539 = vunpack.c.h.b16 %v4493
        %v4540 = vunpack.c.l.b16 %v4494
        %v4541 = vunpack.c.h.b16 %v4494
        %v4542 = vunpack.c.l.b16 %v4495
        %v4543 = vunpack.c.h.b16 %v4495
        %v4544 = vpack.c.b16 %v4514, %v4512
        %v4545 = vpack.c.b16 %v4515, %v4513
        %v4546 = vpack.c.b16 %v4518, %v4516
        %v4547 = vpack.c.b16 %v4519, %v4517
        %v4548 = vpack.c.b16 %v4522, %v4520
        %v4549 = vpack.c.b16 %v4523, %v4521
        %v4550 = vpack.c.b16 %v4526, %v4524
        %v4551 = vpack.c.b16 %v4527, %v4525
        %v4552 = vpack.c.b16 %v4530, %v4528
        %v4553 = vpack.c.b16 %v4531, %v4529
        %v4554 = vpack.c.b16 %v4534, %v4532
        %v4555 = vpack.c.b16 %v4535, %v4533
        %v4556 = vpack.c.b16 %v4538, %v4536
        %v4557 = vpack.c.b16 %v4539, %v4537
        %v4558 = vpack.c.b16 %v4542, %v4540
        %v4559 = vpack.c.b16 %v4543, %v4541
        %4576 = vmatprep.subr.bf16.mxu0 %v4545
        %4577 = vmatpush1.bf16.msra.mxu0 %v4544
        %4578 = vmatprep.subr.bf16.mxu0 %v4547
        %4579 = vmatpush1.bf16.msra.mxu0 %v4546
        %4580 = vmatprep.subr.bf16.mxu0 %v4549
        %4581 = vmatpush1.bf16.msra.mxu0 %v4548
        %4582 = vmatprep.subr.bf16.mxu0 %v4551
        %4583 = vmatpush1.bf16.msra.mxu0 %v4550
        %4584 = vmatprep.subr.bf16.mxu0 %v4553
        %4585 = vmatpush1.bf16.msra.mxu0 %v4552
        %4586 = vmatprep.subr.bf16.mxu0 %v4555
        %4587 = vmatpush1.bf16.msra.mxu0 %v4554
        %4588 = vmatprep.subr.bf16.mxu0 %v4557
        %4589 = vmatpush1.bf16.msra.mxu0 %v4556
        %4590 = vmatprep.subr.bf16.mxu0 %v4559
        %4591 = vmatpush1.bf16.msra.mxu0 %v4558
        %4592 = vmatprep.subr.bf16.mxu0 0
        %4593 = vmatpush1.bf16.msra.mxu0 0
        %4594 = vmatprep.subr.bf16.mxu0 0
        %4595 = vmatpush1.bf16.msra.mxu0 0
        %4596 = vmatprep.subr.bf16.mxu0 0
        %4597 = vmatpush1.bf16.msra.mxu0 0
        %4598 = vmatprep.subr.bf16.mxu0 0
        %4599 = vmatpush1.bf16.msra.mxu0 0
        %4600 = vmatprep.subr.bf16.mxu0 0
        %4601 = vmatpush1.bf16.msra.mxu0 0
        %4602 = vmatprep.subr.bf16.mxu0 0
        %4603 = vmatpush1.bf16.msra.mxu0 0
        %4604 = vmatprep.subr.bf16.mxu0 0
        %4605 = vmatpush1.bf16.msra.mxu0 0
        %4606 = vmatprep.subr.bf16.mxu0 0
        %4607 = vmatpush1.bf16.msra.mxu0 0
        %4608 = vmatprep.mubr.bf16.mxu0 0
        %4609 = vmatmul.mubr.bf16.gmra.mrb[0].mxu0 %v4478
        %v4610 = vpop.f32.mrb[0].mxu0
        %v4611 = vadd.f32 0.0, %v4610
        %v4612 = vpop.f32.mrb[0].mxu0
        %v4613 = vadd.f32 0.0, %v4612
        %v4614 = vpop.f32.mrb[0].mxu0
        %v4615 = vadd.f32 0.0, %v4614
        %v4616 = vpop.f32.mrb[0].mxu0
        %v4617 = vadd.f32 0.0, %v4616
        %4618 = vdwg.mxu0
        %v4619 = vadd.f32 %v4447, %v4611
        %v4620 = vadd.f32 %v4449, %v4613
        %v4621 = vadd.f32 %v4451, %v4615
        %v4622 = vadd.f32 %v4453, %v4617
        %v4624 = vcombine.low %v4136, %v4137
        %v4625 = vcombine.low %v4138, %v4139
        %v4628 = vpack.c.bf16 %v4625, %v4624
        %s4629 = scalar_lea.vmem %s5, 384
        %v4630 = vld [vmem:[%s4629] sm:$0xff]
        %v4631 = vld [vmem:[%s4629 + $0x8] sm:$0xff]
        %v4632 = vld [vmem:[%s4629 + $0x10] sm:$0xff]
        %v4633 = vld [vmem:[%s4629 + $0x18] sm:$0xff]
        %v4634 = vld [vmem:[%s4629 + $0x20] sm:$0xff]
        %v4635 = vld [vmem:[%s4629 + $0x28] sm:$0xff]
        %v4636 = vld [vmem:[%s4629 + $0x30] sm:$0xff]
        %v4637 = vld [vmem:[%s4629 + $0x38] sm:$0xff]
        %v4638 = vld [vmem:[%s4629 + $0x40] sm:$0xff]
        %v4639 = vld [vmem:[%s4629 + $0x48] sm:$0xff]
        %v4640 = vld [vmem:[%s4629 + $0x50] sm:$0xff]
        %v4641 = vld [vmem:[%s4629 + $0x58] sm:$0xff]
        %v4642 = vld [vmem:[%s4629 + $0x60] sm:$0xff]
        %v4643 = vld [vmem:[%s4629 + $0x68] sm:$0xff]
        %v4644 = vld [vmem:[%s4629 + $0x70] sm:$0xff]
        %v4645 = vld [vmem:[%s4629 + $0x78] sm:$0xff]
        %v4662 = vunpack.c.l.b16 %v4630
        %v4663 = vunpack.c.h.b16 %v4630
        %v4664 = vunpack.c.l.b16 %v4631
        %v4665 = vunpack.c.h.b16 %v4631
        %v4666 = vunpack.c.l.b16 %v4632
        %v4667 = vunpack.c.h.b16 %v4632
        %v4668 = vunpack.c.l.b16 %v4633
        %v4669 = vunpack.c.h.b16 %v4633
        %v4670 = vunpack.c.l.b16 %v4634
        %v4671 = vunpack.c.h.b16 %v4634
        %v4672 = vunpack.c.l.b16 %v4635
        %v4673 = vunpack.c.h.b16 %v4635
        %v4674 = vunpack.c.l.b16 %v4636
        %v4675 = vunpack.c.h.b16 %v4636
        %v4676 = vunpack.c.l.b16 %v4637
        %v4677 = vunpack.c.h.b16 %v4637
        %v4678 = vunpack.c.l.b16 %v4638
        %v4679 = vunpack.c.h.b16 %v4638
        %v4680 = vunpack.c.l.b16 %v4639
        %v4681 = vunpack.c.h.b16 %v4639
        %v4682 = vunpack.c.l.b16 %v4640
        %v4683 = vunpack.c.h.b16 %v4640
        %v4684 = vunpack.c.l.b16 %v4641
        %v4685 = vunpack.c.h.b16 %v4641
        %v4686 = vunpack.c.l.b16 %v4642
        %v4687 = vunpack.c.h.b16 %v4642
        %v4688 = vunpack.c.l.b16 %v4643
        %v4689 = vunpack.c.h.b16 %v4643
        %v4690 = vunpack.c.l.b16 %v4644
        %v4691 = vunpack.c.h.b16 %v4644
        %v4692 = vunpack.c.l.b16 %v4645
        %v4693 = vunpack.c.h.b16 %v4645
        %v4694 = vpack.c.b16 %v4664, %v4662
        %v4695 = vpack.c.b16 %v4665, %v4663
        %v4696 = vpack.c.b16 %v4668, %v4666
        %v4697 = vpack.c.b16 %v4669, %v4667
        %v4698 = vpack.c.b16 %v4672, %v4670
        %v4699 = vpack.c.b16 %v4673, %v4671
        %v4700 = vpack.c.b16 %v4676, %v4674
        %v4701 = vpack.c.b16 %v4677, %v4675
        %v4702 = vpack.c.b16 %v4680, %v4678
        %v4703 = vpack.c.b16 %v4681, %v4679
        %v4704 = vpack.c.b16 %v4684, %v4682
        %v4705 = vpack.c.b16 %v4685, %v4683
        %v4706 = vpack.c.b16 %v4688, %v4686
        %v4707 = vpack.c.b16 %v4689, %v4687
        %v4708 = vpack.c.b16 %v4692, %v4690
        %v4709 = vpack.c.b16 %v4693, %v4691
        %4726 = vmatprep.subr.bf16.mxu0 %v4695
        %4727 = vmatpush1.bf16.msra.mxu0 %v4694
        %4728 = vmatprep.subr.bf16.mxu0 %v4697
        %4729 = vmatpush1.bf16.msra.mxu0 %v4696
        %4730 = vmatprep.subr.bf16.mxu0 %v4699
        %4731 = vmatpush1.bf16.msra.mxu0 %v4698
        %4732 = vmatprep.subr.bf16.mxu0 %v4701
        %4733 = vmatpush1.bf16.msra.mxu0 %v4700
        %4734 = vmatprep.subr.bf16.mxu0 %v4703
        %4735 = vmatpush1.bf16.msra.mxu0 %v4702
        %4736 = vmatprep.subr.bf16.mxu0 %v4705
        %4737 = vmatpush1.bf16.msra.mxu0 %v4704
        %4738 = vmatprep.subr.bf16.mxu0 %v4707
        %4739 = vmatpush1.bf16.msra.mxu0 %v4706
        %4740 = vmatprep.subr.bf16.mxu0 %v4709
        %4741 = vmatpush1.bf16.msra.mxu0 %v4708
        %4742 = vmatprep.subr.bf16.mxu0 0
        %4743 = vmatpush1.bf16.msra.mxu0 0
        %4744 = vmatprep.subr.bf16.mxu0 0
        %4745 = vmatpush1.bf16.msra.mxu0 0
        %4746 = vmatprep.subr.bf16.mxu0 0
        %4747 = vmatpush1.bf16.msra.mxu0 0
        %4748 = vmatprep.subr.bf16.mxu0 0
        %4749 = vmatpush1.bf16.msra.mxu0 0
        %4750 = vmatprep.subr.bf16.mxu0 0
        %4751 = vmatpush1.bf16.msra.mxu0 0
        %4752 = vmatprep.subr.bf16.mxu0 0
        %4753 = vmatpush1.bf16.msra.mxu0 0
        %4754 = vmatprep.subr.bf16.mxu0 0
        %4755 = vmatpush1.bf16.msra.mxu0 0
        %4756 = vmatprep.subr.bf16.mxu0 0
        %4757 = vmatpush1.bf16.msra.mxu0 0
        %4758 = vmatprep.mubr.bf16.mxu0 0
        %4759 = vmatmul.mubr.bf16.gmra.mrb[0].mxu0 %v4628
        %v4760 = vpop.f32.mrb[0].mxu0
        %v4761 = vadd.f32 0.0, %v4760
        %v4762 = vpop.f32.mrb[0].mxu0
        %v4763 = vadd.f32 0.0, %v4762
        %v4764 = vpop.f32.mrb[0].mxu0
        %v4765 = vadd.f32 0.0, %v4764
        %v4766 = vpop.f32.mrb[0].mxu0
        %v4767 = vadd.f32 0.0, %v4766
        %4768 = vdwg.mxu0
        %v4769 = vadd.f32 %v4619, %v4761
        %v4770 = vadd.f32 %v4620, %v4763
        %v4771 = vadd.f32 %v4621, %v4765
        %v4772 = vadd.f32 %v4622, %v4767
        %v4773 = vcombine.high %v4139, %v4139
        %v4774 = vrot.slane %v4139, 5
        %v4775 = vrot.slane %v4774, 4
        %v4776 = vrot.slane %v4773, 5
        %v4777 = vsel %vm4170, %v4775, %v4776
        %v4778 = vcombine.low %v4178, %v4182
        %v4779 = vcombine.low %v4186, %v4777
        %v4782 = vpack.c.bf16 %v4779, %v4778
        %s4783 = scalar_lea.vmem %s5, 512
        %v4784 = vld [vmem:[%s4783] sm:$0xff]
        %v4785 = vld [vmem:[%s4783 + $0x8] sm:$0xff]
        %v4786 = vld [vmem:[%s4783 + $0x10] sm:$0xff]
        %v4787 = vld [vmem:[%s4783 + $0x18] sm:$0xff]
        %v4788 = vld [vmem:[%s4783 + $0x20] sm:$0xff]
        %v4789 = vld [vmem:[%s4783 + $0x28] sm:$0xff]
        %v4790 = vld [vmem:[%s4783 + $0x30] sm:$0xff]
        %v4791 = vld [vmem:[%s4783 + $0x38] sm:$0xff]
        %v4792 = vld [vmem:[%s4783 + $0x40] sm:$0xff]
        %v4793 = vld [vmem:[%s4783 + $0x48] sm:$0xff]
        %v4794 = vld [vmem:[%s4783 + $0x50] sm:$0xff]
        %v4795 = vld [vmem:[%s4783 + $0x58] sm:$0xff]
        %v4796 = vld [vmem:[%s4783 + $0x60] sm:$0xff]
        %v4797 = vld [vmem:[%s4783 + $0x68] sm:$0xff]
        %v4798 = vld [vmem:[%s4783 + $0x70] sm:$0xff]
        %v4799 = vld [vmem:[%s4783 + $0x78] sm:$0xff]
        %v4816 = vunpack.c.l.b16 %v4784
        %v4817 = vunpack.c.h.b16 %v4784
        %v4818 = vunpack.c.l.b16 %v4785
        %v4819 = vunpack.c.h.b16 %v4785
        %v4820 = vunpack.c.l.b16 %v4786
        %v4821 = vunpack.c.h.b16 %v4786
        %v4822 = vunpack.c.l.b16 %v4787
        %v4823 = vunpack.c.h.b16 %v4787
        %v4824 = vunpack.c.l.b16 %v4788
        %v4825 = vunpack.c.h.b16 %v4788
        %v4826 = vunpack.c.l.b16 %v4789
        %v4827 = vunpack.c.h.b16 %v4789
        %v4828 = vunpack.c.l.b16 %v4790
        %v4829 = vunpack.c.h.b16 %v4790
        %v4830 = vunpack.c.l.b16 %v4791
        %v4831 = vunpack.c.h.b16 %v4791
        %v4832 = vunpack.c.l.b16 %v4792
        %v4833 = vunpack.c.h.b16 %v4792
        %v4834 = vunpack.c.l.b16 %v4793
        %v4835 = vunpack.c.h.b16 %v4793
        %v4836 = vunpack.c.l.b16 %v4794
        %v4837 = vunpack.c.h.b16 %v4794
        %v4838 = vunpack.c.l.b16 %v4795
        %v4839 = vunpack.c.h.b16 %v4795
        %v4840 = vunpack.c.l.b16 %v4796
        %v4841 = vunpack.c.h.b16 %v4796
        %v4842 = vunpack.c.l.b16 %v4797
        %v4843 = vunpack.c.h.b16 %v4797
        %v4844 = vunpack.c.l.b16 %v4798
        %v4845 = vunpack.c.h.b16 %v4798
        %v4846 = vunpack.c.l.b16 %v4799
        %v4847 = vunpack.c.h.b16 %v4799
        %v4848 = vpack.c.b16 %v4818, %v4816
        %v4849 = vpack.c.b16 %v4819, %v4817
        %v4850 = vpack.c.b16 %v4822, %v4820
        %v4851 = vpack.c.b16 %v4823, %v4821
        %v4852 = vpack.c.b16 %v4826, %v4824
        %v4853 = vpack.c.b16 %v4827, %v4825
        %v4854 = vpack.c.b16 %v4830, %v4828
        %v4855 = vpack.c.b16 %v4831, %v4829
        %v4856 = vpack.c.b16 %v4834, %v4832
        %v4857 = vpack.c.b16 %v4835, %v4833
        %v4858 = vpack.c.b16 %v4838, %v4836
        %v4859 = vpack.c.b16 %v4839, %v4837
        %v4860 = vpack.c.b16 %v4842, %v4840
        %v4861 = vpack.c.b16 %v4843, %v4841
        %v4862 = vpack.c.b16 %v4846, %v4844
        %v4863 = vpack.c.b16 %v4847, %v4845
        %4880 = vmatprep.subr.bf16.mxu0 %v4849
        %4881 = vmatpush1.bf16.msra.mxu0 %v4848
        %4882 = vmatprep.subr.bf16.mxu0 %v4851
        %4883 = vmatpush1.bf16.msra.mxu0 %v4850
        %4884 = vmatprep.subr.bf16.mxu0 %v4853
        %4885 = vmatpush1.bf16.msra.mxu0 %v4852
        %4886 = vmatprep.subr.bf16.mxu0 %v4855
        %4887 = vmatpush1.bf16.msra.mxu0 %v4854
        %4888 = vmatprep.subr.bf16.mxu0 %v4857
        %4889 = vmatpush1.bf16.msra.mxu0 %v4856
        %4890 = vmatprep.subr.bf16.mxu0 %v4859
        %4891 = vmatpush1.bf16.msra.mxu0 %v4858
        %4892 = vmatprep.subr.bf16.mxu0 %v4861
        %4893 = vmatpush1.bf16.msra.mxu0 %v4860
        %4894 = vmatprep.subr.bf16.mxu0 %v4863
        %4895 = vmatpush1.bf16.msra.mxu0 %v4862
        %4896 = vmatprep.subr.bf16.mxu0 0
        %4897 = vmatpush1.bf16.msra.mxu0 0
        %4898 = vmatprep.subr.bf16.mxu0 0
        %4899 = vmatpush1.bf16.msra.mxu0 0
        %4900 = vmatprep.subr.bf16.mxu0 0
        %4901 = vmatpush1.bf16.msra.mxu0 0
        %4902 = vmatprep.subr.bf16.mxu0 0
        %4903 = vmatpush1.bf16.msra.mxu0 0
        %4904 = vmatprep.subr.bf16.mxu0 0
        %4905 = vmatpush1.bf16.msra.mxu0 0
        %4906 = vmatprep.subr.bf16.mxu0 0
        %4907 = vmatpush1.bf16.msra.mxu0 0
        %4908 = vmatprep.subr.bf16.mxu0 0
        %4909 = vmatpush1.bf16.msra.mxu0 0
        %4910 = vmatprep.subr.bf16.mxu0 0
        %4911 = vmatpush1.bf16.msra.mxu0 0
        %4912 = vmatprep.mubr.bf16.mxu0 0
        %4913 = vmatmul.mubr.bf16.gmra.mrb[0].mxu0 %v4782
        %v4914 = vpop.f32.mrb[0].mxu0
        %v4915 = vadd.f32 0.0, %v4914
        %v4916 = vpop.f32.mrb[0].mxu0
        %v4917 = vadd.f32 0.0, %v4916
        %v4918 = vpop.f32.mrb[0].mxu0
        %v4919 = vadd.f32 0.0, %v4918
        %v4920 = vpop.f32.mrb[0].mxu0
        %v4921 = vadd.f32 0.0, %v4920
        %4922 = vdwg.mxu0
        %v4923 = vadd.f32 %v4769, %v4915
        %v4924 = vadd.f32 %v4770, %v4917
        %v4925 = vadd.f32 %v4771, %v4919
        %v4926 = vadd.f32 %v4772, %v4921
        %v4927 = vrot.slane %v4139, 6
        %v4928 = vrot.slane %v4927, 4
        %v4929 = vrot.slane %v4773, 6
        %v4930 = vsel %vm4457, %v4928, %v4929
        %v4931 = vcombine.low %v4465, %v4469
        %v4932 = vcombine.low %v4473, %v4930
        %v4935 = vpack.c.bf16 %v4932, %v4931
        %s4936 = scalar_lea.vmem %s5, 640
        %v4937 = vld [vmem:[%s4936] sm:$0xff]
        %v4938 = vld [vmem:[%s4936 + $0x8] sm:$0xff]
        %v4939 = vld [vmem:[%s4936 + $0x10] sm:$0xff]
        %v4940 = vld [vmem:[%s4936 + $0x18] sm:$0xff]
        %v4941 = vld [vmem:[%s4936 + $0x20] sm:$0xff]
        %v4942 = vld [vmem:[%s4936 + $0x28] sm:$0xff]
        %v4943 = vld [vmem:[%s4936 + $0x30] sm:$0xff]
        %v4944 = vld [vmem:[%s4936 + $0x38] sm:$0xff]
        %v4945 = vld [vmem:[%s4936 + $0x40] sm:$0xff]
        %v4946 = vld [vmem:[%s4936 + $0x48] sm:$0xff]
        %v4947 = vld [vmem:[%s4936 + $0x50] sm:$0xff]
        %v4948 = vld [vmem:[%s4936 + $0x58] sm:$0xff]
        %v4949 = vld [vmem:[%s4936 + $0x60] sm:$0xff]
        %v4950 = vld [vmem:[%s4936 + $0x68] sm:$0xff]
        %v4951 = vld [vmem:[%s4936 + $0x70] sm:$0xff]
        %v4952 = vld [vmem:[%s4936 + $0x78] sm:$0xff]
        %v4969 = vunpack.c.l.b16 %v4937
        %v4970 = vunpack.c.h.b16 %v4937
        %v4971 = vunpack.c.l.b16 %v4938
        %v4972 = vunpack.c.h.b16 %v4938
        %v4973 = vunpack.c.l.b16 %v4939
        %v4974 = vunpack.c.h.b16 %v4939
        %v4975 = vunpack.c.l.b16 %v4940
        %v4976 = vunpack.c.h.b16 %v4940
        %v4977 = vunpack.c.l.b16 %v4941
        %v4978 = vunpack.c.h.b16 %v4941
        %v4979 = vunpack.c.l.b16 %v4942
        %v4980 = vunpack.c.h.b16 %v4942
        %v4981 = vunpack.c.l.b16 %v4943
        %v4982 = vunpack.c.h.b16 %v4943
        %v4983 = vunpack.c.l.b16 %v4944
        %v4984 = vunpack.c.h.b16 %v4944
        %v4985 = vunpack.c.l.b16 %v4945
        %v4986 = vunpack.c.h.b16 %v4945
        %v4987 = vunpack.c.l.b16 %v4946
        %v4988 = vunpack.c.h.b16 %v4946
        %v4989 = vunpack.c.l.b16 %v4947
        %v4990 = vunpack.c.h.b16 %v4947
        %v4991 = vunpack.c.l.b16 %v4948
        %v4992 = vunpack.c.h.b16 %v4948
        %v4993 = vunpack.c.l.b16 %v4949
        %v4994 = vunpack.c.h.b16 %v4949
        %v4995 = vunpack.c.l.b16 %v4950
        %v4996 = vunpack.c.h.b16 %v4950
        %v4997 = vunpack.c.l.b16 %v4951
        %v4998 = vunpack.c.h.b16 %v4951
        %v4999 = vunpack.c.l.b16 %v4952
        %v5000 = vunpack.c.h.b16 %v4952
        %v5001 = vpack.c.b16 %v4971, %v4969
        %v5002 = vpack.c.b16 %v4972, %v4970
        %v5003 = vpack.c.b16 %v4975, %v4973
        %v5004 = vpack.c.b16 %v4976, %v4974
        %v5005 = vpack.c.b16 %v4979, %v4977
        %v5006 = vpack.c.b16 %v4980, %v4978
        %v5007 = vpack.c.b16 %v4983, %v4981
        %v5008 = vpack.c.b16 %v4984, %v4982
        %v5009 = vpack.c.b16 %v4987, %v4985
        %v5010 = vpack.c.b16 %v4988, %v4986
        %v5011 = vpack.c.b16 %v4991, %v4989
        %v5012 = vpack.c.b16 %v4992, %v4990
        %v5013 = vpack.c.b16 %v4995, %v4993
        %v5014 = vpack.c.b16 %v4996, %v4994
        %v5015 = vpack.c.b16 %v4999, %v4997
        %v5016 = vpack.c.b16 %v5000, %v4998
        %5033 = vmatprep.subr.bf16.mxu0 %v5002
        %5034 = vmatpush1.bf16.msra.mxu0 %v5001
        %5035 = vmatprep.subr.bf16.mxu0 %v5004
        %5036 = vmatpush1.bf16.msra.mxu0 %v5003
        %5037 = vmatprep.subr.bf16.mxu0 %v5006
        %5038 = vmatpush1.bf16.msra.mxu0 %v5005
        %5039 = vmatprep.subr.bf16.mxu0 %v5008
        %5040 = vmatpush1.bf16.msra.mxu0 %v5007
        %5041 = vmatprep.subr.bf16.mxu0 %v5010
        %5042 = vmatpush1.bf16.msra.mxu0 %v5009
        %5043 = vmatprep.subr.bf16.mxu0 %v5012
        %5044 = vmatpush1.bf16.msra.mxu0 %v5011
        %5045 = vmatprep.subr.bf16.mxu0 %v5014
        %5046 = vmatpush1.bf16.msra.mxu0 %v5013
        %5047 = vmatprep.subr.bf16.mxu0 %v5016
        %5048 = vmatpush1.bf16.msra.mxu0 %v5015
        %5049 = vmatprep.subr.bf16.mxu0 0
        %5050 = vmatpush1.bf16.msra.mxu0 0
        %5051 = vmatprep.subr.bf16.mxu0 0
        %5052 = vmatpush1.bf16.msra.mxu0 0
        %5053 = vmatprep.subr.bf16.mxu0 0
        %5054 = vmatpush1.bf16.msra.mxu0 0
        %5055 = vmatprep.subr.bf16.mxu0 0
        %5056 = vmatpush1.bf16.msra.mxu0 0
        %5057 = vmatprep.subr.bf16.mxu0 0
        %5058 = vmatpush1.bf16.msra.mxu0 0
        %5059 = vmatprep.subr.bf16.mxu0 0
        %5060 = vmatpush1.bf16.msra.mxu0 0
        %5061 = vmatprep.subr.bf16.mxu0 0
        %5062 = vmatpush1.bf16.msra.mxu0 0
        %5063 = vmatprep.subr.bf16.mxu0 0
        %5064 = vmatpush1.bf16.msra.mxu0 0
        %5065 = vmatprep.mubr.bf16.mxu0 0
        %5066 = vmatmul.mubr.bf16.gmra.mrb[0].mxu0 %v4935
        %v5067 = vpop.f32.mrb[0].mxu0
        %v5068 = vadd.f32 0.0, %v5067
        %v5069 = vpop.f32.mrb[0].mxu0
        %v5070 = vadd.f32 0.0, %v5069
        %v5071 = vpop.f32.mrb[0].mxu0
        %v5072 = vadd.f32 0.0, %v5071
        %v5073 = vpop.f32.mrb[0].mxu0
        %v5074 = vadd.f32 0.0, %v5073
        %5075 = vdwg.mxu0
        %v5076 = vadd.f32 %v4923, %v5068
        %v5077 = vadd.f32 %v4924, %v5070
        %v5078 = vadd.f32 %v4925, %v5072
        %v5079 = vadd.f32 %v4926, %v5074
        %v5080 = vcombine.low %v4139, 0.0
        %v5082 = vpack.c.bf16 %v5080, %v4144
        %s5083 = scalar_lea.vmem %s5, 768
        %v5084 = vld [vmem:[%s5083] sm:$0xff]
        %v5085 = vld [vmem:[%s5083 + $0x8] sm:$0xff]
        %v5086 = vld [vmem:[%s5083 + $0x10] sm:$0xff]
        %v5087 = vld [vmem:[%s5083 + $0x18] sm:$0xff]
        %v5088 = vld [vmem:[%s5083 + $0x20] sm:$0xff]
        %v5089 = vld [vmem:[%s5083 + $0x28] sm:$0xff]
        %v5090 = vld [vmem:[%s5083 + $0x30] sm:$0xff]
        %v5091 = vld [vmem:[%s5083 + $0x38] sm:$0xff]
        %v5092 = vld [vmem:[%s5083 + $0x40] sm:$0xff]
        %v5093 = vld [vmem:[%s5083 + $0x48] sm:$0xff]
        %v5094 = vld [vmem:[%s5083 + $0x50] sm:$0xff]
        %v5095 = vld [vmem:[%s5083 + $0x58] sm:$0xff]
        %v5096 = vld [vmem:[%s5083 + $0x60] sm:$0xff]
        %v5097 = vld [vmem:[%s5083 + $0x68] sm:$0xff]
        %v5098 = vld [vmem:[%s5083 + $0x70] sm:$0xff]
        %v5099 = vld [vmem:[%s5083 + $0x78] sm:$0xff]
        %v5116 = vunpack.c.l.b16 %v5084
        %v5117 = vunpack.c.h.b16 %v5084
        %v5118 = vunpack.c.l.b16 %v5085
        %v5119 = vunpack.c.h.b16 %v5085
        %v5120 = vunpack.c.l.b16 %v5086
        %v5121 = vunpack.c.h.b16 %v5086
        %v5122 = vunpack.c.l.b16 %v5087
        %v5123 = vunpack.c.h.b16 %v5087
        %v5124 = vunpack.c.l.b16 %v5088
        %v5125 = vunpack.c.h.b16 %v5088
        %v5126 = vunpack.c.l.b16 %v5089
        %v5127 = vunpack.c.h.b16 %v5089
        %v5128 = vunpack.c.l.b16 %v5090
        %v5129 = vunpack.c.h.b16 %v5090
        %v5130 = vunpack.c.l.b16 %v5091
        %v5131 = vunpack.c.h.b16 %v5091
        %v5132 = vunpack.c.l.b16 %v5092
        %v5133 = vunpack.c.h.b16 %v5092
        %v5134 = vunpack.c.l.b16 %v5093
        %v5135 = vunpack.c.h.b16 %v5093
        %v5136 = vunpack.c.l.b16 %v5094
        %v5137 = vunpack.c.h.b16 %v5094
        %v5138 = vunpack.c.l.b16 %v5095
        %v5139 = vunpack.c.h.b16 %v5095
        %v5140 = vunpack.c.l.b16 %v5096
        %v5141 = vunpack.c.h.b16 %v5096
        %v5142 = vunpack.c.l.b16 %v5097
        %v5143 = vunpack.c.h.b16 %v5097
        %v5144 = vunpack.c.l.b16 %v5098
        %v5145 = vunpack.c.h.b16 %v5098
        %v5146 = vunpack.c.l.b16 %v5099
        %v5147 = vunpack.c.h.b16 %v5099
        %v5148 = vpack.c.b16 %v5118, %v5116
        %v5149 = vpack.c.b16 %v5119, %v5117
        %v5150 = vpack.c.b16 %v5122, %v5120
        %v5151 = vpack.c.b16 %v5123, %v5121
        %v5152 = vpack.c.b16 %v5126, %v5124
        %v5153 = vpack.c.b16 %v5127, %v5125
        %v5154 = vpack.c.b16 %v5130, %v5128
        %v5155 = vpack.c.b16 %v5131, %v5129
        %v5156 = vpack.c.b16 %v5134, %v5132
        %v5157 = vpack.c.b16 %v5135, %v5133
        %v5158 = vpack.c.b16 %v5138, %v5136
        %v5159 = vpack.c.b16 %v5139, %v5137
        %v5160 = vpack.c.b16 %v5142, %v5140
        %v5161 = vpack.c.b16 %v5143, %v5141
        %v5162 = vpack.c.b16 %v5146, %v5144
        %v5163 = vpack.c.b16 %v5147, %v5145
        %5180 = vmatprep.subr.bf16.mxu0 %v5149
        %5181 = vmatpush1.bf16.msra.mxu0 %v5148
        %5182 = vmatprep.subr.bf16.mxu0 %v5151
        %5183 = vmatpush1.bf16.msra.mxu0 %v5150
        %5184 = vmatprep.subr.bf16.mxu0 %v5153
        %5185 = vmatpush1.bf16.msra.mxu0 %v5152
        %5186 = vmatprep.subr.bf16.mxu0 %v5155
        %5187 = vmatpush1.bf16.msra.mxu0 %v5154
        %5188 = vmatprep.subr.bf16.mxu0 %v5157
        %5189 = vmatpush1.bf16.msra.mxu0 %v5156
        %5190 = vmatprep.subr.bf16.mxu0 %v5159
        %5191 = vmatpush1.bf16.msra.mxu0 %v5158
        %5192 = vmatprep.subr.bf16.mxu0 %v5161
        %5193 = vmatpush1.bf16.msra.mxu0 %v5160
        %5194 = vmatprep.subr.bf16.mxu0 %v5163
        %5195 = vmatpush1.bf16.msra.mxu0 %v5162
        %5196 = vmatprep.subr.bf16.mxu0 0
        %5197 = vmatpush1.bf16.msra.mxu0 0
        %5198 = vmatprep.subr.bf16.mxu0 0
        %5199 = vmatpush1.bf16.msra.mxu0 0
        %5200 = vmatprep.subr.bf16.mxu0 0
        %5201 = vmatpush1.bf16.msra.mxu0 0
        %5202 = vmatprep.subr.bf16.mxu0 0
        %5203 = vmatpush1.bf16.msra.mxu0 0
        %5204 = vmatprep.subr.bf16.mxu0 0
        %5205 = vmatpush1.bf16.msra.mxu0 0
        %5206 = vmatprep.subr.bf16.mxu0 0
        %5207 = vmatpush1.bf16.msra.mxu0 0
        %5208 = vmatprep.subr.bf16.mxu0 0
        %5209 = vmatpush1.bf16.msra.mxu0 0
        %5210 = vmatprep.subr.bf16.mxu0 0
        %5211 = vmatpush1.bf16.msra.mxu0 0
        %5212 = vmatprep.mubr.bf16.mxu0 0
        %5213 = vmatmul.mubr.bf16.gmra.mrb[0].mxu0 %v5082
        %v5214 = vpop.f32.mrb[0].mxu0
        %v5215 = vadd.f32 0.0, %v5214
        %v5216 = vpop.f32.mrb[0].mxu0
        %v5217 = vadd.f32 0.0, %v5216
        %v5218 = vpop.f32.mrb[0].mxu0
        %v5219 = vadd.f32 0.0, %v5218
        %v5220 = vpop.f32.mrb[0].mxu0
        %v5221 = vadd.f32 0.0, %v5220
        %5222 = vdwg.mxu0
        %v5223 = vadd.f32 %v5076, %v5215
        %v5224 = vadd.f32 %v5077, %v5217
        %v5225 = vadd.f32 %v5078, %v5219
        %v5226 = vadd.f32 %v5079, %v5221
        %v5227 = vcombine.low %v4777, %v4174
        %v5229 = vpack.c.bf16 %v5227, %v4188
        %s5230 = scalar_lea.vmem %s5, 896
        %v5231 = vld [vmem:[%s5230] sm:$0xff]
        %v5232 = vld [vmem:[%s5230 + $0x8] sm:$0xff]
        %v5233 = vld [vmem:[%s5230 + $0x10] sm:$0xff]
        %v5234 = vld [vmem:[%s5230 + $0x18] sm:$0xff]
        %v5235 = vld [vmem:[%s5230 + $0x20] sm:$0xff]
        %v5236 = vld [vmem:[%s5230 + $0x28] sm:$0xff]
        %v5237 = vld [vmem:[%s5230 + $0x30] sm:$0xff]
        %v5238 = vld [vmem:[%s5230 + $0x38] sm:$0xff]
        %v5239 = vld [vmem:[%s5230 + $0x40] sm:$0xff]
        %v5240 = vld [vmem:[%s5230 + $0x48] sm:$0xff]
        %v5241 = vld [vmem:[%s5230 + $0x50] sm:$0xff]
        %v5242 = vld [vmem:[%s5230 + $0x58] sm:$0xff]
        %v5243 = vld [vmem:[%s5230 + $0x60] sm:$0xff]
        %v5244 = vld [vmem:[%s5230 + $0x68] sm:$0xff]
        %v5245 = vld [vmem:[%s5230 + $0x70] sm:$0xff]
        %v5246 = vld [vmem:[%s5230 + $0x78] sm:$0xff]
        %v5263 = vunpack.c.l.b16 %v5231
        %v5264 = vunpack.c.h.b16 %v5231
        %v5265 = vunpack.c.l.b16 %v5232
        %v5266 = vunpack.c.h.b16 %v5232
        %v5267 = vunpack.c.l.b16 %v5233
        %v5268 = vunpack.c.h.b16 %v5233
        %v5269 = vunpack.c.l.b16 %v5234
        %v5270 = vunpack.c.h.b16 %v5234
        %v5271 = vunpack.c.l.b16 %v5235
        %v5272 = vunpack.c.h.b16 %v5235
        %v5273 = vunpack.c.l.b16 %v5236
        %v5274 = vunpack.c.h.b16 %v5236
        %v5275 = vunpack.c.l.b16 %v5237
        %v5276 = vunpack.c.h.b16 %v5237
        %v5277 = vunpack.c.l.b16 %v5238
        %v5278 = vunpack.c.h.b16 %v5238
        %v5279 = vunpack.c.l.b16 %v5239
        %v5280 = vunpack.c.h.b16 %v5239
        %v5281 = vunpack.c.l.b16 %v5240
        %v5282 = vunpack.c.h.b16 %v5240
        %v5283 = vunpack.c.l.b16 %v5241
        %v5284 = vunpack.c.h.b16 %v5241
        %v5285 = vunpack.c.l.b16 %v5242
        %v5286 = vunpack.c.h.b16 %v5242
        %v5287 = vunpack.c.l.b16 %v5243
        %v5288 = vunpack.c.h.b16 %v5243
        %v5289 = vunpack.c.l.b16 %v5244
        %v5290 = vunpack.c.h.b16 %v5244
        %v5291 = vunpack.c.l.b16 %v5245
        %v5292 = vunpack.c.h.b16 %v5245
        %v5293 = vunpack.c.l.b16 %v5246
        %v5294 = vunpack.c.h.b16 %v5246
        %v5295 = vpack.c.b16 %v5265, %v5263
        %v5296 = vpack.c.b16 %v5266, %v5264
        %v5297 = vpack.c.b16 %v5269, %v5267
        %v5298 = vpack.c.b16 %v5270, %v5268
        %v5299 = vpack.c.b16 %v5273, %v5271
        %v5300 = vpack.c.b16 %v5274, %v5272
        %v5301 = vpack.c.b16 %v5277, %v5275
        %v5302 = vpack.c.b16 %v5278, %v5276
        %v5303 = vpack.c.b16 %v5281, %v5279
        %v5304 = vpack.c.b16 %v5282, %v5280
        %v5305 = vpack.c.b16 %v5285, %v5283
        %v5306 = vpack.c.b16 %v5286, %v5284
        %v5307 = vpack.c.b16 %v5289, %v5287
        %v5308 = vpack.c.b16 %v5290, %v5288
        %v5309 = vpack.c.b16 %v5293, %v5291
        %v5310 = vpack.c.b16 %v5294, %v5292
        %5327 = vmatprep.subr.bf16.mxu0 %v5296
        %5328 = vmatpush1.bf16.msra.mxu0 %v5295
        %5329 = vmatprep.subr.bf16.mxu0 %v5298
        %5330 = vmatpush1.bf16.msra.mxu0 %v5297
        %5331 = vmatprep.subr.bf16.mxu0 %v5300
        %5332 = vmatpush1.bf16.msra.mxu0 %v5299
        %5333 = vmatprep.subr.bf16.mxu0 %v5302
        %5334 = vmatpush1.bf16.msra.mxu0 %v5301
        %5335 = vmatprep.subr.bf16.mxu0 %v5304
        %5336 = vmatpush1.bf16.msra.mxu0 %v5303
        %5337 = vmatprep.subr.bf16.mxu0 %v5306
        %5338 = vmatpush1.bf16.msra.mxu0 %v5305
        %5339 = vmatprep.subr.bf16.mxu0 %v5308
        %5340 = vmatpush1.bf16.msra.mxu0 %v5307
        %5341 = vmatprep.subr.bf16.mxu0 %v5310
        %5342 = vmatpush1.bf16.msra.mxu0 %v5309
        %5343 = vmatprep.subr.bf16.mxu0 0
        %5344 = vmatpush1.bf16.msra.mxu0 0
        %5345 = vmatprep.subr.bf16.mxu0 0
        %5346 = vmatpush1.bf16.msra.mxu0 0
        %5347 = vmatprep.subr.bf16.mxu0 0
        %5348 = vmatpush1.bf16.msra.mxu0 0
        %5349 = vmatprep.subr.bf16.mxu0 0
        %5350 = vmatpush1.bf16.msra.mxu0 0
        %5351 = vmatprep.subr.bf16.mxu0 0
        %5352 = vmatpush1.bf16.msra.mxu0 0
        %5353 = vmatprep.subr.bf16.mxu0 0
        %5354 = vmatpush1.bf16.msra.mxu0 0
        %5355 = vmatprep.subr.bf16.mxu0 0
        %5356 = vmatpush1.bf16.msra.mxu0 0
        %5357 = vmatprep.subr.bf16.mxu0 0
        %5358 = vmatpush1.bf16.msra.mxu0 0
        %5359 = vmatprep.mubr.bf16.mxu0 0
        %5360 = vmatmul.mubr.bf16.gmra.mrb[0].mxu0 %v5229
        %v5361 = vpop.f32.mrb[0].mxu0
        %v5362 = vadd.f32 0.0, %v5361
        %v5363 = vpop.f32.mrb[0].mxu0
        %v5364 = vadd.f32 0.0, %v5363
        %v5365 = vpop.f32.mrb[0].mxu0
        %v5366 = vadd.f32 0.0, %v5365
        %v5367 = vpop.f32.mrb[0].mxu0
        %v5368 = vadd.f32 0.0, %v5367
        %5369 = vdwg.mxu0
        %v5370 = vadd.f32 %v5223, %v5362
        %v5371 = vadd.f32 %v5224, %v5364
        %v5372 = vadd.f32 %v5225, %v5366
        %v5373 = vadd.f32 %v5226, %v5368
        %v5374 = vcombine.low %v4930, %v4461
        %v5376 = vpack.c.bf16 %v5374, %v4475
        %s5377 = scalar_lea.vmem %s5, 1024
        %v5378 = vld [vmem:[%s5377] sm:$0xff]
        %v5379 = vld [vmem:[%s5377 + $0x8] sm:$0xff]
        %v5380 = vld [vmem:[%s5377 + $0x10] sm:$0xff]
        %v5381 = vld [vmem:[%s5377 + $0x18] sm:$0xff]
        %v5382 = vld [vmem:[%s5377 + $0x20] sm:$0xff]
        %v5383 = vld [vmem:[%s5377 + $0x28] sm:$0xff]
        %v5384 = vld [vmem:[%s5377 + $0x30] sm:$0xff]
        %v5385 = vld [vmem:[%s5377 + $0x38] sm:$0xff]
        %v5386 = vld [vmem:[%s5377 + $0x40] sm:$0xff]
        %v5387 = vld [vmem:[%s5377 + $0x48] sm:$0xff]
        %v5388 = vld [vmem:[%s5377 + $0x50] sm:$0xff]
        %v5389 = vld [vmem:[%s5377 + $0x58] sm:$0xff]
        %v5390 = vld [vmem:[%s5377 + $0x60] sm:$0xff]
        %v5391 = vld [vmem:[%s5377 + $0x68] sm:$0xff]
        %v5392 = vld [vmem:[%s5377 + $0x70] sm:$0xff]
        %v5393 = vld [vmem:[%s5377 + $0x78] sm:$0xff]
        %v5410 = vunpack.c.l.b16 %v5378
        %v5411 = vunpack.c.h.b16 %v5378
        %v5412 = vunpack.c.l.b16 %v5379
        %v5413 = vunpack.c.h.b16 %v5379
        %v5414 = vunpack.c.l.b16 %v5380
        %v5415 = vunpack.c.h.b16 %v5380
        %v5416 = vunpack.c.l.b16 %v5381
        %v5417 = vunpack.c.h.b16 %v5381
        %v5418 = vunpack.c.l.b16 %v5382
        %v5419 = vunpack.c.h.b16 %v5382
        %v5420 = vunpack.c.l.b16 %v5383
        %v5421 = vunpack.c.h.b16 %v5383
        %v5422 = vunpack.c.l.b16 %v5384
        %v5423 = vunpack.c.h.b16 %v5384
        %v5424 = vunpack.c.l.b16 %v5385
        %v5425 = vunpack.c.h.b16 %v5385
        %v5426 = vunpack.c.l.b16 %v5386
        %v5427 = vunpack.c.h.b16 %v5386
        %v5428 = vunpack.c.l.b16 %v5387
        %v5429 = vunpack.c.h.b16 %v5387
        %v5430 = vunpack.c.l.b16 %v5388
        %v5431 = vunpack.c.h.b16 %v5388
        %v5432 = vunpack.c.l.b16 %v5389
        %v5433 = vunpack.c.h.b16 %v5389
        %v5434 = vunpack.c.l.b16 %v5390
        %v5435 = vunpack.c.h.b16 %v5390
        %v5436 = vunpack.c.l.b16 %v5391
        %v5437 = vunpack.c.h.b16 %v5391
        %v5438 = vunpack.c.l.b16 %v5392
        %v5439 = vunpack.c.h.b16 %v5392
        %v5440 = vunpack.c.l.b16 %v5393
        %v5441 = vunpack.c.h.b16 %v5393
        %v5442 = vpack.c.b16 %v5412, %v5410
        %v5443 = vpack.c.b16 %v5413, %v5411
        %v5444 = vpack.c.b16 %v5416, %v5414
        %v5445 = vpack.c.b16 %v5417, %v5415
        %v5446 = vpack.c.b16 %v5420, %v5418
        %v5447 = vpack.c.b16 %v5421, %v5419
        %v5448 = vpack.c.b16 %v5424, %v5422
        %v5449 = vpack.c.b16 %v5425, %v5423
        %v5450 = vpack.c.b16 %v5428, %v5426
        %v5451 = vpack.c.b16 %v5429, %v5427
        %v5452 = vpack.c.b16 %v5432, %v5430
        %v5453 = vpack.c.b16 %v5433, %v5431
        %v5454 = vpack.c.b16 %v5436, %v5434
        %v5455 = vpack.c.b16 %v5437, %v5435
        %v5456 = vpack.c.b16 %v5440, %v5438
        %v5457 = vpack.c.b16 %v5441, %v5439
        %5474 = vmatprep.subr.bf16.mxu0 %v5443
        %5475 = vmatpush1.bf16.msra.mxu0 %v5442
        %5476 = vmatprep.subr.bf16.mxu0 %v5445
        %5477 = vmatpush1.bf16.msra.mxu0 %v5444
        %5478 = vmatprep.subr.bf16.mxu0 %v5447
        %5479 = vmatpush1.bf16.msra.mxu0 %v5446
        %5480 = vmatprep.subr.bf16.mxu0 %v5449
        %5481 = vmatpush1.bf16.msra.mxu0 %v5448
        %5482 = vmatprep.subr.bf16.mxu0 %v5451
        %5483 = vmatpush1.bf16.msra.mxu0 %v5450
        %5484 = vmatprep.subr.bf16.mxu0 %v5453
        %5485 = vmatpush1.bf16.msra.mxu0 %v5452
        %5486 = vmatprep.subr.bf16.mxu0 %v5455
        %5487 = vmatpush1.bf16.msra.mxu0 %v5454
        %5488 = vmatprep.subr.bf16.mxu0 %v5457
        %5489 = vmatpush1.bf16.msra.mxu0 %v5456
        %5490 = vmatprep.subr.bf16.mxu0 0
        %5491 = vmatpush1.bf16.msra.mxu0 0
        %5492 = vmatprep.subr.bf16.mxu0 0
        %5493 = vmatpush1.bf16.msra.mxu0 0
        %5494 = vmatprep.subr.bf16.mxu0 0
        %5495 = vmatpush1.bf16.msra.mxu0 0
        %5496 = vmatprep.subr.bf16.mxu0 0
        %5497 = vmatpush1.bf16.msra.mxu0 0
        %5498 = vmatprep.subr.bf16.mxu0 0
        %5499 = vmatpush1.bf16.msra.mxu0 0
        %5500 = vmatprep.subr.bf16.mxu0 0
        %5501 = vmatpush1.bf16.msra.mxu0 0
        %5502 = vmatprep.subr.bf16.mxu0 0
        %5503 = vmatpush1.bf16.msra.mxu0 0
        %5504 = vmatprep.subr.bf16.mxu0 0
        %5505 = vmatpush1.bf16.msra.mxu0 0
        %5506 = vmatprep.mubr.bf16.mxu0 0
        %5507 = vmatmul.mubr.bf16.gmra.mrb[0].mxu0 %v5376
        %v5508 = vpop.f32.mrb[0].mxu0
        %v5509 = vadd.f32 0.0, %v5508
        %v5510 = vpop.f32.mrb[0].mxu0
        %v5511 = vadd.f32 0.0, %v5510
        %v5512 = vpop.f32.mrb[0].mxu0
        %v5513 = vadd.f32 0.0, %v5512
        %v5514 = vpop.f32.mrb[0].mxu0
        %v5515 = vadd.f32 0.0, %v5514
        %5516 = vdwg.mxu0
        %v5517 = vadd.f32 %v5370, %v5509
        %v5518 = vadd.f32 %v5371, %v5511
        %v5519 = vadd.f32 %v5372, %v5513
        %v5520 = vadd.f32 %v5373, %v5515
        %v5521 = vld [vmem:[%s6] sm:$0x3]
        %v5523 = vlaneseq
        %v5524 = vshrl.u32 %v5523, 7
        %v5525 = vsub.s32 0, %v5524
        %v5526 = vrot.slane %v5521, %v5525
        %v5527 = vlaneseq
        %v5528 = vshrl.u32 %v5527, 7
        %v5529 = vsub.s32 1, %v5528
        %v5530 = vrot.slane %v5521, %v5529
        %v5533 = vadd.f32 %v5517, %v5526
        %v5534 = vadd.f32 %v5518, %v5530
        %v5535 = vadd.f32 %v5519, %v5526
        %v5536 = vadd.f32 %v5520, %v5530
        %v5537 = vmax.f32 %v5533, 0.0
        %v5538 = vmax.f32 %v5534, 0.0
        %v5539 = vmax.f32 %v5535, 0.0
        %v5540 = vmax.f32 %v5536, 0.0
        %v5545 = vcombine.low %v5537, %v5538
        %v5546 = vcombine.high %v5537, %v5538
        %v5548 = vunpack.c.l.s4 1983009808
        %v5549 = vunpack.c.0.s8 %v5548
        %v5550 = vlaneseq
        %v5551 = vshrl.u32 %v5550, 7
        %v5552 = vsub.s32 %v5549, %v5551
        %v5553 = vrot.slane %v5545, %v5552
        %v5555 = vunpack.c.l.s4 1983009808
        %v5556 = vunpack.c.0.s8 %v5555
        %v5557 = vlaneseq
        %v5558 = vshrl.u32 %v5557, 7
        %v5559 = vsub.s32 %v5556, %v5558
        %v5560 = vrot.slane %v5546, %v5559
        %v5561 = vcombine.high %v5553, %v5553
        %v5562 = vcombine.high %v5560, %v5560
        %v5563 = vcombine.low %v5539, %v5540
        %v5564 = vcombine.high %v5539, %v5540
        %v5566 = vunpack.c.l.s4 1983009808
        %v5567 = vunpack.c.0.s8 %v5566
        %v5568 = vlaneseq
        %v5569 = vshrl.u32 %v5568, 7
        %v5570 = vsub.s32 %v5567, %v5569
        %v5571 = vrot.slane %v5563, %v5570
        %v5573 = vunpack.c.l.s4 1983009808
        %v5574 = vunpack.c.0.s8 %v5573
        %v5575 = vlaneseq
        %v5576 = vshrl.u32 %v5575, 7
        %v5577 = vsub.s32 %v5574, %v5576
        %v5578 = vrot.slane %v5564, %v5577
        %v5579 = vcombine.high %v5571, %v5571
        %v5580 = vcombine.high %v5578, %v5578
        %v5589 = vrot.slane %v5553, 7
        %v5590 = vrot.slane %v5589, 2
        %v5591 = vrot.slane %v5561, 7
        %v5592 = vrot.slane %v5591, 2
        %v5593 = vrot.slane %v5560, 7
        %v5594 = vrot.slane %v5593, 2
        %v5595 = vrot.slane %v5562, 7
        %v5596 = vrot.slane %v5595, 2
        %v5597 = vrot.slane %v5571, 7
        %v5598 = vrot.slane %v5597, 2
        %v5599 = vrot.slane %v5579, 7
        %v5600 = vrot.slane %v5599, 2
        %v5601 = vrot.slane %v5578, 7
        %v5602 = vrot.slane %v5601, 2
        %v5603 = vrot.slane %v5580, 7
        %v5604 = vrot.slane %v5603, 2
        %v5613 = vmax.f32 %v5553, %v5590
        %v5614 = vmax.f32 %v5561, %v5592
        %v5615 = vmax.f32 %v5560, %v5594
        %v5616 = vmax.f32 %v5562, %v5596
        %v5617 = vmax.f32 %v5571, %v5598
        %v5618 = vmax.f32 %v5579, %v5600
        %v5619 = vmax.f32 %v5578, %v5602
        %v5620 = vmax.f32 %v5580, %v5604
        %v5621 = vmax.f32 %v5613, %v5615
        %v5622 = vmax.f32 %v5614, %v5616
        %v5623 = vmax.f32 %v5617, %v5619
        %v5624 = vmax.f32 %v5618, %v5620
        %v5629 = vlaneseq
        %v5630 = vshrl.u32 %v5629, 7
        %v5631 = vsub.s32 0, %v5630
        %v5632 = vrot.slane %v5621, %v5631
        %v5633 = vlaneseq
        %v5634 = vshrl.u32 %v5633, 7
        %v5635 = vsub.s32 2, %v5634
        %v5636 = vrot.slane %v5621, %v5635
        %v5637 = vlaneseq
        %v5638 = vshrl.u32 %v5637, 7
        %v5639 = vsub.s32 0, %v5638
        %v5640 = vrot.slane %v5622, %v5639
        %v5641 = vlaneseq
        %v5642 = vshrl.u32 %v5641, 7
        %v5643 = vsub.s32 2, %v5642
        %v5644 = vrot.slane %v5622, %v5643
        %v5645 = vlaneseq
        %v5646 = vshrl.u32 %v5645, 7
        %v5647 = vsub.s32 0, %v5646
        %v5648 = vrot.slane %v5623, %v5647
        %v5649 = vlaneseq
        %v5650 = vshrl.u32 %v5649, 7
        %v5651 = vsub.s32 2, %v5650
        %v5652 = vrot.slane %v5623, %v5651
        %v5653 = vlaneseq
        %v5654 = vshrl.u32 %v5653, 7
        %v5655 = vsub.s32 0, %v5654
        %v5656 = vrot.slane %v5624, %v5655
        %v5657 = vlaneseq
        %v5658 = vshrl.u32 %v5657, 7
        %v5659 = vsub.s32 2, %v5658
        %v5660 = vrot.slane %v5624, %v5659
        %v5661 = vsel %vm2470, %v5640, %v5632
        %v5662 = vsel %vm2470, %v5644, %v5636
        %v5663 = vsel %vm2470, %v5656, %v5648
        %v5664 = vsel %vm2470, %v5660, %v5652
        %v5669 = vsel %vm2540, 0.0, %v5661
        %v5670 = vsel %vm2540, 0.0, %v5662
        %v5671 = vsel %vm2540, 0.0, %v5663
        %v5672 = vsel %vm2540, 0.0, %v5664
        %v5673 = vsel %vm4168, %v5669, 0.0
        %v5674 = vsel %vm4168, %v5670, 0.0
        %v5675 = vsel %vm4168, %v5671, 0.0
        %v5676 = vsel %vm4168, %v5672, 0.0
        %v5679 = vcombine.low 0.0, 0.0
        %v5681 = vunpack.c.l.s4 1983009808
        %v5682 = vunpack.c.0.s8 %v5681
        %v5683 = vlaneseq
        %v5684 = vshrl.u32 %v5683, 7
        %v5685 = vsub.s32 %v5682, %v5684
        %v5686 = vrot.slane %v5679, %v5685
        %v5687 = vcombine.low %v5673, %v5674
        %v5689 = vunpack.c.l.s4 1983009808
        %v5690 = vunpack.c.0.s8 %v5689
        %v5691 = vlaneseq
        %v5692 = vshrl.u32 %v5691, 7
        %v5693 = vsub.s32 %v5690, %v5692
        %v5694 = vrot.slane %v5687, %v5693
        %v5695 = vcombine.low %v5686, %v5694
        %v5697 = vunpack.c.l.s4 1983009808
        %v5698 = vunpack.c.0.s8 %v5697
        %v5699 = vlaneseq
        %v5700 = vshrl.u32 %v5699, 7
        %v5701 = vsub.s32 %v5698, %v5700
        %v5702 = vrot.slane %v5695, %v5701
        %v5703 = vcombine.high %v5702, %v5702
        %v5706 = vpack.c.bf16 %v5702, %v5702
        %v5707 = vpack.c.bf16 %v5703, %v5703
        %v5708 = vld [vmem:[%s7] sm:$0xff]
        %v5709 = vld [vmem:[%s7 + $0x8] sm:$0xff]
        %v5710 = vld [vmem:[%s7 + $0x10] sm:$0xff]
        %v5711 = vld [vmem:[%s7 + $0x18] sm:$0xff]
        %v5712 = vld [vmem:[%s7 + $0x20] sm:$0xff]
        %v5713 = vld [vmem:[%s7 + $0x28] sm:$0xff]
        %v5714 = vld [vmem:[%s7 + $0x30] sm:$0xff]
        %v5715 = vld [vmem:[%s7 + $0x38] sm:$0xff]
        %v5716 = vld [vmem:[%s7 + $0x40] sm:$0xff]
        %v5717 = vld [vmem:[%s7 + $0x48] sm:$0xff]
        %v5718 = vld [vmem:[%s7 + $0x50] sm:$0xff]
        %v5719 = vld [vmem:[%s7 + $0x58] sm:$0xff]
        %v5720 = vld [vmem:[%s7 + $0x60] sm:$0xff]
        %v5721 = vld [vmem:[%s7 + $0x68] sm:$0xff]
        %v5722 = vld [vmem:[%s7 + $0x70] sm:$0xff]
        %v5723 = vld [vmem:[%s7 + $0x78] sm:$0xff]
        %v5724 = vld [vmem:[%s7 + $0x80] sm:$0xff]
        %v5725 = vld [vmem:[%s7 + $0x88] sm:$0xff]
        %v5726 = vld [vmem:[%s7 + $0x90] sm:$0xff]
        %v5727 = vld [vmem:[%s7 + $0x98] sm:$0xff]
        %v5728 = vld [vmem:[%s7 + $0xa0] sm:$0xff]
        %v5729 = vld [vmem:[%s7 + $0xa8] sm:$0xff]
        %v5730 = vld [vmem:[%s7 + $0xb0] sm:$0xff]
        %v5731 = vld [vmem:[%s7 + $0xb8] sm:$0xff]
        %v5732 = vld [vmem:[%s7 + $0xc0] sm:$0xff]
        %v5733 = vld [vmem:[%s7 + $0xc8] sm:$0xff]
        %v5734 = vld [vmem:[%s7 + $0xd0] sm:$0xff]
        %v5735 = vld [vmem:[%s7 + $0xd8] sm:$0xff]
        %v5736 = vld [vmem:[%s7 + $0xe0] sm:$0xff]
        %v5737 = vld [vmem:[%s7 + $0xe8] sm:$0xff]
        %v5738 = vld [vmem:[%s7 + $0xf0] sm:$0xff]
        %v5739 = vld [vmem:[%s7 + $0xf8] sm:$0xff]
        %v5740 = vld [vmem:[%s7 + $0x100] sm:$0xff]
        %v5741 = vld [vmem:[%s7 + $0x108] sm:$0xff]
        %v5742 = vld [vmem:[%s7 + $0x110] sm:$0xff]
        %v5743 = vld [vmem:[%s7 + $0x118] sm:$0xff]
        %v5744 = vld [vmem:[%s7 + $0x120] sm:$0xff]
        %v5745 = vld [vmem:[%s7 + $0x128] sm:$0xff]
        %v5746 = vld [vmem:[%s7 + $0x130] sm:$0xff]
        %v5747 = vld [vmem:[%s7 + $0x138] sm:$0xff]
        %v5748 = vld [vmem:[%s7 + $0x140] sm:$0xff]
        %v5749 = vld [vmem:[%s7 + $0x148] sm:$0xff]
        %v5750 = vld [vmem:[%s7 + $0x150] sm:$0xff]
        %v5751 = vld [vmem:[%s7 + $0x158] sm:$0xff]
        %v5752 = vld [vmem:[%s7 + $0x160] sm:$0xff]
        %v5753 = vld [vmem:[%s7 + $0x168] sm:$0xff]
        %v5754 = vld [vmem:[%s7 + $0x170] sm:$0xff]
        %v5755 = vld [vmem:[%s7 + $0x178] sm:$0xff]
        %v5756 = vld [vmem:[%s7 + $0x180] sm:$0xff]
        %v5757 = vld [vmem:[%s7 + $0x188] sm:$0xff]
        %v5758 = vld [vmem:[%s7 + $0x190] sm:$0xff]
        %v5759 = vld [vmem:[%s7 + $0x198] sm:$0xff]
        %v5760 = vld [vmem:[%s7 + $0x1a0] sm:$0xff]
        %v5761 = vld [vmem:[%s7 + $0x1a8] sm:$0xff]
        %v5762 = vld [vmem:[%s7 + $0x1b0] sm:$0xff]
        %v5763 = vld [vmem:[%s7 + $0x1b8] sm:$0xff]
        %v5764 = vld [vmem:[%s7 + $0x1c0] sm:$0xff]
        %v5765 = vld [vmem:[%s7 + $0x1c8] sm:$0xff]
        %v5766 = vld [vmem:[%s7 + $0x1d0] sm:$0xff]
        %v5767 = vld [vmem:[%s7 + $0x1d8] sm:$0xff]
        %v5768 = vld [vmem:[%s7 + $0x1e0] sm:$0xff]
        %v5769 = vld [vmem:[%s7 + $0x1e8] sm:$0xff]
        %v5770 = vld [vmem:[%s7 + $0x1f0] sm:$0xff]
        %v5771 = vld [vmem:[%s7 + $0x1f8] sm:$0xff]
        %v5772 = vcombine.high %v5686, %v5686
        %v5773 = vcombine.high %v5694, %v5694
        %vm5774 = vmor %vm2540, %vm2470
        %vm5775 = vmor %vm5774, %vm2474
        %vm5776 = vmor %vm5775, %vm2478
        %v5777 = vrot.slane %v5686, 7
        %v5778 = vrot.slane %v5777, 2
        %v5779 = vrot.slane %v5772, 7
        %v5780 = vsel %vm5776, %v5778, %v5779
        %v5781 = vrot.slane %v5694, 7
        %v5782 = vrot.slane %v5781, 2
        %v5783 = vrot.slane %v5773, 7
        %v5784 = vsel %vm5776, %v5782, %v5783
        %v5785 = vcombine.low %v5780, %v5784
        %v5787 = vunpack.c.l.s4 1983009808
        %v5788 = vunpack.c.0.s8 %v5787
        %v5789 = vlaneseq
        %v5790 = vshrl.u32 %v5789, 7
        %v5791 = vsub.s32 %v5788, %v5790
        %v5792 = vrot.slane %v5785, %v5791
        %v5793 = vcombine.high %v5792, %v5792
        %v5796 = vpack.c.bf16 %v5792, %v5792
        %v5797 = vpack.c.bf16 %v5793, %v5793
        %s5798 = scalar_lea.vmem %s7, 512
        %v5799 = vld [vmem:[%s5798] sm:$0xff]
        %v5800 = vld [vmem:[%s5798 + $0x8] sm:$0xff]
        %v5801 = vld [vmem:[%s5798 + $0x10] sm:$0xff]
        %v5802 = vld [vmem:[%s5798 + $0x18] sm:$0xff]
        %v5803 = vld [vmem:[%s5798 + $0x20] sm:$0xff]
        %v5804 = vld [vmem:[%s5798 + $0x28] sm:$0xff]
        %v5805 = vld [vmem:[%s5798 + $0x30] sm:$0xff]
        %v5806 = vld [vmem:[%s5798 + $0x38] sm:$0xff]
        %v5807 = vld [vmem:[%s5798 + $0x40] sm:$0xff]
        %v5808 = vld [vmem:[%s5798 + $0x48] sm:$0xff]
        %v5809 = vld [vmem:[%s5798 + $0x50] sm:$0xff]
        %v5810 = vld [vmem:[%s5798 + $0x58] sm:$0xff]
        %v5811 = vld [vmem:[%s5798 + $0x60] sm:$0xff]
        %v5812 = vld [vmem:[%s5798 + $0x68] sm:$0xff]
        %v5813 = vld [vmem:[%s5798 + $0x70] sm:$0xff]
        %v5814 = vld [vmem:[%s5798 + $0x78] sm:$0xff]
        %v5815 = vld [vmem:[%s5798 + $0x80] sm:$0xff]
        %v5816 = vld [vmem:[%s5798 + $0x88] sm:$0xff]
        %v5817 = vld [vmem:[%s5798 + $0x90] sm:$0xff]
        %v5818 = vld [vmem:[%s5798 + $0x98] sm:$0xff]
        %v5819 = vld [vmem:[%s5798 + $0xa0] sm:$0xff]
        %v5820 = vld [vmem:[%s5798 + $0xa8] sm:$0xff]
        %v5821 = vld [vmem:[%s5798 + $0xb0] sm:$0xff]
        %v5822 = vld [vmem:[%s5798 + $0xb8] sm:$0xff]
        %v5823 = vld [vmem:[%s5798 + $0xc0] sm:$0xff]
        %v5824 = vld [vmem:[%s5798 + $0xc8] sm:$0xff]
        %v5825 = vld [vmem:[%s5798 + $0xd0] sm:$0xff]
        %v5826 = vld [vmem:[%s5798 + $0xd8] sm:$0xff]
        %v5827 = vld [vmem:[%s5798 + $0xe0] sm:$0xff]
        %v5828 = vld [vmem:[%s5798 + $0xe8] sm:$0xff]
        %v5829 = vld [vmem:[%s5798 + $0xf0] sm:$0xff]
        %v5830 = vld [vmem:[%s5798 + $0xf8] sm:$0xff]
        %v5831 = vld [vmem:[%s5798 + $0x100] sm:$0xff]
        %v5832 = vld [vmem:[%s5798 + $0x108] sm:$0xff]
        %v5833 = vld [vmem:[%s5798 + $0x110] sm:$0xff]
        %v5834 = vld [vmem:[%s5798 + $0x118] sm:$0xff]
        %v5835 = vld [vmem:[%s5798 + $0x120] sm:$0xff]
        %v5836 = vld [vmem:[%s5798 + $0x128] sm:$0xff]
        %v5837 = vld [vmem:[%s5798 + $0x130] sm:$0xff]
        %v5838 = vld [vmem:[%s5798 + $0x138] sm:$0xff]
        %v5839 = vld [vmem:[%s5798 + $0x140] sm:$0xff]
        %v5840 = vld [vmem:[%s5798 + $0x148] sm:$0xff]
        %v5841 = vld [vmem:[%s5798 + $0x150] sm:$0xff]
        %v5842 = vld [vmem:[%s5798 + $0x158] sm:$0xff]
        %v5843 = vld [vmem:[%s5798 + $0x160] sm:$0xff]
        %v5844 = vld [vmem:[%s5798 + $0x168] sm:$0xff]
        %v5845 = vld [vmem:[%s5798 + $0x170] sm:$0xff]
        %v5846 = vld [vmem:[%s5798 + $0x178] sm:$0xff]
        %v5847 = vld [vmem:[%s5798 + $0x180] sm:$0xff]
        %v5848 = vld [vmem:[%s5798 + $0x188] sm:$0xff]
        %v5849 = vld [vmem:[%s5798 + $0x190] sm:$0xff]
        %v5850 = vld [vmem:[%s5798 + $0x198] sm:$0xff]
        %v5851 = vld [vmem:[%s5798 + $0x1a0] sm:$0xff]
        %v5852 = vld [vmem:[%s5798 + $0x1a8] sm:$0xff]
        %v5853 = vld [vmem:[%s5798 + $0x1b0] sm:$0xff]
        %v5854 = vld [vmem:[%s5798 + $0x1b8] sm:$0xff]
        %v5855 = vld [vmem:[%s5798 + $0x1c0] sm:$0xff]
        %v5856 = vld [vmem:[%s5798 + $0x1c8] sm:$0xff]
        %v5857 = vld [vmem:[%s5798 + $0x1d0] sm:$0xff]
        %v5858 = vld [vmem:[%s5798 + $0x1d8] sm:$0xff]
        %v5859 = vld [vmem:[%s5798 + $0x1e0] sm:$0xff]
        %v5860 = vld [vmem:[%s5798 + $0x1e8] sm:$0xff]
        %v5861 = vld [vmem:[%s5798 + $0x1f0] sm:$0xff]
        %v5862 = vld [vmem:[%s5798 + $0x1f8] sm:$0xff]
        %v5927 = vunpack.c.l.b16 %v5799
        %v5928 = vunpack.c.h.b16 %v5799
        %v5929 = vunpack.c.l.b16 %v5800
        %v5930 = vunpack.c.h.b16 %v5800
        %v5931 = vunpack.c.l.b16 %v5801
        %v5932 = vunpack.c.h.b16 %v5801
        %v5933 = vunpack.c.l.b16 %v5802
        %v5934 = vunpack.c.h.b16 %v5802
        %v5935 = vunpack.c.l.b16 %v5803
        %v5936 = vunpack.c.h.b16 %v5803
        %v5937 = vunpack.c.l.b16 %v5804
        %v5938 = vunpack.c.h.b16 %v5804
        %v5939 = vunpack.c.l.b16 %v5805
        %v5940 = vunpack.c.h.b16 %v5805
        %v5941 = vunpack.c.l.b16 %v5806
        %v5942 = vunpack.c.h.b16 %v5806
        %v5943 = vunpack.c.l.b16 %v5807
        %v5944 = vunpack.c.h.b16 %v5807
        %v5945 = vunpack.c.l.b16 %v5808
        %v5946 = vunpack.c.h.b16 %v5808
        %v5947 = vunpack.c.l.b16 %v5809
        %v5948 = vunpack.c.h.b16 %v5809
        %v5949 = vunpack.c.l.b16 %v5810
        %v5950 = vunpack.c.h.b16 %v5810
        %v5951 = vunpack.c.l.b16 %v5811
        %v5952 = vunpack.c.h.b16 %v5811
        %v5953 = vunpack.c.l.b16 %v5812
        %v5954 = vunpack.c.h.b16 %v5812
        %v5955 = vunpack.c.l.b16 %v5813
        %v5956 = vunpack.c.h.b16 %v5813
        %v5957 = vunpack.c.l.b16 %v5814
        %v5958 = vunpack.c.h.b16 %v5814
        %v5959 = vunpack.c.l.b16 %v5815
        %v5960 = vunpack.c.h.b16 %v5815
        %v5961 = vunpack.c.l.b16 %v5816
        %v5962 = vunpack.c.h.b16 %v5816
        %v5963 = vunpack.c.l.b16 %v5817
        %v5964 = vunpack.c.h.b16 %v5817
        %v5965 = vunpack.c.l.b16 %v5818
        %v5966 = vunpack.c.h.b16 %v5818
        %v5967 = vunpack.c.l.b16 %v5819
        %v5968 = vunpack.c.h.b16 %v5819
        %v5969 = vunpack.c.l.b16 %v5820
        %v5970 = vunpack.c.h.b16 %v5820
        %v5971 = vunpack.c.l.b16 %v5821
        %v5972 = vunpack.c.h.b16 %v5821
        %v5973 = vunpack.c.l.b16 %v5822
        %v5974 = vunpack.c.h.b16 %v5822
        %v5975 = vunpack.c.l.b16 %v5823
        %v5976 = vunpack.c.h.b16 %v5823
        %v5977 = vunpack.c.l.b16 %v5824
        %v5978 = vunpack.c.h.b16 %v5824
        %v5979 = vunpack.c.l.b16 %v5825
        %v5980 = vunpack.c.h.b16 %v5825
        %v5981 = vunpack.c.l.b16 %v5826
        %v5982 = vunpack.c.h.b16 %v5826
        %v5983 = vunpack.c.l.b16 %v5827
        %v5984 = vunpack.c.h.b16 %v5827
        %v5985 = vunpack.c.l.b16 %v5828
        %v5986 = vunpack.c.h.b16 %v5828
        %v5987 = vunpack.c.l.b16 %v5829
        %v5988 = vunpack.c.h.b16 %v5829
        %v5989 = vunpack.c.l.b16 %v5830
        %v5990 = vunpack.c.h.b16 %v5830
        %v5991 = vunpack.c.l.b16 %v5831
        %v5992 = vunpack.c.h.b16 %v5831
        %v5993 = vunpack.c.l.b16 %v5832
        %v5994 = vunpack.c.h.b16 %v5832
        %v5995 = vunpack.c.l.b16 %v5833
        %v5996 = vunpack.c.h.b16 %v5833
        %v5997 = vunpack.c.l.b16 %v5834
        %v5998 = vunpack.c.h.b16 %v5834
        %v5999 = vunpack.c.l.b16 %v5835
        %v6000 = vunpack.c.h.b16 %v5835
        %v6001 = vunpack.c.l.b16 %v5836
        %v6002 = vunpack.c.h.b16 %v5836
        %v6003 = vunpack.c.l.b16 %v5837
        %v6004 = vunpack.c.h.b16 %v5837
        %v6005 = vunpack.c.l.b16 %v5838
        %v6006 = vunpack.c.h.b16 %v5838
        %v6007 = vunpack.c.l.b16 %v5839
        %v6008 = vunpack.c.h.b16 %v5839
        %v6009 = vunpack.c.l.b16 %v5840
        %v6010 = vunpack.c.h.b16 %v5840
        %v6011 = vunpack.c.l.b16 %v5841
        %v6012 = vunpack.c.h.b16 %v5841
        %v6013 = vunpack.c.l.b16 %v5842
        %v6014 = vunpack.c.h.b16 %v5842
        %v6015 = vunpack.c.l.b16 %v5843
        %v6016 = vunpack.c.h.b16 %v5843
        %v6017 = vunpack.c.l.b16 %v5844
        %v6018 = vunpack.c.h.b16 %v5844
        %v6019 = vunpack.c.l.b16 %v5845
        %v6020 = vunpack.c.h.b16 %v5845
        %v6021 = vunpack.c.l.b16 %v5846
        %v6022 = vunpack.c.h.b16 %v5846
        %v6023 = vunpack.c.l.b16 %v5847
        %v6024 = vunpack.c.h.b16 %v5847
        %v6025 = vunpack.c.l.b16 %v5848
        %v6026 = vunpack.c.h.b16 %v5848
        %v6027 = vunpack.c.l.b16 %v5849
        %v6028 = vunpack.c.h.b16 %v5849
        %v6029 = vunpack.c.l.b16 %v5850
        %v6030 = vunpack.c.h.b16 %v5850
        %v6031 = vunpack.c.l.b16 %v5851
        %v6032 = vunpack.c.h.b16 %v5851
        %v6033 = vunpack.c.l.b16 %v5852
        %v6034 = vunpack.c.h.b16 %v5852
        %v6035 = vunpack.c.l.b16 %v5853
        %v6036 = vunpack.c.h.b16 %v5853
        %v6037 = vunpack.c.l.b16 %v5854
        %v6038 = vunpack.c.h.b16 %v5854
        %v6039 = vunpack.c.l.b16 %v5855
        %v6040 = vunpack.c.h.b16 %v5855
        %v6041 = vunpack.c.l.b16 %v5856
        %v6042 = vunpack.c.h.b16 %v5856
        %v6043 = vunpack.c.l.b16 %v5857
        %v6044 = vunpack.c.h.b16 %v5857
        %v6045 = vunpack.c.l.b16 %v5858
        %v6046 = vunpack.c.h.b16 %v5858
        %v6047 = vunpack.c.l.b16 %v5859
        %v6048 = vunpack.c.h.b16 %v5859
        %v6049 = vunpack.c.l.b16 %v5860
        %v6050 = vunpack.c.h.b16 %v5860
        %v6051 = vunpack.c.l.b16 %v5861
        %v6052 = vunpack.c.h.b16 %v5861
        %v6053 = vunpack.c.l.b16 %v5862
        %v6054 = vunpack.c.h.b16 %v5862
        %v6055 = vpack.c.b16 %v5931, %v5927
        %v6056 = vpack.c.b16 %v5932, %v5928
        %v6057 = vpack.c.b16 %v5933, %v5929
        %v6058 = vpack.c.b16 %v5934, %v5930
        %v6059 = vpack.c.b16 %v5939, %v5935
        %v6060 = vpack.c.b16 %v5940, %v5936
        %v6061 = vpack.c.b16 %v5941, %v5937
        %v6062 = vpack.c.b16 %v5942, %v5938
        %v6063 = vpack.c.b16 %v5947, %v5943
        %v6064 = vpack.c.b16 %v5948, %v5944
        %v6065 = vpack.c.b16 %v5949, %v5945
        %v6066 = vpack.c.b16 %v5950, %v5946
        %v6067 = vpack.c.b16 %v5955, %v5951
        %v6068 = vpack.c.b16 %v5956, %v5952
        %v6069 = vpack.c.b16 %v5957, %v5953
        %v6070 = vpack.c.b16 %v5958, %v5954
        %v6071 = vpack.c.b16 %v5963, %v5959
        %v6072 = vpack.c.b16 %v5964, %v5960
        %v6073 = vpack.c.b16 %v5965, %v5961
        %v6074 = vpack.c.b16 %v5966, %v5962
        %v6075 = vpack.c.b16 %v5971, %v5967
        %v6076 = vpack.c.b16 %v5972, %v5968
        %v6077 = vpack.c.b16 %v5973, %v5969
        %v6078 = vpack.c.b16 %v5974, %v5970
        %v6079 = vpack.c.b16 %v5979, %v5975
        %v6080 = vpack.c.b16 %v5980, %v5976
        %v6081 = vpack.c.b16 %v5981, %v5977
        %v6082 = vpack.c.b16 %v5982, %v5978
        %v6083 = vpack.c.b16 %v5987, %v5983
        %v6084 = vpack.c.b16 %v5988, %v5984
        %v6085 = vpack.c.b16 %v5989, %v5985
        %v6086 = vpack.c.b16 %v5990, %v5986
        %v6087 = vpack.c.b16 %v5995, %v5991
        %v6088 = vpack.c.b16 %v5996, %v5992
        %v6089 = vpack.c.b16 %v5997, %v5993
        %v6090 = vpack.c.b16 %v5998, %v5994
        %v6091 = vpack.c.b16 %v6003, %v5999
        %v6092 = vpack.c.b16 %v6004, %v6000
        %v6093 = vpack.c.b16 %v6005, %v6001
        %v6094 = vpack.c.b16 %v6006, %v6002
        %v6095 = vpack.c.b16 %v6011, %v6007
        %v6096 = vpack.c.b16 %v6012, %v6008
        %v6097 = vpack.c.b16 %v6013, %v6009
        %v6098 = vpack.c.b16 %v6014, %v6010
        %v6099 = vpack.c.b16 %v6019, %v6015
        %v6100 = vpack.c.b16 %v6020, %v6016
        %v6101 = vpack.c.b16 %v6021, %v6017
        %v6102 = vpack.c.b16 %v6022, %v6018
        %v6103 = vpack.c.b16 %v6027, %v6023
        %v6104 = vpack.c.b16 %v6028, %v6024
        %v6105 = vpack.c.b16 %v6029, %v6025
        %v6106 = vpack.c.b16 %v6030, %v6026
        %v6107 = vpack.c.b16 %v6035, %v6031
        %v6108 = vpack.c.b16 %v6036, %v6032
        %v6109 = vpack.c.b16 %v6037, %v6033
        %v6110 = vpack.c.b16 %v6038, %v6034
        %v6111 = vpack.c.b16 %v6043, %v6039
        %v6112 = vpack.c.b16 %v6044, %v6040
        %v6113 = vpack.c.b16 %v6045, %v6041
        %v6114 = vpack.c.b16 %v6046, %v6042
        %v6115 = vpack.c.b16 %v6051, %v6047
        %v6116 = vpack.c.b16 %v6052, %v6048
        %v6117 = vpack.c.b16 %v6053, %v6049
        %v6118 = vpack.c.b16 %v6054, %v6050
        %6183 = vmatprep.subr.bf16.mxu0 %v6056
        %6184 = vmatpush1.bf16.msra.mxu0 %v6055
        %6185 = vmatprep.subr.bf16.mxu0 %v6060
        %6186 = vmatpush1.bf16.msra.mxu0 %v6059
        %6187 = vmatprep.subr.bf16.mxu0 %v6064
        %6188 = vmatpush1.bf16.msra.mxu0 %v6063
        %6189 = vmatprep.subr.bf16.mxu0 %v6068
        %6190 = vmatpush1.bf16.msra.mxu0 %v6067
        %6191 = vmatprep.subr.bf16.mxu0 %v6072
        %6192 = vmatpush1.bf16.msra.mxu0 %v6071
        %6193 = vmatprep.subr.bf16.mxu0 %v6076
        %6194 = vmatpush1.bf16.msra.mxu0 %v6075
        %6195 = vmatprep.subr.bf16.mxu0 %v6080
        %6196 = vmatpush1.bf16.msra.mxu0 %v6079
        %6197 = vmatprep.subr.bf16.mxu0 %v6084
        %6198 = vmatpush1.bf16.msra.mxu0 %v6083
        %6199 = vmatprep.subr.bf16.mxu0 %v6088
        %6200 = vmatpush1.bf16.msra.mxu0 %v6087
        %6201 = vmatprep.subr.bf16.mxu0 %v6092
        %6202 = vmatpush1.bf16.msra.mxu0 %v6091
        %6203 = vmatprep.subr.bf16.mxu0 %v6096
        %6204 = vmatpush1.bf16.msra.mxu0 %v6095
        %6205 = vmatprep.subr.bf16.mxu0 %v6100
        %6206 = vmatpush1.bf16.msra.mxu0 %v6099
        %6207 = vmatprep.subr.bf16.mxu0 %v6104
        %6208 = vmatpush1.bf16.msra.mxu0 %v6103
        %6209 = vmatprep.subr.bf16.mxu0 %v6108
        %6210 = vmatpush1.bf16.msra.mxu0 %v6107
        %6211 = vmatprep.subr.bf16.mxu0 %v6112
        %6212 = vmatpush1.bf16.msra.mxu0 %v6111
        %6213 = vmatprep.subr.bf16.mxu0 %v6116
        %6214 = vmatpush1.bf16.msra.mxu0 %v6115
        %6215 = vmatprep.mubr.bf16.mxu0 %v5797
        %6216 = vmatmul.mubr.bf16.gmra.mrb[0].mxu0 %v5796
        %v6217 = vpop.f32.mrb[0].mxu0
        %v6218 = vadd.f32 0.0, %v6217
        %v6219 = vpop.f32.mrb[0].mxu0
        %v6220 = vadd.f32 0.0, %v6219
        %v6221 = vpop.f32.mrb[0].mxu0
        %v6222 = vpop.f32.mrb[0].mxu0
        %6223 = vdwg.mxu0
        %6224 = vmatprep.subr.bf16.mxu0 %v6058
        %6225 = vmatpush1.bf16.msra.mxu0 %v6057
        %6226 = vmatprep.subr.bf16.mxu0 %v6062
        %6227 = vmatpush1.bf16.msra.mxu0 %v6061
        %6228 = vmatprep.subr.bf16.mxu0 %v6066
        %6229 = vmatpush1.bf16.msra.mxu0 %v6065
        %6230 = vmatprep.subr.bf16.mxu0 %v6070
        %6231 = vmatpush1.bf16.msra.mxu0 %v6069
        %6232 = vmatprep.subr.bf16.mxu0 %v6074
        %6233 = vmatpush1.bf16.msra.mxu0 %v6073
        %6234 = vmatprep.subr.bf16.mxu0 %v6078
        %6235 = vmatpush1.bf16.msra.mxu0 %v6077
        %6236 = vmatprep.subr.bf16.mxu0 %v6082
        %6237 = vmatpush1.bf16.msra.mxu0 %v6081
        %6238 = vmatprep.subr.bf16.mxu0 %v6086
        %6239 = vmatpush1.bf16.msra.mxu0 %v6085
        %6240 = vmatprep.subr.bf16.mxu0 %v6090
        %6241 = vmatpush1.bf16.msra.mxu0 %v6089
        %6242 = vmatprep.subr.bf16.mxu0 %v6094
        %6243 = vmatpush1.bf16.msra.mxu0 %v6093
        %6244 = vmatprep.subr.bf16.mxu0 %v6098
        %6245 = vmatpush1.bf16.msra.mxu0 %v6097
        %6246 = vmatprep.subr.bf16.mxu0 %v6102
        %6247 = vmatpush1.bf16.msra.mxu0 %v6101
        %6248 = vmatprep.subr.bf16.mxu0 %v6106
        %6249 = vmatpush1.bf16.msra.mxu0 %v6105
        %6250 = vmatprep.subr.bf16.mxu0 %v6110
        %6251 = vmatpush1.bf16.msra.mxu0 %v6109
        %6252 = vmatprep.subr.bf16.mxu0 %v6114
        %6253 = vmatpush1.bf16.msra.mxu0 %v6113
        %6254 = vmatprep.subr.bf16.mxu0 %v6118
        %6255 = vmatpush1.bf16.msra.mxu0 %v6117
        %6256 = vmatprep.mubr.bf16.mxu0 %v5797
        %6257 = vmatmul.mubr.bf16.gmra.mrb[0].mxu0 %v5796
        %v6258 = vpop.f32.mrb[0].mxu0
        %v6259 = vadd.f32 0.0, %v6258
        %v6260 = vpop.f32.mrb[0].mxu0
        %v6261 = vadd.f32 0.0, %v6260
        %v6262 = vpop.f32.mrb[0].mxu0
        %v6263 = vpop.f32.mrb[0].mxu0
        %6264 = vdwg.mxu0
        %v6329 = vunpack.c.l.b16 %v5708
        %v6330 = vunpack.c.h.b16 %v5708
        %v6331 = vunpack.c.l.b16 %v5709
        %v6332 = vunpack.c.h.b16 %v5709
        %v6333 = vunpack.c.l.b16 %v5710
        %v6334 = vunpack.c.h.b16 %v5710
        %v6335 = vunpack.c.l.b16 %v5711
        %v6336 = vunpack.c.h.b16 %v5711
        %v6337 = vunpack.c.l.b16 %v5712
        %v6338 = vunpack.c.h.b16 %v5712
        %v6339 = vunpack.c.l.b16 %v5713
        %v6340 = vunpack.c.h.b16 %v5713
        %v6341 = vunpack.c.l.b16 %v5714
        %v6342 = vunpack.c.h.b16 %v5714
        %v6343 = vunpack.c.l.b16 %v5715
        %v6344 = vunpack.c.h.b16 %v5715
        %v6345 = vunpack.c.l.b16 %v5716
        %v6346 = vunpack.c.h.b16 %v5716
        %v6347 = vunpack.c.l.b16 %v5717
        %v6348 = vunpack.c.h.b16 %v5717
        %v6349 = vunpack.c.l.b16 %v5718
        %v6350 = vunpack.c.h.b16 %v5718
        %v6351 = vunpack.c.l.b16 %v5719
        %v6352 = vunpack.c.h.b16 %v5719
        %v6353 = vunpack.c.l.b16 %v5720
        %v6354 = vunpack.c.h.b16 %v5720
        %v6355 = vunpack.c.l.b16 %v5721
        %v6356 = vunpack.c.h.b16 %v5721
        %v6357 = vunpack.c.l.b16 %v5722
        %v6358 = vunpack.c.h.b16 %v5722
        %v6359 = vunpack.c.l.b16 %v5723
        %v6360 = vunpack.c.h.b16 %v5723
        %v6361 = vunpack.c.l.b16 %v5724
        %v6362 = vunpack.c.h.b16 %v5724
        %v6363 = vunpack.c.l.b16 %v5725
        %v6364 = vunpack.c.h.b16 %v5725
        %v6365 = vunpack.c.l.b16 %v5726
        %v6366 = vunpack.c.h.b16 %v5726
        %v6367 = vunpack.c.l.b16 %v5727
        %v6368 = vunpack.c.h.b16 %v5727
        %v6369 = vunpack.c.l.b16 %v5728
        %v6370 = vunpack.c.h.b16 %v5728
        %v6371 = vunpack.c.l.b16 %v5729
        %v6372 = vunpack.c.h.b16 %v5729
        %v6373 = vunpack.c.l.b16 %v5730
        %v6374 = vunpack.c.h.b16 %v5730
        %v6375 = vunpack.c.l.b16 %v5731
        %v6376 = vunpack.c.h.b16 %v5731
        %v6377 = vunpack.c.l.b16 %v5732
        %v6378 = vunpack.c.h.b16 %v5732
        %v6379 = vunpack.c.l.b16 %v5733
        %v6380 = vunpack.c.h.b16 %v5733
        %v6381 = vunpack.c.l.b16 %v5734
        %v6382 = vunpack.c.h.b16 %v5734
        %v6383 = vunpack.c.l.b16 %v5735
        %v6384 = vunpack.c.h.b16 %v5735
        %v6385 = vunpack.c.l.b16 %v5736
        %v6386 = vunpack.c.h.b16 %v5736
        %v6387 = vunpack.c.l.b16 %v5737
        %v6388 = vunpack.c.h.b16 %v5737
        %v6389 = vunpack.c.l.b16 %v5738
        %v6390 = vunpack.c.h.b16 %v5738
        %v6391 = vunpack.c.l.b16 %v5739
        %v6392 = vunpack.c.h.b16 %v5739
        %v6393 = vunpack.c.l.b16 %v5740
        %v6394 = vunpack.c.h.b16 %v5740
        %v6395 = vunpack.c.l.b16 %v5741
        %v6396 = vunpack.c.h.b16 %v5741
        %v6397 = vunpack.c.l.b16 %v5742
        %v6398 = vunpack.c.h.b16 %v5742
        %v6399 = vunpack.c.l.b16 %v5743
        %v6400 = vunpack.c.h.b16 %v5743
        %v6401 = vunpack.c.l.b16 %v5744
        %v6402 = vunpack.c.h.b16 %v5744
        %v6403 = vunpack.c.l.b16 %v5745
        %v6404 = vunpack.c.h.b16 %v5745
        %v6405 = vunpack.c.l.b16 %v5746
        %v6406 = vunpack.c.h.b16 %v5746
        %v6407 = vunpack.c.l.b16 %v5747
        %v6408 = vunpack.c.h.b16 %v5747
        %v6409 = vunpack.c.l.b16 %v5748
        %v6410 = vunpack.c.h.b16 %v5748
        %v6411 = vunpack.c.l.b16 %v5749
        %v6412 = vunpack.c.h.b16 %v5749
        %v6413 = vunpack.c.l.b16 %v5750
        %v6414 = vunpack.c.h.b16 %v5750
        %v6415 = vunpack.c.l.b16 %v5751
        %v6416 = vunpack.c.h.b16 %v5751
        %v6417 = vunpack.c.l.b16 %v5752
        %v6418 = vunpack.c.h.b16 %v5752
        %v6419 = vunpack.c.l.b16 %v5753
        %v6420 = vunpack.c.h.b16 %v5753
        %v6421 = vunpack.c.l.b16 %v5754
        %v6422 = vunpack.c.h.b16 %v5754
        %v6423 = vunpack.c.l.b16 %v5755
        %v6424 = vunpack.c.h.b16 %v5755
        %v6425 = vunpack.c.l.b16 %v5756
        %v6426 = vunpack.c.h.b16 %v5756
        %v6427 = vunpack.c.l.b16 %v5757
        %v6428 = vunpack.c.h.b16 %v5757
        %v6429 = vunpack.c.l.b16 %v5758
        %v6430 = vunpack.c.h.b16 %v5758
        %v6431 = vunpack.c.l.b16 %v5759
        %v6432 = vunpack.c.h.b16 %v5759
        %v6433 = vunpack.c.l.b16 %v5760
        %v6434 = vunpack.c.h.b16 %v5760
        %v6435 = vunpack.c.l.b16 %v5761
        %v6436 = vunpack.c.h.b16 %v5761
        %v6437 = vunpack.c.l.b16 %v5762
        %v6438 = vunpack.c.h.b16 %v5762
        %v6439 = vunpack.c.l.b16 %v5763
        %v6440 = vunpack.c.h.b16 %v5763
        %v6441 = vunpack.c.l.b16 %v5764
        %v6442 = vunpack.c.h.b16 %v5764
        %v6443 = vunpack.c.l.b16 %v5765
        %v6444 = vunpack.c.h.b16 %v5765
        %v6445 = vunpack.c.l.b16 %v5766
        %v6446 = vunpack.c.h.b16 %v5766
        %v6447 = vunpack.c.l.b16 %v5767
        %v6448 = vunpack.c.h.b16 %v5767
        %v6449 = vunpack.c.l.b16 %v5768
        %v6450 = vunpack.c.h.b16 %v5768
        %v6451 = vunpack.c.l.b16 %v5769
        %v6452 = vunpack.c.h.b16 %v5769
        %v6453 = vunpack.c.l.b16 %v5770
        %v6454 = vunpack.c.h.b16 %v5770
        %v6455 = vunpack.c.l.b16 %v5771
        %v6456 = vunpack.c.h.b16 %v5771
        %v6457 = vpack.c.b16 %v6333, %v6329
        %v6458 = vpack.c.b16 %v6334, %v6330
        %v6459 = vpack.c.b16 %v6335, %v6331
        %v6460 = vpack.c.b16 %v6336, %v6332
        %v6461 = vpack.c.b16 %v6341, %v6337
        %v6462 = vpack.c.b16 %v6342, %v6338
        %v6463 = vpack.c.b16 %v6343, %v6339
        %v6464 = vpack.c.b16 %v6344, %v6340
        %v6465 = vpack.c.b16 %v6349, %v6345
        %v6466 = vpack.c.b16 %v6350, %v6346
        %v6467 = vpack.c.b16 %v6351, %v6347
        %v6468 = vpack.c.b16 %v6352, %v6348
        %v6469 = vpack.c.b16 %v6357, %v6353
        %v6470 = vpack.c.b16 %v6358, %v6354
        %v6471 = vpack.c.b16 %v6359, %v6355
        %v6472 = vpack.c.b16 %v6360, %v6356
        %v6473 = vpack.c.b16 %v6365, %v6361
        %v6474 = vpack.c.b16 %v6366, %v6362
        %v6475 = vpack.c.b16 %v6367, %v6363
        %v6476 = vpack.c.b16 %v6368, %v6364
        %v6477 = vpack.c.b16 %v6373, %v6369
        %v6478 = vpack.c.b16 %v6374, %v6370
        %v6479 = vpack.c.b16 %v6375, %v6371
        %v6480 = vpack.c.b16 %v6376, %v6372
        %v6481 = vpack.c.b16 %v6381, %v6377
        %v6482 = vpack.c.b16 %v6382, %v6378
        %v6483 = vpack.c.b16 %v6383, %v6379
        %v6484 = vpack.c.b16 %v6384, %v6380
        %v6485 = vpack.c.b16 %v6389, %v6385
        %v6486 = vpack.c.b16 %v6390, %v6386
        %v6487 = vpack.c.b16 %v6391, %v6387
        %v6488 = vpack.c.b16 %v6392, %v6388
        %v6489 = vpack.c.b16 %v6397, %v6393
        %v6490 = vpack.c.b16 %v6398, %v6394
        %v6491 = vpack.c.b16 %v6399, %v6395
        %v6492 = vpack.c.b16 %v6400, %v6396
        %v6493 = vpack.c.b16 %v6405, %v6401
        %v6494 = vpack.c.b16 %v6406, %v6402
        %v6495 = vpack.c.b16 %v6407, %v6403
        %v6496 = vpack.c.b16 %v6408, %v6404
        %v6497 = vpack.c.b16 %v6413, %v6409
        %v6498 = vpack.c.b16 %v6414, %v6410
        %v6499 = vpack.c.b16 %v6415, %v6411
        %v6500 = vpack.c.b16 %v6416, %v6412
        %v6501 = vpack.c.b16 %v6421, %v6417
        %v6502 = vpack.c.b16 %v6422, %v6418
        %v6503 = vpack.c.b16 %v6423, %v6419
        %v6504 = vpack.c.b16 %v6424, %v6420
        %v6505 = vpack.c.b16 %v6429, %v6425
        %v6506 = vpack.c.b16 %v6430, %v6426
        %v6507 = vpack.c.b16 %v6431, %v6427
        %v6508 = vpack.c.b16 %v6432, %v6428
        %v6509 = vpack.c.b16 %v6437, %v6433
        %v6510 = vpack.c.b16 %v6438, %v6434
        %v6511 = vpack.c.b16 %v6439, %v6435
        %v6512 = vpack.c.b16 %v6440, %v6436
        %v6513 = vpack.c.b16 %v6445, %v6441
        %v6514 = vpack.c.b16 %v6446, %v6442
        %v6515 = vpack.c.b16 %v6447, %v6443
        %v6516 = vpack.c.b16 %v6448, %v6444
        %v6517 = vpack.c.b16 %v6453, %v6449
        %v6518 = vpack.c.b16 %v6454, %v6450
        %v6519 = vpack.c.b16 %v6455, %v6451
        %v6520 = vpack.c.b16 %v6456, %v6452
        %6585 = vmatprep.subr.bf16.mxu0 %v6458
        %6586 = vmatpush1.bf16.msra.mxu0 %v6457
        %6587 = vmatprep.subr.bf16.mxu0 %v6462
        %6588 = vmatpush1.bf16.msra.mxu0 %v6461
        %6589 = vmatprep.subr.bf16.mxu0 %v6466
        %6590 = vmatpush1.bf16.msra.mxu0 %v6465
        %6591 = vmatprep.subr.bf16.mxu0 %v6470
        %6592 = vmatpush1.bf16.msra.mxu0 %v6469
        %6593 = vmatprep.subr.bf16.mxu0 %v6474
        %6594 = vmatpush1.bf16.msra.mxu0 %v6473
        %6595 = vmatprep.subr.bf16.mxu0 %v6478
        %6596 = vmatpush1.bf16.msra.mxu0 %v6477
        %6597 = vmatprep.subr.bf16.mxu0 %v6482
        %6598 = vmatpush1.bf16.msra.mxu0 %v6481
        %6599 = vmatprep.subr.bf16.mxu0 %v6486
        %6600 = vmatpush1.bf16.msra.mxu0 %v6485
        %6601 = vmatprep.subr.bf16.mxu0 %v6490
        %6602 = vmatpush1.bf16.msra.mxu0 %v6489
        %6603 = vmatprep.subr.bf16.mxu0 %v6494
        %6604 = vmatpush1.bf16.msra.mxu0 %v6493
        %6605 = vmatprep.subr.bf16.mxu0 %v6498
        %6606 = vmatpush1.bf16.msra.mxu0 %v6497
        %6607 = vmatprep.subr.bf16.mxu0 %v6502
        %6608 = vmatpush1.bf16.msra.mxu0 %v6501
        %6609 = vmatprep.subr.bf16.mxu0 %v6506
        %6610 = vmatpush1.bf16.msra.mxu0 %v6505
        %6611 = vmatprep.subr.bf16.mxu0 %v6510
        %6612 = vmatpush1.bf16.msra.mxu0 %v6509
        %6613 = vmatprep.subr.bf16.mxu0 %v6514
        %6614 = vmatpush1.bf16.msra.mxu0 %v6513
        %6615 = vmatprep.subr.bf16.mxu0 %v6518
        %6616 = vmatpush1.bf16.msra.mxu0 %v6517
        %6617 = vmatprep.mubr.bf16.mxu0 %v5707
        %6618 = vmatmul.mubr.bf16.gmra.mrb[0].mxu0 %v5706
        %v6619 = vpop.f32.mrb[0].mxu0
        %v6620 = vadd.f32 %v6218, %v6619
        %v6621 = vpop.f32.mrb[0].mxu0
        %v6622 = vadd.f32 %v6220, %v6621
        %v6623 = vpop.f32.mrb[0].mxu0
        %v6624 = vpop.f32.mrb[0].mxu0
        %6625 = vdwg.mxu0
        %6626 = vmatprep.subr.bf16.mxu0 %v6460
        %6627 = vmatpush1.bf16.msra.mxu0 %v6459
        %6628 = vmatprep.subr.bf16.mxu0 %v6464
        %6629 = vmatpush1.bf16.msra.mxu0 %v6463
        %6630 = vmatprep.subr.bf16.mxu0 %v6468
        %6631 = vmatpush1.bf16.msra.mxu0 %v6467
        %6632 = vmatprep.subr.bf16.mxu0 %v6472
        %6633 = vmatpush1.bf16.msra.mxu0 %v6471
        %6634 = vmatprep.subr.bf16.mxu0 %v6476
        %6635 = vmatpush1.bf16.msra.mxu0 %v6475
        %6636 = vmatprep.subr.bf16.mxu0 %v6480
        %6637 = vmatpush1.bf16.msra.mxu0 %v6479
        %6638 = vmatprep.subr.bf16.mxu0 %v6484
        %6639 = vmatpush1.bf16.msra.mxu0 %v6483
        %6640 = vmatprep.subr.bf16.mxu0 %v6488
        %6641 = vmatpush1.bf16.msra.mxu0 %v6487
        %6642 = vmatprep.subr.bf16.mxu0 %v6492
        %6643 = vmatpush1.bf16.msra.mxu0 %v6491
        %6644 = vmatprep.subr.bf16.mxu0 %v6496
        %6645 = vmatpush1.bf16.msra.mxu0 %v6495
        %6646 = vmatprep.subr.bf16.mxu0 %v6500
        %6647 = vmatpush1.bf16.msra.mxu0 %v6499
        %6648 = vmatprep.subr.bf16.mxu0 %v6504
        %6649 = vmatpush1.bf16.msra.mxu0 %v6503
        %6650 = vmatprep.subr.bf16.mxu0 %v6508
        %6651 = vmatpush1.bf16.msra.mxu0 %v6507
        %6652 = vmatprep.subr.bf16.mxu0 %v6512
        %6653 = vmatpush1.bf16.msra.mxu0 %v6511
        %6654 = vmatprep.subr.bf16.mxu0 %v6516
        %6655 = vmatpush1.bf16.msra.mxu0 %v6515
        %6656 = vmatprep.subr.bf16.mxu0 %v6520
        %6657 = vmatpush1.bf16.msra.mxu0 %v6519
        %6658 = vmatprep.mubr.bf16.mxu0 %v5707
        %6659 = vmatmul.mubr.bf16.gmra.mrb[0].mxu0 %v5706
        %v6660 = vpop.f32.mrb[0].mxu0
        %v6661 = vadd.f32 %v6259, %v6660
        %v6662 = vpop.f32.mrb[0].mxu0
        %v6663 = vadd.f32 %v6261, %v6662
        %v6664 = vpop.f32.mrb[0].mxu0
        %v6665 = vpop.f32.mrb[0].mxu0
        %6666 = vdwg.mxu0
        %v6667 = vcombine.low %v5772, %v5773
        %v6669 = vunpack.c.l.s4 1983009808
        %v6670 = vunpack.c.0.s8 %v6669
        %v6671 = vlaneseq
        %v6672 = vshrl.u32 %v6671, 7
        %v6673 = vsub.s32 %v6670, %v6672
        %v6674 = vrot.slane %v6667, %v6673
        %v6675 = vcombine.high %v6674, %v6674
        %v6678 = vpack.c.bf16 %v6674, %v6674
        %v6679 = vpack.c.bf16 %v6675, %v6675
        %s6680 = scalar_lea.vmem %s7, 1024
        %v6681 = vld [vmem:[%s6680] sm:$0xff]
        %v6682 = vld [vmem:[%s6680 + $0x8] sm:$0xff]
        %v6683 = vld [vmem:[%s6680 + $0x10] sm:$0xff]
        %v6684 = vld [vmem:[%s6680 + $0x18] sm:$0xff]
        %v6685 = vld [vmem:[%s6680 + $0x20] sm:$0xff]
        %v6686 = vld [vmem:[%s6680 + $0x28] sm:$0xff]
        %v6687 = vld [vmem:[%s6680 + $0x30] sm:$0xff]
        %v6688 = vld [vmem:[%s6680 + $0x38] sm:$0xff]
        %v6689 = vld [vmem:[%s6680 + $0x40] sm:$0xff]
        %v6690 = vld [vmem:[%s6680 + $0x48] sm:$0xff]
        %v6691 = vld [vmem:[%s6680 + $0x50] sm:$0xff]
        %v6692 = vld [vmem:[%s6680 + $0x58] sm:$0xff]
        %v6693 = vld [vmem:[%s6680 + $0x60] sm:$0xff]
        %v6694 = vld [vmem:[%s6680 + $0x68] sm:$0xff]
        %v6695 = vld [vmem:[%s6680 + $0x70] sm:$0xff]
        %v6696 = vld [vmem:[%s6680 + $0x78] sm:$0xff]
        %v6697 = vld [vmem:[%s6680 + $0x80] sm:$0xff]
        %v6698 = vld [vmem:[%s6680 + $0x88] sm:$0xff]
        %v6699 = vld [vmem:[%s6680 + $0x90] sm:$0xff]
        %v6700 = vld [vmem:[%s6680 + $0x98] sm:$0xff]
        %v6701 = vld [vmem:[%s6680 + $0xa0] sm:$0xff]
        %v6702 = vld [vmem:[%s6680 + $0xa8] sm:$0xff]
        %v6703 = vld [vmem:[%s6680 + $0xb0] sm:$0xff]
        %v6704 = vld [vmem:[%s6680 + $0xb8] sm:$0xff]
        %v6705 = vld [vmem:[%s6680 + $0xc0] sm:$0xff]
        %v6706 = vld [vmem:[%s6680 + $0xc8] sm:$0xff]
        %v6707 = vld [vmem:[%s6680 + $0xd0] sm:$0xff]
        %v6708 = vld [vmem:[%s6680 + $0xd8] sm:$0xff]
        %v6709 = vld [vmem:[%s6680 + $0xe0] sm:$0xff]
        %v6710 = vld [vmem:[%s6680 + $0xe8] sm:$0xff]
        %v6711 = vld [vmem:[%s6680 + $0xf0] sm:$0xff]
        %v6712 = vld [vmem:[%s6680 + $0xf8] sm:$0xff]
        %v6713 = vld [vmem:[%s6680 + $0x100] sm:$0xff]
        %v6714 = vld [vmem:[%s6680 + $0x108] sm:$0xff]
        %v6715 = vld [vmem:[%s6680 + $0x110] sm:$0xff]
        %v6716 = vld [vmem:[%s6680 + $0x118] sm:$0xff]
        %v6717 = vld [vmem:[%s6680 + $0x120] sm:$0xff]
        %v6718 = vld [vmem:[%s6680 + $0x128] sm:$0xff]
        %v6719 = vld [vmem:[%s6680 + $0x130] sm:$0xff]
        %v6720 = vld [vmem:[%s6680 + $0x138] sm:$0xff]
        %v6721 = vld [vmem:[%s6680 + $0x140] sm:$0xff]
        %v6722 = vld [vmem:[%s6680 + $0x148] sm:$0xff]
        %v6723 = vld [vmem:[%s6680 + $0x150] sm:$0xff]
        %v6724 = vld [vmem:[%s6680 + $0x158] sm:$0xff]
        %v6725 = vld [vmem:[%s6680 + $0x160] sm:$0xff]
        %v6726 = vld [vmem:[%s6680 + $0x168] sm:$0xff]
        %v6727 = vld [vmem:[%s6680 + $0x170] sm:$0xff]
        %v6728 = vld [vmem:[%s6680 + $0x178] sm:$0xff]
        %v6729 = vld [vmem:[%s6680 + $0x180] sm:$0xff]
        %v6730 = vld [vmem:[%s6680 + $0x188] sm:$0xff]
        %v6731 = vld [vmem:[%s6680 + $0x190] sm:$0xff]
        %v6732 = vld [vmem:[%s6680 + $0x198] sm:$0xff]
        %v6733 = vld [vmem:[%s6680 + $0x1a0] sm:$0xff]
        %v6734 = vld [vmem:[%s6680 + $0x1a8] sm:$0xff]
        %v6735 = vld [vmem:[%s6680 + $0x1b0] sm:$0xff]
        %v6736 = vld [vmem:[%s6680 + $0x1b8] sm:$0xff]
        %v6737 = vld [vmem:[%s6680 + $0x1c0] sm:$0xff]
        %v6738 = vld [vmem:[%s6680 + $0x1c8] sm:$0xff]
        %v6739 = vld [vmem:[%s6680 + $0x1d0] sm:$0xff]
        %v6740 = vld [vmem:[%s6680 + $0x1d8] sm:$0xff]
        %v6741 = vld [vmem:[%s6680 + $0x1e0] sm:$0xff]
        %v6742 = vld [vmem:[%s6680 + $0x1e8] sm:$0xff]
        %v6743 = vld [vmem:[%s6680 + $0x1f0] sm:$0xff]
        %v6744 = vld [vmem:[%s6680 + $0x1f8] sm:$0xff]
        %v6809 = vunpack.c.l.b16 %v6681
        %v6810 = vunpack.c.h.b16 %v6681
        %v6811 = vunpack.c.l.b16 %v6682
        %v6812 = vunpack.c.h.b16 %v6682
        %v6813 = vunpack.c.l.b16 %v6683
        %v6814 = vunpack.c.h.b16 %v6683
        %v6815 = vunpack.c.l.b16 %v6684
        %v6816 = vunpack.c.h.b16 %v6684
        %v6817 = vunpack.c.l.b16 %v6685
        %v6818 = vunpack.c.h.b16 %v6685
        %v6819 = vunpack.c.l.b16 %v6686
        %v6820 = vunpack.c.h.b16 %v6686
        %v6821 = vunpack.c.l.b16 %v6687
        %v6822 = vunpack.c.h.b16 %v6687
        %v6823 = vunpack.c.l.b16 %v6688
        %v6824 = vunpack.c.h.b16 %v6688
        %v6825 = vunpack.c.l.b16 %v6689
        %v6826 = vunpack.c.h.b16 %v6689
        %v6827 = vunpack.c.l.b16 %v6690
        %v6828 = vunpack.c.h.b16 %v6690
        %v6829 = vunpack.c.l.b16 %v6691
        %v6830 = vunpack.c.h.b16 %v6691
        %v6831 = vunpack.c.l.b16 %v6692
        %v6832 = vunpack.c.h.b16 %v6692
        %v6833 = vunpack.c.l.b16 %v6693
        %v6834 = vunpack.c.h.b16 %v6693
        %v6835 = vunpack.c.l.b16 %v6694
        %v6836 = vunpack.c.h.b16 %v6694
        %v6837 = vunpack.c.l.b16 %v6695
        %v6838 = vunpack.c.h.b16 %v6695
        %v6839 = vunpack.c.l.b16 %v6696
        %v6840 = vunpack.c.h.b16 %v6696
        %v6841 = vunpack.c.l.b16 %v6697
        %v6842 = vunpack.c.h.b16 %v6697
        %v6843 = vunpack.c.l.b16 %v6698
        %v6844 = vunpack.c.h.b16 %v6698
        %v6845 = vunpack.c.l.b16 %v6699
        %v6846 = vunpack.c.h.b16 %v6699
        %v6847 = vunpack.c.l.b16 %v6700
        %v6848 = vunpack.c.h.b16 %v6700
        %v6849 = vunpack.c.l.b16 %v6701
        %v6850 = vunpack.c.h.b16 %v6701
        %v6851 = vunpack.c.l.b16 %v6702
        %v6852 = vunpack.c.h.b16 %v6702
        %v6853 = vunpack.c.l.b16 %v6703
        %v6854 = vunpack.c.h.b16 %v6703
        %v6855 = vunpack.c.l.b16 %v6704
        %v6856 = vunpack.c.h.b16 %v6704
        %v6857 = vunpack.c.l.b16 %v6705
        %v6858 = vunpack.c.h.b16 %v6705
        %v6859 = vunpack.c.l.b16 %v6706
        %v6860 = vunpack.c.h.b16 %v6706
        %v6861 = vunpack.c.l.b16 %v6707
        %v6862 = vunpack.c.h.b16 %v6707
        %v6863 = vunpack.c.l.b16 %v6708
        %v6864 = vunpack.c.h.b16 %v6708
        %v6865 = vunpack.c.l.b16 %v6709
        %v6866 = vunpack.c.h.b16 %v6709
        %v6867 = vunpack.c.l.b16 %v6710
        %v6868 = vunpack.c.h.b16 %v6710
        %v6869 = vunpack.c.l.b16 %v6711
        %v6870 = vunpack.c.h.b16 %v6711
        %v6871 = vunpack.c.l.b16 %v6712
        %v6872 = vunpack.c.h.b16 %v6712
        %v6873 = vunpack.c.l.b16 %v6713
        %v6874 = vunpack.c.h.b16 %v6713
        %v6875 = vunpack.c.l.b16 %v6714
        %v6876 = vunpack.c.h.b16 %v6714
        %v6877 = vunpack.c.l.b16 %v6715
        %v6878 = vunpack.c.h.b16 %v6715
        %v6879 = vunpack.c.l.b16 %v6716
        %v6880 = vunpack.c.h.b16 %v6716
        %v6881 = vunpack.c.l.b16 %v6717
        %v6882 = vunpack.c.h.b16 %v6717
        %v6883 = vunpack.c.l.b16 %v6718
        %v6884 = vunpack.c.h.b16 %v6718
        %v6885 = vunpack.c.l.b16 %v6719
        %v6886 = vunpack.c.h.b16 %v6719
        %v6887 = vunpack.c.l.b16 %v6720
        %v6888 = vunpack.c.h.b16 %v6720
        %v6889 = vunpack.c.l.b16 %v6721
        %v6890 = vunpack.c.h.b16 %v6721
        %v6891 = vunpack.c.l.b16 %v6722
        %v6892 = vunpack.c.h.b16 %v6722
        %v6893 = vunpack.c.l.b16 %v6723
        %v6894 = vunpack.c.h.b16 %v6723
        %v6895 = vunpack.c.l.b16 %v6724
        %v6896 = vunpack.c.h.b16 %v6724
        %v6897 = vunpack.c.l.b16 %v6725
        %v6898 = vunpack.c.h.b16 %v6725
        %v6899 = vunpack.c.l.b16 %v6726
        %v6900 = vunpack.c.h.b16 %v6726
        %v6901 = vunpack.c.l.b16 %v6727
        %v6902 = vunpack.c.h.b16 %v6727
        %v6903 = vunpack.c.l.b16 %v6728
        %v6904 = vunpack.c.h.b16 %v6728
        %v6905 = vunpack.c.l.b16 %v6729
        %v6906 = vunpack.c.h.b16 %v6729
        %v6907 = vunpack.c.l.b16 %v6730
        %v6908 = vunpack.c.h.b16 %v6730
        %v6909 = vunpack.c.l.b16 %v6731
        %v6910 = vunpack.c.h.b16 %v6731
        %v6911 = vunpack.c.l.b16 %v6732
        %v6912 = vunpack.c.h.b16 %v6732
        %v6913 = vunpack.c.l.b16 %v6733
        %v6914 = vunpack.c.h.b16 %v6733
        %v6915 = vunpack.c.l.b16 %v6734
        %v6916 = vunpack.c.h.b16 %v6734
        %v6917 = vunpack.c.l.b16 %v6735
        %v6918 = vunpack.c.h.b16 %v6735
        %v6919 = vunpack.c.l.b16 %v6736
        %v6920 = vunpack.c.h.b16 %v6736
        %v6921 = vunpack.c.l.b16 %v6737
        %v6922 = vunpack.c.h.b16 %v6737
        %v6923 = vunpack.c.l.b16 %v6738
        %v6924 = vunpack.c.h.b16 %v6738
        %v6925 = vunpack.c.l.b16 %v6739
        %v6926 = vunpack.c.h.b16 %v6739
        %v6927 = vunpack.c.l.b16 %v6740
        %v6928 = vunpack.c.h.b16 %v6740
        %v6929 = vunpack.c.l.b16 %v6741
        %v6930 = vunpack.c.h.b16 %v6741
        %v6931 = vunpack.c.l.b16 %v6742
        %v6932 = vunpack.c.h.b16 %v6742
        %v6933 = vunpack.c.l.b16 %v6743
        %v6934 = vunpack.c.h.b16 %v6743
        %v6935 = vunpack.c.l.b16 %v6744
        %v6936 = vunpack.c.h.b16 %v6744
        %v6937 = vpack.c.b16 %v6813, %v6809
        %v6938 = vpack.c.b16 %v6814, %v6810
        %v6939 = vpack.c.b16 %v6815, %v6811
        %v6940 = vpack.c.b16 %v6816, %v6812
        %v6941 = vpack.c.b16 %v6821, %v6817
        %v6942 = vpack.c.b16 %v6822, %v6818
        %v6943 = vpack.c.b16 %v6823, %v6819
        %v6944 = vpack.c.b16 %v6824, %v6820
        %v6945 = vpack.c.b16 %v6829, %v6825
        %v6946 = vpack.c.b16 %v6830, %v6826
        %v6947 = vpack.c.b16 %v6831, %v6827
        %v6948 = vpack.c.b16 %v6832, %v6828
        %v6949 = vpack.c.b16 %v6837, %v6833
        %v6950 = vpack.c.b16 %v6838, %v6834
        %v6951 = vpack.c.b16 %v6839, %v6835
        %v6952 = vpack.c.b16 %v6840, %v6836
        %v6953 = vpack.c.b16 %v6845, %v6841
        %v6954 = vpack.c.b16 %v6846, %v6842
        %v6955 = vpack.c.b16 %v6847, %v6843
        %v6956 = vpack.c.b16 %v6848, %v6844
        %v6957 = vpack.c.b16 %v6853, %v6849
        %v6958 = vpack.c.b16 %v6854, %v6850
        %v6959 = vpack.c.b16 %v6855, %v6851
        %v6960 = vpack.c.b16 %v6856, %v6852
        %v6961 = vpack.c.b16 %v6861, %v6857
        %v6962 = vpack.c.b16 %v6862, %v6858
        %v6963 = vpack.c.b16 %v6863, %v6859
        %v6964 = vpack.c.b16 %v6864, %v6860
        %v6965 = vpack.c.b16 %v6869, %v6865
        %v6966 = vpack.c.b16 %v6870, %v6866
        %v6967 = vpack.c.b16 %v6871, %v6867
        %v6968 = vpack.c.b16 %v6872, %v6868
        %v6969 = vpack.c.b16 %v6877, %v6873
        %v6970 = vpack.c.b16 %v6878, %v6874
        %v6971 = vpack.c.b16 %v6879, %v6875
        %v6972 = vpack.c.b16 %v6880, %v6876
        %v6973 = vpack.c.b16 %v6885, %v6881
        %v6974 = vpack.c.b16 %v6886, %v6882
        %v6975 = vpack.c.b16 %v6887, %v6883
        %v6976 = vpack.c.b16 %v6888, %v6884
        %v6977 = vpack.c.b16 %v6893, %v6889
        %v6978 = vpack.c.b16 %v6894, %v6890
        %v6979 = vpack.c.b16 %v6895, %v6891
        %v6980 = vpack.c.b16 %v6896, %v6892
        %v6981 = vpack.c.b16 %v6901, %v6897
        %v6982 = vpack.c.b16 %v6902, %v6898
        %v6983 = vpack.c.b16 %v6903, %v6899
        %v6984 = vpack.c.b16 %v6904, %v6900
        %v6985 = vpack.c.b16 %v6909, %v6905
        %v6986 = vpack.c.b16 %v6910, %v6906
        %v6987 = vpack.c.b16 %v6911, %v6907
        %v6988 = vpack.c.b16 %v6912, %v6908
        %v6989 = vpack.c.b16 %v6917, %v6913
        %v6990 = vpack.c.b16 %v6918, %v6914
        %v6991 = vpack.c.b16 %v6919, %v6915
        %v6992 = vpack.c.b16 %v6920, %v6916
        %v6993 = vpack.c.b16 %v6925, %v6921
        %v6994 = vpack.c.b16 %v6926, %v6922
        %v6995 = vpack.c.b16 %v6927, %v6923
        %v6996 = vpack.c.b16 %v6928, %v6924
        %v6997 = vpack.c.b16 %v6933, %v6929
        %v6998 = vpack.c.b16 %v6934, %v6930
        %v6999 = vpack.c.b16 %v6935, %v6931
        %v7000 = vpack.c.b16 %v6936, %v6932
        %7065 = vmatprep.subr.bf16.mxu0 %v6938
        %7066 = vmatpush1.bf16.msra.mxu0 %v6937
        %7067 = vmatprep.subr.bf16.mxu0 %v6942
        %7068 = vmatpush1.bf16.msra.mxu0 %v6941
        %7069 = vmatprep.subr.bf16.mxu0 %v6946
        %7070 = vmatpush1.bf16.msra.mxu0 %v6945
        %7071 = vmatprep.subr.bf16.mxu0 %v6950
        %7072 = vmatpush1.bf16.msra.mxu0 %v6949
        %7073 = vmatprep.subr.bf16.mxu0 %v6954
        %7074 = vmatpush1.bf16.msra.mxu0 %v6953
        %7075 = vmatprep.subr.bf16.mxu0 %v6958
        %7076 = vmatpush1.bf16.msra.mxu0 %v6957
        %7077 = vmatprep.subr.bf16.mxu0 %v6962
        %7078 = vmatpush1.bf16.msra.mxu0 %v6961
        %7079 = vmatprep.subr.bf16.mxu0 %v6966
        %7080 = vmatpush1.bf16.msra.mxu0 %v6965
        %7081 = vmatprep.subr.bf16.mxu0 %v6970
        %7082 = vmatpush1.bf16.msra.mxu0 %v6969
        %7083 = vmatprep.subr.bf16.mxu0 %v6974
        %7084 = vmatpush1.bf16.msra.mxu0 %v6973
        %7085 = vmatprep.subr.bf16.mxu0 %v6978
        %7086 = vmatpush1.bf16.msra.mxu0 %v6977
        %7087 = vmatprep.subr.bf16.mxu0 %v6982
        %7088 = vmatpush1.bf16.msra.mxu0 %v6981
        %7089 = vmatprep.subr.bf16.mxu0 %v6986
        %7090 = vmatpush1.bf16.msra.mxu0 %v6985
        %7091 = vmatprep.subr.bf16.mxu0 %v6990
        %7092 = vmatpush1.bf16.msra.mxu0 %v6989
        %7093 = vmatprep.subr.bf16.mxu0 %v6994
        %7094 = vmatpush1.bf16.msra.mxu0 %v6993
        %7095 = vmatprep.subr.bf16.mxu0 %v6998
        %7096 = vmatpush1.bf16.msra.mxu0 %v6997
        %7097 = vmatprep.mubr.bf16.mxu0 %v6679
        %7098 = vmatmul.mubr.bf16.gmra.mrb[0].mxu0 %v6678
        %v7099 = vpop.f32.mrb[0].mxu0
        %v7100 = vadd.f32 0.0, %v7099
        %v7101 = vpop.f32.mrb[0].mxu0
        %v7102 = vadd.f32 0.0, %v7101
        %v7103 = vpop.f32.mrb[0].mxu0
        %v7104 = vpop.f32.mrb[0].mxu0
        %7105 = vdwg.mxu0
        %7106 = vmatprep.subr.bf16.mxu0 %v6940
        %7107 = vmatpush1.bf16.msra.mxu0 %v6939
        %7108 = vmatprep.subr.bf16.mxu0 %v6944
        %7109 = vmatpush1.bf16.msra.mxu0 %v6943
        %7110 = vmatprep.subr.bf16.mxu0 %v6948
        %7111 = vmatpush1.bf16.msra.mxu0 %v6947
        %7112 = vmatprep.subr.bf16.mxu0 %v6952
        %7113 = vmatpush1.bf16.msra.mxu0 %v6951
        %7114 = vmatprep.subr.bf16.mxu0 %v6956
        %7115 = vmatpush1.bf16.msra.mxu0 %v6955
        %7116 = vmatprep.subr.bf16.mxu0 %v6960
        %7117 = vmatpush1.bf16.msra.mxu0 %v6959
        %7118 = vmatprep.subr.bf16.mxu0 %v6964
        %7119 = vmatpush1.bf16.msra.mxu0 %v6963
        %7120 = vmatprep.subr.bf16.mxu0 %v6968
        %7121 = vmatpush1.bf16.msra.mxu0 %v6967
        %7122 = vmatprep.subr.bf16.mxu0 %v6972
        %7123 = vmatpush1.bf16.msra.mxu0 %v6971
        %7124 = vmatprep.subr.bf16.mxu0 %v6976
        %7125 = vmatpush1.bf16.msra.mxu0 %v6975
        %7126 = vmatprep.subr.bf16.mxu0 %v6980
        %7127 = vmatpush1.bf16.msra.mxu0 %v6979
        %7128 = vmatprep.subr.bf16.mxu0 %v6984
        %7129 = vmatpush1.bf16.msra.mxu0 %v6983
        %7130 = vmatprep.subr.bf16.mxu0 %v6988
        %7131 = vmatpush1.bf16.msra.mxu0 %v6987
        %7132 = vmatprep.subr.bf16.mxu0 %v6992
        %7133 = vmatpush1.bf16.msra.mxu0 %v6991
        %7134 = vmatprep.subr.bf16.mxu0 %v6996
        %7135 = vmatpush1.bf16.msra.mxu0 %v6995
        %7136 = vmatprep.subr.bf16.mxu0 %v7000
        %7137 = vmatpush1.bf16.msra.mxu0 %v6999
        %7138 = vmatprep.mubr.bf16.mxu0 %v6679
        %7139 = vmatmul.mubr.bf16.gmra.mrb[0].mxu0 %v6678
        %v7140 = vpop.f32.mrb[0].mxu0
        %v7141 = vadd.f32 0.0, %v7140
        %v7142 = vpop.f32.mrb[0].mxu0
        %v7143 = vadd.f32 0.0, %v7142
        %v7144 = vpop.f32.mrb[0].mxu0
        %v7145 = vpop.f32.mrb[0].mxu0
        %7146 = vdwg.mxu0
        %v7147 = vadd.f32 %v6620, %v7100
        %v7148 = vadd.f32 %v6622, %v7102
        %v7149 = vadd.f32 %v6661, %v7141
        %v7150 = vadd.f32 %v6663, %v7143
        %v7153 = vcombine.low %v5675, %v5676
        %v7155 = vunpack.c.l.s4 1983009808
        %v7156 = vunpack.c.0.s8 %v7155
        %v7157 = vlaneseq
        %v7158 = vshrl.u32 %v7157, 7
        %v7159 = vsub.s32 %v7156, %v7158
        %v7160 = vrot.slane %v7153, %v7159
        %v7161 = vcombine.low %v5694, %v7160
        %v7163 = vunpack.c.l.s4 1983009808
        %v7164 = vunpack.c.0.s8 %v7163
        %v7165 = vlaneseq
        %v7166 = vshrl.u32 %v7165, 7
        %v7167 = vsub.s32 %v7164, %v7166
        %v7168 = vrot.slane %v7161, %v7167
        %v7169 = vcombine.high %v7168, %v7168
        %v7172 = vpack.c.bf16 %v7168, %v7168
        %v7173 = vpack.c.bf16 %v7169, %v7169
        %s7174 = scalar_lea.vmem %s7, 1536
        %v7175 = vld [vmem:[%s7174] sm:$0xff]
        %v7176 = vld [vmem:[%s7174 + $0x8] sm:$0xff]
        %v7177 = vld [vmem:[%s7174 + $0x10] sm:$0xff]
        %v7178 = vld [vmem:[%s7174 + $0x18] sm:$0xff]
        %v7179 = vld [vmem:[%s7174 + $0x20] sm:$0xff]
        %v7180 = vld [vmem:[%s7174 + $0x28] sm:$0xff]
        %v7181 = vld [vmem:[%s7174 + $0x30] sm:$0xff]
        %v7182 = vld [vmem:[%s7174 + $0x38] sm:$0xff]
        %v7183 = vld [vmem:[%s7174 + $0x40] sm:$0xff]
        %v7184 = vld [vmem:[%s7174 + $0x48] sm:$0xff]
        %v7185 = vld [vmem:[%s7174 + $0x50] sm:$0xff]
        %v7186 = vld [vmem:[%s7174 + $0x58] sm:$0xff]
        %v7187 = vld [vmem:[%s7174 + $0x60] sm:$0xff]
        %v7188 = vld [vmem:[%s7174 + $0x68] sm:$0xff]
        %v7189 = vld [vmem:[%s7174 + $0x70] sm:$0xff]
        %v7190 = vld [vmem:[%s7174 + $0x78] sm:$0xff]
        %v7191 = vld [vmem:[%s7174 + $0x80] sm:$0xff]
        %v7192 = vld [vmem:[%s7174 + $0x88] sm:$0xff]
        %v7193 = vld [vmem:[%s7174 + $0x90] sm:$0xff]
        %v7194 = vld [vmem:[%s7174 + $0x98] sm:$0xff]
        %v7195 = vld [vmem:[%s7174 + $0xa0] sm:$0xff]
        %v7196 = vld [vmem:[%s7174 + $0xa8] sm:$0xff]
        %v7197 = vld [vmem:[%s7174 + $0xb0] sm:$0xff]
        %v7198 = vld [vmem:[%s7174 + $0xb8] sm:$0xff]
        %v7199 = vld [vmem:[%s7174 + $0xc0] sm:$0xff]
        %v7200 = vld [vmem:[%s7174 + $0xc8] sm:$0xff]
        %v7201 = vld [vmem:[%s7174 + $0xd0] sm:$0xff]
        %v7202 = vld [vmem:[%s7174 + $0xd8] sm:$0xff]
        %v7203 = vld [vmem:[%s7174 + $0xe0] sm:$0xff]
        %v7204 = vld [vmem:[%s7174 + $0xe8] sm:$0xff]
        %v7205 = vld [vmem:[%s7174 + $0xf0] sm:$0xff]
        %v7206 = vld [vmem:[%s7174 + $0xf8] sm:$0xff]
        %v7207 = vld [vmem:[%s7174 + $0x100] sm:$0xff]
        %v7208 = vld [vmem:[%s7174 + $0x108] sm:$0xff]
        %v7209 = vld [vmem:[%s7174 + $0x110] sm:$0xff]
        %v7210 = vld [vmem:[%s7174 + $0x118] sm:$0xff]
        %v7211 = vld [vmem:[%s7174 + $0x120] sm:$0xff]
        %v7212 = vld [vmem:[%s7174 + $0x128] sm:$0xff]
        %v7213 = vld [vmem:[%s7174 + $0x130] sm:$0xff]
        %v7214 = vld [vmem:[%s7174 + $0x138] sm:$0xff]
        %v7215 = vld [vmem:[%s7174 + $0x140] sm:$0xff]
        %v7216 = vld [vmem:[%s7174 + $0x148] sm:$0xff]
        %v7217 = vld [vmem:[%s7174 + $0x150] sm:$0xff]
        %v7218 = vld [vmem:[%s7174 + $0x158] sm:$0xff]
        %v7219 = vld [vmem:[%s7174 + $0x160] sm:$0xff]
        %v7220 = vld [vmem:[%s7174 + $0x168] sm:$0xff]
        %v7221 = vld [vmem:[%s7174 + $0x170] sm:$0xff]
        %v7222 = vld [vmem:[%s7174 + $0x178] sm:$0xff]
        %v7223 = vld [vmem:[%s7174 + $0x180] sm:$0xff]
        %v7224 = vld [vmem:[%s7174 + $0x188] sm:$0xff]
        %v7225 = vld [vmem:[%s7174 + $0x190] sm:$0xff]
        %v7226 = vld [vmem:[%s7174 + $0x198] sm:$0xff]
        %v7227 = vld [vmem:[%s7174 + $0x1a0] sm:$0xff]
        %v7228 = vld [vmem:[%s7174 + $0x1a8] sm:$0xff]
        %v7229 = vld [vmem:[%s7174 + $0x1b0] sm:$0xff]
        %v7230 = vld [vmem:[%s7174 + $0x1b8] sm:$0xff]
        %v7231 = vld [vmem:[%s7174 + $0x1c0] sm:$0xff]
        %v7232 = vld [vmem:[%s7174 + $0x1c8] sm:$0xff]
        %v7233 = vld [vmem:[%s7174 + $0x1d0] sm:$0xff]
        %v7234 = vld [vmem:[%s7174 + $0x1d8] sm:$0xff]
        %v7235 = vld [vmem:[%s7174 + $0x1e0] sm:$0xff]
        %v7236 = vld [vmem:[%s7174 + $0x1e8] sm:$0xff]
        %v7237 = vld [vmem:[%s7174 + $0x1f0] sm:$0xff]
        %v7238 = vld [vmem:[%s7174 + $0x1f8] sm:$0xff]
        %v7303 = vunpack.c.l.b16 %v7175
        %v7304 = vunpack.c.h.b16 %v7175
        %v7305 = vunpack.c.l.b16 %v7176
        %v7306 = vunpack.c.h.b16 %v7176
        %v7307 = vunpack.c.l.b16 %v7177
        %v7308 = vunpack.c.h.b16 %v7177
        %v7309 = vunpack.c.l.b16 %v7178
        %v7310 = vunpack.c.h.b16 %v7178
        %v7311 = vunpack.c.l.b16 %v7179
        %v7312 = vunpack.c.h.b16 %v7179
        %v7313 = vunpack.c.l.b16 %v7180
        %v7314 = vunpack.c.h.b16 %v7180
        %v7315 = vunpack.c.l.b16 %v7181
        %v7316 = vunpack.c.h.b16 %v7181
        %v7317 = vunpack.c.l.b16 %v7182
        %v7318 = vunpack.c.h.b16 %v7182
        %v7319 = vunpack.c.l.b16 %v7183
        %v7320 = vunpack.c.h.b16 %v7183
        %v7321 = vunpack.c.l.b16 %v7184
        %v7322 = vunpack.c.h.b16 %v7184
        %v7323 = vunpack.c.l.b16 %v7185
        %v7324 = vunpack.c.h.b16 %v7185
        %v7325 = vunpack.c.l.b16 %v7186
        %v7326 = vunpack.c.h.b16 %v7186
        %v7327 = vunpack.c.l.b16 %v7187
        %v7328 = vunpack.c.h.b16 %v7187
        %v7329 = vunpack.c.l.b16 %v7188
        %v7330 = vunpack.c.h.b16 %v7188
        %v7331 = vunpack.c.l.b16 %v7189
        %v7332 = vunpack.c.h.b16 %v7189
        %v7333 = vunpack.c.l.b16 %v7190
        %v7334 = vunpack.c.h.b16 %v7190
        %v7335 = vunpack.c.l.b16 %v7191
        %v7336 = vunpack.c.h.b16 %v7191
        %v7337 = vunpack.c.l.b16 %v7192
        %v7338 = vunpack.c.h.b16 %v7192
        %v7339 = vunpack.c.l.b16 %v7193
        %v7340 = vunpack.c.h.b16 %v7193
        %v7341 = vunpack.c.l.b16 %v7194
        %v7342 = vunpack.c.h.b16 %v7194
        %v7343 = vunpack.c.l.b16 %v7195
        %v7344 = vunpack.c.h.b16 %v7195
        %v7345 = vunpack.c.l.b16 %v7196
        %v7346 = vunpack.c.h.b16 %v7196
        %v7347 = vunpack.c.l.b16 %v7197
        %v7348 = vunpack.c.h.b16 %v7197
        %v7349 = vunpack.c.l.b16 %v7198
        %v7350 = vunpack.c.h.b16 %v7198
        %v7351 = vunpack.c.l.b16 %v7199
        %v7352 = vunpack.c.h.b16 %v7199
        %v7353 = vunpack.c.l.b16 %v7200
        %v7354 = vunpack.c.h.b16 %v7200
        %v7355 = vunpack.c.l.b16 %v7201
        %v7356 = vunpack.c.h.b16 %v7201
        %v7357 = vunpack.c.l.b16 %v7202
        %v7358 = vunpack.c.h.b16 %v7202
        %v7359 = vunpack.c.l.b16 %v7203
        %v7360 = vunpack.c.h.b16 %v7203
        %v7361 = vunpack.c.l.b16 %v7204
        %v7362 = vunpack.c.h.b16 %v7204
        %v7363 = vunpack.c.l.b16 %v7205
        %v7364 = vunpack.c.h.b16 %v7205
        %v7365 = vunpack.c.l.b16 %v7206
        %v7366 = vunpack.c.h.b16 %v7206
        %v7367 = vunpack.c.l.b16 %v7207
        %v7368 = vunpack.c.h.b16 %v7207
        %v7369 = vunpack.c.l.b16 %v7208
        %v7370 = vunpack.c.h.b16 %v7208
        %v7371 = vunpack.c.l.b16 %v7209
        %v7372 = vunpack.c.h.b16 %v7209
        %v7373 = vunpack.c.l.b16 %v7210
        %v7374 = vunpack.c.h.b16 %v7210
        %v7375 = vunpack.c.l.b16 %v7211
        %v7376 = vunpack.c.h.b16 %v7211
        %v7377 = vunpack.c.l.b16 %v7212
        %v7378 = vunpack.c.h.b16 %v7212
        %v7379 = vunpack.c.l.b16 %v7213
        %v7380 = vunpack.c.h.b16 %v7213
        %v7381 = vunpack.c.l.b16 %v7214
        %v7382 = vunpack.c.h.b16 %v7214
        %v7383 = vunpack.c.l.b16 %v7215
        %v7384 = vunpack.c.h.b16 %v7215
        %v7385 = vunpack.c.l.b16 %v7216
        %v7386 = vunpack.c.h.b16 %v7216
        %v7387 = vunpack.c.l.b16 %v7217
        %v7388 = vunpack.c.h.b16 %v7217
        %v7389 = vunpack.c.l.b16 %v7218
        %v7390 = vunpack.c.h.b16 %v7218
        %v7391 = vunpack.c.l.b16 %v7219
        %v7392 = vunpack.c.h.b16 %v7219
        %v7393 = vunpack.c.l.b16 %v7220
        %v7394 = vunpack.c.h.b16 %v7220
        %v7395 = vunpack.c.l.b16 %v7221
        %v7396 = vunpack.c.h.b16 %v7221
        %v7397 = vunpack.c.l.b16 %v7222
        %v7398 = vunpack.c.h.b16 %v7222
        %v7399 = vunpack.c.l.b16 %v7223
        %v7400 = vunpack.c.h.b16 %v7223
        %v7401 = vunpack.c.l.b16 %v7224
        %v7402 = vunpack.c.h.b16 %v7224
        %v7403 = vunpack.c.l.b16 %v7225
        %v7404 = vunpack.c.h.b16 %v7225
        %v7405 = vunpack.c.l.b16 %v7226
        %v7406 = vunpack.c.h.b16 %v7226
        %v7407 = vunpack.c.l.b16 %v7227
        %v7408 = vunpack.c.h.b16 %v7227
        %v7409 = vunpack.c.l.b16 %v7228
        %v7410 = vunpack.c.h.b16 %v7228
        %v7411 = vunpack.c.l.b16 %v7229
        %v7412 = vunpack.c.h.b16 %v7229
        %v7413 = vunpack.c.l.b16 %v7230
        %v7414 = vunpack.c.h.b16 %v7230
        %v7415 = vunpack.c.l.b16 %v7231
        %v7416 = vunpack.c.h.b16 %v7231
        %v7417 = vunpack.c.l.b16 %v7232
        %v7418 = vunpack.c.h.b16 %v7232
        %v7419 = vunpack.c.l.b16 %v7233
        %v7420 = vunpack.c.h.b16 %v7233
        %v7421 = vunpack.c.l.b16 %v7234
        %v7422 = vunpack.c.h.b16 %v7234
        %v7423 = vunpack.c.l.b16 %v7235
        %v7424 = vunpack.c.h.b16 %v7235
        %v7425 = vunpack.c.l.b16 %v7236
        %v7426 = vunpack.c.h.b16 %v7236
        %v7427 = vunpack.c.l.b16 %v7237
        %v7428 = vunpack.c.h.b16 %v7237
        %v7429 = vunpack.c.l.b16 %v7238
        %v7430 = vunpack.c.h.b16 %v7238
        %v7431 = vpack.c.b16 %v7307, %v7303
        %v7432 = vpack.c.b16 %v7308, %v7304
        %v7433 = vpack.c.b16 %v7309, %v7305
        %v7434 = vpack.c.b16 %v7310, %v7306
        %v7435 = vpack.c.b16 %v7315, %v7311
        %v7436 = vpack.c.b16 %v7316, %v7312
        %v7437 = vpack.c.b16 %v7317, %v7313
        %v7438 = vpack.c.b16 %v7318, %v7314
        %v7439 = vpack.c.b16 %v7323, %v7319
        %v7440 = vpack.c.b16 %v7324, %v7320
        %v7441 = vpack.c.b16 %v7325, %v7321
        %v7442 = vpack.c.b16 %v7326, %v7322
        %v7443 = vpack.c.b16 %v7331, %v7327
        %v7444 = vpack.c.b16 %v7332, %v7328
        %v7445 = vpack.c.b16 %v7333, %v7329
        %v7446 = vpack.c.b16 %v7334, %v7330
        %v7447 = vpack.c.b16 %v7339, %v7335
        %v7448 = vpack.c.b16 %v7340, %v7336
        %v7449 = vpack.c.b16 %v7341, %v7337
        %v7450 = vpack.c.b16 %v7342, %v7338
        %v7451 = vpack.c.b16 %v7347, %v7343
        %v7452 = vpack.c.b16 %v7348, %v7344
        %v7453 = vpack.c.b16 %v7349, %v7345
        %v7454 = vpack.c.b16 %v7350, %v7346
        %v7455 = vpack.c.b16 %v7355, %v7351
        %v7456 = vpack.c.b16 %v7356, %v7352
        %v7457 = vpack.c.b16 %v7357, %v7353
        %v7458 = vpack.c.b16 %v7358, %v7354
        %v7459 = vpack.c.b16 %v7363, %v7359
        %v7460 = vpack.c.b16 %v7364, %v7360
        %v7461 = vpack.c.b16 %v7365, %v7361
        %v7462 = vpack.c.b16 %v7366, %v7362
        %v7463 = vpack.c.b16 %v7371, %v7367
        %v7464 = vpack.c.b16 %v7372, %v7368
        %v7465 = vpack.c.b16 %v7373, %v7369
        %v7466 = vpack.c.b16 %v7374, %v7370
        %v7467 = vpack.c.b16 %v7379, %v7375
        %v7468 = vpack.c.b16 %v7380, %v7376
        %v7469 = vpack.c.b16 %v7381, %v7377
        %v7470 = vpack.c.b16 %v7382, %v7378
        %v7471 = vpack.c.b16 %v7387, %v7383
        %v7472 = vpack.c.b16 %v7388, %v7384
        %v7473 = vpack.c.b16 %v7389, %v7385
        %v7474 = vpack.c.b16 %v7390, %v7386
        %v7475 = vpack.c.b16 %v7395, %v7391
        %v7476 = vpack.c.b16 %v7396, %v7392
        %v7477 = vpack.c.b16 %v7397, %v7393
        %v7478 = vpack.c.b16 %v7398, %v7394
        %v7479 = vpack.c.b16 %v7403, %v7399
        %v7480 = vpack.c.b16 %v7404, %v7400
        %v7481 = vpack.c.b16 %v7405, %v7401
        %v7482 = vpack.c.b16 %v7406, %v7402
        %v7483 = vpack.c.b16 %v7411, %v7407
        %v7484 = vpack.c.b16 %v7412, %v7408
        %v7485 = vpack.c.b16 %v7413, %v7409
        %v7486 = vpack.c.b16 %v7414, %v7410
        %v7487 = vpack.c.b16 %v7419, %v7415
        %v7488 = vpack.c.b16 %v7420, %v7416
        %v7489 = vpack.c.b16 %v7421, %v7417
        %v7490 = vpack.c.b16 %v7422, %v7418
        %v7491 = vpack.c.b16 %v7427, %v7423
        %v7492 = vpack.c.b16 %v7428, %v7424
        %v7493 = vpack.c.b16 %v7429, %v7425
        %v7494 = vpack.c.b16 %v7430, %v7426
        %7559 = vmatprep.subr.bf16.mxu0 %v7432
        %7560 = vmatpush1.bf16.msra.mxu0 %v7431
        %7561 = vmatprep.subr.bf16.mxu0 %v7436
        %7562 = vmatpush1.bf16.msra.mxu0 %v7435
        %7563 = vmatprep.subr.bf16.mxu0 %v7440
        %7564 = vmatpush1.bf16.msra.mxu0 %v7439
        %7565 = vmatprep.subr.bf16.mxu0 %v7444
        %7566 = vmatpush1.bf16.msra.mxu0 %v7443
        %7567 = vmatprep.subr.bf16.mxu0 %v7448
        %7568 = vmatpush1.bf16.msra.mxu0 %v7447
        %7569 = vmatprep.subr.bf16.mxu0 %v7452
        %7570 = vmatpush1.bf16.msra.mxu0 %v7451
        %7571 = vmatprep.subr.bf16.mxu0 %v7456
        %7572 = vmatpush1.bf16.msra.mxu0 %v7455
        %7573 = vmatprep.subr.bf16.mxu0 %v7460
        %7574 = vmatpush1.bf16.msra.mxu0 %v7459
        %7575 = vmatprep.subr.bf16.mxu0 %v7464
        %7576 = vmatpush1.bf16.msra.mxu0 %v7463
        %7577 = vmatprep.subr.bf16.mxu0 %v7468
        %7578 = vmatpush1.bf16.msra.mxu0 %v7467
        %7579 = vmatprep.subr.bf16.mxu0 %v7472
        %7580 = vmatpush1.bf16.msra.mxu0 %v7471
        %7581 = vmatprep.subr.bf16.mxu0 %v7476
        %7582 = vmatpush1.bf16.msra.mxu0 %v7475
        %7583 = vmatprep.subr.bf16.mxu0 %v7480
        %7584 = vmatpush1.bf16.msra.mxu0 %v7479
        %7585 = vmatprep.subr.bf16.mxu0 %v7484
        %7586 = vmatpush1.bf16.msra.mxu0 %v7483
        %7587 = vmatprep.subr.bf16.mxu0 %v7488
        %7588 = vmatpush1.bf16.msra.mxu0 %v7487
        %7589 = vmatprep.subr.bf16.mxu0 %v7492
        %7590 = vmatpush1.bf16.msra.mxu0 %v7491
        %7591 = vmatprep.mubr.bf16.mxu0 %v7173
        %7592 = vmatmul.mubr.bf16.gmra.mrb[0].mxu0 %v7172
        %v7593 = vpop.f32.mrb[0].mxu0
        %v7594 = vadd.f32 0.0, %v7593
        %v7595 = vpop.f32.mrb[0].mxu0
        %v7596 = vadd.f32 0.0, %v7595
        %v7597 = vpop.f32.mrb[0].mxu0
        %v7598 = vpop.f32.mrb[0].mxu0
        %7599 = vdwg.mxu0
        %7600 = vmatprep.subr.bf16.mxu0 %v7434
        %7601 = vmatpush1.bf16.msra.mxu0 %v7433
        %7602 = vmatprep.subr.bf16.mxu0 %v7438
        %7603 = vmatpush1.bf16.msra.mxu0 %v7437
        %7604 = vmatprep.subr.bf16.mxu0 %v7442
        %7605 = vmatpush1.bf16.msra.mxu0 %v7441
        %7606 = vmatprep.subr.bf16.mxu0 %v7446
        %7607 = vmatpush1.bf16.msra.mxu0 %v7445
        %7608 = vmatprep.subr.bf16.mxu0 %v7450
        %7609 = vmatpush1.bf16.msra.mxu0 %v7449
        %7610 = vmatprep.subr.bf16.mxu0 %v7454
        %7611 = vmatpush1.bf16.msra.mxu0 %v7453
        %7612 = vmatprep.subr.bf16.mxu0 %v7458
        %7613 = vmatpush1.bf16.msra.mxu0 %v7457
        %7614 = vmatprep.subr.bf16.mxu0 %v7462
        %7615 = vmatpush1.bf16.msra.mxu0 %v7461
        %7616 = vmatprep.subr.bf16.mxu0 %v7466
        %7617 = vmatpush1.bf16.msra.mxu0 %v7465
        %7618 = vmatprep.subr.bf16.mxu0 %v7470
        %7619 = vmatpush1.bf16.msra.mxu0 %v7469
        %7620 = vmatprep.subr.bf16.mxu0 %v7474
        %7621 = vmatpush1.bf16.msra.mxu0 %v7473
        %7622 = vmatprep.subr.bf16.mxu0 %v7478
        %7623 = vmatpush1.bf16.msra.mxu0 %v7477
        %7624 = vmatprep.subr.bf16.mxu0 %v7482
        %7625 = vmatpush1.bf16.msra.mxu0 %v7481
        %7626 = vmatprep.subr.bf16.mxu0 %v7486
        %7627 = vmatpush1.bf16.msra.mxu0 %v7485
        %7628 = vmatprep.subr.bf16.mxu0 %v7490
        %7629 = vmatpush1.bf16.msra.mxu0 %v7489
        %7630 = vmatprep.subr.bf16.mxu0 %v7494
        %7631 = vmatpush1.bf16.msra.mxu0 %v7493
        %7632 = vmatprep.mubr.bf16.mxu0 %v7173
        %7633 = vmatmul.mubr.bf16.gmra.mrb[0].mxu0 %v7172
        %v7634 = vpop.f32.mrb[0].mxu0
        %v7635 = vadd.f32 0.0, %v7634
        %v7636 = vpop.f32.mrb[0].mxu0
        %v7637 = vadd.f32 0.0, %v7636
        %v7638 = vpop.f32.mrb[0].mxu0
        %v7639 = vpop.f32.mrb[0].mxu0
        %7640 = vdwg.mxu0
        %v7641 = vadd.f32 %v7147, %v7594
        %v7642 = vadd.f32 %v7148, %v7596
        %v7643 = vadd.f32 %v7149, %v7635
        %v7644 = vadd.f32 %v7150, %v7637
        %v7645 = vcombine.high %v7160, %v7160
        %v7646 = vrot.slane %v7160, 7
        %v7647 = vrot.slane %v7646, 2
        %v7648 = vrot.slane %v7645, 7
        %v7649 = vsel %vm5776, %v7647, %v7648
        %v7650 = vcombine.low %v5784, %v7649
        %v7652 = vunpack.c.l.s4 1983009808
        %v7653 = vunpack.c.0.s8 %v7652
        %v7654 = vlaneseq
        %v7655 = vshrl.u32 %v7654, 7
        %v7656 = vsub.s32 %v7653, %v7655
        %v7657 = vrot.slane %v7650, %v7656
        %v7658 = vcombine.high %v7657, %v7657
        %v7661 = vpack.c.bf16 %v7657, %v7657
        %v7662 = vpack.c.bf16 %v7658, %v7658
        %s7663 = scalar_lea.vmem %s7, 2048
        %v7664 = vld [vmem:[%s7663] sm:$0xff]
        %v7665 = vld [vmem:[%s7663 + $0x8] sm:$0xff]
        %v7666 = vld [vmem:[%s7663 + $0x10] sm:$0xff]
        %v7667 = vld [vmem:[%s7663 + $0x18] sm:$0xff]
        %v7668 = vld [vmem:[%s7663 + $0x20] sm:$0xff]
        %v7669 = vld [vmem:[%s7663 + $0x28] sm:$0xff]
        %v7670 = vld [vmem:[%s7663 + $0x30] sm:$0xff]
        %v7671 = vld [vmem:[%s7663 + $0x38] sm:$0xff]
        %v7672 = vld [vmem:[%s7663 + $0x40] sm:$0xff]
        %v7673 = vld [vmem:[%s7663 + $0x48] sm:$0xff]
        %v7674 = vld [vmem:[%s7663 + $0x50] sm:$0xff]
        %v7675 = vld [vmem:[%s7663 + $0x58] sm:$0xff]
        %v7676 = vld [vmem:[%s7663 + $0x60] sm:$0xff]
        %v7677 = vld [vmem:[%s7663 + $0x68] sm:$0xff]
        %v7678 = vld [vmem:[%s7663 + $0x70] sm:$0xff]
        %v7679 = vld [vmem:[%s7663 + $0x78] sm:$0xff]
        %v7680 = vld [vmem:[%s7663 + $0x80] sm:$0xff]
        %v7681 = vld [vmem:[%s7663 + $0x88] sm:$0xff]
        %v7682 = vld [vmem:[%s7663 + $0x90] sm:$0xff]
        %v7683 = vld [vmem:[%s7663 + $0x98] sm:$0xff]
        %v7684 = vld [vmem:[%s7663 + $0xa0] sm:$0xff]
        %v7685 = vld [vmem:[%s7663 + $0xa8] sm:$0xff]
        %v7686 = vld [vmem:[%s7663 + $0xb0] sm:$0xff]
        %v7687 = vld [vmem:[%s7663 + $0xb8] sm:$0xff]
        %v7688 = vld [vmem:[%s7663 + $0xc0] sm:$0xff]
        %v7689 = vld [vmem:[%s7663 + $0xc8] sm:$0xff]
        %v7690 = vld [vmem:[%s7663 + $0xd0] sm:$0xff]
        %v7691 = vld [vmem:[%s7663 + $0xd8] sm:$0xff]
        %v7692 = vld [vmem:[%s7663 + $0xe0] sm:$0xff]
        %v7693 = vld [vmem:[%s7663 + $0xe8] sm:$0xff]
        %v7694 = vld [vmem:[%s7663 + $0xf0] sm:$0xff]
        %v7695 = vld [vmem:[%s7663 + $0xf8] sm:$0xff]
        %v7696 = vld [vmem:[%s7663 + $0x100] sm:$0xff]
        %v7697 = vld [vmem:[%s7663 + $0x108] sm:$0xff]
        %v7698 = vld [vmem:[%s7663 + $0x110] sm:$0xff]
        %v7699 = vld [vmem:[%s7663 + $0x118] sm:$0xff]
        %v7700 = vld [vmem:[%s7663 + $0x120] sm:$0xff]
        %v7701 = vld [vmem:[%s7663 + $0x128] sm:$0xff]
        %v7702 = vld [vmem:[%s7663 + $0x130] sm:$0xff]
        %v7703 = vld [vmem:[%s7663 + $0x138] sm:$0xff]
        %v7704 = vld [vmem:[%s7663 + $0x140] sm:$0xff]
        %v7705 = vld [vmem:[%s7663 + $0x148] sm:$0xff]
        %v7706 = vld [vmem:[%s7663 + $0x150] sm:$0xff]
        %v7707 = vld [vmem:[%s7663 + $0x158] sm:$0xff]
        %v7708 = vld [vmem:[%s7663 + $0x160] sm:$0xff]
        %v7709 = vld [vmem:[%s7663 + $0x168] sm:$0xff]
        %v7710 = vld [vmem:[%s7663 + $0x170] sm:$0xff]
        %v7711 = vld [vmem:[%s7663 + $0x178] sm:$0xff]
        %v7712 = vld [vmem:[%s7663 + $0x180] sm:$0xff]
        %v7713 = vld [vmem:[%s7663 + $0x188] sm:$0xff]
        %v7714 = vld [vmem:[%s7663 + $0x190] sm:$0xff]
        %v7715 = vld [vmem:[%s7663 + $0x198] sm:$0xff]
        %v7716 = vld [vmem:[%s7663 + $0x1a0] sm:$0xff]
        %v7717 = vld [vmem:[%s7663 + $0x1a8] sm:$0xff]
        %v7718 = vld [vmem:[%s7663 + $0x1b0] sm:$0xff]
        %v7719 = vld [vmem:[%s7663 + $0x1b8] sm:$0xff]
        %v7720 = vld [vmem:[%s7663 + $0x1c0] sm:$0xff]
        %v7721 = vld [vmem:[%s7663 + $0x1c8] sm:$0xff]
        %v7722 = vld [vmem:[%s7663 + $0x1d0] sm:$0xff]
        %v7723 = vld [vmem:[%s7663 + $0x1d8] sm:$0xff]
        %v7724 = vld [vmem:[%s7663 + $0x1e0] sm:$0xff]
        %v7725 = vld [vmem:[%s7663 + $0x1e8] sm:$0xff]
        %v7726 = vld [vmem:[%s7663 + $0x1f0] sm:$0xff]
        %v7727 = vld [vmem:[%s7663 + $0x1f8] sm:$0xff]
        %v7792 = vunpack.c.l.b16 %v7664
        %v7793 = vunpack.c.h.b16 %v7664
        %v7794 = vunpack.c.l.b16 %v7665
        %v7795 = vunpack.c.h.b16 %v7665
        %v7796 = vunpack.c.l.b16 %v7666
        %v7797 = vunpack.c.h.b16 %v7666
        %v7798 = vunpack.c.l.b16 %v7667
        %v7799 = vunpack.c.h.b16 %v7667
        %v7800 = vunpack.c.l.b16 %v7668
        %v7801 = vunpack.c.h.b16 %v7668
        %v7802 = vunpack.c.l.b16 %v7669
        %v7803 = vunpack.c.h.b16 %v7669
        %v7804 = vunpack.c.l.b16 %v7670
        %v7805 = vunpack.c.h.b16 %v7670
        %v7806 = vunpack.c.l.b16 %v7671
        %v7807 = vunpack.c.h.b16 %v7671
        %v7808 = vunpack.c.l.b16 %v7672
        %v7809 = vunpack.c.h.b16 %v7672
        %v7810 = vunpack.c.l.b16 %v7673
        %v7811 = vunpack.c.h.b16 %v7673
        %v7812 = vunpack.c.l.b16 %v7674
        %v7813 = vunpack.c.h.b16 %v7674
        %v7814 = vunpack.c.l.b16 %v7675
        %v7815 = vunpack.c.h.b16 %v7675
        %v7816 = vunpack.c.l.b16 %v7676
        %v7817 = vunpack.c.h.b16 %v7676
        %v7818 = vunpack.c.l.b16 %v7677
        %v7819 = vunpack.c.h.b16 %v7677
        %v7820 = vunpack.c.l.b16 %v7678
        %v7821 = vunpack.c.h.b16 %v7678
        %v7822 = vunpack.c.l.b16 %v7679
        %v7823 = vunpack.c.h.b16 %v7679
        %v7824 = vunpack.c.l.b16 %v7680
        %v7825 = vunpack.c.h.b16 %v7680
        %v7826 = vunpack.c.l.b16 %v7681
        %v7827 = vunpack.c.h.b16 %v7681
        %v7828 = vunpack.c.l.b16 %v7682
        %v7829 = vunpack.c.h.b16 %v7682
        %v7830 = vunpack.c.l.b16 %v7683
        %v7831 = vunpack.c.h.b16 %v7683
        %v7832 = vunpack.c.l.b16 %v7684
        %v7833 = vunpack.c.h.b16 %v7684
        %v7834 = vunpack.c.l.b16 %v7685
        %v7835 = vunpack.c.h.b16 %v7685
        %v7836 = vunpack.c.l.b16 %v7686
        %v7837 = vunpack.c.h.b16 %v7686
        %v7838 = vunpack.c.l.b16 %v7687
        %v7839 = vunpack.c.h.b16 %v7687
        %v7840 = vunpack.c.l.b16 %v7688
        %v7841 = vunpack.c.h.b16 %v7688
        %v7842 = vunpack.c.l.b16 %v7689
        %v7843 = vunpack.c.h.b16 %v7689
        %v7844 = vunpack.c.l.b16 %v7690
        %v7845 = vunpack.c.h.b16 %v7690
        %v7846 = vunpack.c.l.b16 %v7691
        %v7847 = vunpack.c.h.b16 %v7691
        %v7848 = vunpack.c.l.b16 %v7692
        %v7849 = vunpack.c.h.b16 %v7692
        %v7850 = vunpack.c.l.b16 %v7693
        %v7851 = vunpack.c.h.b16 %v7693
        %v7852 = vunpack.c.l.b16 %v7694
        %v7853 = vunpack.c.h.b16 %v7694
        %v7854 = vunpack.c.l.b16 %v7695
        %v7855 = vunpack.c.h.b16 %v7695
        %v7856 = vunpack.c.l.b16 %v7696
        %v7857 = vunpack.c.h.b16 %v7696
        %v7858 = vunpack.c.l.b16 %v7697
        %v7859 = vunpack.c.h.b16 %v7697
        %v7860 = vunpack.c.l.b16 %v7698
        %v7861 = vunpack.c.h.b16 %v7698
        %v7862 = vunpack.c.l.b16 %v7699
        %v7863 = vunpack.c.h.b16 %v7699
        %v7864 = vunpack.c.l.b16 %v7700
        %v7865 = vunpack.c.h.b16 %v7700
        %v7866 = vunpack.c.l.b16 %v7701
        %v7867 = vunpack.c.h.b16 %v7701
        %v7868 = vunpack.c.l.b16 %v7702
        %v7869 = vunpack.c.h.b16 %v7702
        %v7870 = vunpack.c.l.b16 %v7703
        %v7871 = vunpack.c.h.b16 %v7703
        %v7872 = vunpack.c.l.b16 %v7704
        %v7873 = vunpack.c.h.b16 %v7704
        %v7874 = vunpack.c.l.b16 %v7705
        %v7875 = vunpack.c.h.b16 %v7705
        %v7876 = vunpack.c.l.b16 %v7706
        %v7877 = vunpack.c.h.b16 %v7706
        %v7878 = vunpack.c.l.b16 %v7707
        %v7879 = vunpack.c.h.b16 %v7707
        %v7880 = vunpack.c.l.b16 %v7708
        %v7881 = vunpack.c.h.b16 %v7708
        %v7882 = vunpack.c.l.b16 %v7709
        %v7883 = vunpack.c.h.b16 %v7709
        %v7884 = vunpack.c.l.b16 %v7710
        %v7885 = vunpack.c.h.b16 %v7710
        %v7886 = vunpack.c.l.b16 %v7711
        %v7887 = vunpack.c.h.b16 %v7711
        %v7888 = vunpack.c.l.b16 %v7712
        %v7889 = vunpack.c.h.b16 %v7712
        %v7890 = vunpack.c.l.b16 %v7713
        %v7891 = vunpack.c.h.b16 %v7713
        %v7892 = vunpack.c.l.b16 %v7714
        %v7893 = vunpack.c.h.b16 %v7714
        %v7894 = vunpack.c.l.b16 %v7715
        %v7895 = vunpack.c.h.b16 %v7715
        %v7896 = vunpack.c.l.b16 %v7716
        %v7897 = vunpack.c.h.b16 %v7716
        %v7898 = vunpack.c.l.b16 %v7717
        %v7899 = vunpack.c.h.b16 %v7717
        %v7900 = vunpack.c.l.b16 %v7718
        %v7901 = vunpack.c.h.b16 %v7718
        %v7902 = vunpack.c.l.b16 %v7719
        %v7903 = vunpack.c.h.b16 %v7719
        %v7904 = vunpack.c.l.b16 %v7720
        %v7905 = vunpack.c.h.b16 %v7720
        %v7906 = vunpack.c.l.b16 %v7721
        %v7907 = vunpack.c.h.b16 %v7721
        %v7908 = vunpack.c.l.b16 %v7722
        %v7909 = vunpack.c.h.b16 %v7722
        %v7910 = vunpack.c.l.b16 %v7723
        %v7911 = vunpack.c.h.b16 %v7723
        %v7912 = vunpack.c.l.b16 %v7724
        %v7913 = vunpack.c.h.b16 %v7724
        %v7914 = vunpack.c.l.b16 %v7725
        %v7915 = vunpack.c.h.b16 %v7725
        %v7916 = vunpack.c.l.b16 %v7726
        %v7917 = vunpack.c.h.b16 %v7726
        %v7918 = vunpack.c.l.b16 %v7727
        %v7919 = vunpack.c.h.b16 %v7727
        %v7920 = vpack.c.b16 %v7796, %v7792
        %v7921 = vpack.c.b16 %v7797, %v7793
        %v7922 = vpack.c.b16 %v7798, %v7794
        %v7923 = vpack.c.b16 %v7799, %v7795
        %v7924 = vpack.c.b16 %v7804, %v7800
        %v7925 = vpack.c.b16 %v7805, %v7801
        %v7926 = vpack.c.b16 %v7806, %v7802
        %v7927 = vpack.c.b16 %v7807, %v7803
        %v7928 = vpack.c.b16 %v7812, %v7808
        %v7929 = vpack.c.b16 %v7813, %v7809
        %v7930 = vpack.c.b16 %v7814, %v7810
        %v7931 = vpack.c.b16 %v7815, %v7811
        %v7932 = vpack.c.b16 %v7820, %v7816
        %v7933 = vpack.c.b16 %v7821, %v7817
        %v7934 = vpack.c.b16 %v7822, %v7818
        %v7935 = vpack.c.b16 %v7823, %v7819
        %v7936 = vpack.c.b16 %v7828, %v7824
        %v7937 = vpack.c.b16 %v7829, %v7825
        %v7938 = vpack.c.b16 %v7830, %v7826
        %v7939 = vpack.c.b16 %v7831, %v7827
        %v7940 = vpack.c.b16 %v7836, %v7832
        %v7941 = vpack.c.b16 %v7837, %v7833
        %v7942 = vpack.c.b16 %v7838, %v7834
        %v7943 = vpack.c.b16 %v7839, %v7835
        %v7944 = vpack.c.b16 %v7844, %v7840
        %v7945 = vpack.c.b16 %v7845, %v7841
        %v7946 = vpack.c.b16 %v7846, %v7842
        %v7947 = vpack.c.b16 %v7847, %v7843
        %v7948 = vpack.c.b16 %v7852, %v7848
        %v7949 = vpack.c.b16 %v7853, %v7849
        %v7950 = vpack.c.b16 %v7854, %v7850
        %v7951 = vpack.c.b16 %v7855, %v7851
        %v7952 = vpack.c.b16 %v7860, %v7856
        %v7953 = vpack.c.b16 %v7861, %v7857
        %v7954 = vpack.c.b16 %v7862, %v7858
        %v7955 = vpack.c.b16 %v7863, %v7859
        %v7956 = vpack.c.b16 %v7868, %v7864
        %v7957 = vpack.c.b16 %v7869, %v7865
        %v7958 = vpack.c.b16 %v7870, %v7866
        %v7959 = vpack.c.b16 %v7871, %v7867
        %v7960 = vpack.c.b16 %v7876, %v7872
        %v7961 = vpack.c.b16 %v7877, %v7873
        %v7962 = vpack.c.b16 %v7878, %v7874
        %v7963 = vpack.c.b16 %v7879, %v7875
        %v7964 = vpack.c.b16 %v7884, %v7880
        %v7965 = vpack.c.b16 %v7885, %v7881
        %v7966 = vpack.c.b16 %v7886, %v7882
        %v7967 = vpack.c.b16 %v7887, %v7883
        %v7968 = vpack.c.b16 %v7892, %v7888
        %v7969 = vpack.c.b16 %v7893, %v7889
        %v7970 = vpack.c.b16 %v7894, %v7890
        %v7971 = vpack.c.b16 %v7895, %v7891
        %v7972 = vpack.c.b16 %v7900, %v7896
        %v7973 = vpack.c.b16 %v7901, %v7897
        %v7974 = vpack.c.b16 %v7902, %v7898
        %v7975 = vpack.c.b16 %v7903, %v7899
        %v7976 = vpack.c.b16 %v7908, %v7904
        %v7977 = vpack.c.b16 %v7909, %v7905
        %v7978 = vpack.c.b16 %v7910, %v7906
        %v7979 = vpack.c.b16 %v7911, %v7907
        %v7980 = vpack.c.b16 %v7916, %v7912
        %v7981 = vpack.c.b16 %v7917, %v7913
        %v7982 = vpack.c.b16 %v7918, %v7914
        %v7983 = vpack.c.b16 %v7919, %v7915
        %8048 = vmatprep.subr.bf16.mxu0 %v7921
        %8049 = vmatpush1.bf16.msra.mxu0 %v7920
        %8050 = vmatprep.subr.bf16.mxu0 %v7925
        %8051 = vmatpush1.bf16.msra.mxu0 %v7924
        %8052 = vmatprep.subr.bf16.mxu0 %v7929
        %8053 = vmatpush1.bf16.msra.mxu0 %v7928
        %8054 = vmatprep.subr.bf16.mxu0 %v7933
        %8055 = vmatpush1.bf16.msra.mxu0 %v7932
        %8056 = vmatprep.subr.bf16.mxu0 %v7937
        %8057 = vmatpush1.bf16.msra.mxu0 %v7936
        %8058 = vmatprep.subr.bf16.mxu0 %v7941
        %8059 = vmatpush1.bf16.msra.mxu0 %v7940
        %8060 = vmatprep.subr.bf16.mxu0 %v7945
        %8061 = vmatpush1.bf16.msra.mxu0 %v7944
        %8062 = vmatprep.subr.bf16.mxu0 %v7949
        %8063 = vmatpush1.bf16.msra.mxu0 %v7948
        %8064 = vmatprep.subr.bf16.mxu0 %v7953
        %8065 = vmatpush1.bf16.msra.mxu0 %v7952
        %8066 = vmatprep.subr.bf16.mxu0 %v7957
        %8067 = vmatpush1.bf16.msra.mxu0 %v7956
        %8068 = vmatprep.subr.bf16.mxu0 %v7961
        %8069 = vmatpush1.bf16.msra.mxu0 %v7960
        %8070 = vmatprep.subr.bf16.mxu0 %v7965
        %8071 = vmatpush1.bf16.msra.mxu0 %v7964
        %8072 = vmatprep.subr.bf16.mxu0 %v7969
        %8073 = vmatpush1.bf16.msra.mxu0 %v7968
        %8074 = vmatprep.subr.bf16.mxu0 %v7973
        %8075 = vmatpush1.bf16.msra.mxu0 %v7972
        %8076 = vmatprep.subr.bf16.mxu0 %v7977
        %8077 = vmatpush1.bf16.msra.mxu0 %v7976
        %8078 = vmatprep.subr.bf16.mxu0 %v7981
        %8079 = vmatpush1.bf16.msra.mxu0 %v7980
        %8080 = vmatprep.mubr.bf16.mxu0 %v7662
        %8081 = vmatmul.mubr.bf16.gmra.mrb[0].mxu0 %v7661
        %v8082 = vpop.f32.mrb[0].mxu0
        %v8083 = vadd.f32 0.0, %v8082
        %v8084 = vpop.f32.mrb[0].mxu0
        %v8085 = vadd.f32 0.0, %v8084
        %v8086 = vpop.f32.mrb[0].mxu0
        %v8087 = vpop.f32.mrb[0].mxu0
        %8088 = vdwg.mxu0
        %8089 = vmatprep.subr.bf16.mxu0 %v7923
        %8090 = vmatpush1.bf16.msra.mxu0 %v7922
        %8091 = vmatprep.subr.bf16.mxu0 %v7927
        %8092 = vmatpush1.bf16.msra.mxu0 %v7926
        %8093 = vmatprep.subr.bf16.mxu0 %v7931
        %8094 = vmatpush1.bf16.msra.mxu0 %v7930
        %8095 = vmatprep.subr.bf16.mxu0 %v7935
        %8096 = vmatpush1.bf16.msra.mxu0 %v7934
        %8097 = vmatprep.subr.bf16.mxu0 %v7939
        %8098 = vmatpush1.bf16.msra.mxu0 %v7938
        %8099 = vmatprep.subr.bf16.mxu0 %v7943
        %8100 = vmatpush1.bf16.msra.mxu0 %v7942
        %8101 = vmatprep.subr.bf16.mxu0 %v7947
        %8102 = vmatpush1.bf16.msra.mxu0 %v7946
        %8103 = vmatprep.subr.bf16.mxu0 %v7951
        %8104 = vmatpush1.bf16.msra.mxu0 %v7950
        %8105 = vmatprep.subr.bf16.mxu0 %v7955
        %8106 = vmatpush1.bf16.msra.mxu0 %v7954
        %8107 = vmatprep.subr.bf16.mxu0 %v7959
        %8108 = vmatpush1.bf16.msra.mxu0 %v7958
        %8109 = vmatprep.subr.bf16.mxu0 %v7963
        %8110 = vmatpush1.bf16.msra.mxu0 %v7962
        %8111 = vmatprep.subr.bf16.mxu0 %v7967
        %8112 = vmatpush1.bf16.msra.mxu0 %v7966
        %8113 = vmatprep.subr.bf16.mxu0 %v7971
        %8114 = vmatpush1.bf16.msra.mxu0 %v7970
        %8115 = vmatprep.subr.bf16.mxu0 %v7975
        %8116 = vmatpush1.bf16.msra.mxu0 %v7974
        %8117 = vmatprep.subr.bf16.mxu0 %v7979
        %8118 = vmatpush1.bf16.msra.mxu0 %v7978
        %8119 = vmatprep.subr.bf16.mxu0 %v7983
        %8120 = vmatpush1.bf16.msra.mxu0 %v7982
        %8121 = vmatprep.mubr.bf16.mxu0 %v7662
        %8122 = vmatmul.mubr.bf16.gmra.mrb[0].mxu0 %v7661
        %v8123 = vpop.f32.mrb[0].mxu0
        %v8124 = vadd.f32 0.0, %v8123
        %v8125 = vpop.f32.mrb[0].mxu0
        %v8126 = vadd.f32 0.0, %v8125
        %v8127 = vpop.f32.mrb[0].mxu0
        %v8128 = vpop.f32.mrb[0].mxu0
        %8129 = vdwg.mxu0
        %v8130 = vadd.f32 %v7641, %v8083
        %v8131 = vadd.f32 %v7642, %v8085
        %v8132 = vadd.f32 %v7643, %v8124
        %v8133 = vadd.f32 %v7644, %v8126
        %v8134 = vcombine.low %v5773, %v7645
        %v8136 = vunpack.c.l.s4 1983009808
        %v8137 = vunpack.c.0.s8 %v8136
        %v8138 = vlaneseq
        %v8139 = vshrl.u32 %v8138, 7
        %v8140 = vsub.s32 %v8137, %v8139
        %v8141 = vrot.slane %v8134, %v8140
        %v8142 = vcombine.high %v8141, %v8141
        %v8145 = vpack.c.bf16 %v8141, %v8141
        %v8146 = vpack.c.bf16 %v8142, %v8142
        %s8147 = scalar_lea.vmem %s7, 2560
        %v8148 = vld [vmem:[%s8147] sm:$0xff]
        %v8149 = vld [vmem:[%s8147 + $0x8] sm:$0xff]
        %v8150 = vld [vmem:[%s8147 + $0x10] sm:$0xff]
        %v8151 = vld [vmem:[%s8147 + $0x18] sm:$0xff]
        %v8152 = vld [vmem:[%s8147 + $0x20] sm:$0xff]
        %v8153 = vld [vmem:[%s8147 + $0x28] sm:$0xff]
        %v8154 = vld [vmem:[%s8147 + $0x30] sm:$0xff]
        %v8155 = vld [vmem:[%s8147 + $0x38] sm:$0xff]
        %v8156 = vld [vmem:[%s8147 + $0x40] sm:$0xff]
        %v8157 = vld [vmem:[%s8147 + $0x48] sm:$0xff]
        %v8158 = vld [vmem:[%s8147 + $0x50] sm:$0xff]
        %v8159 = vld [vmem:[%s8147 + $0x58] sm:$0xff]
        %v8160 = vld [vmem:[%s8147 + $0x60] sm:$0xff]
        %v8161 = vld [vmem:[%s8147 + $0x68] sm:$0xff]
        %v8162 = vld [vmem:[%s8147 + $0x70] sm:$0xff]
        %v8163 = vld [vmem:[%s8147 + $0x78] sm:$0xff]
        %v8164 = vld [vmem:[%s8147 + $0x80] sm:$0xff]
        %v8165 = vld [vmem:[%s8147 + $0x88] sm:$0xff]
        %v8166 = vld [vmem:[%s8147 + $0x90] sm:$0xff]
        %v8167 = vld [vmem:[%s8147 + $0x98] sm:$0xff]
        %v8168 = vld [vmem:[%s8147 + $0xa0] sm:$0xff]
        %v8169 = vld [vmem:[%s8147 + $0xa8] sm:$0xff]
        %v8170 = vld [vmem:[%s8147 + $0xb0] sm:$0xff]
        %v8171 = vld [vmem:[%s8147 + $0xb8] sm:$0xff]
        %v8172 = vld [vmem:[%s8147 + $0xc0] sm:$0xff]
        %v8173 = vld [vmem:[%s8147 + $0xc8] sm:$0xff]
        %v8174 = vld [vmem:[%s8147 + $0xd0] sm:$0xff]
        %v8175 = vld [vmem:[%s8147 + $0xd8] sm:$0xff]
        %v8176 = vld [vmem:[%s8147 + $0xe0] sm:$0xff]
        %v8177 = vld [vmem:[%s8147 + $0xe8] sm:$0xff]
        %v8178 = vld [vmem:[%s8147 + $0xf0] sm:$0xff]
        %v8179 = vld [vmem:[%s8147 + $0xf8] sm:$0xff]
        %v8180 = vld [vmem:[%s8147 + $0x100] sm:$0xff]
        %v8181 = vld [vmem:[%s8147 + $0x108] sm:$0xff]
        %v8182 = vld [vmem:[%s8147 + $0x110] sm:$0xff]
        %v8183 = vld [vmem:[%s8147 + $0x118] sm:$0xff]
        %v8184 = vld [vmem:[%s8147 + $0x120] sm:$0xff]
        %v8185 = vld [vmem:[%s8147 + $0x128] sm:$0xff]
        %v8186 = vld [vmem:[%s8147 + $0x130] sm:$0xff]
        %v8187 = vld [vmem:[%s8147 + $0x138] sm:$0xff]
        %v8188 = vld [vmem:[%s8147 + $0x140] sm:$0xff]
        %v8189 = vld [vmem:[%s8147 + $0x148] sm:$0xff]
        %v8190 = vld [vmem:[%s8147 + $0x150] sm:$0xff]
        %v8191 = vld [vmem:[%s8147 + $0x158] sm:$0xff]
        %v8192 = vld [vmem:[%s8147 + $0x160] sm:$0xff]
        %v8193 = vld [vmem:[%s8147 + $0x168] sm:$0xff]
        %v8194 = vld [vmem:[%s8147 + $0x170] sm:$0xff]
        %v8195 = vld [vmem:[%s8147 + $0x178] sm:$0xff]
        %v8196 = vld [vmem:[%s8147 + $0x180] sm:$0xff]
        %v8197 = vld [vmem:[%s8147 + $0x188] sm:$0xff]
        %v8198 = vld [vmem:[%s8147 + $0x190] sm:$0xff]
        %v8199 = vld [vmem:[%s8147 + $0x198] sm:$0xff]
        %v8200 = vld [vmem:[%s8147 + $0x1a0] sm:$0xff]
        %v8201 = vld [vmem:[%s8147 + $0x1a8] sm:$0xff]
        %v8202 = vld [vmem:[%s8147 + $0x1b0] sm:$0xff]
        %v8203 = vld [vmem:[%s8147 + $0x1b8] sm:$0xff]
        %v8204 = vld [vmem:[%s8147 + $0x1c0] sm:$0xff]
        %v8205 = vld [vmem:[%s8147 + $0x1c8] sm:$0xff]
        %v8206 = vld [vmem:[%s8147 + $0x1d0] sm:$0xff]
        %v8207 = vld [vmem:[%s8147 + $0x1d8] sm:$0xff]
        %v8208 = vld [vmem:[%s8147 + $0x1e0] sm:$0xff]
        %v8209 = vld [vmem:[%s8147 + $0x1e8] sm:$0xff]
        %v8210 = vld [vmem:[%s8147 + $0x1f0] sm:$0xff]
        %v8211 = vld [vmem:[%s8147 + $0x1f8] sm:$0xff]
        %v8276 = vunpack.c.l.b16 %v8148
        %v8277 = vunpack.c.h.b16 %v8148
        %v8278 = vunpack.c.l.b16 %v8149
        %v8279 = vunpack.c.h.b16 %v8149
        %v8280 = vunpack.c.l.b16 %v8150
        %v8281 = vunpack.c.h.b16 %v8150
        %v8282 = vunpack.c.l.b16 %v8151
        %v8283 = vunpack.c.h.b16 %v8151
        %v8284 = vunpack.c.l.b16 %v8152
        %v8285 = vunpack.c.h.b16 %v8152
        %v8286 = vunpack.c.l.b16 %v8153
        %v8287 = vunpack.c.h.b16 %v8153
        %v8288 = vunpack.c.l.b16 %v8154
        %v8289 = vunpack.c.h.b16 %v8154
        %v8290 = vunpack.c.l.b16 %v8155
        %v8291 = vunpack.c.h.b16 %v8155
        %v8292 = vunpack.c.l.b16 %v8156
        %v8293 = vunpack.c.h.b16 %v8156
        %v8294 = vunpack.c.l.b16 %v8157
        %v8295 = vunpack.c.h.b16 %v8157
        %v8296 = vunpack.c.l.b16 %v8158
        %v8297 = vunpack.c.h.b16 %v8158
        %v8298 = vunpack.c.l.b16 %v8159
        %v8299 = vunpack.c.h.b16 %v8159
        %v8300 = vunpack.c.l.b16 %v8160
        %v8301 = vunpack.c.h.b16 %v8160
        %v8302 = vunpack.c.l.b16 %v8161
        %v8303 = vunpack.c.h.b16 %v8161
        %v8304 = vunpack.c.l.b16 %v8162
        %v8305 = vunpack.c.h.b16 %v8162
        %v8306 = vunpack.c.l.b16 %v8163
        %v8307 = vunpack.c.h.b16 %v8163
        %v8308 = vunpack.c.l.b16 %v8164
        %v8309 = vunpack.c.h.b16 %v8164
        %v8310 = vunpack.c.l.b16 %v8165
        %v8311 = vunpack.c.h.b16 %v8165
        %v8312 = vunpack.c.l.b16 %v8166
        %v8313 = vunpack.c.h.b16 %v8166
        %v8314 = vunpack.c.l.b16 %v8167
        %v8315 = vunpack.c.h.b16 %v8167
        %v8316 = vunpack.c.l.b16 %v8168
        %v8317 = vunpack.c.h.b16 %v8168
        %v8318 = vunpack.c.l.b16 %v8169
        %v8319 = vunpack.c.h.b16 %v8169
        %v8320 = vunpack.c.l.b16 %v8170
        %v8321 = vunpack.c.h.b16 %v8170
        %v8322 = vunpack.c.l.b16 %v8171
        %v8323 = vunpack.c.h.b16 %v8171
        %v8324 = vunpack.c.l.b16 %v8172
        %v8325 = vunpack.c.h.b16 %v8172
        %v8326 = vunpack.c.l.b16 %v8173
        %v8327 = vunpack.c.h.b16 %v8173
        %v8328 = vunpack.c.l.b16 %v8174
        %v8329 = vunpack.c.h.b16 %v8174
        %v8330 = vunpack.c.l.b16 %v8175
        %v8331 = vunpack.c.h.b16 %v8175
        %v8332 = vunpack.c.l.b16 %v8176
        %v8333 = vunpack.c.h.b16 %v8176
        %v8334 = vunpack.c.l.b16 %v8177
        %v8335 = vunpack.c.h.b16 %v8177
        %v8336 = vunpack.c.l.b16 %v8178
        %v8337 = vunpack.c.h.b16 %v8178
        %v8338 = vunpack.c.l.b16 %v8179
        %v8339 = vunpack.c.h.b16 %v8179
        %v8340 = vunpack.c.l.b16 %v8180
        %v8341 = vunpack.c.h.b16 %v8180
        %v8342 = vunpack.c.l.b16 %v8181
        %v8343 = vunpack.c.h.b16 %v8181
        %v8344 = vunpack.c.l.b16 %v8182
        %v8345 = vunpack.c.h.b16 %v8182
        %v8346 = vunpack.c.l.b16 %v8183
        %v8347 = vunpack.c.h.b16 %v8183
        %v8348 = vunpack.c.l.b16 %v8184
        %v8349 = vunpack.c.h.b16 %v8184
        %v8350 = vunpack.c.l.b16 %v8185
        %v8351 = vunpack.c.h.b16 %v8185
        %v8352 = vunpack.c.l.b16 %v8186
        %v8353 = vunpack.c.h.b16 %v8186
        %v8354 = vunpack.c.l.b16 %v8187
        %v8355 = vunpack.c.h.b16 %v8187
        %v8356 = vunpack.c.l.b16 %v8188
        %v8357 = vunpack.c.h.b16 %v8188
        %v8358 = vunpack.c.l.b16 %v8189
        %v8359 = vunpack.c.h.b16 %v8189
        %v8360 = vunpack.c.l.b16 %v8190
        %v8361 = vunpack.c.h.b16 %v8190
        %v8362 = vunpack.c.l.b16 %v8191
        %v8363 = vunpack.c.h.b16 %v8191
        %v8364 = vunpack.c.l.b16 %v8192
        %v8365 = vunpack.c.h.b16 %v8192
        %v8366 = vunpack.c.l.b16 %v8193
        %v8367 = vunpack.c.h.b16 %v8193
        %v8368 = vunpack.c.l.b16 %v8194
        %v8369 = vunpack.c.h.b16 %v8194
        %v8370 = vunpack.c.l.b16 %v8195
        %v8371 = vunpack.c.h.b16 %v8195
        %v8372 = vunpack.c.l.b16 %v8196
        %v8373 = vunpack.c.h.b16 %v8196
        %v8374 = vunpack.c.l.b16 %v8197
        %v8375 = vunpack.c.h.b16 %v8197
        %v8376 = vunpack.c.l.b16 %v8198
        %v8377 = vunpack.c.h.b16 %v8198
        %v8378 = vunpack.c.l.b16 %v8199
        %v8379 = vunpack.c.h.b16 %v8199
        %v8380 = vunpack.c.l.b16 %v8200
        %v8381 = vunpack.c.h.b16 %v8200
        %v8382 = vunpack.c.l.b16 %v8201
        %v8383 = vunpack.c.h.b16 %v8201
        %v8384 = vunpack.c.l.b16 %v8202
        %v8385 = vunpack.c.h.b16 %v8202
        %v8386 = vunpack.c.l.b16 %v8203
        %v8387 = vunpack.c.h.b16 %v8203
        %v8388 = vunpack.c.l.b16 %v8204
        %v8389 = vunpack.c.h.b16 %v8204
        %v8390 = vunpack.c.l.b16 %v8205
        %v8391 = vunpack.c.h.b16 %v8205
        %v8392 = vunpack.c.l.b16 %v8206
        %v8393 = vunpack.c.h.b16 %v8206
        %v8394 = vunpack.c.l.b16 %v8207
        %v8395 = vunpack.c.h.b16 %v8207
        %v8396 = vunpack.c.l.b16 %v8208
        %v8397 = vunpack.c.h.b16 %v8208
        %v8398 = vunpack.c.l.b16 %v8209
        %v8399 = vunpack.c.h.b16 %v8209
        %v8400 = vunpack.c.l.b16 %v8210
        %v8401 = vunpack.c.h.b16 %v8210
        %v8402 = vunpack.c.l.b16 %v8211
        %v8403 = vunpack.c.h.b16 %v8211
        %v8404 = vpack.c.b16 %v8280, %v8276
        %v8405 = vpack.c.b16 %v8281, %v8277
        %v8406 = vpack.c.b16 %v8282, %v8278
        %v8407 = vpack.c.b16 %v8283, %v8279
        %v8408 = vpack.c.b16 %v8288, %v8284
        %v8409 = vpack.c.b16 %v8289, %v8285
        %v8410 = vpack.c.b16 %v8290, %v8286
        %v8411 = vpack.c.b16 %v8291, %v8287
        %v8412 = vpack.c.b16 %v8296, %v8292
        %v8413 = vpack.c.b16 %v8297, %v8293
        %v8414 = vpack.c.b16 %v8298, %v8294
        %v8415 = vpack.c.b16 %v8299, %v8295
        %v8416 = vpack.c.b16 %v8304, %v8300
        %v8417 = vpack.c.b16 %v8305, %v8301
        %v8418 = vpack.c.b16 %v8306, %v8302
        %v8419 = vpack.c.b16 %v8307, %v8303
        %v8420 = vpack.c.b16 %v8312, %v8308
        %v8421 = vpack.c.b16 %v8313, %v8309
        %v8422 = vpack.c.b16 %v8314, %v8310
        %v8423 = vpack.c.b16 %v8315, %v8311
        %v8424 = vpack.c.b16 %v8320, %v8316
        %v8425 = vpack.c.b16 %v8321, %v8317
        %v8426 = vpack.c.b16 %v8322, %v8318
        %v8427 = vpack.c.b16 %v8323, %v8319
        %v8428 = vpack.c.b16 %v8328, %v8324
        %v8429 = vpack.c.b16 %v8329, %v8325
        %v8430 = vpack.c.b16 %v8330, %v8326
        %v8431 = vpack.c.b16 %v8331, %v8327
        %v8432 = vpack.c.b16 %v8336, %v8332
        %v8433 = vpack.c.b16 %v8337, %v8333
        %v8434 = vpack.c.b16 %v8338, %v8334
        %v8435 = vpack.c.b16 %v8339, %v8335
        %v8436 = vpack.c.b16 %v8344, %v8340
        %v8437 = vpack.c.b16 %v8345, %v8341
        %v8438 = vpack.c.b16 %v8346, %v8342
        %v8439 = vpack.c.b16 %v8347, %v8343
        %v8440 = vpack.c.b16 %v8352, %v8348
        %v8441 = vpack.c.b16 %v8353, %v8349
        %v8442 = vpack.c.b16 %v8354, %v8350
        %v8443 = vpack.c.b16 %v8355, %v8351
        %v8444 = vpack.c.b16 %v8360, %v8356
        %v8445 = vpack.c.b16 %v8361, %v8357
        %v8446 = vpack.c.b16 %v8362, %v8358
        %v8447 = vpack.c.b16 %v8363, %v8359
        %v8448 = vpack.c.b16 %v8368, %v8364
        %v8449 = vpack.c.b16 %v8369, %v8365
        %v8450 = vpack.c.b16 %v8370, %v8366
        %v8451 = vpack.c.b16 %v8371, %v8367
        %v8452 = vpack.c.b16 %v8376, %v8372
        %v8453 = vpack.c.b16 %v8377, %v8373
        %v8454 = vpack.c.b16 %v8378, %v8374
        %v8455 = vpack.c.b16 %v8379, %v8375
        %v8456 = vpack.c.b16 %v8384, %v8380
        %v8457 = vpack.c.b16 %v8385, %v8381
        %v8458 = vpack.c.b16 %v8386, %v8382
        %v8459 = vpack.c.b16 %v8387, %v8383
        %v8460 = vpack.c.b16 %v8392, %v8388
        %v8461 = vpack.c.b16 %v8393, %v8389
        %v8462 = vpack.c.b16 %v8394, %v8390
        %v8463 = vpack.c.b16 %v8395, %v8391
        %v8464 = vpack.c.b16 %v8400, %v8396
        %v8465 = vpack.c.b16 %v8401, %v8397
        %v8466 = vpack.c.b16 %v8402, %v8398
        %v8467 = vpack.c.b16 %v8403, %v8399
        %8532 = vmatprep.subr.bf16.mxu0 %v8405
        %8533 = vmatpush1.bf16.msra.mxu0 %v8404
        %8534 = vmatprep.subr.bf16.mxu0 %v8409
        %8535 = vmatpush1.bf16.msra.mxu0 %v8408
        %8536 = vmatprep.subr.bf16.mxu0 %v8413
        %8537 = vmatpush1.bf16.msra.mxu0 %v8412
        %8538 = vmatprep.subr.bf16.mxu0 %v8417
        %8539 = vmatpush1.bf16.msra.mxu0 %v8416
        %8540 = vmatprep.subr.bf16.mxu0 %v8421
        %8541 = vmatpush1.bf16.msra.mxu0 %v8420
        %8542 = vmatprep.subr.bf16.mxu0 %v8425
        %8543 = vmatpush1.bf16.msra.mxu0 %v8424
        %8544 = vmatprep.subr.bf16.mxu0 %v8429
        %8545 = vmatpush1.bf16.msra.mxu0 %v8428
        %8546 = vmatprep.subr.bf16.mxu0 %v8433
        %8547 = vmatpush1.bf16.msra.mxu0 %v8432
        %8548 = vmatprep.subr.bf16.mxu0 %v8437
        %8549 = vmatpush1.bf16.msra.mxu0 %v8436
        %8550 = vmatprep.subr.bf16.mxu0 %v8441
        %8551 = vmatpush1.bf16.msra.mxu0 %v8440
        %8552 = vmatprep.subr.bf16.mxu0 %v8445
        %8553 = vmatpush1.bf16.msra.mxu0 %v8444
        %8554 = vmatprep.subr.bf16.mxu0 %v8449
        %8555 = vmatpush1.bf16.msra.mxu0 %v8448
        %8556 = vmatprep.subr.bf16.mxu0 %v8453
        %8557 = vmatpush1.bf16.msra.mxu0 %v8452
        %8558 = vmatprep.subr.bf16.mxu0 %v8457
        %8559 = vmatpush1.bf16.msra.mxu0 %v8456
        %8560 = vmatprep.subr.bf16.mxu0 %v8461
        %8561 = vmatpush1.bf16.msra.mxu0 %v8460
        %8562 = vmatprep.subr.bf16.mxu0 %v8465
        %8563 = vmatpush1.bf16.msra.mxu0 %v8464
        %8564 = vmatprep.mubr.bf16.mxu0 %v8146
        %8565 = vmatmul.mubr.bf16.gmra.mrb[0].mxu0 %v8145
        %v8566 = vpop.f32.mrb[0].mxu0
        %v8567 = vadd.f32 0.0, %v8566
        %v8568 = vpop.f32.mrb[0].mxu0
        %v8569 = vadd.f32 0.0, %v8568
        %v8570 = vpop.f32.mrb[0].mxu0
        %v8571 = vpop.f32.mrb[0].mxu0
        %8572 = vdwg.mxu0
        %8573 = vmatprep.subr.bf16.mxu0 %v8407
        %8574 = vmatpush1.bf16.msra.mxu0 %v8406
        %8575 = vmatprep.subr.bf16.mxu0 %v8411
        %8576 = vmatpush1.bf16.msra.mxu0 %v8410
        %8577 = vmatprep.subr.bf16.mxu0 %v8415
        %8578 = vmatpush1.bf16.msra.mxu0 %v8414
        %8579 = vmatprep.subr.bf16.mxu0 %v8419
        %8580 = vmatpush1.bf16.msra.mxu0 %v8418
        %8581 = vmatprep.subr.bf16.mxu0 %v8423
        %8582 = vmatpush1.bf16.msra.mxu0 %v8422
        %8583 = vmatprep.subr.bf16.mxu0 %v8427
        %8584 = vmatpush1.bf16.msra.mxu0 %v8426
        %8585 = vmatprep.subr.bf16.mxu0 %v8431
        %8586 = vmatpush1.bf16.msra.mxu0 %v8430
        %8587 = vmatprep.subr.bf16.mxu0 %v8435
        %8588 = vmatpush1.bf16.msra.mxu0 %v8434
        %8589 = vmatprep.subr.bf16.mxu0 %v8439
        %8590 = vmatpush1.bf16.msra.mxu0 %v8438
        %8591 = vmatprep.subr.bf16.mxu0 %v8443
        %8592 = vmatpush1.bf16.msra.mxu0 %v8442
        %8593 = vmatprep.subr.bf16.mxu0 %v8447
        %8594 = vmatpush1.bf16.msra.mxu0 %v8446
        %8595 = vmatprep.subr.bf16.mxu0 %v8451
        %8596 = vmatpush1.bf16.msra.mxu0 %v8450
        %8597 = vmatprep.subr.bf16.mxu0 %v8455
        %8598 = vmatpush1.bf16.msra.mxu0 %v8454
        %8599 = vmatprep.subr.bf16.mxu0 %v8459
        %8600 = vmatpush1.bf16.msra.mxu0 %v8458
        %8601 = vmatprep.subr.bf16.mxu0 %v8463
        %8602 = vmatpush1.bf16.msra.mxu0 %v8462
        %8603 = vmatprep.subr.bf16.mxu0 %v8467
        %8604 = vmatpush1.bf16.msra.mxu0 %v8466
        %8605 = vmatprep.mubr.bf16.mxu0 %v8146
        %8606 = vmatmul.mubr.bf16.gmra.mrb[0].mxu0 %v8145
        %v8607 = vpop.f32.mrb[0].mxu0
        %v8608 = vadd.f32 0.0, %v8607
        %v8609 = vpop.f32.mrb[0].mxu0
        %v8610 = vadd.f32 0.0, %v8609
        %v8611 = vpop.f32.mrb[0].mxu0
        %v8612 = vpop.f32.mrb[0].mxu0
        %8613 = vdwg.mxu0
        %v8614 = vadd.f32 %v8130, %v8567
        %v8615 = vadd.f32 %v8131, %v8569
        %v8616 = vadd.f32 %v8132, %v8608
        %v8617 = vadd.f32 %v8133, %v8610
        %v8618 = vcombine.low %v7160, %v5686
        %v8620 = vunpack.c.l.s4 1983009808
        %v8621 = vunpack.c.0.s8 %v8620
        %v8622 = vlaneseq
        %v8623 = vshrl.u32 %v8622, 7
        %v8624 = vsub.s32 %v8621, %v8623
        %v8625 = vrot.slane %v8618, %v8624
        %v8626 = vcombine.high %v8625, %v8625
        %v8629 = vpack.c.bf16 %v8625, %v8625
        %v8630 = vpack.c.bf16 %v8626, %v8626
        %s8631 = scalar_lea.vmem %s7, 3072
        %v8632 = vld [vmem:[%s8631] sm:$0xff]
        %v8633 = vld [vmem:[%s8631 + $0x8] sm:$0xff]
        %v8634 = vld [vmem:[%s8631 + $0x10] sm:$0xff]
        %v8635 = vld [vmem:[%s8631 + $0x18] sm:$0xff]
        %v8636 = vld [vmem:[%s8631 + $0x20] sm:$0xff]
        %v8637 = vld [vmem:[%s8631 + $0x28] sm:$0xff]
        %v8638 = vld [vmem:[%s8631 + $0x30] sm:$0xff]
        %v8639 = vld [vmem:[%s8631 + $0x38] sm:$0xff]
        %v8640 = vld [vmem:[%s8631 + $0x40] sm:$0xff]
        %v8641 = vld [vmem:[%s8631 + $0x48] sm:$0xff]
        %v8642 = vld [vmem:[%s8631 + $0x50] sm:$0xff]
        %v8643 = vld [vmem:[%s8631 + $0x58] sm:$0xff]
        %v8644 = vld [vmem:[%s8631 + $0x60] sm:$0xff]
        %v8645 = vld [vmem:[%s8631 + $0x68] sm:$0xff]
        %v8646 = vld [vmem:[%s8631 + $0x70] sm:$0xff]
        %v8647 = vld [vmem:[%s8631 + $0x78] sm:$0xff]
        %v8648 = vld [vmem:[%s8631 + $0x80] sm:$0xff]
        %v8649 = vld [vmem:[%s8631 + $0x88] sm:$0xff]
        %v8650 = vld [vmem:[%s8631 + $0x90] sm:$0xff]
        %v8651 = vld [vmem:[%s8631 + $0x98] sm:$0xff]
        %v8652 = vld [vmem:[%s8631 + $0xa0] sm:$0xff]
        %v8653 = vld [vmem:[%s8631 + $0xa8] sm:$0xff]
        %v8654 = vld [vmem:[%s8631 + $0xb0] sm:$0xff]
        %v8655 = vld [vmem:[%s8631 + $0xb8] sm:$0xff]
        %v8656 = vld [vmem:[%s8631 + $0xc0] sm:$0xff]
        %v8657 = vld [vmem:[%s8631 + $0xc8] sm:$0xff]
        %v8658 = vld [vmem:[%s8631 + $0xd0] sm:$0xff]
        %v8659 = vld [vmem:[%s8631 + $0xd8] sm:$0xff]
        %v8660 = vld [vmem:[%s8631 + $0xe0] sm:$0xff]
        %v8661 = vld [vmem:[%s8631 + $0xe8] sm:$0xff]
        %v8662 = vld [vmem:[%s8631 + $0xf0] sm:$0xff]
        %v8663 = vld [vmem:[%s8631 + $0xf8] sm:$0xff]
        %v8664 = vld [vmem:[%s8631 + $0x100] sm:$0xff]
        %v8665 = vld [vmem:[%s8631 + $0x108] sm:$0xff]
        %v8666 = vld [vmem:[%s8631 + $0x110] sm:$0xff]
        %v8667 = vld [vmem:[%s8631 + $0x118] sm:$0xff]
        %v8668 = vld [vmem:[%s8631 + $0x120] sm:$0xff]
        %v8669 = vld [vmem:[%s8631 + $0x128] sm:$0xff]
        %v8670 = vld [vmem:[%s8631 + $0x130] sm:$0xff]
        %v8671 = vld [vmem:[%s8631 + $0x138] sm:$0xff]
        %v8672 = vld [vmem:[%s8631 + $0x140] sm:$0xff]
        %v8673 = vld [vmem:[%s8631 + $0x148] sm:$0xff]
        %v8674 = vld [vmem:[%s8631 + $0x150] sm:$0xff]
        %v8675 = vld [vmem:[%s8631 + $0x158] sm:$0xff]
        %v8676 = vld [vmem:[%s8631 + $0x160] sm:$0xff]
        %v8677 = vld [vmem:[%s8631 + $0x168] sm:$0xff]
        %v8678 = vld [vmem:[%s8631 + $0x170] sm:$0xff]
        %v8679 = vld [vmem:[%s8631 + $0x178] sm:$0xff]
        %v8680 = vld [vmem:[%s8631 + $0x180] sm:$0xff]
        %v8681 = vld [vmem:[%s8631 + $0x188] sm:$0xff]
        %v8682 = vld [vmem:[%s8631 + $0x190] sm:$0xff]
        %v8683 = vld [vmem:[%s8631 + $0x198] sm:$0xff]
        %v8684 = vld [vmem:[%s8631 + $0x1a0] sm:$0xff]
        %v8685 = vld [vmem:[%s8631 + $0x1a8] sm:$0xff]
        %v8686 = vld [vmem:[%s8631 + $0x1b0] sm:$0xff]
        %v8687 = vld [vmem:[%s8631 + $0x1b8] sm:$0xff]
        %v8688 = vld [vmem:[%s8631 + $0x1c0] sm:$0xff]
        %v8689 = vld [vmem:[%s8631 + $0x1c8] sm:$0xff]
        %v8690 = vld [vmem:[%s8631 + $0x1d0] sm:$0xff]
        %v8691 = vld [vmem:[%s8631 + $0x1d8] sm:$0xff]
        %v8692 = vld [vmem:[%s8631 + $0x1e0] sm:$0xff]
        %v8693 = vld [vmem:[%s8631 + $0x1e8] sm:$0xff]
        %v8694 = vld [vmem:[%s8631 + $0x1f0] sm:$0xff]
        %v8695 = vld [vmem:[%s8631 + $0x1f8] sm:$0xff]
        %v8760 = vunpack.c.l.b16 %v8632
        %v8761 = vunpack.c.h.b16 %v8632
        %v8762 = vunpack.c.l.b16 %v8633
        %v8763 = vunpack.c.h.b16 %v8633
        %v8764 = vunpack.c.l.b16 %v8634
        %v8765 = vunpack.c.h.b16 %v8634
        %v8766 = vunpack.c.l.b16 %v8635
        %v8767 = vunpack.c.h.b16 %v8635
        %v8768 = vunpack.c.l.b16 %v8636
        %v8769 = vunpack.c.h.b16 %v8636
        %v8770 = vunpack.c.l.b16 %v8637
        %v8771 = vunpack.c.h.b16 %v8637
        %v8772 = vunpack.c.l.b16 %v8638
        %v8773 = vunpack.c.h.b16 %v8638
        %v8774 = vunpack.c.l.b16 %v8639
        %v8775 = vunpack.c.h.b16 %v8639
        %v8776 = vunpack.c.l.b16 %v8640
        %v8777 = vunpack.c.h.b16 %v8640
        %v8778 = vunpack.c.l.b16 %v8641
        %v8779 = vunpack.c.h.b16 %v8641
        %v8780 = vunpack.c.l.b16 %v8642
        %v8781 = vunpack.c.h.b16 %v8642
        %v8782 = vunpack.c.l.b16 %v8643
        %v8783 = vunpack.c.h.b16 %v8643
        %v8784 = vunpack.c.l.b16 %v8644
        %v8785 = vunpack.c.h.b16 %v8644
        %v8786 = vunpack.c.l.b16 %v8645
        %v8787 = vunpack.c.h.b16 %v8645
        %v8788 = vunpack.c.l.b16 %v8646
        %v8789 = vunpack.c.h.b16 %v8646
        %v8790 = vunpack.c.l.b16 %v8647
        %v8791 = vunpack.c.h.b16 %v8647
        %v8792 = vunpack.c.l.b16 %v8648
        %v8793 = vunpack.c.h.b16 %v8648
        %v8794 = vunpack.c.l.b16 %v8649
        %v8795 = vunpack.c.h.b16 %v8649
        %v8796 = vunpack.c.l.b16 %v8650
        %v8797 = vunpack.c.h.b16 %v8650
        %v8798 = vunpack.c.l.b16 %v8651
        %v8799 = vunpack.c.h.b16 %v8651
        %v8800 = vunpack.c.l.b16 %v8652
        %v8801 = vunpack.c.h.b16 %v8652
        %v8802 = vunpack.c.l.b16 %v8653
        %v8803 = vunpack.c.h.b16 %v8653
        %v8804 = vunpack.c.l.b16 %v8654
        %v8805 = vunpack.c.h.b16 %v8654
        %v8806 = vunpack.c.l.b16 %v8655
        %v8807 = vunpack.c.h.b16 %v8655
        %v8808 = vunpack.c.l.b16 %v8656
        %v8809 = vunpack.c.h.b16 %v8656
        %v8810 = vunpack.c.l.b16 %v8657
        %v8811 = vunpack.c.h.b16 %v8657
        %v8812 = vunpack.c.l.b16 %v8658
        %v8813 = vunpack.c.h.b16 %v8658
        %v8814 = vunpack.c.l.b16 %v8659
        %v8815 = vunpack.c.h.b16 %v8659
        %v8816 = vunpack.c.l.b16 %v8660
        %v8817 = vunpack.c.h.b16 %v8660
        %v8818 = vunpack.c.l.b16 %v8661
        %v8819 = vunpack.c.h.b16 %v8661
        %v8820 = vunpack.c.l.b16 %v8662
        %v8821 = vunpack.c.h.b16 %v8662
        %v8822 = vunpack.c.l.b16 %v8663
        %v8823 = vunpack.c.h.b16 %v8663
        %v8824 = vunpack.c.l.b16 %v8664
        %v8825 = vunpack.c.h.b16 %v8664
        %v8826 = vunpack.c.l.b16 %v8665
        %v8827 = vunpack.c.h.b16 %v8665
        %v8828 = vunpack.c.l.b16 %v8666
        %v8829 = vunpack.c.h.b16 %v8666
        %v8830 = vunpack.c.l.b16 %v8667
        %v8831 = vunpack.c.h.b16 %v8667
        %v8832 = vunpack.c.l.b16 %v8668
        %v8833 = vunpack.c.h.b16 %v8668
        %v8834 = vunpack.c.l.b16 %v8669
        %v8835 = vunpack.c.h.b16 %v8669
        %v8836 = vunpack.c.l.b16 %v8670
        %v8837 = vunpack.c.h.b16 %v8670
        %v8838 = vunpack.c.l.b16 %v8671
        %v8839 = vunpack.c.h.b16 %v8671
        %v8840 = vunpack.c.l.b16 %v8672
        %v8841 = vunpack.c.h.b16 %v8672
        %v8842 = vunpack.c.l.b16 %v8673
        %v8843 = vunpack.c.h.b16 %v8673
        %v8844 = vunpack.c.l.b16 %v8674
        %v8845 = vunpack.c.h.b16 %v8674
        %v8846 = vunpack.c.l.b16 %v8675
        %v8847 = vunpack.c.h.b16 %v8675
        %v8848 = vunpack.c.l.b16 %v8676
        %v8849 = vunpack.c.h.b16 %v8676
        %v8850 = vunpack.c.l.b16 %v8677
        %v8851 = vunpack.c.h.b16 %v8677
        %v8852 = vunpack.c.l.b16 %v8678
        %v8853 = vunpack.c.h.b16 %v8678
        %v8854 = vunpack.c.l.b16 %v8679
        %v8855 = vunpack.c.h.b16 %v8679
        %v8856 = vunpack.c.l.b16 %v8680
        %v8857 = vunpack.c.h.b16 %v8680
        %v8858 = vunpack.c.l.b16 %v8681
        %v8859 = vunpack.c.h.b16 %v8681
        %v8860 = vunpack.c.l.b16 %v8682
        %v8861 = vunpack.c.h.b16 %v8682
        %v8862 = vunpack.c.l.b16 %v8683
        %v8863 = vunpack.c.h.b16 %v8683
        %v8864 = vunpack.c.l.b16 %v8684
        %v8865 = vunpack.c.h.b16 %v8684
        %v8866 = vunpack.c.l.b16 %v8685
        %v8867 = vunpack.c.h.b16 %v8685
        %v8868 = vunpack.c.l.b16 %v8686
        %v8869 = vunpack.c.h.b16 %v8686
        %v8870 = vunpack.c.l.b16 %v8687
        %v8871 = vunpack.c.h.b16 %v8687
        %v8872 = vunpack.c.l.b16 %v8688
        %v8873 = vunpack.c.h.b16 %v8688
        %v8874 = vunpack.c.l.b16 %v8689
        %v8875 = vunpack.c.h.b16 %v8689
        %v8876 = vunpack.c.l.b16 %v8690
        %v8877 = vunpack.c.h.b16 %v8690
        %v8878 = vunpack.c.l.b16 %v8691
        %v8879 = vunpack.c.h.b16 %v8691
        %v8880 = vunpack.c.l.b16 %v8692
        %v8881 = vunpack.c.h.b16 %v8692
        %v8882 = vunpack.c.l.b16 %v8693
        %v8883 = vunpack.c.h.b16 %v8693
        %v8884 = vunpack.c.l.b16 %v8694
        %v8885 = vunpack.c.h.b16 %v8694
        %v8886 = vunpack.c.l.b16 %v8695
        %v8887 = vunpack.c.h.b16 %v8695
        %v8888 = vpack.c.b16 %v8764, %v8760
        %v8889 = vpack.c.b16 %v8765, %v8761
        %v8890 = vpack.c.b16 %v8766, %v8762
        %v8891 = vpack.c.b16 %v8767, %v8763
        %v8892 = vpack.c.b16 %v8772, %v8768
        %v8893 = vpack.c.b16 %v8773, %v8769
        %v8894 = vpack.c.b16 %v8774, %v8770
        %v8895 = vpack.c.b16 %v8775, %v8771
        %v8896 = vpack.c.b16 %v8780, %v8776
        %v8897 = vpack.c.b16 %v8781, %v8777
        %v8898 = vpack.c.b16 %v8782, %v8778
        %v8899 = vpack.c.b16 %v8783, %v8779
        %v8900 = vpack.c.b16 %v8788, %v8784
        %v8901 = vpack.c.b16 %v8789, %v8785
        %v8902 = vpack.c.b16 %v8790, %v8786
        %v8903 = vpack.c.b16 %v8791, %v8787
        %v8904 = vpack.c.b16 %v8796, %v8792
        %v8905 = vpack.c.b16 %v8797, %v8793
        %v8906 = vpack.c.b16 %v8798, %v8794
        %v8907 = vpack.c.b16 %v8799, %v8795
        %v8908 = vpack.c.b16 %v8804, %v8800
        %v8909 = vpack.c.b16 %v8805, %v8801
        %v8910 = vpack.c.b16 %v8806, %v8802
        %v8911 = vpack.c.b16 %v8807, %v8803
        %v8912 = vpack.c.b16 %v8812, %v8808
        %v8913 = vpack.c.b16 %v8813, %v8809
        %v8914 = vpack.c.b16 %v8814, %v8810
        %v8915 = vpack.c.b16 %v8815, %v8811
        %v8916 = vpack.c.b16 %v8820, %v8816
        %v8917 = vpack.c.b16 %v8821, %v8817
        %v8918 = vpack.c.b16 %v8822, %v8818
        %v8919 = vpack.c.b16 %v8823, %v8819
        %v8920 = vpack.c.b16 %v8828, %v8824
        %v8921 = vpack.c.b16 %v8829, %v8825
        %v8922 = vpack.c.b16 %v8830, %v8826
        %v8923 = vpack.c.b16 %v8831, %v8827
        %v8924 = vpack.c.b16 %v8836, %v8832
        %v8925 = vpack.c.b16 %v8837, %v8833
        %v8926 = vpack.c.b16 %v8838, %v8834
        %v8927 = vpack.c.b16 %v8839, %v8835
        %v8928 = vpack.c.b16 %v8844, %v8840
        %v8929 = vpack.c.b16 %v8845, %v8841
        %v8930 = vpack.c.b16 %v8846, %v8842
        %v8931 = vpack.c.b16 %v8847, %v8843
        %v8932 = vpack.c.b16 %v8852, %v8848
        %v8933 = vpack.c.b16 %v8853, %v8849
        %v8934 = vpack.c.b16 %v8854, %v8850
        %v8935 = vpack.c.b16 %v8855, %v8851
        %v8936 = vpack.c.b16 %v8860, %v8856
        %v8937 = vpack.c.b16 %v8861, %v8857
        %v8938 = vpack.c.b16 %v8862, %v8858
        %v8939 = vpack.c.b16 %v8863, %v8859
        %v8940 = vpack.c.b16 %v8868, %v8864
        %v8941 = vpack.c.b16 %v8869, %v8865
        %v8942 = vpack.c.b16 %v8870, %v8866
        %v8943 = vpack.c.b16 %v8871, %v8867
        %v8944 = vpack.c.b16 %v8876, %v8872
        %v8945 = vpack.c.b16 %v8877, %v8873
        %v8946 = vpack.c.b16 %v8878, %v8874
        %v8947 = vpack.c.b16 %v8879, %v8875
        %v8948 = vpack.c.b16 %v8884, %v8880
        %v8949 = vpack.c.b16 %v8885, %v8881
        %v8950 = vpack.c.b16 %v8886, %v8882
        %v8951 = vpack.c.b16 %v8887, %v8883
        %9016 = vmatprep.subr.bf16.mxu0 %v8889
        %9017 = vmatpush1.bf16.msra.mxu0 %v8888
        %9018 = vmatprep.subr.bf16.mxu0 %v8893
        %9019 = vmatpush1.bf16.msra.mxu0 %v8892
        %9020 = vmatprep.subr.bf16.mxu0 %v8897
        %9021 = vmatpush1.bf16.msra.mxu0 %v8896
        %9022 = vmatprep.subr.bf16.mxu0 %v8901
        %9023 = vmatpush1.bf16.msra.mxu0 %v8900
        %9024 = vmatprep.subr.bf16.mxu0 %v8905
        %9025 = vmatpush1.bf16.msra.mxu0 %v8904
        %9026 = vmatprep.subr.bf16.mxu0 %v8909
        %9027 = vmatpush1.bf16.msra.mxu0 %v8908
        %9028 = vmatprep.subr.bf16.mxu0 %v8913
        %9029 = vmatpush1.bf16.msra.mxu0 %v8912
        %9030 = vmatprep.subr.bf16.mxu0 %v8917
        %9031 = vmatpush1.bf16.msra.mxu0 %v8916
        %9032 = vmatprep.subr.bf16.mxu0 %v8921
        %9033 = vmatpush1.bf16.msra.mxu0 %v8920
        %9034 = vmatprep.subr.bf16.mxu0 %v8925
        %9035 = vmatpush1.bf16.msra.mxu0 %v8924
        %9036 = vmatprep.subr.bf16.mxu0 %v8929
        %9037 = vmatpush1.bf16.msra.mxu0 %v8928
        %9038 = vmatprep.subr.bf16.mxu0 %v8933
        %9039 = vmatpush1.bf16.msra.mxu0 %v8932
        %9040 = vmatprep.subr.bf16.mxu0 %v8937
        %9041 = vmatpush1.bf16.msra.mxu0 %v8936
        %9042 = vmatprep.subr.bf16.mxu0 %v8941
        %9043 = vmatpush1.bf16.msra.mxu0 %v8940
        %9044 = vmatprep.subr.bf16.mxu0 %v8945
        %9045 = vmatpush1.bf16.msra.mxu0 %v8944
        %9046 = vmatprep.subr.bf16.mxu0 %v8949
        %9047 = vmatpush1.bf16.msra.mxu0 %v8948
        %9048 = vmatprep.mubr.bf16.mxu0 %v8630
        %9049 = vmatmul.mubr.bf16.gmra.mrb[0].mxu0 %v8629
        %v9050 = vpop.f32.mrb[0].mxu0
        %v9051 = vadd.f32 0.0, %v9050
        %v9052 = vpop.f32.mrb[0].mxu0
        %v9053 = vadd.f32 0.0, %v9052
        %v9054 = vpop.f32.mrb[0].mxu0
        %v9055 = vpop.f32.mrb[0].mxu0
        %9056 = vdwg.mxu0
        %9057 = vmatprep.subr.bf16.mxu0 %v8891
        %9058 = vmatpush1.bf16.msra.mxu0 %v8890
        %9059 = vmatprep.subr.bf16.mxu0 %v8895
        %9060 = vmatpush1.bf16.msra.mxu0 %v8894
        %9061 = vmatprep.subr.bf16.mxu0 %v8899
        %9062 = vmatpush1.bf16.msra.mxu0 %v8898
        %9063 = vmatprep.subr.bf16.mxu0 %v8903
        %9064 = vmatpush1.bf16.msra.mxu0 %v8902
        %9065 = vmatprep.subr.bf16.mxu0 %v8907
        %9066 = vmatpush1.bf16.msra.mxu0 %v8906
        %9067 = vmatprep.subr.bf16.mxu0 %v8911
        %9068 = vmatpush1.bf16.msra.mxu0 %v8910
        %9069 = vmatprep.subr.bf16.mxu0 %v8915
        %9070 = vmatpush1.bf16.msra.mxu0 %v8914
        %9071 = vmatprep.subr.bf16.mxu0 %v8919
        %9072 = vmatpush1.bf16.msra.mxu0 %v8918
        %9073 = vmatprep.subr.bf16.mxu0 %v8923
        %9074 = vmatpush1.bf16.msra.mxu0 %v8922
        %9075 = vmatprep.subr.bf16.mxu0 %v8927
        %9076 = vmatpush1.bf16.msra.mxu0 %v8926
        %9077 = vmatprep.subr.bf16.mxu0 %v8931
        %9078 = vmatpush1.bf16.msra.mxu0 %v8930
        %9079 = vmatprep.subr.bf16.mxu0 %v8935
        %9080 = vmatpush1.bf16.msra.mxu0 %v8934
        %9081 = vmatprep.subr.bf16.mxu0 %v8939
        %9082 = vmatpush1.bf16.msra.mxu0 %v8938
        %9083 = vmatprep.subr.bf16.mxu0 %v8943
        %9084 = vmatpush1.bf16.msra.mxu0 %v8942
        %9085 = vmatprep.subr.bf16.mxu0 %v8947
        %9086 = vmatpush1.bf16.msra.mxu0 %v8946
        %9087 = vmatprep.subr.bf16.mxu0 %v8951
        %9088 = vmatpush1.bf16.msra.mxu0 %v8950
        %9089 = vmatprep.mubr.bf16.mxu0 %v8630
        %9090 = vmatmul.mubr.bf16.gmra.mrb[0].mxu0 %v8629
        %v9091 = vpop.f32.mrb[0].mxu0
        %v9092 = vadd.f32 0.0, %v9091
        %v9093 = vpop.f32.mrb[0].mxu0
        %v9094 = vadd.f32 0.0, %v9093
        %v9095 = vpop.f32.mrb[0].mxu0
        %v9096 = vpop.f32.mrb[0].mxu0
        %9097 = vdwg.mxu0
        %v9098 = vadd.f32 %v8614, %v9051
        %v9099 = vadd.f32 %v8615, %v9053
        %v9100 = vadd.f32 %v8616, %v9092
        %v9101 = vadd.f32 %v8617, %v9094
        %v9102 = vcombine.low %v7649, %v5780
        %v9104 = vunpack.c.l.s4 1983009808
        %v9105 = vunpack.c.0.s8 %v9104
        %v9106 = vlaneseq
        %v9107 = vshrl.u32 %v9106, 7
        %v9108 = vsub.s32 %v9105, %v9107
        %v9109 = vrot.slane %v9102, %v9108
        %v9110 = vcombine.high %v9109, %v9109
        %v9113 = vpack.c.bf16 %v9109, %v9109
        %v9114 = vpack.c.bf16 %v9110, %v9110
        %s9115 = scalar_lea.vmem %s7, 3584
        %v9116 = vld [vmem:[%s9115] sm:$0xff]
        %v9117 = vld [vmem:[%s9115 + $0x8] sm:$0xff]
        %v9118 = vld [vmem:[%s9115 + $0x10] sm:$0xff]
        %v9119 = vld [vmem:[%s9115 + $0x18] sm:$0xff]
        %v9120 = vld [vmem:[%s9115 + $0x20] sm:$0xff]
        %v9121 = vld [vmem:[%s9115 + $0x28] sm:$0xff]
        %v9122 = vld [vmem:[%s9115 + $0x30] sm:$0xff]
        %v9123 = vld [vmem:[%s9115 + $0x38] sm:$0xff]
        %v9124 = vld [vmem:[%s9115 + $0x40] sm:$0xff]
        %v9125 = vld [vmem:[%s9115 + $0x48] sm:$0xff]
        %v9126 = vld [vmem:[%s9115 + $0x50] sm:$0xff]
        %v9127 = vld [vmem:[%s9115 + $0x58] sm:$0xff]
        %v9128 = vld [vmem:[%s9115 + $0x60] sm:$0xff]
        %v9129 = vld [vmem:[%s9115 + $0x68] sm:$0xff]
        %v9130 = vld [vmem:[%s9115 + $0x70] sm:$0xff]
        %v9131 = vld [vmem:[%s9115 + $0x78] sm:$0xff]
        %v9132 = vld [vmem:[%s9115 + $0x80] sm:$0xff]
        %v9133 = vld [vmem:[%s9115 + $0x88] sm:$0xff]
        %v9134 = vld [vmem:[%s9115 + $0x90] sm:$0xff]
        %v9135 = vld [vmem:[%s9115 + $0x98] sm:$0xff]
        %v9136 = vld [vmem:[%s9115 + $0xa0] sm:$0xff]
        %v9137 = vld [vmem:[%s9115 + $0xa8] sm:$0xff]
        %v9138 = vld [vmem:[%s9115 + $0xb0] sm:$0xff]
        %v9139 = vld [vmem:[%s9115 + $0xb8] sm:$0xff]
        %v9140 = vld [vmem:[%s9115 + $0xc0] sm:$0xff]
        %v9141 = vld [vmem:[%s9115 + $0xc8] sm:$0xff]
        %v9142 = vld [vmem:[%s9115 + $0xd0] sm:$0xff]
        %v9143 = vld [vmem:[%s9115 + $0xd8] sm:$0xff]
        %v9144 = vld [vmem:[%s9115 + $0xe0] sm:$0xff]
        %v9145 = vld [vmem:[%s9115 + $0xe8] sm:$0xff]
        %v9146 = vld [vmem:[%s9115 + $0xf0] sm:$0xff]
        %v9147 = vld [vmem:[%s9115 + $0xf8] sm:$0xff]
        %v9148 = vld [vmem:[%s9115 + $0x100] sm:$0xff]
        %v9149 = vld [vmem:[%s9115 + $0x108] sm:$0xff]
        %v9150 = vld [vmem:[%s9115 + $0x110] sm:$0xff]
        %v9151 = vld [vmem:[%s9115 + $0x118] sm:$0xff]
        %v9152 = vld [vmem:[%s9115 + $0x120] sm:$0xff]
        %v9153 = vld [vmem:[%s9115 + $0x128] sm:$0xff]
        %v9154 = vld [vmem:[%s9115 + $0x130] sm:$0xff]
        %v9155 = vld [vmem:[%s9115 + $0x138] sm:$0xff]
        %v9156 = vld [vmem:[%s9115 + $0x140] sm:$0xff]
        %v9157 = vld [vmem:[%s9115 + $0x148] sm:$0xff]
        %v9158 = vld [vmem:[%s9115 + $0x150] sm:$0xff]
        %v9159 = vld [vmem:[%s9115 + $0x158] sm:$0xff]
        %v9160 = vld [vmem:[%s9115 + $0x160] sm:$0xff]
        %v9161 = vld [vmem:[%s9115 + $0x168] sm:$0xff]
        %v9162 = vld [vmem:[%s9115 + $0x170] sm:$0xff]
        %v9163 = vld [vmem:[%s9115 + $0x178] sm:$0xff]
        %v9164 = vld [vmem:[%s9115 + $0x180] sm:$0xff]
        %v9165 = vld [vmem:[%s9115 + $0x188] sm:$0xff]
        %v9166 = vld [vmem:[%s9115 + $0x190] sm:$0xff]
        %v9167 = vld [vmem:[%s9115 + $0x198] sm:$0xff]
        %v9168 = vld [vmem:[%s9115 + $0x1a0] sm:$0xff]
        %v9169 = vld [vmem:[%s9115 + $0x1a8] sm:$0xff]
        %v9170 = vld [vmem:[%s9115 + $0x1b0] sm:$0xff]
        %v9171 = vld [vmem:[%s9115 + $0x1b8] sm:$0xff]
        %v9172 = vld [vmem:[%s9115 + $0x1c0] sm:$0xff]
        %v9173 = vld [vmem:[%s9115 + $0x1c8] sm:$0xff]
        %v9174 = vld [vmem:[%s9115 + $0x1d0] sm:$0xff]
        %v9175 = vld [vmem:[%s9115 + $0x1d8] sm:$0xff]
        %v9176 = vld [vmem:[%s9115 + $0x1e0] sm:$0xff]
        %v9177 = vld [vmem:[%s9115 + $0x1e8] sm:$0xff]
        %v9178 = vld [vmem:[%s9115 + $0x1f0] sm:$0xff]
        %v9179 = vld [vmem:[%s9115 + $0x1f8] sm:$0xff]
        %v9244 = vunpack.c.l.b16 %v9116
        %v9245 = vunpack.c.h.b16 %v9116
        %v9246 = vunpack.c.l.b16 %v9117
        %v9247 = vunpack.c.h.b16 %v9117
        %v9248 = vunpack.c.l.b16 %v9118
        %v9249 = vunpack.c.h.b16 %v9118
        %v9250 = vunpack.c.l.b16 %v9119
        %v9251 = vunpack.c.h.b16 %v9119
        %v9252 = vunpack.c.l.b16 %v9120
        %v9253 = vunpack.c.h.b16 %v9120
        %v9254 = vunpack.c.l.b16 %v9121
        %v9255 = vunpack.c.h.b16 %v9121
        %v9256 = vunpack.c.l.b16 %v9122
        %v9257 = vunpack.c.h.b16 %v9122
        %v9258 = vunpack.c.l.b16 %v9123
        %v9259 = vunpack.c.h.b16 %v9123
        %v9260 = vunpack.c.l.b16 %v9124
        %v9261 = vunpack.c.h.b16 %v9124
        %v9262 = vunpack.c.l.b16 %v9125
        %v9263 = vunpack.c.h.b16 %v9125
        %v9264 = vunpack.c.l.b16 %v9126
        %v9265 = vunpack.c.h.b16 %v9126
        %v9266 = vunpack.c.l.b16 %v9127
        %v9267 = vunpack.c.h.b16 %v9127
        %v9268 = vunpack.c.l.b16 %v9128
        %v9269 = vunpack.c.h.b16 %v9128
        %v9270 = vunpack.c.l.b16 %v9129
        %v9271 = vunpack.c.h.b16 %v9129
        %v9272 = vunpack.c.l.b16 %v9130
        %v9273 = vunpack.c.h.b16 %v9130
        %v9274 = vunpack.c.l.b16 %v9131
        %v9275 = vunpack.c.h.b16 %v9131
        %v9276 = vunpack.c.l.b16 %v9132
        %v9277 = vunpack.c.h.b16 %v9132
        %v9278 = vunpack.c.l.b16 %v9133
        %v9279 = vunpack.c.h.b16 %v9133
        %v9280 = vunpack.c.l.b16 %v9134
        %v9281 = vunpack.c.h.b16 %v9134
        %v9282 = vunpack.c.l.b16 %v9135
        %v9283 = vunpack.c.h.b16 %v9135
        %v9284 = vunpack.c.l.b16 %v9136
        %v9285 = vunpack.c.h.b16 %v9136
        %v9286 = vunpack.c.l.b16 %v9137
        %v9287 = vunpack.c.h.b16 %v9137
        %v9288 = vunpack.c.l.b16 %v9138
        %v9289 = vunpack.c.h.b16 %v9138
        %v9290 = vunpack.c.l.b16 %v9139
        %v9291 = vunpack.c.h.b16 %v9139
        %v9292 = vunpack.c.l.b16 %v9140
        %v9293 = vunpack.c.h.b16 %v9140
        %v9294 = vunpack.c.l.b16 %v9141
        %v9295 = vunpack.c.h.b16 %v9141
        %v9296 = vunpack.c.l.b16 %v9142
        %v9297 = vunpack.c.h.b16 %v9142
        %v9298 = vunpack.c.l.b16 %v9143
        %v9299 = vunpack.c.h.b16 %v9143
        %v9300 = vunpack.c.l.b16 %v9144
        %v9301 = vunpack.c.h.b16 %v9144
        %v9302 = vunpack.c.l.b16 %v9145
        %v9303 = vunpack.c.h.b16 %v9145
        %v9304 = vunpack.c.l.b16 %v9146
        %v9305 = vunpack.c.h.b16 %v9146
        %v9306 = vunpack.c.l.b16 %v9147
        %v9307 = vunpack.c.h.b16 %v9147
        %v9308 = vunpack.c.l.b16 %v9148
        %v9309 = vunpack.c.h.b16 %v9148
        %v9310 = vunpack.c.l.b16 %v9149
        %v9311 = vunpack.c.h.b16 %v9149
        %v9312 = vunpack.c.l.b16 %v9150
        %v9313 = vunpack.c.h.b16 %v9150
        %v9314 = vunpack.c.l.b16 %v9151
        %v9315 = vunpack.c.h.b16 %v9151
        %v9316 = vunpack.c.l.b16 %v9152
        %v9317 = vunpack.c.h.b16 %v9152
        %v9318 = vunpack.c.l.b16 %v9153
        %v9319 = vunpack.c.h.b16 %v9153
        %v9320 = vunpack.c.l.b16 %v9154
        %v9321 = vunpack.c.h.b16 %v9154
        %v9322 = vunpack.c.l.b16 %v9155
        %v9323 = vunpack.c.h.b16 %v9155
        %v9324 = vunpack.c.l.b16 %v9156
        %v9325 = vunpack.c.h.b16 %v9156
        %v9326 = vunpack.c.l.b16 %v9157
        %v9327 = vunpack.c.h.b16 %v9157
        %v9328 = vunpack.c.l.b16 %v9158
        %v9329 = vunpack.c.h.b16 %v9158
        %v9330 = vunpack.c.l.b16 %v9159
        %v9331 = vunpack.c.h.b16 %v9159
        %v9332 = vunpack.c.l.b16 %v9160
        %v9333 = vunpack.c.h.b16 %v9160
        %v9334 = vunpack.c.l.b16 %v9161
        %v9335 = vunpack.c.h.b16 %v9161
        %v9336 = vunpack.c.l.b16 %v9162
        %v9337 = vunpack.c.h.b16 %v9162
        %v9338 = vunpack.c.l.b16 %v9163
        %v9339 = vunpack.c.h.b16 %v9163
        %v9340 = vunpack.c.l.b16 %v9164
        %v9341 = vunpack.c.h.b16 %v9164
        %v9342 = vunpack.c.l.b16 %v9165
        %v9343 = vunpack.c.h.b16 %v9165
        %v9344 = vunpack.c.l.b16 %v9166
        %v9345 = vunpack.c.h.b16 %v9166
        %v9346 = vunpack.c.l.b16 %v9167
        %v9347 = vunpack.c.h.b16 %v9167
        %v9348 = vunpack.c.l.b16 %v9168
        %v9349 = vunpack.c.h.b16 %v9168
        %v9350 = vunpack.c.l.b16 %v9169
        %v9351 = vunpack.c.h.b16 %v9169
        %v9352 = vunpack.c.l.b16 %v9170
        %v9353 = vunpack.c.h.b16 %v9170
        %v9354 = vunpack.c.l.b16 %v9171
        %v9355 = vunpack.c.h.b16 %v9171
        %v9356 = vunpack.c.l.b16 %v9172
        %v9357 = vunpack.c.h.b16 %v9172
        %v9358 = vunpack.c.l.b16 %v9173
        %v9359 = vunpack.c.h.b16 %v9173
        %v9360 = vunpack.c.l.b16 %v9174
        %v9361 = vunpack.c.h.b16 %v9174
        %v9362 = vunpack.c.l.b16 %v9175
        %v9363 = vunpack.c.h.b16 %v9175
        %v9364 = vunpack.c.l.b16 %v9176
        %v9365 = vunpack.c.h.b16 %v9176
        %v9366 = vunpack.c.l.b16 %v9177
        %v9367 = vunpack.c.h.b16 %v9177
        %v9368 = vunpack.c.l.b16 %v9178
        %v9369 = vunpack.c.h.b16 %v9178
        %v9370 = vunpack.c.l.b16 %v9179
        %v9371 = vunpack.c.h.b16 %v9179
        %v9372 = vpack.c.b16 %v9248, %v9244
        %v9373 = vpack.c.b16 %v9249, %v9245
        %v9374 = vpack.c.b16 %v9250, %v9246
        %v9375 = vpack.c.b16 %v9251, %v9247
        %v9376 = vpack.c.b16 %v9256, %v9252
        %v9377 = vpack.c.b16 %v9257, %v9253
        %v9378 = vpack.c.b16 %v9258, %v9254
        %v9379 = vpack.c.b16 %v9259, %v9255
        %v9380 = vpack.c.b16 %v9264, %v9260
        %v9381 = vpack.c.b16 %v9265, %v9261
        %v9382 = vpack.c.b16 %v9266, %v9262
        %v9383 = vpack.c.b16 %v9267, %v9263
        %v9384 = vpack.c.b16 %v9272, %v9268
        %v9385 = vpack.c.b16 %v9273, %v9269
        %v9386 = vpack.c.b16 %v9274, %v9270
        %v9387 = vpack.c.b16 %v9275, %v9271
        %v9388 = vpack.c.b16 %v9280, %v9276
        %v9389 = vpack.c.b16 %v9281, %v9277
        %v9390 = vpack.c.b16 %v9282, %v9278
        %v9391 = vpack.c.b16 %v9283, %v9279
        %v9392 = vpack.c.b16 %v9288, %v9284
        %v9393 = vpack.c.b16 %v9289, %v9285
        %v9394 = vpack.c.b16 %v9290, %v9286
        %v9395 = vpack.c.b16 %v9291, %v9287
        %v9396 = vpack.c.b16 %v9296, %v9292
        %v9397 = vpack.c.b16 %v9297, %v9293
        %v9398 = vpack.c.b16 %v9298, %v9294
        %v9399 = vpack.c.b16 %v9299, %v9295
        %v9400 = vpack.c.b16 %v9304, %v9300
        %v9401 = vpack.c.b16 %v9305, %v9301
        %v9402 = vpack.c.b16 %v9306, %v9302
        %v9403 = vpack.c.b16 %v9307, %v9303
        %v9404 = vpack.c.b16 %v9312, %v9308
        %v9405 = vpack.c.b16 %v9313, %v9309
        %v9406 = vpack.c.b16 %v9314, %v9310
        %v9407 = vpack.c.b16 %v9315, %v9311
        %v9408 = vpack.c.b16 %v9320, %v9316
        %v9409 = vpack.c.b16 %v9321, %v9317
        %v9410 = vpack.c.b16 %v9322, %v9318
        %v9411 = vpack.c.b16 %v9323, %v9319
        %v9412 = vpack.c.b16 %v9328, %v9324
        %v9413 = vpack.c.b16 %v9329, %v9325
        %v9414 = vpack.c.b16 %v9330, %v9326
        %v9415 = vpack.c.b16 %v9331, %v9327
        %v9416 = vpack.c.b16 %v9336, %v9332
        %v9417 = vpack.c.b16 %v9337, %v9333
        %v9418 = vpack.c.b16 %v9338, %v9334
        %v9419 = vpack.c.b16 %v9339, %v9335
        %v9420 = vpack.c.b16 %v9344, %v9340
        %v9421 = vpack.c.b16 %v9345, %v9341
        %v9422 = vpack.c.b16 %v9346, %v9342
        %v9423 = vpack.c.b16 %v9347, %v9343
        %v9424 = vpack.c.b16 %v9352, %v9348
        %v9425 = vpack.c.b16 %v9353, %v9349
        %v9426 = vpack.c.b16 %v9354, %v9350
        %v9427 = vpack.c.b16 %v9355, %v9351
        %v9428 = vpack.c.b16 %v9360, %v9356
        %v9429 = vpack.c.b16 %v9361, %v9357
        %v9430 = vpack.c.b16 %v9362, %v9358
        %v9431 = vpack.c.b16 %v9363, %v9359
        %v9432 = vpack.c.b16 %v9368, %v9364
        %v9433 = vpack.c.b16 %v9369, %v9365
        %v9434 = vpack.c.b16 %v9370, %v9366
        %v9435 = vpack.c.b16 %v9371, %v9367
        %9500 = vmatprep.subr.bf16.mxu0 %v9373
        %9501 = vmatpush1.bf16.msra.mxu0 %v9372
        %9502 = vmatprep.subr.bf16.mxu0 %v9377
        %9503 = vmatpush1.bf16.msra.mxu0 %v9376
        %9504 = vmatprep.subr.bf16.mxu0 %v9381
        %9505 = vmatpush1.bf16.msra.mxu0 %v9380
        %9506 = vmatprep.subr.bf16.mxu0 %v9385
        %9507 = vmatpush1.bf16.msra.mxu0 %v9384
        %9508 = vmatprep.subr.bf16.mxu0 %v9389
        %9509 = vmatpush1.bf16.msra.mxu0 %v9388
        %9510 = vmatprep.subr.bf16.mxu0 %v9393
        %9511 = vmatpush1.bf16.msra.mxu0 %v9392
        %9512 = vmatprep.subr.bf16.mxu0 %v9397
        %9513 = vmatpush1.bf16.msra.mxu0 %v9396
        %9514 = vmatprep.subr.bf16.mxu0 %v9401
        %9515 = vmatpush1.bf16.msra.mxu0 %v9400
        %9516 = vmatprep.subr.bf16.mxu0 %v9405
        %9517 = vmatpush1.bf16.msra.mxu0 %v9404
        %9518 = vmatprep.subr.bf16.mxu0 %v9409
        %9519 = vmatpush1.bf16.msra.mxu0 %v9408
        %9520 = vmatprep.subr.bf16.mxu0 %v9413
        %9521 = vmatpush1.bf16.msra.mxu0 %v9412
        %9522 = vmatprep.subr.bf16.mxu0 %v9417
        %9523 = vmatpush1.bf16.msra.mxu0 %v9416
        %9524 = vmatprep.subr.bf16.mxu0 %v9421
        %9525 = vmatpush1.bf16.msra.mxu0 %v9420
        %9526 = vmatprep.subr.bf16.mxu0 %v9425
        %9527 = vmatpush1.bf16.msra.mxu0 %v9424
        %9528 = vmatprep.subr.bf16.mxu0 %v9429
        %9529 = vmatpush1.bf16.msra.mxu0 %v9428
        %9530 = vmatprep.subr.bf16.mxu0 %v9433
        %9531 = vmatpush1.bf16.msra.mxu0 %v9432
        %9532 = vmatprep.mubr.bf16.mxu0 %v9114
        %9533 = vmatmul.mubr.bf16.gmra.mrb[0].mxu0 %v9113
        %v9534 = vpop.f32.mrb[0].mxu0
        %v9535 = vadd.f32 0.0, %v9534
        %v9536 = vpop.f32.mrb[0].mxu0
        %v9537 = vadd.f32 0.0, %v9536
        %v9538 = vpop.f32.mrb[0].mxu0
        %v9539 = vpop.f32.mrb[0].mxu0
        %9540 = vdwg.mxu0
        %9541 = vmatprep.subr.bf16.mxu0 %v9375
        %9542 = vmatpush1.bf16.msra.mxu0 %v9374
        %9543 = vmatprep.subr.bf16.mxu0 %v9379
        %9544 = vmatpush1.bf16.msra.mxu0 %v9378
        %9545 = vmatprep.subr.bf16.mxu0 %v9383
        %9546 = vmatpush1.bf16.msra.mxu0 %v9382
        %9547 = vmatprep.subr.bf16.mxu0 %v9387
        %9548 = vmatpush1.bf16.msra.mxu0 %v9386
        %9549 = vmatprep.subr.bf16.mxu0 %v9391
        %9550 = vmatpush1.bf16.msra.mxu0 %v9390
        %9551 = vmatprep.subr.bf16.mxu0 %v9395
        %9552 = vmatpush1.bf16.msra.mxu0 %v9394
        %9553 = vmatprep.subr.bf16.mxu0 %v9399
        %9554 = vmatpush1.bf16.msra.mxu0 %v9398
        %9555 = vmatprep.subr.bf16.mxu0 %v9403
        %9556 = vmatpush1.bf16.msra.mxu0 %v9402
        %9557 = vmatprep.subr.bf16.mxu0 %v9407
        %9558 = vmatpush1.bf16.msra.mxu0 %v9406
        %9559 = vmatprep.subr.bf16.mxu0 %v9411
        %9560 = vmatpush1.bf16.msra.mxu0 %v9410
        %9561 = vmatprep.subr.bf16.mxu0 %v9415
        %9562 = vmatpush1.bf16.msra.mxu0 %v9414
        %9563 = vmatprep.subr.bf16.mxu0 %v9419
        %9564 = vmatpush1.bf16.msra.mxu0 %v9418
        %9565 = vmatprep.subr.bf16.mxu0 %v9423
        %9566 = vmatpush1.bf16.msra.mxu0 %v9422
        %9567 = vmatprep.subr.bf16.mxu0 %v9427
        %9568 = vmatpush1.bf16.msra.mxu0 %v9426
        %9569 = vmatprep.subr.bf16.mxu0 %v9431
        %9570 = vmatpush1.bf16.msra.mxu0 %v9430
        %9571 = vmatprep.subr.bf16.mxu0 %v9435
        %9572 = vmatpush1.bf16.msra.mxu0 %v9434
        %9573 = vmatprep.mubr.bf16.mxu0 %v9114
        %9574 = vmatmul.mubr.bf16.gmra.mrb[0].mxu0 %v9113
        %v9575 = vpop.f32.mrb[0].mxu0
        %v9576 = vadd.f32 0.0, %v9575
        %v9577 = vpop.f32.mrb[0].mxu0
        %v9578 = vadd.f32 0.0, %v9577
        %v9579 = vpop.f32.mrb[0].mxu0
        %v9580 = vpop.f32.mrb[0].mxu0
        %9581 = vdwg.mxu0
        %v9582 = vadd.f32 %v9098, %v9535
        %v9583 = vadd.f32 %v9099, %v9537
        %v9584 = vadd.f32 %v9100, %v9576
        %v9585 = vadd.f32 %v9101, %v9578
        %v9586 = vcombine.low %v7645, %v5772
        %v9588 = vunpack.c.l.s4 1983009808
        %v9589 = vunpack.c.0.s8 %v9588
        %v9590 = vlaneseq
        %v9591 = vshrl.u32 %v9590, 7
        %v9592 = vsub.s32 %v9589, %v9591
        %v9593 = vrot.slane %v9586, %v9592
        %v9594 = vcombine.high %v9593, %v9593
        %v9597 = vpack.c.bf16 %v9593, %v9593
        %v9598 = vpack.c.bf16 %v9594, %v9594
        %s9599 = scalar_lea.vmem %s7, 4096
        %v9600 = vld [vmem:[%s9599] sm:$0xff]
        %v9601 = vld [vmem:[%s9599 + $0x8] sm:$0xff]
        %v9602 = vld [vmem:[%s9599 + $0x10] sm:$0xff]
        %v9603 = vld [vmem:[%s9599 + $0x18] sm:$0xff]
        %v9604 = vld [vmem:[%s9599 + $0x20] sm:$0xff]
        %v9605 = vld [vmem:[%s9599 + $0x28] sm:$0xff]
        %v9606 = vld [vmem:[%s9599 + $0x30] sm:$0xff]
        %v9607 = vld [vmem:[%s9599 + $0x38] sm:$0xff]
        %v9608 = vld [vmem:[%s9599 + $0x40] sm:$0xff]
        %v9609 = vld [vmem:[%s9599 + $0x48] sm:$0xff]
        %v9610 = vld [vmem:[%s9599 + $0x50] sm:$0xff]
        %v9611 = vld [vmem:[%s9599 + $0x58] sm:$0xff]
        %v9612 = vld [vmem:[%s9599 + $0x60] sm:$0xff]
        %v9613 = vld [vmem:[%s9599 + $0x68] sm:$0xff]
        %v9614 = vld [vmem:[%s9599 + $0x70] sm:$0xff]
        %v9615 = vld [vmem:[%s9599 + $0x78] sm:$0xff]
        %v9616 = vld [vmem:[%s9599 + $0x80] sm:$0xff]
        %v9617 = vld [vmem:[%s9599 + $0x88] sm:$0xff]
        %v9618 = vld [vmem:[%s9599 + $0x90] sm:$0xff]
        %v9619 = vld [vmem:[%s9599 + $0x98] sm:$0xff]
        %v9620 = vld [vmem:[%s9599 + $0xa0] sm:$0xff]
        %v9621 = vld [vmem:[%s9599 + $0xa8] sm:$0xff]
        %v9622 = vld [vmem:[%s9599 + $0xb0] sm:$0xff]
        %v9623 = vld [vmem:[%s9599 + $0xb8] sm:$0xff]
        %v9624 = vld [vmem:[%s9599 + $0xc0] sm:$0xff]
        %v9625 = vld [vmem:[%s9599 + $0xc8] sm:$0xff]
        %v9626 = vld [vmem:[%s9599 + $0xd0] sm:$0xff]
        %v9627 = vld [vmem:[%s9599 + $0xd8] sm:$0xff]
        %v9628 = vld [vmem:[%s9599 + $0xe0] sm:$0xff]
        %v9629 = vld [vmem:[%s9599 + $0xe8] sm:$0xff]
        %v9630 = vld [vmem:[%s9599 + $0xf0] sm:$0xff]
        %v9631 = vld [vmem:[%s9599 + $0xf8] sm:$0xff]
        %v9632 = vld [vmem:[%s9599 + $0x100] sm:$0xff]
        %v9633 = vld [vmem:[%s9599 + $0x108] sm:$0xff]
        %v9634 = vld [vmem:[%s9599 + $0x110] sm:$0xff]
        %v9635 = vld [vmem:[%s9599 + $0x118] sm:$0xff]
        %v9636 = vld [vmem:[%s9599 + $0x120] sm:$0xff]
        %v9637 = vld [vmem:[%s9599 + $0x128] sm:$0xff]
        %v9638 = vld [vmem:[%s9599 + $0x130] sm:$0xff]
        %v9639 = vld [vmem:[%s9599 + $0x138] sm:$0xff]
        %v9640 = vld [vmem:[%s9599 + $0x140] sm:$0xff]
        %v9641 = vld [vmem:[%s9599 + $0x148] sm:$0xff]
        %v9642 = vld [vmem:[%s9599 + $0x150] sm:$0xff]
        %v9643 = vld [vmem:[%s9599 + $0x158] sm:$0xff]
        %v9644 = vld [vmem:[%s9599 + $0x160] sm:$0xff]
        %v9645 = vld [vmem:[%s9599 + $0x168] sm:$0xff]
        %v9646 = vld [vmem:[%s9599 + $0x170] sm:$0xff]
        %v9647 = vld [vmem:[%s9599 + $0x178] sm:$0xff]
        %v9648 = vld [vmem:[%s9599 + $0x180] sm:$0xff]
        %v9649 = vld [vmem:[%s9599 + $0x188] sm:$0xff]
        %v9650 = vld [vmem:[%s9599 + $0x190] sm:$0xff]
        %v9651 = vld [vmem:[%s9599 + $0x198] sm:$0xff]
        %v9652 = vld [vmem:[%s9599 + $0x1a0] sm:$0xff]
        %v9653 = vld [vmem:[%s9599 + $0x1a8] sm:$0xff]
        %v9654 = vld [vmem:[%s9599 + $0x1b0] sm:$0xff]
        %v9655 = vld [vmem:[%s9599 + $0x1b8] sm:$0xff]
        %v9656 = vld [vmem:[%s9599 + $0x1c0] sm:$0xff]
        %v9657 = vld [vmem:[%s9599 + $0x1c8] sm:$0xff]
        %v9658 = vld [vmem:[%s9599 + $0x1d0] sm:$0xff]
        %v9659 = vld [vmem:[%s9599 + $0x1d8] sm:$0xff]
        %v9660 = vld [vmem:[%s9599 + $0x1e0] sm:$0xff]
        %v9661 = vld [vmem:[%s9599 + $0x1e8] sm:$0xff]
        %v9662 = vld [vmem:[%s9599 + $0x1f0] sm:$0xff]
        %v9663 = vld [vmem:[%s9599 + $0x1f8] sm:$0xff]
        %v9728 = vunpack.c.l.b16 %v9600
        %v9729 = vunpack.c.h.b16 %v9600
        %v9730 = vunpack.c.l.b16 %v9601
        %v9731 = vunpack.c.h.b16 %v9601
        %v9732 = vunpack.c.l.b16 %v9602
        %v9733 = vunpack.c.h.b16 %v9602
        %v9734 = vunpack.c.l.b16 %v9603
        %v9735 = vunpack.c.h.b16 %v9603
        %v9736 = vunpack.c.l.b16 %v9604
        %v9737 = vunpack.c.h.b16 %v9604
        %v9738 = vunpack.c.l.b16 %v9605
        %v9739 = vunpack.c.h.b16 %v9605
        %v9740 = vunpack.c.l.b16 %v9606
        %v9741 = vunpack.c.h.b16 %v9606
        %v9742 = vunpack.c.l.b16 %v9607
        %v9743 = vunpack.c.h.b16 %v9607
        %v9744 = vunpack.c.l.b16 %v9608
        %v9745 = vunpack.c.h.b16 %v9608
        %v9746 = vunpack.c.l.b16 %v9609
        %v9747 = vunpack.c.h.b16 %v9609
        %v9748 = vunpack.c.l.b16 %v9610
        %v9749 = vunpack.c.h.b16 %v9610
        %v9750 = vunpack.c.l.b16 %v9611
        %v9751 = vunpack.c.h.b16 %v9611
        %v9752 = vunpack.c.l.b16 %v9612
        %v9753 = vunpack.c.h.b16 %v9612
        %v9754 = vunpack.c.l.b16 %v9613
        %v9755 = vunpack.c.h.b16 %v9613
        %v9756 = vunpack.c.l.b16 %v9614
        %v9757 = vunpack.c.h.b16 %v9614
        %v9758 = vunpack.c.l.b16 %v9615
        %v9759 = vunpack.c.h.b16 %v9615
        %v9760 = vunpack.c.l.b16 %v9616
        %v9761 = vunpack.c.h.b16 %v9616
        %v9762 = vunpack.c.l.b16 %v9617
        %v9763 = vunpack.c.h.b16 %v9617
        %v9764 = vunpack.c.l.b16 %v9618
        %v9765 = vunpack.c.h.b16 %v9618
        %v9766 = vunpack.c.l.b16 %v9619
        %v9767 = vunpack.c.h.b16 %v9619
        %v9768 = vunpack.c.l.b16 %v9620
        %v9769 = vunpack.c.h.b16 %v9620
        %v9770 = vunpack.c.l.b16 %v9621
        %v9771 = vunpack.c.h.b16 %v9621
        %v9772 = vunpack.c.l.b16 %v9622
        %v9773 = vunpack.c.h.b16 %v9622
        %v9774 = vunpack.c.l.b16 %v9623
        %v9775 = vunpack.c.h.b16 %v9623
        %v9776 = vunpack.c.l.b16 %v9624
        %v9777 = vunpack.c.h.b16 %v9624
        %v9778 = vunpack.c.l.b16 %v9625
        %v9779 = vunpack.c.h.b16 %v9625
        %v9780 = vunpack.c.l.b16 %v9626
        %v9781 = vunpack.c.h.b16 %v9626
        %v9782 = vunpack.c.l.b16 %v9627
        %v9783 = vunpack.c.h.b16 %v9627
        %v9784 = vunpack.c.l.b16 %v9628
        %v9785 = vunpack.c.h.b16 %v9628
        %v9786 = vunpack.c.l.b16 %v9629
        %v9787 = vunpack.c.h.b16 %v9629
        %v9788 = vunpack.c.l.b16 %v9630
        %v9789 = vunpack.c.h.b16 %v9630
        %v9790 = vunpack.c.l.b16 %v9631
        %v9791 = vunpack.c.h.b16 %v9631
        %v9792 = vunpack.c.l.b16 %v9632
        %v9793 = vunpack.c.h.b16 %v9632
        %v9794 = vunpack.c.l.b16 %v9633
        %v9795 = vunpack.c.h.b16 %v9633
        %v9796 = vunpack.c.l.b16 %v9634
        %v9797 = vunpack.c.h.b16 %v9634
        %v9798 = vunpack.c.l.b16 %v9635
        %v9799 = vunpack.c.h.b16 %v9635
        %v9800 = vunpack.c.l.b16 %v9636
        %v9801 = vunpack.c.h.b16 %v9636
        %v9802 = vunpack.c.l.b16 %v9637
        %v9803 = vunpack.c.h.b16 %v9637
        %v9804 = vunpack.c.l.b16 %v9638
        %v9805 = vunpack.c.h.b16 %v9638
        %v9806 = vunpack.c.l.b16 %v9639
        %v9807 = vunpack.c.h.b16 %v9639
        %v9808 = vunpack.c.l.b16 %v9640
        %v9809 = vunpack.c.h.b16 %v9640
        %v9810 = vunpack.c.l.b16 %v9641
        %v9811 = vunpack.c.h.b16 %v9641
        %v9812 = vunpack.c.l.b16 %v9642
        %v9813 = vunpack.c.h.b16 %v9642
        %v9814 = vunpack.c.l.b16 %v9643
        %v9815 = vunpack.c.h.b16 %v9643
        %v9816 = vunpack.c.l.b16 %v9644
        %v9817 = vunpack.c.h.b16 %v9644
        %v9818 = vunpack.c.l.b16 %v9645
        %v9819 = vunpack.c.h.b16 %v9645
        %v9820 = vunpack.c.l.b16 %v9646
        %v9821 = vunpack.c.h.b16 %v9646
        %v9822 = vunpack.c.l.b16 %v9647
        %v9823 = vunpack.c.h.b16 %v9647
        %v9824 = vunpack.c.l.b16 %v9648
        %v9825 = vunpack.c.h.b16 %v9648
        %v9826 = vunpack.c.l.b16 %v9649
        %v9827 = vunpack.c.h.b16 %v9649
        %v9828 = vunpack.c.l.b16 %v9650
        %v9829 = vunpack.c.h.b16 %v9650
        %v9830 = vunpack.c.l.b16 %v9651
        %v9831 = vunpack.c.h.b16 %v9651
        %v9832 = vunpack.c.l.b16 %v9652
        %v9833 = vunpack.c.h.b16 %v9652
        %v9834 = vunpack.c.l.b16 %v9653
        %v9835 = vunpack.c.h.b16 %v9653
        %v9836 = vunpack.c.l.b16 %v9654
        %v9837 = vunpack.c.h.b16 %v9654
        %v9838 = vunpack.c.l.b16 %v9655
        %v9839 = vunpack.c.h.b16 %v9655
        %v9840 = vunpack.c.l.b16 %v9656
        %v9841 = vunpack.c.h.b16 %v9656
        %v9842 = vunpack.c.l.b16 %v9657
        %v9843 = vunpack.c.h.b16 %v9657
        %v9844 = vunpack.c.l.b16 %v9658
        %v9845 = vunpack.c.h.b16 %v9658
        %v9846 = vunpack.c.l.b16 %v9659
        %v9847 = vunpack.c.h.b16 %v9659
        %v9848 = vunpack.c.l.b16 %v9660
        %v9849 = vunpack.c.h.b16 %v9660
        %v9850 = vunpack.c.l.b16 %v9661
        %v9851 = vunpack.c.h.b16 %v9661
        %v9852 = vunpack.c.l.b16 %v9662
        %v9853 = vunpack.c.h.b16 %v9662
        %v9854 = vunpack.c.l.b16 %v9663
        %v9855 = vunpack.c.h.b16 %v9663
        %v9856 = vpack.c.b16 %v9732, %v9728
        %v9857 = vpack.c.b16 %v9733, %v9729
        %v9858 = vpack.c.b16 %v9734, %v9730
        %v9859 = vpack.c.b16 %v9735, %v9731
        %v9860 = vpack.c.b16 %v9740, %v9736
        %v9861 = vpack.c.b16 %v9741, %v9737
        %v9862 = vpack.c.b16 %v9742, %v9738
        %v9863 = vpack.c.b16 %v9743, %v9739
        %v9864 = vpack.c.b16 %v9748, %v9744
        %v9865 = vpack.c.b16 %v9749, %v9745
        %v9866 = vpack.c.b16 %v9750, %v9746
        %v9867 = vpack.c.b16 %v9751, %v9747
        %v9868 = vpack.c.b16 %v9756, %v9752
        %v9869 = vpack.c.b16 %v9757, %v9753
        %v9870 = vpack.c.b16 %v9758, %v9754
        %v9871 = vpack.c.b16 %v9759, %v9755
        %v9872 = vpack.c.b16 %v9764, %v9760
        %v9873 = vpack.c.b16 %v9765, %v9761
        %v9874 = vpack.c.b16 %v9766, %v9762
        %v9875 = vpack.c.b16 %v9767, %v9763
        %v9876 = vpack.c.b16 %v9772, %v9768
        %v9877 = vpack.c.b16 %v9773, %v9769
        %v9878 = vpack.c.b16 %v9774, %v9770
        %v9879 = vpack.c.b16 %v9775, %v9771
        %v9880 = vpack.c.b16 %v9780, %v9776
        %v9881 = vpack.c.b16 %v9781, %v9777
        %v9882 = vpack.c.b16 %v9782, %v9778
        %v9883 = vpack.c.b16 %v9783, %v9779
        %v9884 = vpack.c.b16 %v9788, %v9784
        %v9885 = vpack.c.b16 %v9789, %v9785
        %v9886 = vpack.c.b16 %v9790, %v9786
        %v9887 = vpack.c.b16 %v9791, %v9787
        %v9888 = vpack.c.b16 %v9796, %v9792
        %v9889 = vpack.c.b16 %v9797, %v9793
        %v9890 = vpack.c.b16 %v9798, %v9794
        %v9891 = vpack.c.b16 %v9799, %v9795
        %v9892 = vpack.c.b16 %v9804, %v9800
        %v9893 = vpack.c.b16 %v9805, %v9801
        %v9894 = vpack.c.b16 %v9806, %v9802
        %v9895 = vpack.c.b16 %v9807, %v9803
        %v9896 = vpack.c.b16 %v9812, %v9808
        %v9897 = vpack.c.b16 %v9813, %v9809
        %v9898 = vpack.c.b16 %v9814, %v9810
        %v9899 = vpack.c.b16 %v9815, %v9811
        %v9900 = vpack.c.b16 %v9820, %v9816
        %v9901 = vpack.c.b16 %v9821, %v9817
        %v9902 = vpack.c.b16 %v9822, %v9818
        %v9903 = vpack.c.b16 %v9823, %v9819
        %v9904 = vpack.c.b16 %v9828, %v9824
        %v9905 = vpack.c.b16 %v9829, %v9825
        %v9906 = vpack.c.b16 %v9830, %v9826
        %v9907 = vpack.c.b16 %v9831, %v9827
        %v9908 = vpack.c.b16 %v9836, %v9832
        %v9909 = vpack.c.b16 %v9837, %v9833
        %v9910 = vpack.c.b16 %v9838, %v9834
        %v9911 = vpack.c.b16 %v9839, %v9835
        %v9912 = vpack.c.b16 %v9844, %v9840
        %v9913 = vpack.c.b16 %v9845, %v9841
        %v9914 = vpack.c.b16 %v9846, %v9842
        %v9915 = vpack.c.b16 %v9847, %v9843
        %v9916 = vpack.c.b16 %v9852, %v9848
        %v9917 = vpack.c.b16 %v9853, %v9849
        %v9918 = vpack.c.b16 %v9854, %v9850
        %v9919 = vpack.c.b16 %v9855, %v9851
        %9984 = vmatprep.subr.bf16.mxu0 %v9857
        %9985 = vmatpush1.bf16.msra.mxu0 %v9856
        %9986 = vmatprep.subr.bf16.mxu0 %v9861
        %9987 = vmatpush1.bf16.msra.mxu0 %v9860
        %9988 = vmatprep.subr.bf16.mxu0 %v9865
        %9989 = vmatpush1.bf16.msra.mxu0 %v9864
        %9990 = vmatprep.subr.bf16.mxu0 %v9869
        %9991 = vmatpush1.bf16.msra.mxu0 %v9868
        %9992 = vmatprep.subr.bf16.mxu0 %v9873
        %9993 = vmatpush1.bf16.msra.mxu0 %v9872
        %9994 = vmatprep.subr.bf16.mxu0 %v9877
        %9995 = vmatpush1.bf16.msra.mxu0 %v9876
        %9996 = vmatprep.subr.bf16.mxu0 %v9881
        %9997 = vmatpush1.bf16.msra.mxu0 %v9880
        %9998 = vmatprep.subr.bf16.mxu0 %v9885
        %9999 = vmatpush1.bf16.msra.mxu0 %v9884
        %10000 = vmatprep.subr.bf16.mxu0 %v9889
        %10001 = vmatpush1.bf16.msra.mxu0 %v9888
        %10002 = vmatprep.subr.bf16.mxu0 %v9893
        %10003 = vmatpush1.bf16.msra.mxu0 %v9892
        %10004 = vmatprep.subr.bf16.mxu0 %v9897
        %10005 = vmatpush1.bf16.msra.mxu0 %v9896
        %10006 = vmatprep.subr.bf16.mxu0 %v9901
        %10007 = vmatpush1.bf16.msra.mxu0 %v9900
        %10008 = vmatprep.subr.bf16.mxu0 %v9905
        %10009 = vmatpush1.bf16.msra.mxu0 %v9904
        %10010 = vmatprep.subr.bf16.mxu0 %v9909
        %10011 = vmatpush1.bf16.msra.mxu0 %v9908
        %10012 = vmatprep.subr.bf16.mxu0 %v9913
        %10013 = vmatpush1.bf16.msra.mxu0 %v9912
        %10014 = vmatprep.subr.bf16.mxu0 %v9917
        %10015 = vmatpush1.bf16.msra.mxu0 %v9916
        %10016 = vmatprep.mubr.bf16.mxu0 %v9598
        %10017 = vmatmul.mubr.bf16.gmra.mrb[0].mxu0 %v9597
        %v10018 = vpop.f32.mrb[0].mxu0
        %v10019 = vadd.f32 0.0, %v10018
        %v10020 = vpop.f32.mrb[0].mxu0
        %v10021 = vadd.f32 0.0, %v10020
        %v10022 = vpop.f32.mrb[0].mxu0
        %v10023 = vpop.f32.mrb[0].mxu0
        %10024 = vdwg.mxu0
        %10025 = vmatprep.subr.bf16.mxu0 %v9859
        %10026 = vmatpush1.bf16.msra.mxu0 %v9858
        %10027 = vmatprep.subr.bf16.mxu0 %v9863
        %10028 = vmatpush1.bf16.msra.mxu0 %v9862
        %10029 = vmatprep.subr.bf16.mxu0 %v9867
        %10030 = vmatpush1.bf16.msra.mxu0 %v9866
        %10031 = vmatprep.subr.bf16.mxu0 %v9871
        %10032 = vmatpush1.bf16.msra.mxu0 %v9870
        %10033 = vmatprep.subr.bf16.mxu0 %v9875
        %10034 = vmatpush1.bf16.msra.mxu0 %v9874
        %10035 = vmatprep.subr.bf16.mxu0 %v9879
        %10036 = vmatpush1.bf16.msra.mxu0 %v9878
        %10037 = vmatprep.subr.bf16.mxu0 %v9883
        %10038 = vmatpush1.bf16.msra.mxu0 %v9882
        %10039 = vmatprep.subr.bf16.mxu0 %v9887
        %10040 = vmatpush1.bf16.msra.mxu0 %v9886
        %10041 = vmatprep.subr.bf16.mxu0 %v9891
        %10042 = vmatpush1.bf16.msra.mxu0 %v9890
        %10043 = vmatprep.subr.bf16.mxu0 %v9895
        %10044 = vmatpush1.bf16.msra.mxu0 %v9894
        %10045 = vmatprep.subr.bf16.mxu0 %v9899
        %10046 = vmatpush1.bf16.msra.mxu0 %v9898
        %10047 = vmatprep.subr.bf16.mxu0 %v9903
        %10048 = vmatpush1.bf16.msra.mxu0 %v9902
        %10049 = vmatprep.subr.bf16.mxu0 %v9907
        %10050 = vmatpush1.bf16.msra.mxu0 %v9906
        %10051 = vmatprep.subr.bf16.mxu0 %v9911
        %10052 = vmatpush1.bf16.msra.mxu0 %v9910
        %10053 = vmatprep.subr.bf16.mxu0 %v9915
        %10054 = vmatpush1.bf16.msra.mxu0 %v9914
        %10055 = vmatprep.subr.bf16.mxu0 %v9919
        %10056 = vmatpush1.bf16.msra.mxu0 %v9918
        %10057 = vmatprep.mubr.bf16.mxu0 %v9598
        %10058 = vmatmul.mubr.bf16.gmra.mrb[0].mxu0 %v9597
        %v10059 = vpop.f32.mrb[0].mxu0
        %v10060 = vadd.f32 0.0, %v10059
        %v10061 = vpop.f32.mrb[0].mxu0
        %v10062 = vadd.f32 0.0, %v10061
        %v10063 = vpop.f32.mrb[0].mxu0
        %v10064 = vpop.f32.mrb[0].mxu0
        %10065 = vdwg.mxu0
        %v10066 = vadd.f32 %v9582, %v10019
        %v10067 = vadd.f32 %v9583, %v10021
        %v10068 = vadd.f32 %v9584, %v10060
        %v10069 = vadd.f32 %v9585, %v10062
        %v10070 = vld [vmem:[%s8] sm:$0xf]
        %v10072 = vlaneseq
        %v10073 = vshrl.u32 %v10072, 7
        %v10074 = vsub.s32 0, %v10073
        %v10075 = vrot.slane %v10070, %v10074
        %v10076 = vlaneseq
        %v10077 = vshrl.u32 %v10076, 7
        %v10078 = vsub.s32 1, %v10077
        %v10079 = vrot.slane %v10070, %v10078
        %v10080 = vlaneseq
        %v10081 = vshrl.u32 %v10080, 7
        %v10082 = vsub.s32 2, %v10081
        %v10083 = vrot.slane %v10070, %v10082
        %v10084 = vlaneseq
        %v10085 = vshrl.u32 %v10084, 7
        %v10086 = vsub.s32 3, %v10085
        %v10087 = vrot.slane %v10070, %v10086
        %v10092 = vadd.f32 %v10066, %v10075
        %v10093 = vadd.f32 %v10067, %v10079
        %v10094 = vadd.f32 %v10068, %v10083
        %v10095 = vadd.f32 %v10069, %v10087
        %v10096 = vmax.f32 %v10092, 0.0
        %v10097 = vmax.f32 %v10093, 0.0
        %v10098 = vmax.f32 %v10094, 0.0
        %v10099 = vmax.f32 %v10095, 0.0
        %v10104 = vcombine.low %v10096, %v10097
        %v10105 = vcombine.low %v10098, %v10099
        %v10107 = vunpack.c.l.s4 1983009808
        %v10108 = vunpack.c.0.s8 %v10107
        %v10109 = vlaneseq
        %v10110 = vshrl.u32 %v10109, 7
        %v10111 = vsub.s32 %v10108, %v10110
        %v10112 = vrot.slane %v10104, %v10111
        %v10114 = vunpack.c.l.s4 1983009808
        %v10115 = vunpack.c.0.s8 %v10114
        %v10116 = vlaneseq
        %v10117 = vshrl.u32 %v10116, 7
        %v10118 = vsub.s32 %v10115, %v10117
        %v10119 = vrot.slane %v10105, %v10118
        %v10120 = vcombine.low %v10112, %v10119
        %v10121 = vcombine.high %v10112, %v10119
        %v10124 = vrot.slane %v10120, 7
        %v10125 = vrot.slane %v10124, 2
        %v10126 = vrot.slane %v10121, 7
        %v10127 = vrot.slane %v10126, 2
        %v10130 = vmax.f32 %v10120, %v10125
        %v10131 = vmax.f32 %v10121, %v10127
        %v10132 = vmax.f32 %v10130, %v10131
        %v10134 = vlaneseq
        %v10135 = vshrl.u32 %v10134, 7
        %v10136 = vsub.s32 0, %v10135
        %v10137 = vrot.slane %v10132, %v10136
        %v10138 = vlaneseq
        %v10139 = vshrl.u32 %v10138, 7
        %v10140 = vsub.s32 2, %v10139
        %v10141 = vrot.slane %v10132, %v10140
        %v10142 = vlaneseq
        %v10143 = vshrl.u32 %v10142, 7
        %v10144 = vsub.s32 4, %v10143
        %v10145 = vrot.slane %v10132, %v10144
        %v10146 = vlaneseq
        %v10147 = vshrl.u32 %v10146, 7
        %v10148 = vsub.s32 6, %v10147
        %v10149 = vrot.slane %v10132, %v10148
        %v10154 = vpack.c.bf16 %v10137, %v10137
        %v10155 = vpack.c.bf16 %v10141, %v10141
        %v10156 = vpack.c.bf16 %v10145, %v10145
        %v10157 = vpack.c.bf16 %v10149, %v10149
        %v10158 = vld [vmem:[%s9] sm:$0xff]
        %v10159 = vld [vmem:[%s9 + $0x8] sm:$0xff]
        %v10160 = vld [vmem:[%s9 + $0x10] sm:$0xff]
        %v10161 = vld [vmem:[%s9 + $0x18] sm:$0xff]
        %v10162 = vld [vmem:[%s9 + $0x20] sm:$0xff]
        %v10163 = vld [vmem:[%s9 + $0x28] sm:$0xff]
        %v10164 = vld [vmem:[%s9 + $0x30] sm:$0xff]
        %v10165 = vld [vmem:[%s9 + $0x38] sm:$0xff]
        %v10166 = vld [vmem:[%s9 + $0x40] sm:$0xff]
        %v10167 = vld [vmem:[%s9 + $0x48] sm:$0xff]
        %v10168 = vld [vmem:[%s9 + $0x50] sm:$0xff]
        %v10169 = vld [vmem:[%s9 + $0x58] sm:$0xff]
        %v10170 = vld [vmem:[%s9 + $0x60] sm:$0xff]
        %v10171 = vld [vmem:[%s9 + $0x68] sm:$0xff]
        %v10172 = vld [vmem:[%s9 + $0x70] sm:$0xff]
        %v10173 = vld [vmem:[%s9 + $0x78] sm:$0xff]
        %v10174 = vld [vmem:[%s9 + $0x80] sm:$0xff]
        %v10175 = vld [vmem:[%s9 + $0x88] sm:$0xff]
        %v10176 = vld [vmem:[%s9 + $0x90] sm:$0xff]
        %v10177 = vld [vmem:[%s9 + $0x98] sm:$0xff]
        %v10178 = vld [vmem:[%s9 + $0xa0] sm:$0xff]
        %v10179 = vld [vmem:[%s9 + $0xa8] sm:$0xff]
        %v10180 = vld [vmem:[%s9 + $0xb0] sm:$0xff]
        %v10181 = vld [vmem:[%s9 + $0xb8] sm:$0xff]
        %v10182 = vld [vmem:[%s9 + $0xc0] sm:$0xff]
        %v10183 = vld [vmem:[%s9 + $0xc8] sm:$0xff]
        %v10184 = vld [vmem:[%s9 + $0xd0] sm:$0xff]
        %v10185 = vld [vmem:[%s9 + $0xd8] sm:$0xff]
        %v10186 = vld [vmem:[%s9 + $0xe0] sm:$0xff]
        %v10187 = vld [vmem:[%s9 + $0xe8] sm:$0xff]
        %v10188 = vld [vmem:[%s9 + $0xf0] sm:$0xff]
        %v10189 = vld [vmem:[%s9 + $0xf8] sm:$0xff]
        %v10190 = vld [vmem:[%s9 + $0x100] sm:$0xff]
        %v10191 = vld [vmem:[%s9 + $0x108] sm:$0xff]
        %v10192 = vld [vmem:[%s9 + $0x110] sm:$0xff]
        %v10193 = vld [vmem:[%s9 + $0x118] sm:$0xff]
        %v10194 = vld [vmem:[%s9 + $0x120] sm:$0xff]
        %v10195 = vld [vmem:[%s9 + $0x128] sm:$0xff]
        %v10196 = vld [vmem:[%s9 + $0x130] sm:$0xff]
        %v10197 = vld [vmem:[%s9 + $0x138] sm:$0xff]
        %v10198 = vld [vmem:[%s9 + $0x140] sm:$0xff]
        %v10199 = vld [vmem:[%s9 + $0x148] sm:$0xff]
        %v10200 = vld [vmem:[%s9 + $0x150] sm:$0xff]
        %v10201 = vld [vmem:[%s9 + $0x158] sm:$0xff]
        %v10202 = vld [vmem:[%s9 + $0x160] sm:$0xff]
        %v10203 = vld [vmem:[%s9 + $0x168] sm:$0xff]
        %v10204 = vld [vmem:[%s9 + $0x170] sm:$0xff]
        %v10205 = vld [vmem:[%s9 + $0x178] sm:$0xff]
        %v10206 = vld [vmem:[%s9 + $0x180] sm:$0xff]
        %v10207 = vld [vmem:[%s9 + $0x188] sm:$0xff]
        %v10208 = vld [vmem:[%s9 + $0x190] sm:$0xff]
        %v10209 = vld [vmem:[%s9 + $0x198] sm:$0xff]
        %v10210 = vld [vmem:[%s9 + $0x1a0] sm:$0xff]
        %v10211 = vld [vmem:[%s9 + $0x1a8] sm:$0xff]
        %v10212 = vld [vmem:[%s9 + $0x1b0] sm:$0xff]
        %v10213 = vld [vmem:[%s9 + $0x1b8] sm:$0xff]
        %v10214 = vld [vmem:[%s9 + $0x1c0] sm:$0xff]
        %v10215 = vld [vmem:[%s9 + $0x1c8] sm:$0xff]
        %v10216 = vld [vmem:[%s9 + $0x1d0] sm:$0xff]
        %v10217 = vld [vmem:[%s9 + $0x1d8] sm:$0xff]
        %v10218 = vld [vmem:[%s9 + $0x1e0] sm:$0xff]
        %v10219 = vld [vmem:[%s9 + $0x1e8] sm:$0xff]
        %v10220 = vld [vmem:[%s9 + $0x1f0] sm:$0xff]
        %v10221 = vld [vmem:[%s9 + $0x1f8] sm:$0xff]
        %v10222 = vld [vmem:[%s9 + $0x200] sm:$0xff]
        %v10223 = vld [vmem:[%s9 + $0x208] sm:$0xff]
        %v10224 = vld [vmem:[%s9 + $0x210] sm:$0xff]
        %v10225 = vld [vmem:[%s9 + $0x218] sm:$0xff]
        %v10226 = vld [vmem:[%s9 + $0x220] sm:$0xff]
        %v10227 = vld [vmem:[%s9 + $0x228] sm:$0xff]
        %v10228 = vld [vmem:[%s9 + $0x230] sm:$0xff]
        %v10229 = vld [vmem:[%s9 + $0x238] sm:$0xff]
        %v10230 = vld [vmem:[%s9 + $0x240] sm:$0xff]
        %v10231 = vld [vmem:[%s9 + $0x248] sm:$0xff]
        %v10232 = vld [vmem:[%s9 + $0x250] sm:$0xff]
        %v10233 = vld [vmem:[%s9 + $0x258] sm:$0xff]
        %v10234 = vld [vmem:[%s9 + $0x260] sm:$0xff]
        %v10235 = vld [vmem:[%s9 + $0x268] sm:$0xff]
        %v10236 = vld [vmem:[%s9 + $0x270] sm:$0xff]
        %v10237 = vld [vmem:[%s9 + $0x278] sm:$0xff]
        %v10238 = vld [vmem:[%s9 + $0x280] sm:$0xff]
        %v10239 = vld [vmem:[%s9 + $0x288] sm:$0xff]
        %v10240 = vld [vmem:[%s9 + $0x290] sm:$0xff]
        %v10241 = vld [vmem:[%s9 + $0x298] sm:$0xff]
        %v10242 = vld [vmem:[%s9 + $0x2a0] sm:$0xff]
        %v10243 = vld [vmem:[%s9 + $0x2a8] sm:$0xff]
        %v10244 = vld [vmem:[%s9 + $0x2b0] sm:$0xff]
        %v10245 = vld [vmem:[%s9 + $0x2b8] sm:$0xff]
        %v10246 = vld [vmem:[%s9 + $0x2c0] sm:$0xff]
        %v10247 = vld [vmem:[%s9 + $0x2c8] sm:$0xff]
        %v10248 = vld [vmem:[%s9 + $0x2d0] sm:$0xff]
        %v10249 = vld [vmem:[%s9 + $0x2d8] sm:$0xff]
        %v10250 = vld [vmem:[%s9 + $0x2e0] sm:$0xff]
        %v10251 = vld [vmem:[%s9 + $0x2e8] sm:$0xff]
        %v10252 = vld [vmem:[%s9 + $0x2f0] sm:$0xff]
        %v10253 = vld [vmem:[%s9 + $0x2f8] sm:$0xff]
        %v10254 = vld [vmem:[%s9 + $0x300] sm:$0xff]
        %v10255 = vld [vmem:[%s9 + $0x308] sm:$0xff]
        %v10256 = vld [vmem:[%s9 + $0x310] sm:$0xff]
        %v10257 = vld [vmem:[%s9 + $0x318] sm:$0xff]
        %v10258 = vld [vmem:[%s9 + $0x320] sm:$0xff]
        %v10259 = vld [vmem:[%s9 + $0x328] sm:$0xff]
        %v10260 = vld [vmem:[%s9 + $0x330] sm:$0xff]
        %v10261 = vld [vmem:[%s9 + $0x338] sm:$0xff]
        %v10262 = vld [vmem:[%s9 + $0x340] sm:$0xff]
        %v10263 = vld [vmem:[%s9 + $0x348] sm:$0xff]
        %v10264 = vld [vmem:[%s9 + $0x350] sm:$0xff]
        %v10265 = vld [vmem:[%s9 + $0x358] sm:$0xff]
        %v10266 = vld [vmem:[%s9 + $0x360] sm:$0xff]
        %v10267 = vld [vmem:[%s9 + $0x368] sm:$0xff]
        %v10268 = vld [vmem:[%s9 + $0x370] sm:$0xff]
        %v10269 = vld [vmem:[%s9 + $0x378] sm:$0xff]
        %v10270 = vld [vmem:[%s9 + $0x380] sm:$0xff]
        %v10271 = vld [vmem:[%s9 + $0x388] sm:$0xff]
        %v10272 = vld [vmem:[%s9 + $0x390] sm:$0xff]
        %v10273 = vld [vmem:[%s9 + $0x398] sm:$0xff]
        %v10274 = vld [vmem:[%s9 + $0x3a0] sm:$0xff]
        %v10275 = vld [vmem:[%s9 + $0x3a8] sm:$0xff]
        %v10276 = vld [vmem:[%s9 + $0x3b0] sm:$0xff]
        %v10277 = vld [vmem:[%s9 + $0x3b8] sm:$0xff]
        %v10278 = vld [vmem:[%s9 + $0x3c0] sm:$0xff]
        %v10279 = vld [vmem:[%s9 + $0x3c8] sm:$0xff]
        %v10280 = vld [vmem:[%s9 + $0x3d0] sm:$0xff]
        %v10281 = vld [vmem:[%s9 + $0x3d8] sm:$0xff]
        %v10282 = vld [vmem:[%s9 + $0x3e0] sm:$0xff]
        %v10283 = vld [vmem:[%s9 + $0x3e8] sm:$0xff]
        %v10284 = vld [vmem:[%s9 + $0x3f0] sm:$0xff]
        %v10285 = vld [vmem:[%s9 + $0x3f8] sm:$0xff]
        %v10286 = vld [vmem:[%s10] sm:$0xf]
        %v10415 = vunpack.c.l.b16 %v10158
        %v10416 = vunpack.c.h.b16 %v10158
        %v10417 = vunpack.c.l.b16 %v10159
        %v10418 = vunpack.c.h.b16 %v10159
        %v10419 = vunpack.c.l.b16 %v10160
        %v10420 = vunpack.c.h.b16 %v10160
        %v10421 = vunpack.c.l.b16 %v10161
        %v10422 = vunpack.c.h.b16 %v10161
        %v10423 = vunpack.c.l.b16 %v10162
        %v10424 = vunpack.c.h.b16 %v10162
        %v10425 = vunpack.c.l.b16 %v10163
        %v10426 = vunpack.c.h.b16 %v10163
        %v10427 = vunpack.c.l.b16 %v10164
        %v10428 = vunpack.c.h.b16 %v10164
        %v10429 = vunpack.c.l.b16 %v10165
        %v10430 = vunpack.c.h.b16 %v10165
        %v10431 = vunpack.c.l.b16 %v10166
        %v10432 = vunpack.c.h.b16 %v10166
        %v10433 = vunpack.c.l.b16 %v10167
        %v10434 = vunpack.c.h.b16 %v10167
        %v10435 = vunpack.c.l.b16 %v10168
        %v10436 = vunpack.c.h.b16 %v10168
        %v10437 = vunpack.c.l.b16 %v10169
        %v10438 = vunpack.c.h.b16 %v10169
        %v10439 = vunpack.c.l.b16 %v10170
        %v10440 = vunpack.c.h.b16 %v10170
        %v10441 = vunpack.c.l.b16 %v10171
        %v10442 = vunpack.c.h.b16 %v10171
        %v10443 = vunpack.c.l.b16 %v10172
        %v10444 = vunpack.c.h.b16 %v10172
        %v10445 = vunpack.c.l.b16 %v10173
        %v10446 = vunpack.c.h.b16 %v10173
        %v10447 = vunpack.c.l.b16 %v10174
        %v10448 = vunpack.c.h.b16 %v10174
        %v10449 = vunpack.c.l.b16 %v10175
        %v10450 = vunpack.c.h.b16 %v10175
        %v10451 = vunpack.c.l.b16 %v10176
        %v10452 = vunpack.c.h.b16 %v10176
        %v10453 = vunpack.c.l.b16 %v10177
        %v10454 = vunpack.c.h.b16 %v10177
        %v10455 = vunpack.c.l.b16 %v10178
        %v10456 = vunpack.c.h.b16 %v10178
        %v10457 = vunpack.c.l.b16 %v10179
        %v10458 = vunpack.c.h.b16 %v10179
        %v10459 = vunpack.c.l.b16 %v10180
        %v10460 = vunpack.c.h.b16 %v10180
        %v10461 = vunpack.c.l.b16 %v10181
        %v10462 = vunpack.c.h.b16 %v10181
        %v10463 = vunpack.c.l.b16 %v10182
        %v10464 = vunpack.c.h.b16 %v10182
        %v10465 = vunpack.c.l.b16 %v10183
        %v10466 = vunpack.c.h.b16 %v10183
        %v10467 = vunpack.c.l.b16 %v10184
        %v10468 = vunpack.c.h.b16 %v10184
        %v10469 = vunpack.c.l.b16 %v10185
        %v10470 = vunpack.c.h.b16 %v10185
        %v10471 = vunpack.c.l.b16 %v10186
        %v10472 = vunpack.c.h.b16 %v10186
        %v10473 = vunpack.c.l.b16 %v10187
        %v10474 = vunpack.c.h.b16 %v10187
        %v10475 = vunpack.c.l.b16 %v10188
        %v10476 = vunpack.c.h.b16 %v10188
        %v10477 = vunpack.c.l.b16 %v10189
        %v10478 = vunpack.c.h.b16 %v10189
        %v10479 = vunpack.c.l.b16 %v10190
        %v10480 = vunpack.c.h.b16 %v10190
        %v10481 = vunpack.c.l.b16 %v10191
        %v10482 = vunpack.c.h.b16 %v10191
        %v10483 = vunpack.c.l.b16 %v10192
        %v10484 = vunpack.c.h.b16 %v10192
        %v10485 = vunpack.c.l.b16 %v10193
        %v10486 = vunpack.c.h.b16 %v10193
        %v10487 = vunpack.c.l.b16 %v10194
        %v10488 = vunpack.c.h.b16 %v10194
        %v10489 = vunpack.c.l.b16 %v10195
        %v10490 = vunpack.c.h.b16 %v10195
        %v10491 = vunpack.c.l.b16 %v10196
        %v10492 = vunpack.c.h.b16 %v10196
        %v10493 = vunpack.c.l.b16 %v10197
        %v10494 = vunpack.c.h.b16 %v10197
        %v10495 = vunpack.c.l.b16 %v10198
        %v10496 = vunpack.c.h.b16 %v10198
        %v10497 = vunpack.c.l.b16 %v10199
        %v10498 = vunpack.c.h.b16 %v10199
        %v10499 = vunpack.c.l.b16 %v10200
        %v10500 = vunpack.c.h.b16 %v10200
        %v10501 = vunpack.c.l.b16 %v10201
        %v10502 = vunpack.c.h.b16 %v10201
        %v10503 = vunpack.c.l.b16 %v10202
        %v10504 = vunpack.c.h.b16 %v10202
        %v10505 = vunpack.c.l.b16 %v10203
        %v10506 = vunpack.c.h.b16 %v10203
        %v10507 = vunpack.c.l.b16 %v10204
        %v10508 = vunpack.c.h.b16 %v10204
        %v10509 = vunpack.c.l.b16 %v10205
        %v10510 = vunpack.c.h.b16 %v10205
        %v10511 = vunpack.c.l.b16 %v10206
        %v10512 = vunpack.c.h.b16 %v10206
        %v10513 = vunpack.c.l.b16 %v10207
        %v10514 = vunpack.c.h.b16 %v10207
        %v10515 = vunpack.c.l.b16 %v10208
        %v10516 = vunpack.c.h.b16 %v10208
        %v10517 = vunpack.c.l.b16 %v10209
        %v10518 = vunpack.c.h.b16 %v10209
        %v10519 = vunpack.c.l.b16 %v10210
        %v10520 = vunpack.c.h.b16 %v10210
        %v10521 = vunpack.c.l.b16 %v10211
        %v10522 = vunpack.c.h.b16 %v10211
        %v10523 = vunpack.c.l.b16 %v10212
        %v10524 = vunpack.c.h.b16 %v10212
        %v10525 = vunpack.c.l.b16 %v10213
        %v10526 = vunpack.c.h.b16 %v10213
        %v10527 = vunpack.c.l.b16 %v10214
        %v10528 = vunpack.c.h.b16 %v10214
        %v10529 = vunpack.c.l.b16 %v10215
        %v10530 = vunpack.c.h.b16 %v10215
        %v10531 = vunpack.c.l.b16 %v10216
        %v10532 = vunpack.c.h.b16 %v10216
        %v10533 = vunpack.c.l.b16 %v10217
        %v10534 = vunpack.c.h.b16 %v10217
        %v10535 = vunpack.c.l.b16 %v10218
        %v10536 = vunpack.c.h.b16 %v10218
        %v10537 = vunpack.c.l.b16 %v10219
        %v10538 = vunpack.c.h.b16 %v10219
        %v10539 = vunpack.c.l.b16 %v10220
        %v10540 = vunpack.c.h.b16 %v10220
        %v10541 = vunpack.c.l.b16 %v10221
        %v10542 = vunpack.c.h.b16 %v10221
        %v10543 = vunpack.c.l.b16 %v10222
        %v10544 = vunpack.c.h.b16 %v10222
        %v10545 = vunpack.c.l.b16 %v10223
        %v10546 = vunpack.c.h.b16 %v10223
        %v10547 = vunpack.c.l.b16 %v10224
        %v10548 = vunpack.c.h.b16 %v10224
        %v10549 = vunpack.c.l.b16 %v10225
        %v10550 = vunpack.c.h.b16 %v10225
        %v10551 = vunpack.c.l.b16 %v10226
        %v10552 = vunpack.c.h.b16 %v10226
        %v10553 = vunpack.c.l.b16 %v10227
        %v10554 = vunpack.c.h.b16 %v10227
        %v10555 = vunpack.c.l.b16 %v10228
        %v10556 = vunpack.c.h.b16 %v10228
        %v10557 = vunpack.c.l.b16 %v10229
        %v10558 = vunpack.c.h.b16 %v10229
        %v10559 = vunpack.c.l.b16 %v10230
        %v10560 = vunpack.c.h.b16 %v10230
        %v10561 = vunpack.c.l.b16 %v10231
        %v10562 = vunpack.c.h.b16 %v10231
        %v10563 = vunpack.c.l.b16 %v10232
        %v10564 = vunpack.c.h.b16 %v10232
        %v10565 = vunpack.c.l.b16 %v10233
        %v10566 = vunpack.c.h.b16 %v10233
        %v10567 = vunpack.c.l.b16 %v10234
        %v10568 = vunpack.c.h.b16 %v10234
        %v10569 = vunpack.c.l.b16 %v10235
        %v10570 = vunpack.c.h.b16 %v10235
        %v10571 = vunpack.c.l.b16 %v10236
        %v10572 = vunpack.c.h.b16 %v10236
        %v10573 = vunpack.c.l.b16 %v10237
        %v10574 = vunpack.c.h.b16 %v10237
        %v10575 = vunpack.c.l.b16 %v10238
        %v10576 = vunpack.c.h.b16 %v10238
        %v10577 = vunpack.c.l.b16 %v10239
        %v10578 = vunpack.c.h.b16 %v10239
        %v10579 = vunpack.c.l.b16 %v10240
        %v10580 = vunpack.c.h.b16 %v10240
        %v10581 = vunpack.c.l.b16 %v10241
        %v10582 = vunpack.c.h.b16 %v10241
        %v10583 = vunpack.c.l.b16 %v10242
        %v10584 = vunpack.c.h.b16 %v10242
        %v10585 = vunpack.c.l.b16 %v10243
        %v10586 = vunpack.c.h.b16 %v10243
        %v10587 = vunpack.c.l.b16 %v10244
        %v10588 = vunpack.c.h.b16 %v10244
        %v10589 = vunpack.c.l.b16 %v10245
        %v10590 = vunpack.c.h.b16 %v10245
        %v10591 = vunpack.c.l.b16 %v10246
        %v10592 = vunpack.c.h.b16 %v10246
        %v10593 = vunpack.c.l.b16 %v10247
        %v10594 = vunpack.c.h.b16 %v10247
        %v10595 = vunpack.c.l.b16 %v10248
        %v10596 = vunpack.c.h.b16 %v10248
        %v10597 = vunpack.c.l.b16 %v10249
        %v10598 = vunpack.c.h.b16 %v10249
        %v10599 = vunpack.c.l.b16 %v10250
        %v10600 = vunpack.c.h.b16 %v10250
        %v10601 = vunpack.c.l.b16 %v10251
        %v10602 = vunpack.c.h.b16 %v10251
        %v10603 = vunpack.c.l.b16 %v10252
        %v10604 = vunpack.c.h.b16 %v10252
        %v10605 = vunpack.c.l.b16 %v10253
        %v10606 = vunpack.c.h.b16 %v10253
        %v10607 = vunpack.c.l.b16 %v10254
        %v10608 = vunpack.c.h.b16 %v10254
        %v10609 = vunpack.c.l.b16 %v10255
        %v10610 = vunpack.c.h.b16 %v10255
        %v10611 = vunpack.c.l.b16 %v10256
        %v10612 = vunpack.c.h.b16 %v10256
        %v10613 = vunpack.c.l.b16 %v10257
        %v10614 = vunpack.c.h.b16 %v10257
        %v10615 = vunpack.c.l.b16 %v10258
        %v10616 = vunpack.c.h.b16 %v10258
        %v10617 = vunpack.c.l.b16 %v10259
        %v10618 = vunpack.c.h.b16 %v10259
        %v10619 = vunpack.c.l.b16 %v10260
        %v10620 = vunpack.c.h.b16 %v10260
        %v10621 = vunpack.c.l.b16 %v10261
        %v10622 = vunpack.c.h.b16 %v10261
        %v10623 = vunpack.c.l.b16 %v10262
        %v10624 = vunpack.c.h.b16 %v10262
        %v10625 = vunpack.c.l.b16 %v10263
        %v10626 = vunpack.c.h.b16 %v10263
        %v10627 = vunpack.c.l.b16 %v10264
        %v10628 = vunpack.c.h.b16 %v10264
        %v10629 = vunpack.c.l.b16 %v10265
        %v10630 = vunpack.c.h.b16 %v10265
        %v10631 = vunpack.c.l.b16 %v10266
        %v10632 = vunpack.c.h.b16 %v10266
        %v10633 = vunpack.c.l.b16 %v10267
        %v10634 = vunpack.c.h.b16 %v10267
        %v10635 = vunpack.c.l.b16 %v10268
        %v10636 = vunpack.c.h.b16 %v10268
        %v10637 = vunpack.c.l.b16 %v10269
        %v10638 = vunpack.c.h.b16 %v10269
        %v10639 = vunpack.c.l.b16 %v10270
        %v10640 = vunpack.c.h.b16 %v10270
        %v10641 = vunpack.c.l.b16 %v10271
        %v10642 = vunpack.c.h.b16 %v10271
        %v10643 = vunpack.c.l.b16 %v10272
        %v10644 = vunpack.c.h.b16 %v10272
        %v10645 = vunpack.c.l.b16 %v10273
        %v10646 = vunpack.c.h.b16 %v10273
        %v10647 = vunpack.c.l.b16 %v10274
        %v10648 = vunpack.c.h.b16 %v10274
        %v10649 = vunpack.c.l.b16 %v10275
        %v10650 = vunpack.c.h.b16 %v10275
        %v10651 = vunpack.c.l.b16 %v10276
        %v10652 = vunpack.c.h.b16 %v10276
        %v10653 = vunpack.c.l.b16 %v10277
        %v10654 = vunpack.c.h.b16 %v10277
        %v10655 = vunpack.c.l.b16 %v10278
        %v10656 = vunpack.c.h.b16 %v10278
        %v10657 = vunpack.c.l.b16 %v10279
        %v10658 = vunpack.c.h.b16 %v10279
        %v10659 = vunpack.c.l.b16 %v10280
        %v10660 = vunpack.c.h.b16 %v10280
        %v10661 = vunpack.c.l.b16 %v10281
        %v10662 = vunpack.c.h.b16 %v10281
        %v10663 = vunpack.c.l.b16 %v10282
        %v10664 = vunpack.c.h.b16 %v10282
        %v10665 = vunpack.c.l.b16 %v10283
        %v10666 = vunpack.c.h.b16 %v10283
        %v10667 = vunpack.c.l.b16 %v10284
        %v10668 = vunpack.c.h.b16 %v10284
        %v10669 = vunpack.c.l.b16 %v10285
        %v10670 = vunpack.c.h.b16 %v10285
        %v10671 = vpack.c.b16 %v10419, %v10415
        %v10672 = vpack.c.b16 %v10420, %v10416
        %v10673 = vpack.c.b16 %v10421, %v10417
        %v10674 = vpack.c.b16 %v10422, %v10418
        %v10675 = vpack.c.b16 %v10427, %v10423
        %v10676 = vpack.c.b16 %v10428, %v10424
        %v10677 = vpack.c.b16 %v10429, %v10425
        %v10678 = vpack.c.b16 %v10430, %v10426
        %v10679 = vpack.c.b16 %v10435, %v10431
        %v10680 = vpack.c.b16 %v10436, %v10432
        %v10681 = vpack.c.b16 %v10437, %v10433
        %v10682 = vpack.c.b16 %v10438, %v10434
        %v10683 = vpack.c.b16 %v10443, %v10439
        %v10684 = vpack.c.b16 %v10444, %v10440
        %v10685 = vpack.c.b16 %v10445, %v10441
        %v10686 = vpack.c.b16 %v10446, %v10442
        %v10687 = vpack.c.b16 %v10451, %v10447
        %v10688 = vpack.c.b16 %v10452, %v10448
        %v10689 = vpack.c.b16 %v10453, %v10449
        %v10690 = vpack.c.b16 %v10454, %v10450
        %v10691 = vpack.c.b16 %v10459, %v10455
        %v10692 = vpack.c.b16 %v10460, %v10456
        %v10693 = vpack.c.b16 %v10461, %v10457
        %v10694 = vpack.c.b16 %v10462, %v10458
        %v10695 = vpack.c.b16 %v10467, %v10463
        %v10696 = vpack.c.b16 %v10468, %v10464
        %v10697 = vpack.c.b16 %v10469, %v10465
        %v10698 = vpack.c.b16 %v10470, %v10466
        %v10699 = vpack.c.b16 %v10475, %v10471
        %v10700 = vpack.c.b16 %v10476, %v10472
        %v10701 = vpack.c.b16 %v10477, %v10473
        %v10702 = vpack.c.b16 %v10478, %v10474
        %v10703 = vpack.c.b16 %v10483, %v10479
        %v10704 = vpack.c.b16 %v10484, %v10480
        %v10705 = vpack.c.b16 %v10485, %v10481
        %v10706 = vpack.c.b16 %v10486, %v10482
        %v10707 = vpack.c.b16 %v10491, %v10487
        %v10708 = vpack.c.b16 %v10492, %v10488
        %v10709 = vpack.c.b16 %v10493, %v10489
        %v10710 = vpack.c.b16 %v10494, %v10490
        %v10711 = vpack.c.b16 %v10499, %v10495
        %v10712 = vpack.c.b16 %v10500, %v10496
        %v10713 = vpack.c.b16 %v10501, %v10497
        %v10714 = vpack.c.b16 %v10502, %v10498
        %v10715 = vpack.c.b16 %v10507, %v10503
        %v10716 = vpack.c.b16 %v10508, %v10504
        %v10717 = vpack.c.b16 %v10509, %v10505
        %v10718 = vpack.c.b16 %v10510, %v10506
        %v10719 = vpack.c.b16 %v10515, %v10511
        %v10720 = vpack.c.b16 %v10516, %v10512
        %v10721 = vpack.c.b16 %v10517, %v10513
        %v10722 = vpack.c.b16 %v10518, %v10514
        %v10723 = vpack.c.b16 %v10523, %v10519
        %v10724 = vpack.c.b16 %v10524, %v10520
        %v10725 = vpack.c.b16 %v10525, %v10521
        %v10726 = vpack.c.b16 %v10526, %v10522
        %v10727 = vpack.c.b16 %v10531, %v10527
        %v10728 = vpack.c.b16 %v10532, %v10528
        %v10729 = vpack.c.b16 %v10533, %v10529
        %v10730 = vpack.c.b16 %v10534, %v10530
        %v10731 = vpack.c.b16 %v10539, %v10535
        %v10732 = vpack.c.b16 %v10540, %v10536
        %v10733 = vpack.c.b16 %v10541, %v10537
        %v10734 = vpack.c.b16 %v10542, %v10538
        %v10735 = vpack.c.b16 %v10547, %v10543
        %v10736 = vpack.c.b16 %v10548, %v10544
        %v10737 = vpack.c.b16 %v10549, %v10545
        %v10738 = vpack.c.b16 %v10550, %v10546
        %v10739 = vpack.c.b16 %v10555, %v10551
        %v10740 = vpack.c.b16 %v10556, %v10552
        %v10741 = vpack.c.b16 %v10557, %v10553
        %v10742 = vpack.c.b16 %v10558, %v10554
        %v10743 = vpack.c.b16 %v10563, %v10559
        %v10744 = vpack.c.b16 %v10564, %v10560
        %v10745 = vpack.c.b16 %v10565, %v10561
        %v10746 = vpack.c.b16 %v10566, %v10562
        %v10747 = vpack.c.b16 %v10571, %v10567
        %v10748 = vpack.c.b16 %v10572, %v10568
        %v10749 = vpack.c.b16 %v10573, %v10569
        %v10750 = vpack.c.b16 %v10574, %v10570
        %v10751 = vpack.c.b16 %v10579, %v10575
        %v10752 = vpack.c.b16 %v10580, %v10576
        %v10753 = vpack.c.b16 %v10581, %v10577
        %v10754 = vpack.c.b16 %v10582, %v10578
        %v10755 = vpack.c.b16 %v10587, %v10583
        %v10756 = vpack.c.b16 %v10588, %v10584
        %v10757 = vpack.c.b16 %v10589, %v10585
        %v10758 = vpack.c.b16 %v10590, %v10586
        %v10759 = vpack.c.b16 %v10595, %v10591
        %v10760 = vpack.c.b16 %v10596, %v10592
        %v10761 = vpack.c.b16 %v10597, %v10593
        %v10762 = vpack.c.b16 %v10598, %v10594
        %v10763 = vpack.c.b16 %v10603, %v10599
        %v10764 = vpack.c.b16 %v10604, %v10600
        %v10765 = vpack.c.b16 %v10605, %v10601
        %v10766 = vpack.c.b16 %v10606, %v10602
        %v10767 = vpack.c.b16 %v10611, %v10607
        %v10768 = vpack.c.b16 %v10612, %v10608
        %v10769 = vpack.c.b16 %v10613, %v10609
        %v10770 = vpack.c.b16 %v10614, %v10610
        %v10771 = vpack.c.b16 %v10619, %v10615
        %v10772 = vpack.c.b16 %v10620, %v10616
        %v10773 = vpack.c.b16 %v10621, %v10617
        %v10774 = vpack.c.b16 %v10622, %v10618
        %v10775 = vpack.c.b16 %v10627, %v10623
        %v10776 = vpack.c.b16 %v10628, %v10624
        %v10777 = vpack.c.b16 %v10629, %v10625
        %v10778 = vpack.c.b16 %v10630, %v10626
        %v10779 = vpack.c.b16 %v10635, %v10631
        %v10780 = vpack.c.b16 %v10636, %v10632
        %v10781 = vpack.c.b16 %v10637, %v10633
        %v10782 = vpack.c.b16 %v10638, %v10634
        %v10783 = vpack.c.b16 %v10643, %v10639
        %v10784 = vpack.c.b16 %v10644, %v10640
        %v10785 = vpack.c.b16 %v10645, %v10641
        %v10786 = vpack.c.b16 %v10646, %v10642
        %v10787 = vpack.c.b16 %v10651, %v10647
        %v10788 = vpack.c.b16 %v10652, %v10648
        %v10789 = vpack.c.b16 %v10653, %v10649
        %v10790 = vpack.c.b16 %v10654, %v10650
        %v10791 = vpack.c.b16 %v10659, %v10655
        %v10792 = vpack.c.b16 %v10660, %v10656
        %v10793 = vpack.c.b16 %v10661, %v10657
        %v10794 = vpack.c.b16 %v10662, %v10658
        %v10795 = vpack.c.b16 %v10667, %v10663
        %v10796 = vpack.c.b16 %v10668, %v10664
        %v10797 = vpack.c.b16 %v10669, %v10665
        %v10798 = vpack.c.b16 %v10670, %v10666
        %v10928 = vlaneseq
        %v10929 = vshrl.u32 %v10928, 7
        %v10930 = vsub.s32 0, %v10929
        %v10931 = vrot.slane %v10286, %v10930
        %v10932 = vlaneseq
        %v10933 = vshrl.u32 %v10932, 7
        %v10934 = vsub.s32 1, %v10933
        %v10935 = vrot.slane %v10286, %v10934
        %v10936 = vlaneseq
        %v10937 = vshrl.u32 %v10936, 7
        %v10938 = vsub.s32 2, %v10937
        %v10939 = vrot.slane %v10286, %v10938
        %v10940 = vlaneseq
        %v10941 = vshrl.u32 %v10940, 7
        %v10942 = vsub.s32 3, %v10941
        %v10943 = vrot.slane %v10286, %v10942
        %10948 = vmatprep.subr.bf16.mxu0 %v10672
        %10949 = vmatpush1.bf16.msra.mxu0 %v10671
        %10950 = vmatprep.subr.bf16.mxu0 %v10676
        %10951 = vmatpush1.bf16.msra.mxu0 %v10675
        %10952 = vmatprep.subr.bf16.mxu0 %v10680
        %10953 = vmatpush1.bf16.msra.mxu0 %v10679
        %10954 = vmatprep.subr.bf16.mxu0 %v10684
        %10955 = vmatpush1.bf16.msra.mxu0 %v10683
        %10956 = vmatprep.subr.bf16.mxu0 %v10688
        %10957 = vmatpush1.bf16.msra.mxu0 %v10687
        %10958 = vmatprep.subr.bf16.mxu0 %v10692
        %10959 = vmatpush1.bf16.msra.mxu0 %v10691
        %10960 = vmatprep.subr.bf16.mxu0 %v10696
        %10961 = vmatpush1.bf16.msra.mxu0 %v10695
        %10962 = vmatprep.subr.bf16.mxu0 %v10700
        %10963 = vmatpush1.bf16.msra.mxu0 %v10699
        %10964 = vmatprep.subr.bf16.mxu0 %v10704
        %10965 = vmatpush1.bf16.msra.mxu0 %v10703
        %10966 = vmatprep.subr.bf16.mxu0 %v10708
        %10967 = vmatpush1.bf16.msra.mxu0 %v10707
        %10968 = vmatprep.subr.bf16.mxu0 %v10712
        %10969 = vmatpush1.bf16.msra.mxu0 %v10711
        %10970 = vmatprep.subr.bf16.mxu0 %v10716
        %10971 = vmatpush1.bf16.msra.mxu0 %v10715
        %10972 = vmatprep.subr.bf16.mxu0 %v10720
        %10973 = vmatpush1.bf16.msra.mxu0 %v10719
        %10974 = vmatprep.subr.bf16.mxu0 %v10724
        %10975 = vmatpush1.bf16.msra.mxu0 %v10723
        %10976 = vmatprep.subr.bf16.mxu0 %v10728
        %10977 = vmatpush1.bf16.msra.mxu0 %v10727
        %10978 = vmatprep.subr.bf16.mxu0 %v10732
        %10979 = vmatpush1.bf16.msra.mxu0 %v10731
        %10980 = vmatprep.mubr.bf16.mxu0 %v10155
        %10981 = vmatmul.mubr.bf16.gmra.mrb[0].mxu0 %v10154
        %v10982 = vpop.f32.mrb[0].mxu0
        %v10983 = vadd.f32 %v10931, %v10982
        %v10984 = vpop.f32.mrb[0].mxu0
        %v10985 = vadd.f32 %v10935, %v10984
        %v10986 = vpop.f32.mrb[0].mxu0
        %v10987 = vpop.f32.mrb[0].mxu0
        %10988 = vdwg.mxu0
        %10989 = vmatprep.subr.bf16.mxu0 %v10736
        %10990 = vmatpush1.bf16.msra.mxu0 %v10735
        %10991 = vmatprep.subr.bf16.mxu0 %v10740
        %10992 = vmatpush1.bf16.msra.mxu0 %v10739
        %10993 = vmatprep.subr.bf16.mxu0 %v10744
        %10994 = vmatpush1.bf16.msra.mxu0 %v10743
        %10995 = vmatprep.subr.bf16.mxu0 %v10748
        %10996 = vmatpush1.bf16.msra.mxu0 %v10747
        %10997 = vmatprep.subr.bf16.mxu0 %v10752
        %10998 = vmatpush1.bf16.msra.mxu0 %v10751
        %10999 = vmatprep.subr.bf16.mxu0 %v10756
        %11000 = vmatpush1.bf16.msra.mxu0 %v10755
        %11001 = vmatprep.subr.bf16.mxu0 %v10760
        %11002 = vmatpush1.bf16.msra.mxu0 %v10759
        %11003 = vmatprep.subr.bf16.mxu0 %v10764
        %11004 = vmatpush1.bf16.msra.mxu0 %v10763
        %11005 = vmatprep.subr.bf16.mxu0 %v10768
        %11006 = vmatpush1.bf16.msra.mxu0 %v10767
        %11007 = vmatprep.subr.bf16.mxu0 %v10772
        %11008 = vmatpush1.bf16.msra.mxu0 %v10771
        %11009 = vmatprep.subr.bf16.mxu0 %v10776
        %11010 = vmatpush1.bf16.msra.mxu0 %v10775
        %11011 = vmatprep.subr.bf16.mxu0 %v10780
        %11012 = vmatpush1.bf16.msra.mxu0 %v10779
        %11013 = vmatprep.subr.bf16.mxu0 %v10784
        %11014 = vmatpush1.bf16.msra.mxu0 %v10783
        %11015 = vmatprep.subr.bf16.mxu0 %v10788
        %11016 = vmatpush1.bf16.msra.mxu0 %v10787
        %11017 = vmatprep.subr.bf16.mxu0 %v10792
        %11018 = vmatpush1.bf16.msra.mxu0 %v10791
        %11019 = vmatprep.subr.bf16.mxu0 %v10796
        %11020 = vmatpush1.bf16.msra.mxu0 %v10795
        %11021 = vmatprep.mubr.bf16.mxu0 %v10157
        %11022 = vmatmul.mubr.bf16.gmra.mrb[0].mxu0 %v10156
        %v11023 = vpop.f32.mrb[0].mxu0
        %v11024 = vadd.f32 %v10983, %v11023
        %v11025 = vpop.f32.mrb[0].mxu0
        %v11026 = vadd.f32 %v10985, %v11025
        %v11027 = vpop.f32.mrb[0].mxu0
        %v11028 = vpop.f32.mrb[0].mxu0
        %11029 = vdwg.mxu0
        %11030 = vmatprep.subr.bf16.mxu0 %v10674
        %11031 = vmatpush1.bf16.msra.mxu0 %v10673
        %11032 = vmatprep.subr.bf16.mxu0 %v10678
        %11033 = vmatpush1.bf16.msra.mxu0 %v10677
        %11034 = vmatprep.subr.bf16.mxu0 %v10682
        %11035 = vmatpush1.bf16.msra.mxu0 %v10681
        %11036 = vmatprep.subr.bf16.mxu0 %v10686
        %11037 = vmatpush1.bf16.msra.mxu0 %v10685
        %11038 = vmatprep.subr.bf16.mxu0 %v10690
        %11039 = vmatpush1.bf16.msra.mxu0 %v10689
        %11040 = vmatprep.subr.bf16.mxu0 %v10694
        %11041 = vmatpush1.bf16.msra.mxu0 %v10693
        %11042 = vmatprep.subr.bf16.mxu0 %v10698
        %11043 = vmatpush1.bf16.msra.mxu0 %v10697
        %11044 = vmatprep.subr.bf16.mxu0 %v10702
        %11045 = vmatpush1.bf16.msra.mxu0 %v10701
        %11046 = vmatprep.subr.bf16.mxu0 %v10706
        %11047 = vmatpush1.bf16.msra.mxu0 %v10705
        %11048 = vmatprep.subr.bf16.mxu0 %v10710
        %11049 = vmatpush1.bf16.msra.mxu0 %v10709
        %11050 = vmatprep.subr.bf16.mxu0 %v10714
        %11051 = vmatpush1.bf16.msra.mxu0 %v10713
        %11052 = vmatprep.subr.bf16.mxu0 %v10718
        %11053 = vmatpush1.bf16.msra.mxu0 %v10717
        %11054 = vmatprep.subr.bf16.mxu0 %v10722
        %11055 = vmatpush1.bf16.msra.mxu0 %v10721
        %11056 = vmatprep.subr.bf16.mxu0 %v10726
        %11057 = vmatpush1.bf16.msra.mxu0 %v10725
        %11058 = vmatprep.subr.bf16.mxu0 %v10730
        %11059 = vmatpush1.bf16.msra.mxu0 %v10729
        %11060 = vmatprep.subr.bf16.mxu0 %v10734
        %11061 = vmatpush1.bf16.msra.mxu0 %v10733
        %11062 = vmatprep.mubr.bf16.mxu0 %v10155
        %11063 = vmatmul.mubr.bf16.gmra.mrb[0].mxu0 %v10154
        %v11064 = vpop.f32.mrb[0].mxu0
        %v11065 = vadd.f32 %v10939, %v11064
        %v11066 = vpop.f32.mrb[0].mxu0
        %v11067 = vadd.f32 %v10943, %v11066
        %v11068 = vpop.f32.mrb[0].mxu0
        %v11069 = vpop.f32.mrb[0].mxu0
        %11070 = vdwg.mxu0
        %11071 = vmatprep.subr.bf16.mxu0 %v10738
        %11072 = vmatpush1.bf16.msra.mxu0 %v10737
        %11073 = vmatprep.subr.bf16.mxu0 %v10742
        %11074 = vmatpush1.bf16.msra.mxu0 %v10741
        %11075 = vmatprep.subr.bf16.mxu0 %v10746
        %11076 = vmatpush1.bf16.msra.mxu0 %v10745
        %11077 = vmatprep.subr.bf16.mxu0 %v10750
        %11078 = vmatpush1.bf16.msra.mxu0 %v10749
        %11079 = vmatprep.subr.bf16.mxu0 %v10754
        %11080 = vmatpush1.bf16.msra.mxu0 %v10753
        %11081 = vmatprep.subr.bf16.mxu0 %v10758
        %11082 = vmatpush1.bf16.msra.mxu0 %v10757
        %11083 = vmatprep.subr.bf16.mxu0 %v10762
        %11084 = vmatpush1.bf16.msra.mxu0 %v10761
        %11085 = vmatprep.subr.bf16.mxu0 %v10766
        %11086 = vmatpush1.bf16.msra.mxu0 %v10765
        %11087 = vmatprep.subr.bf16.mxu0 %v10770
        %11088 = vmatpush1.bf16.msra.mxu0 %v10769
        %11089 = vmatprep.subr.bf16.mxu0 %v10774
        %11090 = vmatpush1.bf16.msra.mxu0 %v10773
        %11091 = vmatprep.subr.bf16.mxu0 %v10778
        %11092 = vmatpush1.bf16.msra.mxu0 %v10777
        %11093 = vmatprep.subr.bf16.mxu0 %v10782
        %11094 = vmatpush1.bf16.msra.mxu0 %v10781
        %11095 = vmatprep.subr.bf16.mxu0 %v10786
        %11096 = vmatpush1.bf16.msra.mxu0 %v10785
        %11097 = vmatprep.subr.bf16.mxu0 %v10790
        %11098 = vmatpush1.bf16.msra.mxu0 %v10789
        %11099 = vmatprep.subr.bf16.mxu0 %v10794
        %11100 = vmatpush1.bf16.msra.mxu0 %v10793
        %11101 = vmatprep.subr.bf16.mxu0 %v10798
        %11102 = vmatpush1.bf16.msra.mxu0 %v10797
        %11103 = vmatprep.mubr.bf16.mxu0 %v10157
        %11104 = vmatmul.mubr.bf16.gmra.mrb[0].mxu0 %v10156
        %v11105 = vpop.f32.mrb[0].mxu0
        %v11106 = vadd.f32 %v11065, %v11105
        %v11107 = vpop.f32.mrb[0].mxu0
        %v11108 = vadd.f32 %v11067, %v11107
        %v11109 = vpop.f32.mrb[0].mxu0
        %v11110 = vpop.f32.mrb[0].mxu0
        %11111 = vdwg.mxu0
        %v11112 = vmax.f32 %v11024, 0.0
        %v11113 = vmax.f32 %v11026, 0.0
        %v11114 = vmax.f32 %v11106, 0.0
        %v11115 = vmax.f32 %v11108, 0.0
        %v11116 = vpack.c.bf16 %v11112, %v11112
        %v11117 = vpack.c.bf16 %v11113, %v11113
        %v11118 = vpack.c.bf16 %v11114, %v11114
        %v11119 = vpack.c.bf16 %v11115, %v11115
        %v11120 = vld [vmem:[%s11] sm:$0xff]
        %v11121 = vld [vmem:[%s11 + $0x8] sm:$0xff]
        %v11122 = vld [vmem:[%s11 + $0x10] sm:$0xff]
        %v11123 = vld [vmem:[%s11 + $0x18] sm:$0xff]
        %v11124 = vld [vmem:[%s11 + $0x20] sm:$0xff]
        %v11125 = vld [vmem:[%s11 + $0x28] sm:$0xff]
        %v11126 = vld [vmem:[%s11 + $0x30] sm:$0xff]
        %v11127 = vld [vmem:[%s11 + $0x38] sm:$0xff]
        %v11128 = vld [vmem:[%s11 + $0x40] sm:$0xff]
        %v11129 = vld [vmem:[%s11 + $0x48] sm:$0xff]
        %v11130 = vld [vmem:[%s11 + $0x50] sm:$0xff]
        %v11131 = vld [vmem:[%s11 + $0x58] sm:$0xff]
        %v11132 = vld [vmem:[%s11 + $0x60] sm:$0xff]
        %v11133 = vld [vmem:[%s11 + $0x68] sm:$0xff]
        %v11134 = vld [vmem:[%s11 + $0x70] sm:$0xff]
        %v11135 = vld [vmem:[%s11 + $0x78] sm:$0xff]
        %v11136 = vld [vmem:[%s11 + $0x80] sm:$0xff]
        %v11137 = vld [vmem:[%s11 + $0x88] sm:$0xff]
        %v11138 = vld [vmem:[%s11 + $0x90] sm:$0xff]
        %v11139 = vld [vmem:[%s11 + $0x98] sm:$0xff]
        %v11140 = vld [vmem:[%s11 + $0xa0] sm:$0xff]
        %v11141 = vld [vmem:[%s11 + $0xa8] sm:$0xff]
        %v11142 = vld [vmem:[%s11 + $0xb0] sm:$0xff]
        %v11143 = vld [vmem:[%s11 + $0xb8] sm:$0xff]
        %v11144 = vld [vmem:[%s11 + $0xc0] sm:$0xff]
        %v11145 = vld [vmem:[%s11 + $0xc8] sm:$0xff]
        %v11146 = vld [vmem:[%s11 + $0xd0] sm:$0xff]
        %v11147 = vld [vmem:[%s11 + $0xd8] sm:$0xff]
        %v11148 = vld [vmem:[%s11 + $0xe0] sm:$0xff]
        %v11149 = vld [vmem:[%s11 + $0xe8] sm:$0xff]
        %v11150 = vld [vmem:[%s11 + $0xf0] sm:$0xff]
        %v11151 = vld [vmem:[%s11 + $0xf8] sm:$0xff]
        %v11152 = vld [vmem:[%s11 + $0x100] sm:$0xff]
        %v11153 = vld [vmem:[%s11 + $0x108] sm:$0xff]
        %v11154 = vld [vmem:[%s11 + $0x110] sm:$0xff]
        %v11155 = vld [vmem:[%s11 + $0x118] sm:$0xff]
        %v11156 = vld [vmem:[%s11 + $0x120] sm:$0xff]
        %v11157 = vld [vmem:[%s11 + $0x128] sm:$0xff]
        %v11158 = vld [vmem:[%s11 + $0x130] sm:$0xff]
        %v11159 = vld [vmem:[%s11 + $0x138] sm:$0xff]
        %v11160 = vld [vmem:[%s11 + $0x140] sm:$0xff]
        %v11161 = vld [vmem:[%s11 + $0x148] sm:$0xff]
        %v11162 = vld [vmem:[%s11 + $0x150] sm:$0xff]
        %v11163 = vld [vmem:[%s11 + $0x158] sm:$0xff]
        %v11164 = vld [vmem:[%s11 + $0x160] sm:$0xff]
        %v11165 = vld [vmem:[%s11 + $0x168] sm:$0xff]
        %v11166 = vld [vmem:[%s11 + $0x170] sm:$0xff]
        %v11167 = vld [vmem:[%s11 + $0x178] sm:$0xff]
        %v11168 = vld [vmem:[%s11 + $0x180] sm:$0xff]
        %v11169 = vld [vmem:[%s11 + $0x188] sm:$0xff]
        %v11170 = vld [vmem:[%s11 + $0x190] sm:$0xff]
        %v11171 = vld [vmem:[%s11 + $0x198] sm:$0xff]
        %v11172 = vld [vmem:[%s11 + $0x1a0] sm:$0xff]
        %v11173 = vld [vmem:[%s11 + $0x1a8] sm:$0xff]
        %v11174 = vld [vmem:[%s11 + $0x1b0] sm:$0xff]
        %v11175 = vld [vmem:[%s11 + $0x1b8] sm:$0xff]
        %v11176 = vld [vmem:[%s11 + $0x1c0] sm:$0xff]
        %v11177 = vld [vmem:[%s11 + $0x1c8] sm:$0xff]
        %v11178 = vld [vmem:[%s11 + $0x1d0] sm:$0xff]
        %v11179 = vld [vmem:[%s11 + $0x1d8] sm:$0xff]
        %v11180 = vld [vmem:[%s11 + $0x1e0] sm:$0xff]
        %v11181 = vld [vmem:[%s11 + $0x1e8] sm:$0xff]
        %v11182 = vld [vmem:[%s11 + $0x1f0] sm:$0xff]
        %v11183 = vld [vmem:[%s11 + $0x1f8] sm:$0xff]
        %v11184 = vld [vmem:[%s11 + $0x200] sm:$0xff]
        %v11185 = vld [vmem:[%s11 + $0x208] sm:$0xff]
        %v11186 = vld [vmem:[%s11 + $0x210] sm:$0xff]
        %v11187 = vld [vmem:[%s11 + $0x218] sm:$0xff]
        %v11188 = vld [vmem:[%s11 + $0x220] sm:$0xff]
        %v11189 = vld [vmem:[%s11 + $0x228] sm:$0xff]
        %v11190 = vld [vmem:[%s11 + $0x230] sm:$0xff]
        %v11191 = vld [vmem:[%s11 + $0x238] sm:$0xff]
        %v11192 = vld [vmem:[%s11 + $0x240] sm:$0xff]
        %v11193 = vld [vmem:[%s11 + $0x248] sm:$0xff]
        %v11194 = vld [vmem:[%s11 + $0x250] sm:$0xff]
        %v11195 = vld [vmem:[%s11 + $0x258] sm:$0xff]
        %v11196 = vld [vmem:[%s11 + $0x260] sm:$0xff]
        %v11197 = vld [vmem:[%s11 + $0x268] sm:$0xff]
        %v11198 = vld [vmem:[%s11 + $0x270] sm:$0xff]
        %v11199 = vld [vmem:[%s11 + $0x278] sm:$0xff]
        %v11200 = vld [vmem:[%s11 + $0x280] sm:$0xff]
        %v11201 = vld [vmem:[%s11 + $0x288] sm:$0xff]
        %v11202 = vld [vmem:[%s11 + $0x290] sm:$0xff]
        %v11203 = vld [vmem:[%s11 + $0x298] sm:$0xff]
        %v11204 = vld [vmem:[%s11 + $0x2a0] sm:$0xff]
        %v11205 = vld [vmem:[%s11 + $0x2a8] sm:$0xff]
        %v11206 = vld [vmem:[%s11 + $0x2b0] sm:$0xff]
        %v11207 = vld [vmem:[%s11 + $0x2b8] sm:$0xff]
        %v11208 = vld [vmem:[%s11 + $0x2c0] sm:$0xff]
        %v11209 = vld [vmem:[%s11 + $0x2c8] sm:$0xff]
        %v11210 = vld [vmem:[%s11 + $0x2d0] sm:$0xff]
        %v11211 = vld [vmem:[%s11 + $0x2d8] sm:$0xff]
        %v11212 = vld [vmem:[%s11 + $0x2e0] sm:$0xff]
        %v11213 = vld [vmem:[%s11 + $0x2e8] sm:$0xff]
        %v11214 = vld [vmem:[%s11 + $0x2f0] sm:$0xff]
        %v11215 = vld [vmem:[%s11 + $0x2f8] sm:$0xff]
        %v11216 = vld [vmem:[%s11 + $0x300] sm:$0xff]
        %v11217 = vld [vmem:[%s11 + $0x308] sm:$0xff]
        %v11218 = vld [vmem:[%s11 + $0x310] sm:$0xff]
        %v11219 = vld [vmem:[%s11 + $0x318] sm:$0xff]
        %v11220 = vld [vmem:[%s11 + $0x320] sm:$0xff]
        %v11221 = vld [vmem:[%s11 + $0x328] sm:$0xff]
        %v11222 = vld [vmem:[%s11 + $0x330] sm:$0xff]
        %v11223 = vld [vmem:[%s11 + $0x338] sm:$0xff]
        %v11224 = vld [vmem:[%s11 + $0x340] sm:$0xff]
        %v11225 = vld [vmem:[%s11 + $0x348] sm:$0xff]
        %v11226 = vld [vmem:[%s11 + $0x350] sm:$0xff]
        %v11227 = vld [vmem:[%s11 + $0x358] sm:$0xff]
        %v11228 = vld [vmem:[%s11 + $0x360] sm:$0xff]
        %v11229 = vld [vmem:[%s11 + $0x368] sm:$0xff]
        %v11230 = vld [vmem:[%s11 + $0x370] sm:$0xff]
        %v11231 = vld [vmem:[%s11 + $0x378] sm:$0xff]
        %v11232 = vld [vmem:[%s11 + $0x380] sm:$0xff]
        %v11233 = vld [vmem:[%s11 + $0x388] sm:$0xff]
        %v11234 = vld [vmem:[%s11 + $0x390] sm:$0xff]
        %v11235 = vld [vmem:[%s11 + $0x398] sm:$0xff]
        %v11236 = vld [vmem:[%s11 + $0x3a0] sm:$0xff]
        %v11237 = vld [vmem:[%s11 + $0x3a8] sm:$0xff]
        %v11238 = vld [vmem:[%s11 + $0x3b0] sm:$0xff]
        %v11239 = vld [vmem:[%s11 + $0x3b8] sm:$0xff]
        %v11240 = vld [vmem:[%s11 + $0x3c0] sm:$0xff]
        %v11241 = vld [vmem:[%s11 + $0x3c8] sm:$0xff]
        %v11242 = vld [vmem:[%s11 + $0x3d0] sm:$0xff]
        %v11243 = vld [vmem:[%s11 + $0x3d8] sm:$0xff]
        %v11244 = vld [vmem:[%s11 + $0x3e0] sm:$0xff]
        %v11245 = vld [vmem:[%s11 + $0x3e8] sm:$0xff]
        %v11246 = vld [vmem:[%s11 + $0x3f0] sm:$0xff]
        %v11247 = vld [vmem:[%s11 + $0x3f8] sm:$0xff]
        %v11248 = vld [vmem:[%s12] sm:$0xf]
        %v11377 = vunpack.c.l.b16 %v11120
        %v11378 = vunpack.c.h.b16 %v11120
        %v11379 = vunpack.c.l.b16 %v11121
        %v11380 = vunpack.c.h.b16 %v11121
        %v11381 = vunpack.c.l.b16 %v11122
        %v11382 = vunpack.c.h.b16 %v11122
        %v11383 = vunpack.c.l.b16 %v11123
        %v11384 = vunpack.c.h.b16 %v11123
        %v11385 = vunpack.c.l.b16 %v11124
        %v11386 = vunpack.c.h.b16 %v11124
        %v11387 = vunpack.c.l.b16 %v11125
        %v11388 = vunpack.c.h.b16 %v11125
        %v11389 = vunpack.c.l.b16 %v11126
        %v11390 = vunpack.c.h.b16 %v11126
        %v11391 = vunpack.c.l.b16 %v11127
        %v11392 = vunpack.c.h.b16 %v11127
        %v11393 = vunpack.c.l.b16 %v11128
        %v11394 = vunpack.c.h.b16 %v11128
        %v11395 = vunpack.c.l.b16 %v11129
        %v11396 = vunpack.c.h.b16 %v11129
        %v11397 = vunpack.c.l.b16 %v11130
        %v11398 = vunpack.c.h.b16 %v11130
        %v11399 = vunpack.c.l.b16 %v11131
        %v11400 = vunpack.c.h.b16 %v11131
        %v11401 = vunpack.c.l.b16 %v11132
        %v11402 = vunpack.c.h.b16 %v11132
        %v11403 = vunpack.c.l.b16 %v11133
        %v11404 = vunpack.c.h.b16 %v11133
        %v11405 = vunpack.c.l.b16 %v11134
        %v11406 = vunpack.c.h.b16 %v11134
        %v11407 = vunpack.c.l.b16 %v11135
        %v11408 = vunpack.c.h.b16 %v11135
        %v11409 = vunpack.c.l.b16 %v11136
        %v11410 = vunpack.c.h.b16 %v11136
        %v11411 = vunpack.c.l.b16 %v11137
        %v11412 = vunpack.c.h.b16 %v11137
        %v11413 = vunpack.c.l.b16 %v11138
        %v11414 = vunpack.c.h.b16 %v11138
        %v11415 = vunpack.c.l.b16 %v11139
        %v11416 = vunpack.c.h.b16 %v11139
        %v11417 = vunpack.c.l.b16 %v11140
        %v11418 = vunpack.c.h.b16 %v11140
        %v11419 = vunpack.c.l.b16 %v11141
        %v11420 = vunpack.c.h.b16 %v11141
        %v11421 = vunpack.c.l.b16 %v11142
        %v11422 = vunpack.c.h.b16 %v11142
        %v11423 = vunpack.c.l.b16 %v11143
        %v11424 = vunpack.c.h.b16 %v11143
        %v11425 = vunpack.c.l.b16 %v11144
        %v11426 = vunpack.c.h.b16 %v11144
        %v11427 = vunpack.c.l.b16 %v11145
        %v11428 = vunpack.c.h.b16 %v11145
        %v11429 = vunpack.c.l.b16 %v11146
        %v11430 = vunpack.c.h.b16 %v11146
        %v11431 = vunpack.c.l.b16 %v11147
        %v11432 = vunpack.c.h.b16 %v11147
        %v11433 = vunpack.c.l.b16 %v11148
        %v11434 = vunpack.c.h.b16 %v11148
        %v11435 = vunpack.c.l.b16 %v11149
        %v11436 = vunpack.c.h.b16 %v11149
        %v11437 = vunpack.c.l.b16 %v11150
        %v11438 = vunpack.c.h.b16 %v11150
        %v11439 = vunpack.c.l.b16 %v11151
        %v11440 = vunpack.c.h.b16 %v11151
        %v11441 = vunpack.c.l.b16 %v11152
        %v11442 = vunpack.c.h.b16 %v11152
        %v11443 = vunpack.c.l.b16 %v11153
        %v11444 = vunpack.c.h.b16 %v11153
        %v11445 = vunpack.c.l.b16 %v11154
        %v11446 = vunpack.c.h.b16 %v11154
        %v11447 = vunpack.c.l.b16 %v11155
        %v11448 = vunpack.c.h.b16 %v11155
        %v11449 = vunpack.c.l.b16 %v11156
        %v11450 = vunpack.c.h.b16 %v11156
        %v11451 = vunpack.c.l.b16 %v11157
        %v11452 = vunpack.c.h.b16 %v11157
        %v11453 = vunpack.c.l.b16 %v11158
        %v11454 = vunpack.c.h.b16 %v11158
        %v11455 = vunpack.c.l.b16 %v11159
        %v11456 = vunpack.c.h.b16 %v11159
        %v11457 = vunpack.c.l.b16 %v11160
        %v11458 = vunpack.c.h.b16 %v11160
        %v11459 = vunpack.c.l.b16 %v11161
        %v11460 = vunpack.c.h.b16 %v11161
        %v11461 = vunpack.c.l.b16 %v11162
        %v11462 = vunpack.c.h.b16 %v11162
        %v11463 = vunpack.c.l.b16 %v11163
        %v11464 = vunpack.c.h.b16 %v11163
        %v11465 = vunpack.c.l.b16 %v11164
        %v11466 = vunpack.c.h.b16 %v11164
        %v11467 = vunpack.c.l.b16 %v11165
        %v11468 = vunpack.c.h.b16 %v11165
        %v11469 = vunpack.c.l.b16 %v11166
        %v11470 = vunpack.c.h.b16 %v11166
        %v11471 = vunpack.c.l.b16 %v11167
        %v11472 = vunpack.c.h.b16 %v11167
        %v11473 = vunpack.c.l.b16 %v11168
        %v11474 = vunpack.c.h.b16 %v11168
        %v11475 = vunpack.c.l.b16 %v11169
        %v11476 = vunpack.c.h.b16 %v11169
        %v11477 = vunpack.c.l.b16 %v11170
        %v11478 = vunpack.c.h.b16 %v11170
        %v11479 = vunpack.c.l.b16 %v11171
        %v11480 = vunpack.c.h.b16 %v11171
        %v11481 = vunpack.c.l.b16 %v11172
        %v11482 = vunpack.c.h.b16 %v11172
        %v11483 = vunpack.c.l.b16 %v11173
        %v11484 = vunpack.c.h.b16 %v11173
        %v11485 = vunpack.c.l.b16 %v11174
        %v11486 = vunpack.c.h.b16 %v11174
        %v11487 = vunpack.c.l.b16 %v11175
        %v11488 = vunpack.c.h.b16 %v11175
        %v11489 = vunpack.c.l.b16 %v11176
        %v11490 = vunpack.c.h.b16 %v11176
        %v11491 = vunpack.c.l.b16 %v11177
        %v11492 = vunpack.c.h.b16 %v11177
        %v11493 = vunpack.c.l.b16 %v11178
        %v11494 = vunpack.c.h.b16 %v11178
        %v11495 = vunpack.c.l.b16 %v11179
        %v11496 = vunpack.c.h.b16 %v11179
        %v11497 = vunpack.c.l.b16 %v11180
        %v11498 = vunpack.c.h.b16 %v11180
        %v11499 = vunpack.c.l.b16 %v11181
        %v11500 = vunpack.c.h.b16 %v11181
        %v11501 = vunpack.c.l.b16 %v11182
        %v11502 = vunpack.c.h.b16 %v11182
        %v11503 = vunpack.c.l.b16 %v11183
        %v11504 = vunpack.c.h.b16 %v11183
        %v11505 = vunpack.c.l.b16 %v11184
        %v11506 = vunpack.c.h.b16 %v11184
        %v11507 = vunpack.c.l.b16 %v11185
        %v11508 = vunpack.c.h.b16 %v11185
        %v11509 = vunpack.c.l.b16 %v11186
        %v11510 = vunpack.c.h.b16 %v11186
        %v11511 = vunpack.c.l.b16 %v11187
        %v11512 = vunpack.c.h.b16 %v11187
        %v11513 = vunpack.c.l.b16 %v11188
        %v11514 = vunpack.c.h.b16 %v11188
        %v11515 = vunpack.c.l.b16 %v11189
        %v11516 = vunpack.c.h.b16 %v11189
        %v11517 = vunpack.c.l.b16 %v11190
        %v11518 = vunpack.c.h.b16 %v11190
        %v11519 = vunpack.c.l.b16 %v11191
        %v11520 = vunpack.c.h.b16 %v11191
        %v11521 = vunpack.c.l.b16 %v11192
        %v11522 = vunpack.c.h.b16 %v11192
        %v11523 = vunpack.c.l.b16 %v11193
        %v11524 = vunpack.c.h.b16 %v11193
        %v11525 = vunpack.c.l.b16 %v11194
        %v11526 = vunpack.c.h.b16 %v11194
        %v11527 = vunpack.c.l.b16 %v11195
        %v11528 = vunpack.c.h.b16 %v11195
        %v11529 = vunpack.c.l.b16 %v11196
        %v11530 = vunpack.c.h.b16 %v11196
        %v11531 = vunpack.c.l.b16 %v11197
        %v11532 = vunpack.c.h.b16 %v11197
        %v11533 = vunpack.c.l.b16 %v11198
        %v11534 = vunpack.c.h.b16 %v11198
        %v11535 = vunpack.c.l.b16 %v11199
        %v11536 = vunpack.c.h.b16 %v11199
        %v11537 = vunpack.c.l.b16 %v11200
        %v11538 = vunpack.c.h.b16 %v11200
        %v11539 = vunpack.c.l.b16 %v11201
        %v11540 = vunpack.c.h.b16 %v11201
        %v11541 = vunpack.c.l.b16 %v11202
        %v11542 = vunpack.c.h.b16 %v11202
        %v11543 = vunpack.c.l.b16 %v11203
        %v11544 = vunpack.c.h.b16 %v11203
        %v11545 = vunpack.c.l.b16 %v11204
        %v11546 = vunpack.c.h.b16 %v11204
        %v11547 = vunpack.c.l.b16 %v11205
        %v11548 = vunpack.c.h.b16 %v11205
        %v11549 = vunpack.c.l.b16 %v11206
        %v11550 = vunpack.c.h.b16 %v11206
        %v11551 = vunpack.c.l.b16 %v11207
        %v11552 = vunpack.c.h.b16 %v11207
        %v11553 = vunpack.c.l.b16 %v11208
        %v11554 = vunpack.c.h.b16 %v11208
        %v11555 = vunpack.c.l.b16 %v11209
        %v11556 = vunpack.c.h.b16 %v11209
        %v11557 = vunpack.c.l.b16 %v11210
        %v11558 = vunpack.c.h.b16 %v11210
        %v11559 = vunpack.c.l.b16 %v11211
        %v11560 = vunpack.c.h.b16 %v11211
        %v11561 = vunpack.c.l.b16 %v11212
        %v11562 = vunpack.c.h.b16 %v11212
        %v11563 = vunpack.c.l.b16 %v11213
        %v11564 = vunpack.c.h.b16 %v11213
        %v11565 = vunpack.c.l.b16 %v11214
        %v11566 = vunpack.c.h.b16 %v11214
        %v11567 = vunpack.c.l.b16 %v11215
        %v11568 = vunpack.c.h.b16 %v11215
        %v11569 = vunpack.c.l.b16 %v11216
        %v11570 = vunpack.c.h.b16 %v11216
        %v11571 = vunpack.c.l.b16 %v11217
        %v11572 = vunpack.c.h.b16 %v11217
        %v11573 = vunpack.c.l.b16 %v11218
        %v11574 = vunpack.c.h.b16 %v11218
        %v11575 = vunpack.c.l.b16 %v11219
        %v11576 = vunpack.c.h.b16 %v11219
        %v11577 = vunpack.c.l.b16 %v11220
        %v11578 = vunpack.c.h.b16 %v11220
        %v11579 = vunpack.c.l.b16 %v11221
        %v11580 = vunpack.c.h.b16 %v11221
        %v11581 = vunpack.c.l.b16 %v11222
        %v11582 = vunpack.c.h.b16 %v11222
        %v11583 = vunpack.c.l.b16 %v11223
        %v11584 = vunpack.c.h.b16 %v11223
        %v11585 = vunpack.c.l.b16 %v11224
        %v11586 = vunpack.c.h.b16 %v11224
        %v11587 = vunpack.c.l.b16 %v11225
        %v11588 = vunpack.c.h.b16 %v11225
        %v11589 = vunpack.c.l.b16 %v11226
        %v11590 = vunpack.c.h.b16 %v11226
        %v11591 = vunpack.c.l.b16 %v11227
        %v11592 = vunpack.c.h.b16 %v11227
        %v11593 = vunpack.c.l.b16 %v11228
        %v11594 = vunpack.c.h.b16 %v11228
        %v11595 = vunpack.c.l.b16 %v11229
        %v11596 = vunpack.c.h.b16 %v11229
        %v11597 = vunpack.c.l.b16 %v11230
        %v11598 = vunpack.c.h.b16 %v11230
        %v11599 = vunpack.c.l.b16 %v11231
        %v11600 = vunpack.c.h.b16 %v11231
        %v11601 = vunpack.c.l.b16 %v11232
        %v11602 = vunpack.c.h.b16 %v11232
        %v11603 = vunpack.c.l.b16 %v11233
        %v11604 = vunpack.c.h.b16 %v11233
        %v11605 = vunpack.c.l.b16 %v11234
        %v11606 = vunpack.c.h.b16 %v11234
        %v11607 = vunpack.c.l.b16 %v11235
        %v11608 = vunpack.c.h.b16 %v11235
        %v11609 = vunpack.c.l.b16 %v11236
        %v11610 = vunpack.c.h.b16 %v11236
        %v11611 = vunpack.c.l.b16 %v11237
        %v11612 = vunpack.c.h.b16 %v11237
        %v11613 = vunpack.c.l.b16 %v11238
        %v11614 = vunpack.c.h.b16 %v11238
        %v11615 = vunpack.c.l.b16 %v11239
        %v11616 = vunpack.c.h.b16 %v11239
        %v11617 = vunpack.c.l.b16 %v11240
        %v11618 = vunpack.c.h.b16 %v11240
        %v11619 = vunpack.c.l.b16 %v11241
        %v11620 = vunpack.c.h.b16 %v11241
        %v11621 = vunpack.c.l.b16 %v11242
        %v11622 = vunpack.c.h.b16 %v11242
        %v11623 = vunpack.c.l.b16 %v11243
        %v11624 = vunpack.c.h.b16 %v11243
        %v11625 = vunpack.c.l.b16 %v11244
        %v11626 = vunpack.c.h.b16 %v11244
        %v11627 = vunpack.c.l.b16 %v11245
        %v11628 = vunpack.c.h.b16 %v11245
        %v11629 = vunpack.c.l.b16 %v11246
        %v11630 = vunpack.c.h.b16 %v11246
        %v11631 = vunpack.c.l.b16 %v11247
        %v11632 = vunpack.c.h.b16 %v11247
        %v11633 = vpack.c.b16 %v11381, %v11377
        %v11634 = vpack.c.b16 %v11382, %v11378
        %v11635 = vpack.c.b16 %v11383, %v11379
        %v11636 = vpack.c.b16 %v11384, %v11380
        %v11637 = vpack.c.b16 %v11389, %v11385
        %v11638 = vpack.c.b16 %v11390, %v11386
        %v11639 = vpack.c.b16 %v11391, %v11387
        %v11640 = vpack.c.b16 %v11392, %v11388
        %v11641 = vpack.c.b16 %v11397, %v11393
        %v11642 = vpack.c.b16 %v11398, %v11394
        %v11643 = vpack.c.b16 %v11399, %v11395
        %v11644 = vpack.c.b16 %v11400, %v11396
        %v11645 = vpack.c.b16 %v11405, %v11401
        %v11646 = vpack.c.b16 %v11406, %v11402
        %v11647 = vpack.c.b16 %v11407, %v11403
        %v11648 = vpack.c.b16 %v11408, %v11404
        %v11649 = vpack.c.b16 %v11413, %v11409
        %v11650 = vpack.c.b16 %v11414, %v11410
        %v11651 = vpack.c.b16 %v11415, %v11411
        %v11652 = vpack.c.b16 %v11416, %v11412
        %v11653 = vpack.c.b16 %v11421, %v11417
        %v11654 = vpack.c.b16 %v11422, %v11418
        %v11655 = vpack.c.b16 %v11423, %v11419
        %v11656 = vpack.c.b16 %v11424, %v11420
        %v11657 = vpack.c.b16 %v11429, %v11425
        %v11658 = vpack.c.b16 %v11430, %v11426
        %v11659 = vpack.c.b16 %v11431, %v11427
        %v11660 = vpack.c.b16 %v11432, %v11428
        %v11661 = vpack.c.b16 %v11437, %v11433
        %v11662 = vpack.c.b16 %v11438, %v11434
        %v11663 = vpack.c.b16 %v11439, %v11435
        %v11664 = vpack.c.b16 %v11440, %v11436
        %v11665 = vpack.c.b16 %v11445, %v11441
        %v11666 = vpack.c.b16 %v11446, %v11442
        %v11667 = vpack.c.b16 %v11447, %v11443
        %v11668 = vpack.c.b16 %v11448, %v11444
        %v11669 = vpack.c.b16 %v11453, %v11449
        %v11670 = vpack.c.b16 %v11454, %v11450
        %v11671 = vpack.c.b16 %v11455, %v11451
        %v11672 = vpack.c.b16 %v11456, %v11452
        %v11673 = vpack.c.b16 %v11461, %v11457
        %v11674 = vpack.c.b16 %v11462, %v11458
        %v11675 = vpack.c.b16 %v11463, %v11459
        %v11676 = vpack.c.b16 %v11464, %v11460
        %v11677 = vpack.c.b16 %v11469, %v11465
        %v11678 = vpack.c.b16 %v11470, %v11466
        %v11679 = vpack.c.b16 %v11471, %v11467
        %v11680 = vpack.c.b16 %v11472, %v11468
        %v11681 = vpack.c.b16 %v11477, %v11473
        %v11682 = vpack.c.b16 %v11478, %v11474
        %v11683 = vpack.c.b16 %v11479, %v11475
        %v11684 = vpack.c.b16 %v11480, %v11476
        %v11685 = vpack.c.b16 %v11485, %v11481
        %v11686 = vpack.c.b16 %v11486, %v11482
        %v11687 = vpack.c.b16 %v11487, %v11483
        %v11688 = vpack.c.b16 %v11488, %v11484
        %v11689 = vpack.c.b16 %v11493, %v11489
        %v11690 = vpack.c.b16 %v11494, %v11490
        %v11691 = vpack.c.b16 %v11495, %v11491
        %v11692 = vpack.c.b16 %v11496, %v11492
        %v11693 = vpack.c.b16 %v11501, %v11497
        %v11694 = vpack.c.b16 %v11502, %v11498
        %v11695 = vpack.c.b16 %v11503, %v11499
        %v11696 = vpack.c.b16 %v11504, %v11500
        %v11697 = vpack.c.b16 %v11509, %v11505
        %v11698 = vpack.c.b16 %v11510, %v11506
        %v11699 = vpack.c.b16 %v11511, %v11507
        %v11700 = vpack.c.b16 %v11512, %v11508
        %v11701 = vpack.c.b16 %v11517, %v11513
        %v11702 = vpack.c.b16 %v11518, %v11514
        %v11703 = vpack.c.b16 %v11519, %v11515
        %v11704 = vpack.c.b16 %v11520, %v11516
        %v11705 = vpack.c.b16 %v11525, %v11521
        %v11706 = vpack.c.b16 %v11526, %v11522
        %v11707 = vpack.c.b16 %v11527, %v11523
        %v11708 = vpack.c.b16 %v11528, %v11524
        %v11709 = vpack.c.b16 %v11533, %v11529
        %v11710 = vpack.c.b16 %v11534, %v11530
        %v11711 = vpack.c.b16 %v11535, %v11531
        %v11712 = vpack.c.b16 %v11536, %v11532
        %v11713 = vpack.c.b16 %v11541, %v11537
        %v11714 = vpack.c.b16 %v11542, %v11538
        %v11715 = vpack.c.b16 %v11543, %v11539
        %v11716 = vpack.c.b16 %v11544, %v11540
        %v11717 = vpack.c.b16 %v11549, %v11545
        %v11718 = vpack.c.b16 %v11550, %v11546
        %v11719 = vpack.c.b16 %v11551, %v11547
        %v11720 = vpack.c.b16 %v11552, %v11548
        %v11721 = vpack.c.b16 %v11557, %v11553
        %v11722 = vpack.c.b16 %v11558, %v11554
        %v11723 = vpack.c.b16 %v11559, %v11555
        %v11724 = vpack.c.b16 %v11560, %v11556
        %v11725 = vpack.c.b16 %v11565, %v11561
        %v11726 = vpack.c.b16 %v11566, %v11562
        %v11727 = vpack.c.b16 %v11567, %v11563
        %v11728 = vpack.c.b16 %v11568, %v11564
        %v11729 = vpack.c.b16 %v11573, %v11569
        %v11730 = vpack.c.b16 %v11574, %v11570
        %v11731 = vpack.c.b16 %v11575, %v11571
        %v11732 = vpack.c.b16 %v11576, %v11572
        %v11733 = vpack.c.b16 %v11581, %v11577
        %v11734 = vpack.c.b16 %v11582, %v11578
        %v11735 = vpack.c.b16 %v11583, %v11579
        %v11736 = vpack.c.b16 %v11584, %v11580
        %v11737 = vpack.c.b16 %v11589, %v11585
        %v11738 = vpack.c.b16 %v11590, %v11586
        %v11739 = vpack.c.b16 %v11591, %v11587
        %v11740 = vpack.c.b16 %v11592, %v11588
        %v11741 = vpack.c.b16 %v11597, %v11593
        %v11742 = vpack.c.b16 %v11598, %v11594
        %v11743 = vpack.c.b16 %v11599, %v11595
        %v11744 = vpack.c.b16 %v11600, %v11596
        %v11745 = vpack.c.b16 %v11605, %v11601
        %v11746 = vpack.c.b16 %v11606, %v11602
        %v11747 = vpack.c.b16 %v11607, %v11603
        %v11748 = vpack.c.b16 %v11608, %v11604
        %v11749 = vpack.c.b16 %v11613, %v11609
        %v11750 = vpack.c.b16 %v11614, %v11610
        %v11751 = vpack.c.b16 %v11615, %v11611
        %v11752 = vpack.c.b16 %v11616, %v11612
        %v11753 = vpack.c.b16 %v11621, %v11617
        %v11754 = vpack.c.b16 %v11622, %v11618
        %v11755 = vpack.c.b16 %v11623, %v11619
        %v11756 = vpack.c.b16 %v11624, %v11620
        %v11757 = vpack.c.b16 %v11629, %v11625
        %v11758 = vpack.c.b16 %v11630, %v11626
        %v11759 = vpack.c.b16 %v11631, %v11627
        %v11760 = vpack.c.b16 %v11632, %v11628
        %v11890 = vlaneseq
        %v11891 = vshrl.u32 %v11890, 7
        %v11892 = vsub.s32 0, %v11891
        %v11893 = vrot.slane %v11248, %v11892
        %v11894 = vlaneseq
        %v11895 = vshrl.u32 %v11894, 7
        %v11896 = vsub.s32 1, %v11895
        %v11897 = vrot.slane %v11248, %v11896
        %v11898 = vlaneseq
        %v11899 = vshrl.u32 %v11898, 7
        %v11900 = vsub.s32 2, %v11899
        %v11901 = vrot.slane %v11248, %v11900
        %v11902 = vlaneseq
        %v11903 = vshrl.u32 %v11902, 7
        %v11904 = vsub.s32 3, %v11903
        %v11905 = vrot.slane %v11248, %v11904
        %11910 = vmatprep.subr.bf16.mxu0 %v11634
        %11911 = vmatpush1.bf16.msra.mxu0 %v11633
        %11912 = vmatprep.subr.bf16.mxu0 %v11638
        %11913 = vmatpush1.bf16.msra.mxu0 %v11637
        %11914 = vmatprep.subr.bf16.mxu0 %v11642
        %11915 = vmatpush1.bf16.msra.mxu0 %v11641
        %11916 = vmatprep.subr.bf16.mxu0 %v11646
        %11917 = vmatpush1.bf16.msra.mxu0 %v11645
        %11918 = vmatprep.subr.bf16.mxu0 %v11650
        %11919 = vmatpush1.bf16.msra.mxu0 %v11649
        %11920 = vmatprep.subr.bf16.mxu0 %v11654
        %11921 = vmatpush1.bf16.msra.mxu0 %v11653
        %11922 = vmatprep.subr.bf16.mxu0 %v11658
        %11923 = vmatpush1.bf16.msra.mxu0 %v11657
        %11924 = vmatprep.subr.bf16.mxu0 %v11662
        %11925 = vmatpush1.bf16.msra.mxu0 %v11661
        %11926 = vmatprep.subr.bf16.mxu0 %v11666
        %11927 = vmatpush1.bf16.msra.mxu0 %v11665
        %11928 = vmatprep.subr.bf16.mxu0 %v11670
        %11929 = vmatpush1.bf16.msra.mxu0 %v11669
        %11930 = vmatprep.subr.bf16.mxu0 %v11674
        %11931 = vmatpush1.bf16.msra.mxu0 %v11673
        %11932 = vmatprep.subr.bf16.mxu0 %v11678
        %11933 = vmatpush1.bf16.msra.mxu0 %v11677
        %11934 = vmatprep.subr.bf16.mxu0 %v11682
        %11935 = vmatpush1.bf16.msra.mxu0 %v11681
        %11936 = vmatprep.subr.bf16.mxu0 %v11686
        %11937 = vmatpush1.bf16.msra.mxu0 %v11685
        %11938 = vmatprep.subr.bf16.mxu0 %v11690
        %11939 = vmatpush1.bf16.msra.mxu0 %v11689
        %11940 = vmatprep.subr.bf16.mxu0 %v11694
        %11941 = vmatpush1.bf16.msra.mxu0 %v11693
        %11942 = vmatprep.mubr.bf16.mxu0 %v11117
        %11943 = vmatmul.mubr.bf16.gmra.mrb[0].mxu0 %v11116
        %v11944 = vpop.f32.mrb[0].mxu0
        %v11945 = vadd.f32 %v11893, %v11944
        %v11946 = vpop.f32.mrb[0].mxu0
        %v11947 = vadd.f32 %v11897, %v11946
        %v11948 = vpop.f32.mrb[0].mxu0
        %v11949 = vpop.f32.mrb[0].mxu0
        %11950 = vdwg.mxu0
        %11951 = vmatprep.subr.bf16.mxu0 %v11698
        %11952 = vmatpush1.bf16.msra.mxu0 %v11697
        %11953 = vmatprep.subr.bf16.mxu0 %v11702
        %11954 = vmatpush1.bf16.msra.mxu0 %v11701
        %11955 = vmatprep.subr.bf16.mxu0 %v11706
        %11956 = vmatpush1.bf16.msra.mxu0 %v11705
        %11957 = vmatprep.subr.bf16.mxu0 %v11710
        %11958 = vmatpush1.bf16.msra.mxu0 %v11709
        %11959 = vmatprep.subr.bf16.mxu0 %v11714
        %11960 = vmatpush1.bf16.msra.mxu0 %v11713
        %11961 = vmatprep.subr.bf16.mxu0 %v11718
        %11962 = vmatpush1.bf16.msra.mxu0 %v11717
        %11963 = vmatprep.subr.bf16.mxu0 %v11722
        %11964 = vmatpush1.bf16.msra.mxu0 %v11721
        %11965 = vmatprep.subr.bf16.mxu0 %v11726
        %11966 = vmatpush1.bf16.msra.mxu0 %v11725
        %11967 = vmatprep.subr.bf16.mxu0 %v11730
        %11968 = vmatpush1.bf16.msra.mxu0 %v11729
        %11969 = vmatprep.subr.bf16.mxu0 %v11734
        %11970 = vmatpush1.bf16.msra.mxu0 %v11733
        %11971 = vmatprep.subr.bf16.mxu0 %v11738
        %11972 = vmatpush1.bf16.msra.mxu0 %v11737
        %11973 = vmatprep.subr.bf16.mxu0 %v11742
        %11974 = vmatpush1.bf16.msra.mxu0 %v11741
        %11975 = vmatprep.subr.bf16.mxu0 %v11746
        %11976 = vmatpush1.bf16.msra.mxu0 %v11745
        %11977 = vmatprep.subr.bf16.mxu0 %v11750
        %11978 = vmatpush1.bf16.msra.mxu0 %v11749
        %11979 = vmatprep.subr.bf16.mxu0 %v11754
        %11980 = vmatpush1.bf16.msra.mxu0 %v11753
        %11981 = vmatprep.subr.bf16.mxu0 %v11758
        %11982 = vmatpush1.bf16.msra.mxu0 %v11757
        %11983 = vmatprep.mubr.bf16.mxu0 %v11119
        %11984 = vmatmul.mubr.bf16.gmra.mrb[0].mxu0 %v11118
        %v11985 = vpop.f32.mrb[0].mxu0
        %v11986 = vadd.f32 %v11945, %v11985
        %v11987 = vpop.f32.mrb[0].mxu0
        %v11988 = vadd.f32 %v11947, %v11987
        %v11989 = vpop.f32.mrb[0].mxu0
        %v11990 = vpop.f32.mrb[0].mxu0
        %11991 = vdwg.mxu0
        %11992 = vmatprep.subr.bf16.mxu0 %v11636
        %11993 = vmatpush1.bf16.msra.mxu0 %v11635
        %11994 = vmatprep.subr.bf16.mxu0 %v11640
        %11995 = vmatpush1.bf16.msra.mxu0 %v11639
        %11996 = vmatprep.subr.bf16.mxu0 %v11644
        %11997 = vmatpush1.bf16.msra.mxu0 %v11643
        %11998 = vmatprep.subr.bf16.mxu0 %v11648
        %11999 = vmatpush1.bf16.msra.mxu0 %v11647
        %12000 = vmatprep.subr.bf16.mxu0 %v11652
        %12001 = vmatpush1.bf16.msra.mxu0 %v11651
        %12002 = vmatprep.subr.bf16.mxu0 %v11656
        %12003 = vmatpush1.bf16.msra.mxu0 %v11655
        %12004 = vmatprep.subr.bf16.mxu0 %v11660
        %12005 = vmatpush1.bf16.msra.mxu0 %v11659
        %12006 = vmatprep.subr.bf16.mxu0 %v11664
        %12007 = vmatpush1.bf16.msra.mxu0 %v11663
        %12008 = vmatprep.subr.bf16.mxu0 %v11668
        %12009 = vmatpush1.bf16.msra.mxu0 %v11667
        %12010 = vmatprep.subr.bf16.mxu0 %v11672
        %12011 = vmatpush1.bf16.msra.mxu0 %v11671
        %12012 = vmatprep.subr.bf16.mxu0 %v11676
        %12013 = vmatpush1.bf16.msra.mxu0 %v11675
        %12014 = vmatprep.subr.bf16.mxu0 %v11680
        %12015 = vmatpush1.bf16.msra.mxu0 %v11679
        %12016 = vmatprep.subr.bf16.mxu0 %v11684
        %12017 = vmatpush1.bf16.msra.mxu0 %v11683
        %12018 = vmatprep.subr.bf16.mxu0 %v11688
        %12019 = vmatpush1.bf16.msra.mxu0 %v11687
        %12020 = vmatprep.subr.bf16.mxu0 %v11692
        %12021 = vmatpush1.bf16.msra.mxu0 %v11691
        %12022 = vmatprep.subr.bf16.mxu0 %v11696
        %12023 = vmatpush1.bf16.msra.mxu0 %v11695
        %12024 = vmatprep.mubr.bf16.mxu0 %v11117
        %12025 = vmatmul.mubr.bf16.gmra.mrb[0].mxu0 %v11116
        %v12026 = vpop.f32.mrb[0].mxu0
        %v12027 = vadd.f32 %v11901, %v12026
        %v12028 = vpop.f32.mrb[0].mxu0
        %v12029 = vadd.f32 %v11905, %v12028
        %v12030 = vpop.f32.mrb[0].mxu0
        %v12031 = vpop.f32.mrb[0].mxu0
        %12032 = vdwg.mxu0
        %12033 = vmatprep.subr.bf16.mxu0 %v11700
        %12034 = vmatpush1.bf16.msra.mxu0 %v11699
        %12035 = vmatprep.subr.bf16.mxu0 %v11704
        %12036 = vmatpush1.bf16.msra.mxu0 %v11703
        %12037 = vmatprep.subr.bf16.mxu0 %v11708
        %12038 = vmatpush1.bf16.msra.mxu0 %v11707
        %12039 = vmatprep.subr.bf16.mxu0 %v11712
        %12040 = vmatpush1.bf16.msra.mxu0 %v11711
        %12041 = vmatprep.subr.bf16.mxu0 %v11716
        %12042 = vmatpush1.bf16.msra.mxu0 %v11715
        %12043 = vmatprep.subr.bf16.mxu0 %v11720
        %12044 = vmatpush1.bf16.msra.mxu0 %v11719
        %12045 = vmatprep.subr.bf16.mxu0 %v11724
        %12046 = vmatpush1.bf16.msra.mxu0 %v11723
        %12047 = vmatprep.subr.bf16.mxu0 %v11728
        %12048 = vmatpush1.bf16.msra.mxu0 %v11727
        %12049 = vmatprep.subr.bf16.mxu0 %v11732
        %12050 = vmatpush1.bf16.msra.mxu0 %v11731
        %12051 = vmatprep.subr.bf16.mxu0 %v11736
        %12052 = vmatpush1.bf16.msra.mxu0 %v11735
        %12053 = vmatprep.subr.bf16.mxu0 %v11740
        %12054 = vmatpush1.bf16.msra.mxu0 %v11739
        %12055 = vmatprep.subr.bf16.mxu0 %v11744
        %12056 = vmatpush1.bf16.msra.mxu0 %v11743
        %12057 = vmatprep.subr.bf16.mxu0 %v11748
        %12058 = vmatpush1.bf16.msra.mxu0 %v11747
        %12059 = vmatprep.subr.bf16.mxu0 %v11752
        %12060 = vmatpush1.bf16.msra.mxu0 %v11751
        %12061 = vmatprep.subr.bf16.mxu0 %v11756
        %12062 = vmatpush1.bf16.msra.mxu0 %v11755
        %12063 = vmatprep.subr.bf16.mxu0 %v11760
        %12064 = vmatpush1.bf16.msra.mxu0 %v11759
        %12065 = vmatprep.mubr.bf16.mxu0 %v11119
        %12066 = vmatmul.mubr.bf16.gmra.mrb[0].mxu0 %v11118
        %v12067 = vpop.f32.mrb[0].mxu0
        %v12068 = vadd.f32 %v12027, %v12067
        %v12069 = vpop.f32.mrb[0].mxu0
        %v12070 = vadd.f32 %v12029, %v12069
        %v12071 = vpop.f32.mrb[0].mxu0
        %v12072 = vpop.f32.mrb[0].mxu0
        %12073 = vdwg.mxu0
        %v12074 = vmax.f32 %v11986, 0.0
        %v12075 = vmax.f32 %v11988, 0.0
        %v12076 = vmax.f32 %v12068, 0.0
        %v12077 = vmax.f32 %v12070, 0.0
        %v12078 = vpack.c.bf16 %v12074, %v12074
        %v12079 = vpack.c.bf16 %v12075, %v12075
        %v12080 = vpack.c.bf16 %v12076, %v12076
        %v12081 = vpack.c.bf16 %v12077, %v12077
        %v12082 = vld [vmem:[%s13] sm:$0xf]
        %v12083 = vld [vmem:[%s13 + $0x4] sm:$0xf]
        %v12084 = vld [vmem:[%s13 + $0x8] sm:$0xf]
        %v12085 = vld [vmem:[%s13 + $0xc] sm:$0xf]
        %v12086 = vld [vmem:[%s13 + $0x10] sm:$0xf]
        %v12087 = vld [vmem:[%s13 + $0x14] sm:$0xf]
        %v12088 = vld [vmem:[%s13 + $0x18] sm:$0xf]
        %v12089 = vld [vmem:[%s13 + $0x1c] sm:$0xf]
        %v12090 = vld [vmem:[%s13 + $0x20] sm:$0xf]
        %v12091 = vld [vmem:[%s13 + $0x24] sm:$0xf]
        %v12092 = vld [vmem:[%s13 + $0x28] sm:$0xf]
        %v12093 = vld [vmem:[%s13 + $0x2c] sm:$0xf]
        %v12094 = vld [vmem:[%s13 + $0x30] sm:$0xf]
        %v12095 = vld [vmem:[%s13 + $0x34] sm:$0xf]
        %v12096 = vld [vmem:[%s13 + $0x38] sm:$0xf]
        %v12097 = vld [vmem:[%s13 + $0x3c] sm:$0xf]
        %v12098 = vld [vmem:[%s13 + $0x40] sm:$0xf]
        %v12099 = vld [vmem:[%s13 + $0x44] sm:$0xf]
        %v12100 = vld [vmem:[%s13 + $0x48] sm:$0xf]
        %v12101 = vld [vmem:[%s13 + $0x4c] sm:$0xf]
        %v12102 = vld [vmem:[%s13 + $0x50] sm:$0xf]
        %v12103 = vld [vmem:[%s13 + $0x54] sm:$0xf]
        %v12104 = vld [vmem:[%s13 + $0x58] sm:$0xf]
        %v12105 = vld [vmem:[%s13 + $0x5c] sm:$0xf]
        %v12106 = vld [vmem:[%s13 + $0x60] sm:$0xf]
        %v12107 = vld [vmem:[%s13 + $0x64] sm:$0xf]
        %v12108 = vld [vmem:[%s13 + $0x68] sm:$0xf]
        %v12109 = vld [vmem:[%s13 + $0x6c] sm:$0xf]
        %v12110 = vld [vmem:[%s13 + $0x70] sm:$0xf]
        %v12111 = vld [vmem:[%s13 + $0x74] sm:$0xf]
        %v12112 = vld [vmem:[%s13 + $0x78] sm:$0xf]
        %v12113 = vld [vmem:[%s13 + $0x7c] sm:$0xf]
        %v12114 = vld [vmem:[%s13 + $0x80] sm:$0xf]
        %v12115 = vld [vmem:[%s13 + $0x84] sm:$0xf]
        %v12116 = vld [vmem:[%s13 + $0x88] sm:$0xf]
        %v12117 = vld [vmem:[%s13 + $0x8c] sm:$0xf]
        %v12118 = vld [vmem:[%s13 + $0x90] sm:$0xf]
        %v12119 = vld [vmem:[%s13 + $0x94] sm:$0xf]
        %v12120 = vld [vmem:[%s13 + $0x98] sm:$0xf]
        %v12121 = vld [vmem:[%s13 + $0x9c] sm:$0xf]
        %v12122 = vld [vmem:[%s13 + $0xa0] sm:$0xf]
        %v12123 = vld [vmem:[%s13 + $0xa4] sm:$0xf]
        %v12124 = vld [vmem:[%s13 + $0xa8] sm:$0xf]
        %v12125 = vld [vmem:[%s13 + $0xac] sm:$0xf]
        %v12126 = vld [vmem:[%s13 + $0xb0] sm:$0xf]
        %v12127 = vld [vmem:[%s13 + $0xb4] sm:$0xf]
        %v12128 = vld [vmem:[%s13 + $0xb8] sm:$0xf]
        %v12129 = vld [vmem:[%s13 + $0xbc] sm:$0xf]
        %v12130 = vld [vmem:[%s13 + $0xc0] sm:$0xf]
        %v12131 = vld [vmem:[%s13 + $0xc4] sm:$0xf]
        %v12132 = vld [vmem:[%s13 + $0xc8] sm:$0xf]
        %v12133 = vld [vmem:[%s13 + $0xcc] sm:$0xf]
        %v12134 = vld [vmem:[%s13 + $0xd0] sm:$0xf]
        %v12135 = vld [vmem:[%s13 + $0xd4] sm:$0xf]
        %v12136 = vld [vmem:[%s13 + $0xd8] sm:$0xf]
        %v12137 = vld [vmem:[%s13 + $0xdc] sm:$0xf]
        %v12138 = vld [vmem:[%s13 + $0xe0] sm:$0xf]
        %v12139 = vld [vmem:[%s13 + $0xe4] sm:$0xf]
        %v12140 = vld [vmem:[%s13 + $0xe8] sm:$0xf]
        %v12141 = vld [vmem:[%s13 + $0xec] sm:$0xf]
        %v12142 = vld [vmem:[%s13 + $0xf0] sm:$0xf]
        %v12143 = vld [vmem:[%s13 + $0xf4] sm:$0xf]
        %v12144 = vld [vmem:[%s13 + $0xf8] sm:$0xf]
        %v12145 = vld [vmem:[%s13 + $0xfc] sm:$0xf]
        %v12146 = vld [vmem:[%s14] sm:$0x1]
        %v12211 = vunpack.c.l.b16 %v12082
        %v12212 = vunpack.c.l.b16 %v12083
        %v12213 = vunpack.c.l.b16 %v12084
        %v12214 = vunpack.c.l.b16 %v12085
        %v12215 = vunpack.c.l.b16 %v12086
        %v12216 = vunpack.c.l.b16 %v12087
        %v12217 = vunpack.c.l.b16 %v12088
        %v12218 = vunpack.c.l.b16 %v12089
        %v12219 = vunpack.c.l.b16 %v12090
        %v12220 = vunpack.c.l.b16 %v12091
        %v12221 = vunpack.c.l.b16 %v12092
        %v12222 = vunpack.c.l.b16 %v12093
        %v12223 = vunpack.c.l.b16 %v12094
        %v12224 = vunpack.c.l.b16 %v12095
        %v12225 = vunpack.c.l.b16 %v12096
        %v12226 = vunpack.c.l.b16 %v12097
        %v12227 = vunpack.c.l.b16 %v12098
        %v12228 = vunpack.c.l.b16 %v12099
        %v12229 = vunpack.c.l.b16 %v12100
        %v12230 = vunpack.c.l.b16 %v12101
        %v12231 = vunpack.c.l.b16 %v12102
        %v12232 = vunpack.c.l.b16 %v12103
        %v12233 = vunpack.c.l.b16 %v12104
        %v12234 = vunpack.c.l.b16 %v12105
        %v12235 = vunpack.c.l.b16 %v12106
        %v12236 = vunpack.c.l.b16 %v12107
        %v12237 = vunpack.c.l.b16 %v12108
        %v12238 = vunpack.c.l.b16 %v12109
        %v12239 = vunpack.c.l.b16 %v12110
        %v12240 = vunpack.c.l.b16 %v12111
        %v12241 = vunpack.c.l.b16 %v12112
        %v12242 = vunpack.c.l.b16 %v12113
        %v12243 = vunpack.c.l.b16 %v12114
        %v12244 = vunpack.c.l.b16 %v12115
        %v12245 = vunpack.c.l.b16 %v12116
        %v12246 = vunpack.c.l.b16 %v12117
        %v12247 = vunpack.c.l.b16 %v12118
        %v12248 = vunpack.c.l.b16 %v12119
        %v12249 = vunpack.c.l.b16 %v12120
        %v12250 = vunpack.c.l.b16 %v12121
        %v12251 = vunpack.c.l.b16 %v12122
        %v12252 = vunpack.c.l.b16 %v12123
        %v12253 = vunpack.c.l.b16 %v12124
        %v12254 = vunpack.c.l.b16 %v12125
        %v12255 = vunpack.c.l.b16 %v12126
        %v12256 = vunpack.c.l.b16 %v12127
        %v12257 = vunpack.c.l.b16 %v12128
        %v12258 = vunpack.c.l.b16 %v12129
        %v12259 = vunpack.c.l.b16 %v12130
        %v12260 = vunpack.c.l.b16 %v12131
        %v12261 = vunpack.c.l.b16 %v12132
        %v12262 = vunpack.c.l.b16 %v12133
        %v12263 = vunpack.c.l.b16 %v12134
        %v12264 = vunpack.c.l.b16 %v12135
        %v12265 = vunpack.c.l.b16 %v12136
        %v12266 = vunpack.c.l.b16 %v12137
        %v12267 = vunpack.c.l.b16 %v12138
        %v12268 = vunpack.c.l.b16 %v12139
        %v12269 = vunpack.c.l.b16 %v12140
        %v12270 = vunpack.c.l.b16 %v12141
        %v12271 = vunpack.c.l.b16 %v12142
        %v12272 = vunpack.c.l.b16 %v12143
        %v12273 = vunpack.c.l.b16 %v12144
        %v12274 = vunpack.c.l.b16 %v12145
        %v12275 = vpack.c.b16 %v12212, %v12211
        %v12276 = vpack.c.b16 %v12214, %v12213
        %v12277 = vpack.c.b16 %v12216, %v12215
        %v12278 = vpack.c.b16 %v12218, %v12217
        %v12279 = vpack.c.b16 %v12220, %v12219
        %v12280 = vpack.c.b16 %v12222, %v12221
        %v12281 = vpack.c.b16 %v12224, %v12223
        %v12282 = vpack.c.b16 %v12226, %v12225
        %v12283 = vpack.c.b16 %v12228, %v12227
        %v12284 = vpack.c.b16 %v12230, %v12229
        %v12285 = vpack.c.b16 %v12232, %v12231
        %v12286 = vpack.c.b16 %v12234, %v12233
        %v12287 = vpack.c.b16 %v12236, %v12235
        %v12288 = vpack.c.b16 %v12238, %v12237
        %v12289 = vpack.c.b16 %v12240, %v12239
        %v12290 = vpack.c.b16 %v12242, %v12241
        %v12291 = vpack.c.b16 %v12244, %v12243
        %v12292 = vpack.c.b16 %v12246, %v12245
        %v12293 = vpack.c.b16 %v12248, %v12247
        %v12294 = vpack.c.b16 %v12250, %v12249
        %v12295 = vpack.c.b16 %v12252, %v12251
        %v12296 = vpack.c.b16 %v12254, %v12253
        %v12297 = vpack.c.b16 %v12256, %v12255
        %v12298 = vpack.c.b16 %v12258, %v12257
        %v12299 = vpack.c.b16 %v12260, %v12259
        %v12300 = vpack.c.b16 %v12262, %v12261
        %v12301 = vpack.c.b16 %v12264, %v12263
        %v12302 = vpack.c.b16 %v12266, %v12265
        %v12303 = vpack.c.b16 %v12268, %v12267
        %v12304 = vpack.c.b16 %v12270, %v12269
        %v12305 = vpack.c.b16 %v12272, %v12271
        %v12306 = vpack.c.b16 %v12274, %v12273
        %12339 = vmatprep.subr.bf16.mxu0 0
        %12340 = vmatpush1.bf16.msra.mxu0 %v12275
        %12341 = vmatprep.subr.bf16.mxu0 0
        %12342 = vmatpush1.bf16.msra.mxu0 %v12276
        %12343 = vmatprep.subr.bf16.mxu0 0
        %12344 = vmatpush1.bf16.msra.mxu0 %v12277
        %12345 = vmatprep.subr.bf16.mxu0 0
        %12346 = vmatpush1.bf16.msra.mxu0 %v12278
        %12347 = vmatprep.subr.bf16.mxu0 0
        %12348 = vmatpush1.bf16.msra.mxu0 %v12279
        %12349 = vmatprep.subr.bf16.mxu0 0
        %12350 = vmatpush1.bf16.msra.mxu0 %v12280
        %12351 = vmatprep.subr.bf16.mxu0 0
        %12352 = vmatpush1.bf16.msra.mxu0 %v12281
        %12353 = vmatprep.subr.bf16.mxu0 0
        %12354 = vmatpush1.bf16.msra.mxu0 %v12282
        %12355 = vmatprep.subr.bf16.mxu0 0
        %12356 = vmatpush1.bf16.msra.mxu0 %v12283
        %12357 = vmatprep.subr.bf16.mxu0 0
        %12358 = vmatpush1.bf16.msra.mxu0 %v12284
        %12359 = vmatprep.subr.bf16.mxu0 0
        %12360 = vmatpush1.bf16.msra.mxu0 %v12285
        %12361 = vmatprep.subr.bf16.mxu0 0
        %12362 = vmatpush1.bf16.msra.mxu0 %v12286
        %12363 = vmatprep.subr.bf16.mxu0 0
        %12364 = vmatpush1.bf16.msra.mxu0 %v12287
        %12365 = vmatprep.subr.bf16.mxu0 0
        %12366 = vmatpush1.bf16.msra.mxu0 %v12288
        %12367 = vmatprep.subr.bf16.mxu0 0
        %12368 = vmatpush1.bf16.msra.mxu0 %v12289
        %12369 = vmatprep.subr.bf16.mxu0 0
        %12370 = vmatpush1.bf16.msra.mxu0 %v12290
        %12371 = vmatprep.mubr.bf16.mxu0 %v12079
        %12372 = vmatmul.mubr.bf16.gmra.mrb[0].mxu0 %v12078
        %v12373 = vpop.f32.mrb[0].mxu0
        %v12374 = vadd.f32 %v12146, %v12373
        %v12375 = vpop.f32.mrb[0].mxu0
        %v12376 = vpop.f32.mrb[0].mxu0
        %v12377 = vpop.f32.mrb[0].mxu0
        %12378 = vdwg.mxu0
        %12379 = vmatprep.subr.bf16.mxu0 0
        %12380 = vmatpush1.bf16.msra.mxu0 %v12291
        %12381 = vmatprep.subr.bf16.mxu0 0
        %12382 = vmatpush1.bf16.msra.mxu0 %v12292
        %12383 = vmatprep.subr.bf16.mxu0 0
        %12384 = vmatpush1.bf16.msra.mxu0 %v12293
        %12385 = vmatprep.subr.bf16.mxu0 0
        %12386 = vmatpush1.bf16.msra.mxu0 %v12294
        %12387 = vmatprep.subr.bf16.mxu0 0
        %12388 = vmatpush1.bf16.msra.mxu0 %v12295
        %12389 = vmatprep.subr.bf16.mxu0 0
        %12390 = vmatpush1.bf16.msra.mxu0 %v12296
        %12391 = vmatprep.subr.bf16.mxu0 0
        %12392 = vmatpush1.bf16.msra.mxu0 %v12297
        %12393 = vmatprep.subr.bf16.mxu0 0
        %12394 = vmatpush1.bf16.msra.mxu0 %v12298
        %12395 = vmatprep.subr.bf16.mxu0 0
        %12396 = vmatpush1.bf16.msra.mxu0 %v12299
        %12397 = vmatprep.subr.bf16.mxu0 0
        %12398 = vmatpush1.bf16.msra.mxu0 %v12300
        %12399 = vmatprep.subr.bf16.mxu0 0
        %12400 = vmatpush1.bf16.msra.mxu0 %v12301
        %12401 = vmatprep.subr.bf16.mxu0 0
        %12402 = vmatpush1.bf16.msra.mxu0 %v12302
        %12403 = vmatprep.subr.bf16.mxu0 0
        %12404 = vmatpush1.bf16.msra.mxu0 %v12303
        %12405 = vmatprep.subr.bf16.mxu0 0
        %12406 = vmatpush1.bf16.msra.mxu0 %v12304
        %12407 = vmatprep.subr.bf16.mxu0 0
        %12408 = vmatpush1.bf16.msra.mxu0 %v12305
        %12409 = vmatprep.subr.bf16.mxu0 0
        %12410 = vmatpush1.bf16.msra.mxu0 %v12306
        %12411 = vmatprep.mubr.bf16.mxu0 %v12081
        %12412 = vmatmul.mubr.bf16.gmra.mrb[0].mxu0 %v12080
        %v12413 = vpop.f32.mrb[0].mxu0
        %v12414 = vadd.f32 %v12374, %v12413
        %v12415 = vpop.f32.mrb[0].mxu0
        %v12416 = vpop.f32.mrb[0].mxu0
        %v12417 = vpop.f32.mrb[0].mxu0
        %12418 = vdwg.mxu0
        %12419 = vst [vmem:[%s486] sm:$0x1] %v12414
        %s12420 = sand.u32 %s357, 1
        %s12421 = scalar_lea.sflag [#allocation3], %s12420
        %s12422 = sand.u32 %s357, 1
        %s12423 = scalar_lea.vmem [#allocation2], %s12422
        // Predicated region
        $region81: #{_lambda_.1} parent=79 // pred_check
          %p12424 = pneg %p367
        $region82: #{_lambda_.1} parent=79 // pred_check_branch
          %12426 = sbr.rel (%p12424) target = $region84
        $region83: #{_lambda_.1} parent=79 // pred_region
          %s12428 = ssub.s32 16, 16
          %12429 = vsyncadd %s12421, %s12428
          %s12430 = smul.addr %s29, 16
          %s12431 = scalar_lea.hbm %s15, %s12430
          %s12433 = sshll.u32 %s12423, 4
          %s12434 = int_to_ptr.vmem [resolvable:$true] %s12433
          %12436 = dma.vmem_to_hbm [thread:$0]  %s12434, 16, %s12431, %s12421
        $region84: #{_lambda_.1} parent=79 // pred_fallthru
          _
      $region80: #{_lambda_.1} parent=5 // pred_fallthru
        _
      %p12437 = scmp.le.s32.totalorder 2, %s24
      // Predicated region
      $region85: #{_lambda_.1} parent=5 // pred_check
        %p12438 = pneg %p12437
      $region86: #{_lambda_.1} parent=5 // pred_check_branch
        %12440 = sbr.rel (%p12438) target = $region88
      $region87: #{_lambda_.1} parent=5 // pred_region
        %s12441 = ssub.s32 %s24, 2
        // Predicated region
        $region89: #{_lambda_.1} parent=87 // pred_check
          %p12442 = pneg %p373
        $region90: #{_lambda_.1} parent=87 // pred_check_branch
          %12444 = sbr.rel (%p12442) target = $region92
        $region91: #{_lambda_.1} parent=87 // pred_region
          %s12445 = sand.u32 %s358, 1
          %s12446 = scalar_lea.sflag [#allocation3], %s12445
          %s12447 = sand.u32 %s358, 1
          %s12448 = scalar_lea.vmem [#allocation2], %s12447
          %12449 = dma.done %s12446, 16
        $region92: #{_lambda_.1} parent=87 // pred_fallthru
          _
      $region88: #{_lambda_.1} parent=5 // pred_fallthru
        _
    $region6: #{_lambda_.1} parent=1 // loop_footer
      %s28 = sadd.s32 1, %s24
    $region7: #{_lambda_.1} parent=1 // loop_footer_branch
      %23 = sbr.rel target = $region3
    $region8: #{_lambda_.1} parent=1 // loop_exit
      _
    %12450 = vsyncpa [#allocation3], 1
    %s12451 = scalar_lea.sflag [#allocation3], 1
    %12452 = vsyncpa %s12451, 1

</llo_original>
